<compile_context>
chip_gen: v7x
topology: tpu7x:2x2x1
jax: 0.10.0
libtpu: 0.0.40
codegen_flags: <defaults>
</compile_context>

<pallas_src>
import functools

import jax
import jax.numpy as jnp
from jax.experimental import pallas as pl
from jax.experimental.pallas import tpu as pltpu

CPAD = 128     # channel padding (lane width)


def _round_up(x, m):
    return (x + m - 1) // m * m


def residual_block_kernel(x_ref, mask_ref, w1s_ref, w2_ref, w3_ref, bn_ref,
                          o_ref, slab_ref, *, N, H, W, margin, eps):
    Wp = W + 2
    Lr = x_ref.shape[0]                # rows of the flat padded spatial grid
    inv_n = 1.0 / float(N * H * W)     # BN stats are over the real pixels only

    mask = mask_ref[...]               # (Lr, 1): 1 at real pixels, 0 elsewhere

    def bn_coeffs(h_masked, g, b):
        # one reduction pass: per-channel sum & sum-of-squares of the masked
        # activations (padding rows are exactly zero -> contribute nothing)
        s = jnp.sum(h_masked, axis=0, keepdims=True)
        ss = jnp.sum(h_masked * h_masked, axis=0, keepdims=True)
        mu = s * inv_n
        var = ss * inv_n - mu * mu
        a = g * jax.lax.rsqrt(var + eps)
        c = b - mu * a
        return a, c                    # (1, CPAD) each

    g1, b1 = bn_ref[0:1, :], bn_ref[1:2, :]
    g2, b2 = bn_ref[2:3, :], bn_ref[3:4, :]
    g3, b3 = bn_ref[4:5, :], bn_ref[5:6, :]

    x = x_ref[...]                     # (Lr, CPAD) f32, read exactly once

    # ---- fused conv1 (1x1) + shortcut (1x1): one wide matmul --------------
    h1sc = jnp.dot(x, w1s_ref[...], preferred_element_type=jnp.float32)
    h1 = h1sc[:, :CPAD]                # conv1 out (padding rows are exactly 0)
    sc = h1sc[:, CPAD:]                # shortcut  (padding rows are exactly 0)

    # ---- bn1 + relu; re-zero the padding rows for the 3x3 conv ------------
    a1, c1 = bn_coeffs(h1, g1, b1)
    m1 = jnp.maximum(h1 * a1 + c1, 0.0) * mask            # (Lr, CPAD)

    # ---- conv2 (3x3, pad=1): sublane-shifted taps over a flat padded slab -
    # only the slab margins need zeroing (they are read only for rows that
    # get discarded, but must be finite so the mask-multiply can kill them)
    slab_ref[0:margin, :] = jnp.zeros((margin, CPAD), jnp.float32)
    slab_ref[margin + Lr:margin + Lr + margin, :] = jnp.zeros(
        (margin, CPAD), jnp.float32)
    slab_ref[pl.ds(margin, Lr), :] = m1

    base = margin - Wp - 1             # tap (ky,kx) starts at base + ky*Wp + kx
    acc = jnp.dot(slab_ref[pl.ds(base, Lr), :], w2_ref[0],
                  preferred_element_type=jnp.float32)
    for t in range(1, 9):              # back-to-back dots into one accumulator
        ky, kx = divmod(t, 3)
        acc = acc + jnp.dot(slab_ref[pl.ds(base + ky * Wp + kx, Lr), :],
                            w2_ref[t], preferred_element_type=jnp.float32)
    q2 = acc * mask                    # padding rows of acc are junk -> zero

    # ---- bn2 + relu --------------------------------------------------------
    a2, c2 = bn_coeffs(q2, g2, b2)
    h2 = jnp.maximum(q2 * a2 + c2, 0.0)

    # ---- conv3 (1x1) + bn3 (no relu) ---------------------------------------
    h3 = jnp.dot(h2, w3_ref[...], preferred_element_type=jnp.float32) * mask
    a3, c3 = bn_coeffs(h3, g3, b3)

    # ---- residual add + relu: lane-dense (Lr, 128) store -------------------
    o_ref[...] = jnp.maximum(h3 * a3 + c3 + sc, 0.0)


@functools.partial(jax.jit, static_argnames=("eps",))
def residual_block(x_nchw, params, eps=1e-5):
    N, Cin, H, W = x_nchw.shape
    Cout = params["w3_pt"].shape[0]
    Hp, Wp = H + 2, W + 2
    L = N * Hp * Wp
    Lr = _round_up(L, 8)               # sublane-aligned row count
    margin = _round_up(Wp + 1, 8)      # slab margin, covers the largest tap

    # --- activations: NCHW -> NHWC, zero-pad spatial by 1, pad channels to
    #     128, flatten to a lane-dense (Lr, 128) slab ------------------------
    x = jnp.transpose(x_nchw, (0, 2, 3, 1)).astype(jnp.float32)
    x = jnp.pad(x, ((0, 0), (1, 1), (1, 1), (0, CPAD - Cin)))
    x2d = jnp.pad(x.reshape(L, CPAD), ((0, Lr - L), (0, 0)))

    # interior mask: 1 at real pixels, 0 at the zero-padding / alignment rows
    mask = jnp.pad(jnp.ones((N, H, W), jnp.float32),
                   ((0, 0), (1, 1), (1, 1))).reshape(L, 1)
    mask = jnp.pad(mask, ((0, Lr - L), (0, 0)))

    # --- weights: matmul layout (C_in, C_out), zero-padded to 128 ------------
    def pad_mat(w):
        ci, co = w.shape
        return jnp.pad(w, ((0, CPAD - ci), (0, CPAD - co)))

    w1 = pad_mat(params["w1_pt"][:, :, 0, 0].T)              # conv1
    ws = pad_mat(params["ws_pt"][:, :, 0, 0].T)              # shortcut
    w1s = jnp.concatenate([w1, ws], axis=1)                  # (CPAD, 2*CPAD)
    w2 = jnp.transpose(params["w2_pt"], (2, 3, 1, 0)).reshape(9, Cin, Cin)
    w2 = jnp.pad(w2, ((0, 0), (0, CPAD - Cin), (0, CPAD - Cin)))
    w3 = pad_mat(params["w3_pt"][:, :, 0, 0].T)

    # BN gamma/beta packed into one (8, 128) slab; padded gammas/betas are 0 so
    # padded channels stay exactly 0 through every BN stage.
    def pad_vec(v):
        return jnp.pad(v, (0, CPAD - v.shape[0]))

    bn = jnp.stack([pad_vec(params["g1"]), pad_vec(params["b1"]),
                    pad_vec(params["g2"]), pad_vec(params["b2"]),
                    pad_vec(params["g3"]), pad_vec(params["b3"])])
    bn = jnp.pad(bn, ((0, 2), (0, 0)))                       # (8, CPAD)

    kernel = functools.partial(residual_block_kernel, N=N, H=H, W=W,
                               margin=margin, eps=eps)

    def full_spec(shape):
        nd = len(shape)
        return pl.BlockSpec(shape, lambda i, _nd=nd: (0,) * _nd)

    args = (x2d, mask, w1s, w2, w3, bn)
    out2d = pl.pallas_call(
        kernel,
        out_shape=jax.ShapeDtypeStruct((Lr, CPAD), jnp.float32),
        grid=(1,),
        in_specs=[full_spec(a.shape) for a in args],
        out_specs=full_spec((Lr, CPAD)),
        scratch_shapes=[pltpu.VMEM((margin + Lr + margin, CPAD), jnp.float32)],
        compiler_params=pltpu.CompilerParams(
            dimension_semantics=("arbitrary",),
            vmem_limit_bytes=32 * 1024 * 1024),
    )(*args)

    out = out2d[:L].reshape(N, Hp, Wp, CPAD)[:, 1:H + 1, 1:W + 1, :Cout]
    return jnp.transpose(out, (0, 3, 1, 2))


# ----------------------- pure-JAX reference (NCHW) -----------------------
def residual_block_ref(x, p, eps=1e-5):
    def conv(x, w, pad):
        return jax.lax.conv_general_dilated(
            x, w, (1, 1), ((pad, pad), (pad, pad)),
            dimension_numbers=("NCHW", "OIHW", "NCHW"))

    def bn(x, g, b):
        mu = x.mean(axis=(0, 2, 3), keepdims=True)
        var = ((x - mu) ** 2).mean(axis=(0, 2, 3), keepdims=True)
        return ((x - mu) / jnp.sqrt(var + eps) * g.reshape(1, -1, 1, 1)
                + b.reshape(1, -1, 1, 1))

    h = jax.nn.relu(bn(conv(x, p["w1_pt"], 0), p["g1"], p["b1"]))
    h = jax.nn.relu(bn(conv(h, p["w2_pt"], 1), p["g2"], p["b2"]))
    h = bn(conv(h, p["w3_pt"], 0), p["g3"], p["b3"])
    sc = conv(x, p["ws_pt"], 0)
    return jax.nn.relu(h + sc)


def make_params(key, cin, cout):
    ks = jax.random.split(key, 10)
    # PyTorch-layout conv weights (O, I, kH, kW), no bias (bias=False in module)
    return dict(
        w1_pt=jax.random.normal(ks[0], (cin, cin, 1, 1), jnp.float32) * 0.3,
        w2_pt=jax.random.normal(ks[1], (cin, cin, 3, 3), jnp.float32) * 0.2,
        w3_pt=jax.random.normal(ks[2], (cout, cin, 1, 1), jnp.float32) * 0.3,
        ws_pt=jax.random.normal(ks[3], (cout, cin, 1, 1), jnp.float32) * 0.3,
        g1=1.0 + 0.1 * jax.random.normal(ks[4], (cin,), jnp.float32),
        b1=0.1 * jax.random.normal(ks[5], (cin,), jnp.float32),
        g2=1.0 + 0.1 * jax.random.normal(ks[6], (cin,), jnp.float32),
        b2=0.1 * jax.random.normal(ks[7], (cin,), jnp.float32),
        g3=1.0 + 0.1 * jax.random.normal(ks[8], (cout,), jnp.float32),
        b3=0.1 * jax.random.normal(ks[9], (cout,), jnp.float32),
    )


if __name__ == "__main__":
    N, Cin, Cout, H, W = 2, 4, 8, 16, 16
    key = jax.random.PRNGKey(0)
    kx, kp = jax.random.split(key)
    x = jax.random.normal(kx, (N, Cin, H, W), jnp.float32)
    params = make_params(kp, Cin, Cout)

    out = jax.block_until_ready(residual_block(x, params))
    ref = jax.block_until_ready(residual_block_ref(x, params))

    assert out.shape == (N, Cout, H, W)
    assert jnp.allclose(out, ref, atol=2e-4, rtol=2e-4), (
        float(jnp.max(jnp.abs(out - ref))))
    print("KERNEL_OK")
</pallas_src>

<mosaic_0001>
module attributes {stable_mosaic.version = 11 : i64} {
  func.func @residual_block_kernel(%arg0: i32, %arg1: memref<648x128xf32, #tpu.memory_space<vmem>>, %arg2: memref<648x1xf32, #tpu.memory_space<vmem>>, %arg3: memref<128x256xf32, #tpu.memory_space<vmem>>, %arg4: memref<9x128x128xf32, #tpu.memory_space<vmem>>, %arg5: memref<128x128xf32, #tpu.memory_space<vmem>>, %arg6: memref<8x128xf32, #tpu.memory_space<vmem>>, %arg7: memref<648x128xf32, #tpu.memory_space<vmem>>, %arg8: memref<696x128xf32, #tpu.memory_space<vmem>>) attributes {dimension_semantics = [#tpu.dimension_semantics<arbitrary>], iteration_bounds = array<i64: 1>, scalar_prefetch = 0 : i64, scratch_operands = 1 : i64, tpu.core_type = #tpu.core_type<tc>, window_params = [{pipeline_mode = #tpu.pipeline_mode<synchronous>, transform_indices = @transform_0, window_bounds = array<i64: 648, 128>}, {pipeline_mode = #tpu.pipeline_mode<synchronous>, transform_indices = @transform_1, window_bounds = array<i64: 648, 1>}, {pipeline_mode = #tpu.pipeline_mode<synchronous>, transform_indices = @transform_2, window_bounds = array<i64: 128, 256>}, {pipeline_mode = #tpu.pipeline_mode<synchronous>, transform_indices = @transform_3, window_bounds = array<i64: 9, 128, 128>}, {pipeline_mode = #tpu.pipeline_mode<synchronous>, transform_indices = @transform_4, window_bounds = array<i64: 128, 128>}, {pipeline_mode = #tpu.pipeline_mode<synchronous>, transform_indices = @transform_5, window_bounds = array<i64: 8, 128>}, {pipeline_mode = #tpu.pipeline_mode<synchronous>, transform_indices = @transform_6, window_bounds = array<i64: 648, 128>}]} {
    %c0 = arith.constant 0 : index
    %c0_0 = arith.constant 0 : index
    %0 = vector.load %arg2[%c0, %c0_0] : memref<648x1xf32, #tpu.memory_space<vmem>>, vector<648x1xf32>
    %c0_1 = arith.constant 0 : index
    %c0_2 = arith.constant 0 : index
    %1 = vector.load %arg6[%c0_1, %c0_2] : memref<8x128xf32, #tpu.memory_space<vmem>>, vector<1x128xf32>
    %c1 = arith.constant 1 : index
    %c0_3 = arith.constant 0 : index
    %2 = vector.load %arg6[%c1, %c0_3] : memref<8x128xf32, #tpu.memory_space<vmem>>, vector<1x128xf32>
    %c2 = arith.constant 2 : index
    %c0_4 = arith.constant 0 : index
    %3 = vector.load %arg6[%c2, %c0_4] : memref<8x128xf32, #tpu.memory_space<vmem>>, vector<1x128xf32>
    %c3 = arith.constant 3 : index
    %c0_5 = arith.constant 0 : index
    %4 = vector.load %arg6[%c3, %c0_5] : memref<8x128xf32, #tpu.memory_space<vmem>>, vector<1x128xf32>
    %c4 = arith.constant 4 : index
    %c0_6 = arith.constant 0 : index
    %5 = vector.load %arg6[%c4, %c0_6] : memref<8x128xf32, #tpu.memory_space<vmem>>, vector<1x128xf32>
    %c5 = arith.constant 5 : index
    %c0_7 = arith.constant 0 : index
    %6 = vector.load %arg6[%c5, %c0_7] : memref<8x128xf32, #tpu.memory_space<vmem>>, vector<1x128xf32>
    %c0_8 = arith.constant 0 : index
    %c0_9 = arith.constant 0 : index
    %7 = vector.load %arg1[%c0_8, %c0_9] : memref<648x128xf32, #tpu.memory_space<vmem>>, vector<648x128xf32>
    %c0_10 = arith.constant 0 : index
    %c0_11 = arith.constant 0 : index
    %8 = vector.load %arg3[%c0_10, %c0_11] : memref<128x256xf32, #tpu.memory_space<vmem>>, vector<128x256xf32>
    %cst = arith.constant dense<0.000000e+00> : vector<648x256xf32>
    %9 = tpu.matmul %7, %8, %cst {dimension_numbers = #tpu.dot_dimension_numbers<[1], [0], [0], [1], [0, 0, 1, 1], [], []>} : vector<648x128xf32>, vector<128x256xf32>, vector<648x256xf32> -> vector<648x256xf32>
    %10 = vector.extract_strided_slice %9 {offsets = [0, 0], sizes = [648, 128], strides = [1, 1]} : vector<648x256xf32> to vector<648x128xf32>
    %11 = vector.extract_strided_slice %9 {offsets = [0, 128], sizes = [648, 128], strides = [1, 1]} : vector<648x256xf32> to vector<648x128xf32>
    %cst_12 = arith.constant dense<0.000000e+00> : vector<128xf32>
    %12 = vector.multi_reduction <add>, %10, %cst_12 [0] : vector<648x128xf32> to vector<128xf32>
    %13 = vector.shape_cast %12 : vector<128xf32> to vector<1x128xf32>
    %14 = arith.mulf %10, %10 : vector<648x128xf32>
    %cst_13 = arith.constant dense<0.000000e+00> : vector<128xf32>
    %15 = vector.multi_reduction <add>, %14, %cst_13 [0] : vector<648x128xf32> to vector<128xf32>
    %16 = vector.shape_cast %15 : vector<128xf32> to vector<1x128xf32>
    %cst_14 = arith.constant 0.001953125 : f32
    %17 = vector.broadcast %cst_14 : f32 to vector<1x128xf32>
    %18 = arith.mulf %13, %17 : vector<1x128xf32>
    %cst_15 = arith.constant 0.001953125 : f32
    %19 = vector.broadcast %cst_15 : f32 to vector<1x128xf32>
    %20 = arith.mulf %16, %19 : vector<1x128xf32>
    %21 = arith.mulf %18, %18 : vector<1x128xf32>
    %22 = arith.subf %20, %21 : vector<1x128xf32>
    %cst_16 = arith.constant 9.99999974E-6 : f32
    %23 = vector.broadcast %cst_16 : f32 to vector<1x128xf32>
    %24 = arith.addf %22, %23 : vector<1x128xf32>
    %25 = math.rsqrt %24 : vector<1x128xf32>
    %26 = arith.mulf %1, %25 : vector<1x128xf32>
    %27 = arith.mulf %18, %26 : vector<1x128xf32>
    %28 = arith.subf %2, %27 : vector<1x128xf32>
    %29 = vector.broadcast %26 : vector<1x128xf32> to vector<648x128xf32>
    %30 = arith.mulf %10, %29 : vector<648x128xf32>
    %31 = vector.broadcast %28 : vector<1x128xf32> to vector<648x128xf32>
    %32 = arith.addf %30, %31 : vector<648x128xf32>
    %cst_17 = arith.constant 0.000000e+00 : f32
    %33 = vector.broadcast %cst_17 : f32 to vector<648x128xf32>
    %34 = arith.maximumf %32, %33 : vector<648x128xf32>
    %35 = vector.broadcast %0 : vector<648x1xf32> to vector<648x128xf32>
    %36 = arith.mulf %34, %35 : vector<648x128xf32>
    %cst_18 = arith.constant 0.000000e+00 : f32
    %37 = vector.broadcast %cst_18 : f32 to vector<24x128xf32>
    %c0_19 = arith.constant 0 : index
    %c0_20 = arith.constant 0 : index
    %38 = vector.load %arg8[%c0_19, %c0_20] : memref<696x128xf32, #tpu.memory_space<vmem>>, vector<24x128xf32>
    tpu.vector_store %arg8[%c0_19, %c0_20], %37 {strides = array<i32>} : memref<696x128xf32, #tpu.memory_space<vmem>>, vector<24x128xf32>,
    %cst_21 = arith.constant 0.000000e+00 : f32
    %39 = vector.broadcast %cst_21 : f32 to vector<24x128xf32>
    %c672 = arith.constant 672 : index
    %c0_22 = arith.constant 0 : index
    %40 = vector.load %arg8[%c672, %c0_22] : memref<696x128xf32, #tpu.memory_space<vmem>>, vector<24x128xf32>
    tpu.vector_store %arg8[%c672, %c0_22], %39 {strides = array<i32>} : memref<696x128xf32, #tpu.memory_space<vmem>>, vector<24x128xf32>,
    %c24 = arith.constant 24 : index
    %c0_23 = arith.constant 0 : index
    %41 = vector.load %arg8[%c24, %c0_23] : memref<696x128xf32, #tpu.memory_space<vmem>>, vector<648x128xf32>
    tpu.vector_store %arg8[%c24, %c0_23], %36 {strides = array<i32>} : memref<696x128xf32, #tpu.memory_space<vmem>>, vector<648x128xf32>,
    %c5_24 = arith.constant 5 : index
    %c0_25 = arith.constant 0 : index
    %42 = vector.load %arg8[%c5_24, %c0_25] : memref<696x128xf32, #tpu.memory_space<vmem>>, vector<648x128xf32>
    %c0_26 = arith.constant 0 : index
    %c0_27 = arith.constant 0 : index
    %c0_28 = arith.constant 0 : index
    %43 = vector.load %arg4[%c0_26, %c0_27, %c0_28] : memref<9x128x128xf32, #tpu.memory_space<vmem>>, vector<1x128x128xf32>
    %44 = vector.shape_cast %43 : vector<1x128x128xf32> to vector<128x128xf32>
    %cst_29 = arith.constant dense<0.000000e+00> : vector<648x128xf32>
    %45 = tpu.matmul %42, %44, %cst_29 {dimension_numbers = #tpu.dot_dimension_numbers<[1], [0], [0], [1], [0, 0, 1, 1], [], []>} : vector<648x128xf32>, vector<128x128xf32>, vector<648x128xf32> -> vector<648x128xf32>
    %c6 = arith.constant 6 : index
    %c0_30 = arith.constant 0 : index
    %46 = vector.load %arg8[%c6, %c0_30] : memref<696x128xf32, #tpu.memory_space<vmem>>, vector<648x128xf32>
    %c1_31 = arith.constant 1 : index
    %c0_32 = arith.constant 0 : index
    %c0_33 = arith.constant 0 : index
    %47 = vector.load %arg4[%c1_31, %c0_32, %c0_33] : memref<9x128x128xf32, #tpu.memory_space<vmem>>, vector<1x128x128xf32>
    %48 = vector.shape_cast %47 : vector<1x128x128xf32> to vector<128x128xf32>
    %cst_34 = arith.constant dense<0.000000e+00> : vector<648x128xf32>
    %49 = tpu.matmul %46, %48, %cst_34 {dimension_numbers = #tpu.dot_dimension_numbers<[1], [0], [0], [1], [0, 0, 1, 1], [], []>} : vector<648x128xf32>, vector<128x128xf32>, vector<648x128xf32> -> vector<648x128xf32>
    %50 = arith.addf %45, %49 : vector<648x128xf32>
    %c7 = arith.constant 7 : index
    %c0_35 = arith.constant 0 : index
    %51 = vector.load %arg8[%c7, %c0_35] : memref<696x128xf32, #tpu.memory_space<vmem>>, vector<648x128xf32>
    %c2_36 = arith.constant 2 : index
    %c0_37 = arith.constant 0 : index
    %c0_38 = arith.constant 0 : index
    %52 = vector.load %arg4[%c2_36, %c0_37, %c0_38] : memref<9x128x128xf32, #tpu.memory_space<vmem>>, vector<1x128x128xf32>
    %53 = vector.shape_cast %52 : vector<1x128x128xf32> to vector<128x128xf32>
    %cst_39 = arith.constant dense<0.000000e+00> : vector<648x128xf32>
    %54 = tpu.matmul %51, %53, %cst_39 {dimension_numbers = #tpu.dot_dimension_numbers<[1], [0], [0], [1], [0, 0, 1, 1], [], []>} : vector<648x128xf32>, vector<128x128xf32>, vector<648x128xf32> -> vector<648x128xf32>
    %55 = arith.addf %50, %54 : vector<648x128xf32>
    %c23 = arith.constant 23 : index
    %c0_40 = arith.constant 0 : index
    %56 = vector.load %arg8[%c23, %c0_40] : memref<696x128xf32, #tpu.memory_space<vmem>>, vector<648x128xf32>
    %c3_41 = arith.constant 3 : index
    %c0_42 = arith.constant 0 : index
    %c0_43 = arith.constant 0 : index
    %57 = vector.load %arg4[%c3_41, %c0_42, %c0_43] : memref<9x128x128xf32, #tpu.memory_space<vmem>>, vector<1x128x128xf32>
    %58 = vector.shape_cast %57 : vector<1x128x128xf32> to vector<128x128xf32>
    %cst_44 = arith.constant dense<0.000000e+00> : vector<648x128xf32>
    %59 = tpu.matmul %56, %58, %cst_44 {dimension_numbers = #tpu.dot_dimension_numbers<[1], [0], [0], [1], [0, 0, 1, 1], [], []>} : vector<648x128xf32>, vector<128x128xf32>, vector<648x128xf32> -> vector<648x128xf32>
    %60 = arith.addf %55, %59 : vector<648x128xf32>
    %c24_45 = arith.constant 24 : index
    %c0_46 = arith.constant 0 : index
    %61 = vector.load %arg8[%c24_45, %c0_46] : memref<696x128xf32, #tpu.memory_space<vmem>>, vector<648x128xf32>
    %c4_47 = arith.constant 4 : index
    %c0_48 = arith.constant 0 : index
    %c0_49 = arith.constant 0 : index
    %62 = vector.load %arg4[%c4_47, %c0_48, %c0_49] : memref<9x128x128xf32, #tpu.memory_space<vmem>>, vector<1x128x128xf32>
    %63 = vector.shape_cast %62 : vector<1x128x128xf32> to vector<128x128xf32>
    %cst_50 = arith.constant dense<0.000000e+00> : vector<648x128xf32>
    %64 = tpu.matmul %61, %63, %cst_50 {dimension_numbers = #tpu.dot_dimension_numbers<[1], [0], [0], [1], [0, 0, 1, 1], [], []>} : vector<648x128xf32>, vector<128x128xf32>, vector<648x128xf32> -> vector<648x128xf32>
    %65 = arith.addf %60, %64 : vector<648x128xf32>
    %c25 = arith.constant 25 : index
    %c0_51 = arith.constant 0 : index
    %66 = vector.load %arg8[%c25, %c0_51] : memref<696x128xf32, #tpu.memory_space<vmem>>, vector<648x128xf32>
    %c5_52 = arith.constant 5 : index
    %c0_53 = arith.constant 0 : index
    %c0_54 = arith.constant 0 : index
    %67 = vector.load %arg4[%c5_52, %c0_53, %c0_54] : memref<9x128x128xf32, #tpu.memory_space<vmem>>, vector<1x128x128xf32>
    %68 = vector.shape_cast %67 : vector<1x128x128xf32> to vector<128x128xf32>
    %cst_55 = arith.constant dense<0.000000e+00> : vector<648x128xf32>
    %69 = tpu.matmul %66, %68, %cst_55 {dimension_numbers = #tpu.dot_dimension_numbers<[1], [0], [0], [1], [0, 0, 1, 1], [], []>} : vector<648x128xf32>, vector<128x128xf32>, vector<648x128xf32> -> vector<648x128xf32>
    %70 = arith.addf %65, %69 : vector<648x128xf32>
    %c41 = arith.constant 41 : index
    %c0_56 = arith.constant 0 : index
    %71 = vector.load %arg8[%c41, %c0_56] : memref<696x128xf32, #tpu.memory_space<vmem>>, vector<648x128xf32>
    %c6_57 = arith.constant 6 : index
    %c0_58 = arith.constant 0 : index
    %c0_59 = arith.constant 0 : index
    %72 = vector.load %arg4[%c6_57, %c0_58, %c0_59] : memref<9x128x128xf32, #tpu.memory_space<vmem>>, vector<1x128x128xf32>
    %73 = vector.shape_cast %72 : vector<1x128x128xf32> to vector<128x128xf32>
    %cst_60 = arith.constant dense<0.000000e+00> : vector<648x128xf32>
    %74 = tpu.matmul %71, %73, %cst_60 {dimension_numbers = #tpu.dot_dimension_numbers<[1], [0], [0], [1], [0, 0, 1, 1], [], []>} : vector<648x128xf32>, vector<128x128xf32>, vector<648x128xf32> -> vector<648x128xf32>
    %75 = arith.addf %70, %74 : vector<648x128xf32>
    %c42 = arith.constant 42 : index
    %c0_61 = arith.constant 0 : index
    %76 = vector.load %arg8[%c42, %c0_61] : memref<696x128xf32, #tpu.memory_space<vmem>>, vector<648x128xf32>
    %c7_62 = arith.constant 7 : index
    %c0_63 = arith.constant 0 : index
    %c0_64 = arith.constant 0 : index
    %77 = vector.load %arg4[%c7_62, %c0_63, %c0_64] : memref<9x128x128xf32, #tpu.memory_space<vmem>>, vector<1x128x128xf32>
    %78 = vector.shape_cast %77 : vector<1x128x128xf32> to vector<128x128xf32>
    %cst_65 = arith.constant dense<0.000000e+00> : vector<648x128xf32>
    %79 = tpu.matmul %76, %78, %cst_65 {dimension_numbers = #tpu.dot_dimension_numbers<[1], [0], [0], [1], [0, 0, 1, 1], [], []>} : vector<648x128xf32>, vector<128x128xf32>, vector<648x128xf32> -> vector<648x128xf32>
    %80 = arith.addf %75, %79 : vector<648x128xf32>
    %c43 = arith.constant 43 : index
    %c0_66 = arith.constant 0 : index
    %81 = vector.load %arg8[%c43, %c0_66] : memref<696x128xf32, #tpu.memory_space<vmem>>, vector<648x128xf32>
    %c8 = arith.constant 8 : index
    %c0_67 = arith.constant 0 : index
    %c0_68 = arith.constant 0 : index
    %82 = vector.load %arg4[%c8, %c0_67, %c0_68] : memref<9x128x128xf32, #tpu.memory_space<vmem>>, vector<1x128x128xf32>
    %83 = vector.shape_cast %82 : vector<1x128x128xf32> to vector<128x128xf32>
    %cst_69 = arith.constant dense<0.000000e+00> : vector<648x128xf32>
    %84 = tpu.matmul %81, %83, %cst_69 {dimension_numbers = #tpu.dot_dimension_numbers<[1], [0], [0], [1], [0, 0, 1, 1], [], []>} : vector<648x128xf32>, vector<128x128xf32>, vector<648x128xf32> -> vector<648x128xf32>
    %85 = arith.addf %80, %84 : vector<648x128xf32>
    %86 = vector.broadcast %0 : vector<648x1xf32> to vector<648x128xf32>
    %87 = arith.mulf %85, %86 : vector<648x128xf32>
    %cst_70 = arith.constant dense<0.000000e+00> : vector<128xf32>
    %88 = vector.multi_reduction <add>, %87, %cst_70 [0] : vector<648x128xf32> to vector<128xf32>
    %89 = vector.shape_cast %88 : vector<128xf32> to vector<1x128xf32>
    %90 = arith.mulf %87, %87 : vector<648x128xf32>
    %cst_71 = arith.constant dense<0.000000e+00> : vector<128xf32>
    %91 = vector.multi_reduction <add>, %90, %cst_71 [0] : vector<648x128xf32> to vector<128xf32>
    %92 = vector.shape_cast %91 : vector<128xf32> to vector<1x128xf32>
    %cst_72 = arith.constant 0.001953125 : f32
    %93 = vector.broadcast %cst_72 : f32 to vector<1x128xf32>
    %94 = arith.mulf %89, %93 : vector<1x128xf32>
    %cst_73 = arith.constant 0.001953125 : f32
    %95 = vector.broadcast %cst_73 : f32 to vector<1x128xf32>
    %96 = arith.mulf %92, %95 : vector<1x128xf32>
    %97 = arith.mulf %94, %94 : vector<1x128xf32>
    %98 = arith.subf %96, %97 : vector<1x128xf32>
    %cst_74 = arith.constant 9.99999974E-6 : f32
    %99 = vector.broadcast %cst_74 : f32 to vector<1x128xf32>
    %100 = arith.addf %98, %99 : vector<1x128xf32>
    %101 = math.rsqrt %100 : vector<1x128xf32>
    %102 = arith.mulf %3, %101 : vector<1x128xf32>
    %103 = arith.mulf %94, %102 : vector<1x128xf32>
    %104 = arith.subf %4, %103 : vector<1x128xf32>
    %105 = vector.broadcast %102 : vector<1x128xf32> to vector<648x128xf32>
    %106 = arith.mulf %87, %105 : vector<648x128xf32>
    %107 = vector.broadcast %104 : vector<1x128xf32> to vector<648x128xf32>
    %108 = arith.addf %106, %107 : vector<648x128xf32>
    %cst_75 = arith.constant 0.000000e+00 : f32
    %109 = vector.broadcast %cst_75 : f32 to vector<648x128xf32>
    %110 = arith.maximumf %108, %109 : vector<648x128xf32>
    %c0_76 = arith.constant 0 : index
    %c0_77 = arith.constant 0 : index
    %111 = vector.load %arg5[%c0_76, %c0_77] : memref<128x128xf32, #tpu.memory_space<vmem>>, vector<128x128xf32>
    %cst_78 = arith.constant dense<0.000000e+00> : vector<648x128xf32>
    %112 = tpu.matmul %110, %111, %cst_78 {dimension_numbers = #tpu.dot_dimension_numbers<[1], [0], [0], [1], [0, 0, 1, 1], [], []>} : vector<648x128xf32>, vector<128x128xf32>, vector<648x128xf32> -> vector<648x128xf32>
    %113 = vector.broadcast %0 : vector<648x1xf32> to vector<648x128xf32>
    %114 = arith.mulf %112, %113 : vector<648x128xf32>
    %cst_79 = arith.constant dense<0.000000e+00> : vector<128xf32>
    %115 = vector.multi_reduction <add>, %114, %cst_79 [0] : vector<648x128xf32> to vector<128xf32>
    %116 = vector.shape_cast %115 : vector<128xf32> to vector<1x128xf32>
    %117 = arith.mulf %114, %114 : vector<648x128xf32>
    %cst_80 = arith.constant dense<0.000000e+00> : vector<128xf32>
    %118 = vector.multi_reduction <add>, %117, %cst_80 [0] : vector<648x128xf32> to vector<128xf32>
    %119 = vector.shape_cast %118 : vector<128xf32> to vector<1x128xf32>
    %cst_81 = arith.constant 0.001953125 : f32
    %120 = vector.broadcast %cst_81 : f32 to vector<1x128xf32>
    %121 = arith.mulf %116, %120 : vector<1x128xf32>
    %cst_82 = arith.constant 0.001953125 : f32
    %122 = vector.broadcast %cst_82 : f32 to vector<1x128xf32>
    %123 = arith.mulf %119, %122 : vector<1x128xf32>
    %124 = arith.mulf %121, %121 : vector<1x128xf32>
    %125 = arith.subf %123, %124 : vector<1x128xf32>
    %cst_83 = arith.constant 9.99999974E-6 : f32
    %126 = vector.broadcast %cst_83 : f32 to vector<1x128xf32>
    %127 = arith.addf %125, %126 : vector<1x128xf32>
    %128 = math.rsqrt %127 : vector<1x128xf32>
    %129 = arith.mulf %5, %128 : vector<1x128xf32>
    %130 = arith.mulf %121, %129 : vector<1x128xf32>
    %131 = arith.subf %6, %130 : vector<1x128xf32>
    %132 = vector.broadcast %129 : vector<1x128xf32> to vector<648x128xf32>
    %133 = arith.mulf %114, %132 : vector<648x128xf32>
    %134 = vector.broadcast %131 : vector<1x128xf32> to vector<648x128xf32>
    %135 = arith.addf %133, %134 : vector<648x128xf32>
    %136 = arith.addf %135, %11 : vector<648x128xf32>
    %cst_84 = arith.constant 0.000000e+00 : f32
    %137 = vector.broadcast %cst_84 : f32 to vector<648x128xf32>
    %138 = arith.maximumf %136, %137 : vector<648x128xf32>
    %c0_85 = arith.constant 0 : index
    %c0_86 = arith.constant 0 : index
    %139 = vector.load %arg7[%c0_85, %c0_86] : memref<648x128xf32, #tpu.memory_space<vmem>>, vector<648x128xf32>
    tpu.vector_store %arg7[%c0_85, %c0_86], %138 {strides = array<i32>} : memref<648x128xf32, #tpu.memory_space<vmem>>, vector<648x128xf32>,
    return
  }
  func.func @transform_0(%arg0: i32) -> (i32, i32) {
    %c0_i32 = arith.constant 0 : i32
    %c0_i32_0 = arith.constant 0 : i32
    %c0_i32_1 = arith.constant 0 : i32
    return %c0_i32, %c0_i32_0 : i32, i32
  }
  func.func @transform_1(%arg0: i32) -> (i32, i32) {
    %c0_i32 = arith.constant 0 : i32
    %c0_i32_0 = arith.constant 0 : i32
    %c0_i32_1 = arith.constant 0 : i32
    return %c0_i32, %c0_i32_0 : i32, i32
  }
  func.func @transform_2(%arg0: i32) -> (i32, i32) {
    %c0_i32 = arith.constant 0 : i32
    %c0_i32_0 = arith.constant 0 : i32
    %c0_i32_1 = arith.constant 0 : i32
    return %c0_i32, %c0_i32_0 : i32, i32
  }
  func.func @transform_3(%arg0: i32) -> (i32, i32, i32) {
    %c0_i32 = arith.constant 0 : i32
    %c0_i32_0 = arith.constant 0 : i32
    %c0_i32_1 = arith.constant 0 : i32
    %c0_i32_2 = arith.constant 0 : i32
    return %c0_i32, %c0_i32_0, %c0_i32_1 : i32, i32, i32
  }
  func.func @transform_4(%arg0: i32) -> (i32, i32) {
    %c0_i32 = arith.constant 0 : i32
    %c0_i32_0 = arith.constant 0 : i32
    %c0_i32_1 = arith.constant 0 : i32
    return %c0_i32, %c0_i32_0 : i32, i32
  }
  func.func @transform_5(%arg0: i32) -> (i32, i32) {
    %c0_i32 = arith.constant 0 : i32
    %c0_i32_0 = arith.constant 0 : i32
    %c0_i32_1 = arith.constant 0 : i32
    return %c0_i32, %c0_i32_0 : i32, i32
  }
  func.func @transform_6(%arg0: i32) -> (i32, i32) {
    %c0_i32 = arith.constant 0 : i32
    %c0_i32_0 = arith.constant 0 : i32
    %c0_i32_1 = arith.constant 0 : i32
    return %c0_i32, %c0_i32_0 : i32, i32
  }
}

</mosaic_0001>

<llo_original>
// kernel: residual_block.1
$region0: #{residual_block.1}
  #allocation0 [shape = 'u32[]', space=smem, size = 0x4, offset = 0x4, fixed_abs, tag = 'smem constant byte address 0x4 - core index']
  #allocation1 [shape = 'u32[144,128]{1,0:T(1,128)}', space=vmem, size = 0x12000, scoped, tag = 'internal scratch']
  #allocation2 [shape = 'f32[696,128]{1,0:T(8,128)}', space=vmem, size = 0x57000, scoped, tag = 'scratch operand']
  %s0 = inlined_call_operand.vmem [shape: f32[648,128], index: 0, kind: input, shape index: {}]
  %s1 = inlined_call_operand.vmem [shape: f32[648,1], index: 1, kind: input, shape index: {}]
  %s2 = inlined_call_operand.vmem [shape: f32[128,256], index: 2, kind: input, shape index: {}]
  %s3 = inlined_call_operand.vmem [shape: f32[9,128,128], index: 3, kind: input, shape index: {}]
  %s4 = inlined_call_operand.vmem [shape: f32[128,128], index: 4, kind: input, shape index: {}]
  %s5 = inlined_call_operand.vmem [shape: f32[8,128], index: 5, kind: input, shape index: {}]
  %s6 = inlined_call_operand.vmem [shape: f32[648,128], index: 6, kind: output, shape index: {}]
  %s7 = sld [smem:[#allocation0]]
  $region34: #{residual_block.1} parent=0
    _
  %s9 = ssub.s32 1, %s7
  %s10 = scalar_select 0, %s9, %s7
  // Predicated region
  $region2: #{residual_block.1} parent=0 // pred_check
    _
  $region3: #{residual_block.1} parent=0 // pred_check_branch
    %12 = sbr.rel (0) target = $region5
  $region4: #{residual_block.1} parent=0 // pred_region
    _
  $region5: #{residual_block.1} parent=0 // pred_fallthru
    _
  // Predicated region
  $region6: #{residual_block.1} parent=0 // pred_check
    _
  $region7: #{residual_block.1} parent=0 // pred_check_branch
    %14 = sbr.rel (0) target = $region9
  $region8: #{residual_block.1} parent=0 // pred_region
    _
  $region9: #{residual_block.1} parent=0 // pred_fallthru
    _
  // Predicated region
  $region10: #{residual_block.1} parent=0 // pred_check
    _
  $region11: #{residual_block.1} parent=0 // pred_check_branch
    %16 = sbr.rel (0) target = $region13
  $region12: #{residual_block.1} parent=0 // pred_region
    _
  $region13: #{residual_block.1} parent=0 // pred_fallthru
    _
  // Predicated region
  $region14: #{residual_block.1} parent=0 // pred_check
    _
  $region15: #{residual_block.1} parent=0 // pred_check_branch
    %18 = sbr.rel (0) target = $region17
  $region16: #{residual_block.1} parent=0 // pred_region
    _
  $region17: #{residual_block.1} parent=0 // pred_fallthru
    _
  // Predicated region
  $region18: #{residual_block.1} parent=0 // pred_check
    _
  $region19: #{residual_block.1} parent=0 // pred_check_branch
    %20 = sbr.rel (0) target = $region21
  $region20: #{residual_block.1} parent=0 // pred_region
    _
  $region21: #{residual_block.1} parent=0 // pred_fallthru
    _
  // Predicated region
  $region22: #{residual_block.1} parent=0 // pred_check
    _
  $region23: #{residual_block.1} parent=0 // pred_check_branch
    %22 = sbr.rel (0) target = $region25
  $region24: #{residual_block.1} parent=0 // pred_region
    _
  $region25: #{residual_block.1} parent=0 // pred_fallthru
    _
  %v23 = vld [vmem:[%s1] sm:$0xff]
  %v24 = vld [vmem:[%s1 + $0x8] sm:$0xff]
  %v25 = vld [vmem:[%s1 + $0x10] sm:$0xff]
  %v26 = vld [vmem:[%s1 + $0x18] sm:$0xff]
  %v27 = vld [vmem:[%s1 + $0x20] sm:$0xff]
  %v28 = vld [vmem:[%s1 + $0x28] sm:$0xff]
  %v29 = vld [vmem:[%s1 + $0x30] sm:$0xff]
  %v30 = vld [vmem:[%s1 + $0x38] sm:$0xff]
  %v31 = vld [vmem:[%s1 + $0x40] sm:$0xff]
  %v32 = vld [vmem:[%s1 + $0x48] sm:$0xff]
  %v33 = vld [vmem:[%s1 + $0x50] sm:$0xff]
  %v34 = vld [vmem:[%s1 + $0x58] sm:$0xff]
  %v35 = vld [vmem:[%s1 + $0x60] sm:$0xff]
  %v36 = vld [vmem:[%s1 + $0x68] sm:$0xff]
  %v37 = vld [vmem:[%s1 + $0x70] sm:$0xff]
  %v38 = vld [vmem:[%s1 + $0x78] sm:$0xff]
  %v39 = vld [vmem:[%s1 + $0x80] sm:$0xff]
  %v40 = vld [vmem:[%s1 + $0x88] sm:$0xff]
  %v41 = vld [vmem:[%s1 + $0x90] sm:$0xff]
  %v42 = vld [vmem:[%s1 + $0x98] sm:$0xff]
  %v43 = vld [vmem:[%s1 + $0xa0] sm:$0xff]
  %v44 = vld [vmem:[%s1 + $0xa8] sm:$0xff]
  %v45 = vld [vmem:[%s1 + $0xb0] sm:$0xff]
  %v46 = vld [vmem:[%s1 + $0xb8] sm:$0xff]
  %v47 = vld [vmem:[%s1 + $0xc0] sm:$0xff]
  %v48 = vld [vmem:[%s1 + $0xc8] sm:$0xff]
  %v49 = vld [vmem:[%s1 + $0xd0] sm:$0xff]
  %v50 = vld [vmem:[%s1 + $0xd8] sm:$0xff]
  %v51 = vld [vmem:[%s1 + $0xe0] sm:$0xff]
  %v52 = vld [vmem:[%s1 + $0xe8] sm:$0xff]
  %v53 = vld [vmem:[%s1 + $0xf0] sm:$0xff]
  %v54 = vld [vmem:[%s1 + $0xf8] sm:$0xff]
  %v55 = vld [vmem:[%s1 + $0x100] sm:$0xff]
  %v56 = vld [vmem:[%s1 + $0x108] sm:$0xff]
  %v57 = vld [vmem:[%s1 + $0x110] sm:$0xff]
  %v58 = vld [vmem:[%s1 + $0x118] sm:$0xff]
  %v59 = vld [vmem:[%s1 + $0x120] sm:$0xff]
  %v60 = vld [vmem:[%s1 + $0x128] sm:$0xff]
  %v61 = vld [vmem:[%s1 + $0x130] sm:$0xff]
  %v62 = vld [vmem:[%s1 + $0x138] sm:$0xff]
  %v63 = vld [vmem:[%s1 + $0x140] sm:$0xff]
  %v64 = vld [vmem:[%s1 + $0x148] sm:$0xff]
  %v65 = vld [vmem:[%s1 + $0x150] sm:$0xff]
  %v66 = vld [vmem:[%s1 + $0x158] sm:$0xff]
  %v67 = vld [vmem:[%s1 + $0x160] sm:$0xff]
  %v68 = vld [vmem:[%s1 + $0x168] sm:$0xff]
  %v69 = vld [vmem:[%s1 + $0x170] sm:$0xff]
  %v70 = vld [vmem:[%s1 + $0x178] sm:$0xff]
  %v71 = vld [vmem:[%s1 + $0x180] sm:$0xff]
  %v72 = vld [vmem:[%s1 + $0x188] sm:$0xff]
  %v73 = vld [vmem:[%s1 + $0x190] sm:$0xff]
  %v74 = vld [vmem:[%s1 + $0x198] sm:$0xff]
  %v75 = vld [vmem:[%s1 + $0x1a0] sm:$0xff]
  %v76 = vld [vmem:[%s1 + $0x1a8] sm:$0xff]
  %v77 = vld [vmem:[%s1 + $0x1b0] sm:$0xff]
  %v78 = vld [vmem:[%s1 + $0x1b8] sm:$0xff]
  %v79 = vld [vmem:[%s1 + $0x1c0] sm:$0xff]
  %v80 = vld [vmem:[%s1 + $0x1c8] sm:$0xff]
  %v81 = vld [vmem:[%s1 + $0x1d0] sm:$0xff]
  %v82 = vld [vmem:[%s1 + $0x1d8] sm:$0xff]
  %v83 = vld [vmem:[%s1 + $0x1e0] sm:$0xff]
  %v84 = vld [vmem:[%s1 + $0x1e8] sm:$0xff]
  %v85 = vld [vmem:[%s1 + $0x1f0] sm:$0xff]
  %v86 = vld [vmem:[%s1 + $0x1f8] sm:$0xff]
  %v87 = vld [vmem:[%s1 + $0x200] sm:$0xff]
  %v88 = vld [vmem:[%s1 + $0x208] sm:$0xff]
  %v89 = vld [vmem:[%s1 + $0x210] sm:$0xff]
  %v90 = vld [vmem:[%s1 + $0x218] sm:$0xff]
  %v91 = vld [vmem:[%s1 + $0x220] sm:$0xff]
  %v92 = vld [vmem:[%s1 + $0x228] sm:$0xff]
  %v93 = vld [vmem:[%s1 + $0x230] sm:$0xff]
  %v94 = vld [vmem:[%s1 + $0x238] sm:$0xff]
  %v95 = vld [vmem:[%s1 + $0x240] sm:$0xff]
  %v96 = vld [vmem:[%s1 + $0x248] sm:$0xff]
  %v97 = vld [vmem:[%s1 + $0x250] sm:$0xff]
  %v98 = vld [vmem:[%s1 + $0x258] sm:$0xff]
  %v99 = vld [vmem:[%s1 + $0x260] sm:$0xff]
  %v100 = vld [vmem:[%s1 + $0x268] sm:$0xff]
  %v101 = vld [vmem:[%s1 + $0x270] sm:$0xff]
  %v102 = vld [vmem:[%s1 + $0x278] sm:$0xff]
  %v103 = vld [vmem:[%s1 + $0x280] sm:$0xff]
  %v104 = vld [vmem:[%s5] sm:$0x1]
  %v105 = vld [vmem:[%s5 + $0x1] sm:$0x1]
  %v106 = vld [vmem:[%s5 + $0x2] sm:$0x1]
  %v107 = vld [vmem:[%s5 + $0x3] sm:$0x1]
  %v108 = vld [vmem:[%s5 + $0x4] sm:$0x1]
  %v109 = vld [vmem:[%s5 + $0x5] sm:$0x1]
  %v110 = vld [vmem:[%s0] sm:$0xff]
  %v111 = vld [vmem:[%s0 + $0x8] sm:$0xff]
  %v112 = vld [vmem:[%s0 + $0x10] sm:$0xff]
  %v113 = vld [vmem:[%s0 + $0x18] sm:$0xff]
  %v114 = vld [vmem:[%s0 + $0x20] sm:$0xff]
  %v115 = vld [vmem:[%s0 + $0x28] sm:$0xff]
  %v116 = vld [vmem:[%s0 + $0x30] sm:$0xff]
  %v117 = vld [vmem:[%s0 + $0x38] sm:$0xff]
  %v118 = vld [vmem:[%s0 + $0x40] sm:$0xff]
  %v119 = vld [vmem:[%s0 + $0x48] sm:$0xff]
  %v120 = vld [vmem:[%s0 + $0x50] sm:$0xff]
  %v121 = vld [vmem:[%s0 + $0x58] sm:$0xff]
  %v122 = vld [vmem:[%s0 + $0x60] sm:$0xff]
  %v123 = vld [vmem:[%s0 + $0x68] sm:$0xff]
  %v124 = vld [vmem:[%s0 + $0x70] sm:$0xff]
  %v125 = vld [vmem:[%s0 + $0x78] sm:$0xff]
  %v126 = vld [vmem:[%s0 + $0x80] sm:$0xff]
  %v127 = vld [vmem:[%s0 + $0x88] sm:$0xff]
  %v128 = vld [vmem:[%s0 + $0x90] sm:$0xff]
  %v129 = vld [vmem:[%s0 + $0x98] sm:$0xff]
  %v130 = vld [vmem:[%s0 + $0xa0] sm:$0xff]
  %v131 = vld [vmem:[%s0 + $0xa8] sm:$0xff]
  %v132 = vld [vmem:[%s0 + $0xb0] sm:$0xff]
  %v133 = vld [vmem:[%s0 + $0xb8] sm:$0xff]
  %v134 = vld [vmem:[%s0 + $0xc0] sm:$0xff]
  %v135 = vld [vmem:[%s0 + $0xc8] sm:$0xff]
  %v136 = vld [vmem:[%s0 + $0xd0] sm:$0xff]
  %v137 = vld [vmem:[%s0 + $0xd8] sm:$0xff]
  %v138 = vld [vmem:[%s0 + $0xe0] sm:$0xff]
  %v139 = vld [vmem:[%s0 + $0xe8] sm:$0xff]
  %v140 = vld [vmem:[%s0 + $0xf0] sm:$0xff]
  %v141 = vld [vmem:[%s0 + $0xf8] sm:$0xff]
  %v142 = vld [vmem:[%s0 + $0x100] sm:$0xff]
  %v143 = vld [vmem:[%s0 + $0x108] sm:$0xff]
  %v144 = vld [vmem:[%s0 + $0x110] sm:$0xff]
  %v145 = vld [vmem:[%s0 + $0x118] sm:$0xff]
  %v146 = vld [vmem:[%s0 + $0x120] sm:$0xff]
  %v147 = vld [vmem:[%s0 + $0x128] sm:$0xff]
  %v148 = vld [vmem:[%s0 + $0x130] sm:$0xff]
  %v149 = vld [vmem:[%s0 + $0x138] sm:$0xff]
  %v150 = vld [vmem:[%s0 + $0x140] sm:$0xff]
  %v151 = vld [vmem:[%s0 + $0x148] sm:$0xff]
  %v152 = vld [vmem:[%s0 + $0x150] sm:$0xff]
  %v153 = vld [vmem:[%s0 + $0x158] sm:$0xff]
  %v154 = vld [vmem:[%s0 + $0x160] sm:$0xff]
  %v155 = vld [vmem:[%s0 + $0x168] sm:$0xff]
  %v156 = vld [vmem:[%s0 + $0x170] sm:$0xff]
  %v157 = vld [vmem:[%s0 + $0x178] sm:$0xff]
  %v158 = vld [vmem:[%s0 + $0x180] sm:$0xff]
  %v159 = vld [vmem:[%s0 + $0x188] sm:$0xff]
  %v160 = vld [vmem:[%s0 + $0x190] sm:$0xff]
  %v161 = vld [vmem:[%s0 + $0x198] sm:$0xff]
  %v162 = vld [vmem:[%s0 + $0x1a0] sm:$0xff]
  %v163 = vld [vmem:[%s0 + $0x1a8] sm:$0xff]
  %v164 = vld [vmem:[%s0 + $0x1b0] sm:$0xff]
  %v165 = vld [vmem:[%s0 + $0x1b8] sm:$0xff]
  %v166 = vld [vmem:[%s0 + $0x1c0] sm:$0xff]
  %v167 = vld [vmem:[%s0 + $0x1c8] sm:$0xff]
  %v168 = vld [vmem:[%s0 + $0x1d0] sm:$0xff]
  %v169 = vld [vmem:[%s0 + $0x1d8] sm:$0xff]
  %v170 = vld [vmem:[%s0 + $0x1e0] sm:$0xff]
  %v171 = vld [vmem:[%s0 + $0x1e8] sm:$0xff]
  %v172 = vld [vmem:[%s0 + $0x1f0] sm:$0xff]
  %v173 = vld [vmem:[%s0 + $0x1f8] sm:$0xff]
  %v174 = vld [vmem:[%s0 + $0x200] sm:$0xff]
  %v175 = vld [vmem:[%s0 + $0x208] sm:$0xff]
  %v176 = vld [vmem:[%s0 + $0x210] sm:$0xff]
  %v177 = vld [vmem:[%s0 + $0x218] sm:$0xff]
  %v178 = vld [vmem:[%s0 + $0x220] sm:$0xff]
  %v179 = vld [vmem:[%s0 + $0x228] sm:$0xff]
  %v180 = vld [vmem:[%s0 + $0x230] sm:$0xff]
  %v181 = vld [vmem:[%s0 + $0x238] sm:$0xff]
  %v182 = vld [vmem:[%s0 + $0x240] sm:$0xff]
  %v183 = vld [vmem:[%s0 + $0x248] sm:$0xff]
  %v184 = vld [vmem:[%s0 + $0x250] sm:$0xff]
  %v185 = vld [vmem:[%s0 + $0x258] sm:$0xff]
  %v186 = vld [vmem:[%s0 + $0x260] sm:$0xff]
  %v187 = vld [vmem:[%s0 + $0x268] sm:$0xff]
  %v188 = vld [vmem:[%s0 + $0x270] sm:$0xff]
  %v189 = vld [vmem:[%s0 + $0x278] sm:$0xff]
  %v190 = vld [vmem:[%s0 + $0x280] sm:$0xff]
  %v191 = vld [vmem:[%s2] sm:$0xff]
  %v192 = vld [vmem:[%s2 + $0x8] sm:$0xff]
  %v193 = vld [vmem:[%s2 + $0x10] sm:$0xff]
  %v194 = vld [vmem:[%s2 + $0x18] sm:$0xff]
  %v195 = vld [vmem:[%s2 + $0x20] sm:$0xff]
  %v196 = vld [vmem:[%s2 + $0x28] sm:$0xff]
  %v197 = vld [vmem:[%s2 + $0x30] sm:$0xff]
  %v198 = vld [vmem:[%s2 + $0x38] sm:$0xff]
  %v199 = vld [vmem:[%s2 + $0x40] sm:$0xff]
  %v200 = vld [vmem:[%s2 + $0x48] sm:$0xff]
  %v201 = vld [vmem:[%s2 + $0x50] sm:$0xff]
  %v202 = vld [vmem:[%s2 + $0x58] sm:$0xff]
  %v203 = vld [vmem:[%s2 + $0x60] sm:$0xff]
  %v204 = vld [vmem:[%s2 + $0x68] sm:$0xff]
  %v205 = vld [vmem:[%s2 + $0x70] sm:$0xff]
  %v206 = vld [vmem:[%s2 + $0x78] sm:$0xff]
  %v207 = vld [vmem:[%s2 + $0x80] sm:$0xff]
  %v208 = vld [vmem:[%s2 + $0x88] sm:$0xff]
  %v209 = vld [vmem:[%s2 + $0x90] sm:$0xff]
  %v210 = vld [vmem:[%s2 + $0x98] sm:$0xff]
  %v211 = vld [vmem:[%s2 + $0xa0] sm:$0xff]
  %v212 = vld [vmem:[%s2 + $0xa8] sm:$0xff]
  %v213 = vld [vmem:[%s2 + $0xb0] sm:$0xff]
  %v214 = vld [vmem:[%s2 + $0xb8] sm:$0xff]
  %v215 = vld [vmem:[%s2 + $0xc0] sm:$0xff]
  %v216 = vld [vmem:[%s2 + $0xc8] sm:$0xff]
  %v217 = vld [vmem:[%s2 + $0xd0] sm:$0xff]
  %v218 = vld [vmem:[%s2 + $0xd8] sm:$0xff]
  %v219 = vld [vmem:[%s2 + $0xe0] sm:$0xff]
  %v220 = vld [vmem:[%s2 + $0xe8] sm:$0xff]
  %v221 = vld [vmem:[%s2 + $0xf0] sm:$0xff]
  %v222 = vld [vmem:[%s2 + $0xf8] sm:$0xff]
  %223 = vmatprep.subr.mxu0 %v192
  %224 = vmatpush1.msra.mxu0 %v191
  %225 = vmatprep.subr.mxu0 %v194
  %226 = vmatpush1.msra.mxu0 %v193
  %227 = vmatprep.subr.mxu0 %v196
  %228 = vmatpush1.msra.mxu0 %v195
  %229 = vmatprep.subr.mxu0 %v198
  %230 = vmatpush1.msra.mxu0 %v197
  %231 = vmatprep.subr.mxu0 %v200
  %232 = vmatpush1.msra.mxu0 %v199
  %233 = vmatprep.subr.mxu0 %v202
  %234 = vmatpush1.msra.mxu0 %v201
  %235 = vmatprep.subr.mxu0 %v204
  %236 = vmatpush1.msra.mxu0 %v203
  %237 = vmatprep.subr.mxu0 %v206
  %238 = vmatpush1.msra.mxu0 %v205
  %239 = vmatprep.subr.mxu0 %v208
  %240 = vmatpush1.msra.mxu0 %v207
  %241 = vmatprep.subr.mxu0 %v210
  %242 = vmatpush1.msra.mxu0 %v209
  %243 = vmatprep.subr.mxu0 %v212
  %244 = vmatpush1.msra.mxu0 %v211
  %245 = vmatprep.subr.mxu0 %v214
  %246 = vmatpush1.msra.mxu0 %v213
  %247 = vmatprep.subr.mxu0 %v216
  %248 = vmatpush1.msra.mxu0 %v215
  %249 = vmatprep.subr.mxu0 %v218
  %250 = vmatpush1.msra.mxu0 %v217
  %251 = vmatprep.subr.mxu0 %v220
  %252 = vmatpush1.msra.mxu0 %v219
  %253 = vmatprep.subr.mxu0 %v222
  %254 = vmatpush1.msra.mxu0 %v221
  %255 = vmatprep.subr.mxu0 0.0
  %256 = vmatpush1.msra.mxu0 0.0
  %257 = vmatprep.subr.mxu0 0.0
  %258 = vmatpush1.msra.mxu0 0.0
  %259 = vmatprep.subr.mxu0 0.0
  %260 = vmatpush1.msra.mxu0 0.0
  %261 = vmatprep.subr.mxu0 0.0
  %262 = vmatpush1.msra.mxu0 0.0
  %263 = vmatprep.subr.mxu0 0.0
  %264 = vmatpush1.msra.mxu0 0.0
  %265 = vmatprep.subr.mxu0 0.0
  %266 = vmatpush1.msra.mxu0 0.0
  %267 = vmatprep.subr.mxu0 0.0
  %268 = vmatpush1.msra.mxu0 0.0
  %269 = vmatprep.subr.mxu0 0.0
  %270 = vmatpush1.msra.mxu0 0.0
  %271 = vmatprep.subr.mxu0 0.0
  %272 = vmatpush1.msra.mxu0 0.0
  %273 = vmatprep.subr.mxu0 0.0
  %274 = vmatpush1.msra.mxu0 0.0
  %275 = vmatprep.subr.mxu0 0.0
  %276 = vmatpush1.msra.mxu0 0.0
  %277 = vmatprep.subr.mxu0 0.0
  %278 = vmatpush1.msra.mxu0 0.0
  %279 = vmatprep.subr.mxu0 0.0
  %280 = vmatpush1.msra.mxu0 0.0
  %281 = vmatprep.subr.mxu0 0.0
  %282 = vmatpush1.msra.mxu0 0.0
  %283 = vmatprep.subr.mxu0 0.0
  %284 = vmatpush1.msra.mxu0 0.0
  %285 = vmatprep.subr.mxu0 0.0
  %286 = vmatpush1.msra.mxu0 0.0
  %287 = vmatprep.mubr.f32.mxu0 0.0
  %288 = vmatmul.mubr.f32.gmra.mrb[0].mxu0 %v110
  %v289 = vpop.f32.mrb[0].mxu0
  %v290 = vadd.f32 0.0, %v289
  %v291 = vpop.f32.mrb[0].mxu0
  %v292 = vadd.f32 0.0, %v291
  %293 = vmatprep.mubr.f32.mxu0 0.0
  %294 = vmatmul.mubr.f32.gmra.mrb[0].mxu0 %v111
  %v295 = vpop.f32.mrb[0].mxu0
  %v296 = vadd.f32 0.0, %v295
  %v297 = vpop.f32.mrb[0].mxu0
  %v298 = vadd.f32 0.0, %v297
  %299 = vmatprep.mubr.f32.mxu0 0.0
  %300 = vmatmul.mubr.f32.gmra.mrb[0].mxu0 %v112
  %v301 = vpop.f32.mrb[0].mxu0
  %v302 = vadd.f32 0.0, %v301
  %v303 = vpop.f32.mrb[0].mxu0
  %v304 = vadd.f32 0.0, %v303
  %305 = vmatprep.mubr.f32.mxu0 0.0
  %306 = vmatmul.mubr.f32.gmra.mrb[0].mxu0 %v113
  %v307 = vpop.f32.mrb[0].mxu0
  %v308 = vadd.f32 0.0, %v307
  %v309 = vpop.f32.mrb[0].mxu0
  %v310 = vadd.f32 0.0, %v309
  %311 = vmatprep.mubr.f32.mxu0 0.0
  %312 = vmatmul.mubr.f32.gmra.mrb[0].mxu0 %v114
  %v313 = vpop.f32.mrb[0].mxu0
  %v314 = vadd.f32 0.0, %v313
  %v315 = vpop.f32.mrb[0].mxu0
  %v316 = vadd.f32 0.0, %v315
  %317 = vmatprep.mubr.f32.mxu0 0.0
  %318 = vmatmul.mubr.f32.gmra.mrb[0].mxu0 %v115
  %v319 = vpop.f32.mrb[0].mxu0
  %v320 = vadd.f32 0.0, %v319
  %v321 = vpop.f32.mrb[0].mxu0
  %v322 = vadd.f32 0.0, %v321
  %323 = vmatprep.mubr.f32.mxu0 0.0
  %324 = vmatmul.mubr.f32.gmra.mrb[0].mxu0 %v116
  %v325 = vpop.f32.mrb[0].mxu0
  %v326 = vadd.f32 0.0, %v325
  %v327 = vpop.f32.mrb[0].mxu0
  %v328 = vadd.f32 0.0, %v327
  %329 = vmatprep.mubr.f32.mxu0 0.0
  %330 = vmatmul.mubr.f32.gmra.mrb[0].mxu0 %v117
  %v331 = vpop.f32.mrb[0].mxu0
  %v332 = vadd.f32 0.0, %v331
  %v333 = vpop.f32.mrb[0].mxu0
  %v334 = vadd.f32 0.0, %v333
  %335 = vmatprep.mubr.f32.mxu0 0.0
  %336 = vmatmul.mubr.f32.gmra.mrb[0].mxu0 %v118
  %v337 = vpop.f32.mrb[0].mxu0
  %v338 = vadd.f32 0.0, %v337
  %v339 = vpop.f32.mrb[0].mxu0
  %v340 = vadd.f32 0.0, %v339
  %341 = vmatprep.mubr.f32.mxu0 0.0
  %342 = vmatmul.mubr.f32.gmra.mrb[0].mxu0 %v119
  %v343 = vpop.f32.mrb[0].mxu0
  %v344 = vadd.f32 0.0, %v343
  %v345 = vpop.f32.mrb[0].mxu0
  %v346 = vadd.f32 0.0, %v345
  %347 = vmatprep.mubr.f32.mxu0 0.0
  %348 = vmatmul.mubr.f32.gmra.mrb[0].mxu0 %v120
  %v349 = vpop.f32.mrb[0].mxu0
  %v350 = vadd.f32 0.0, %v349
  %v351 = vpop.f32.mrb[0].mxu0
  %v352 = vadd.f32 0.0, %v351
  %353 = vmatprep.mubr.f32.mxu0 0.0
  %354 = vmatmul.mubr.f32.gmra.mrb[0].mxu0 %v121
  %v355 = vpop.f32.mrb[0].mxu0
  %v356 = vadd.f32 0.0, %v355
  %v357 = vpop.f32.mrb[0].mxu0
  %v358 = vadd.f32 0.0, %v357
  %359 = vmatprep.mubr.f32.mxu0 0.0
  %360 = vmatmul.mubr.f32.gmra.mrb[0].mxu0 %v122
  %v361 = vpop.f32.mrb[0].mxu0
  %v362 = vadd.f32 0.0, %v361
  %v363 = vpop.f32.mrb[0].mxu0
  %v364 = vadd.f32 0.0, %v363
  %365 = vmatprep.mubr.f32.mxu0 0.0
  %366 = vmatmul.mubr.f32.gmra.mrb[0].mxu0 %v123
  %v367 = vpop.f32.mrb[0].mxu0
  %v368 = vadd.f32 0.0, %v367
  %v369 = vpop.f32.mrb[0].mxu0
  %v370 = vadd.f32 0.0, %v369
  %371 = vmatprep.mubr.f32.mxu0 0.0
  %372 = vmatmul.mubr.f32.gmra.mrb[0].mxu0 %v124
  %v373 = vpop.f32.mrb[0].mxu0
  %v374 = vadd.f32 0.0, %v373
  %v375 = vpop.f32.mrb[0].mxu0
  %v376 = vadd.f32 0.0, %v375
  %377 = vmatprep.mubr.f32.mxu0 0.0
  %378 = vmatmul.mubr.f32.gmra.mrb[0].mxu0 %v125
  %v379 = vpop.f32.mrb[0].mxu0
  %v380 = vadd.f32 0.0, %v379
  %v381 = vpop.f32.mrb[0].mxu0
  %v382 = vadd.f32 0.0, %v381
  %383 = vmatprep.mubr.f32.mxu0 0.0
  %384 = vmatmul.mubr.f32.gmra.mrb[0].mxu0 %v126
  %v385 = vpop.f32.mrb[0].mxu0
  %v386 = vadd.f32 0.0, %v385
  %v387 = vpop.f32.mrb[0].mxu0
  %v388 = vadd.f32 0.0, %v387
  %389 = vmatprep.mubr.f32.mxu0 0.0
  %390 = vmatmul.mubr.f32.gmra.mrb[0].mxu0 %v127
  %v391 = vpop.f32.mrb[0].mxu0
  %v392 = vadd.f32 0.0, %v391
  %v393 = vpop.f32.mrb[0].mxu0
  %v394 = vadd.f32 0.0, %v393
  %395 = vmatprep.mubr.f32.mxu0 0.0
  %396 = vmatmul.mubr.f32.gmra.mrb[0].mxu0 %v128
  %v397 = vpop.f32.mrb[0].mxu0
  %v398 = vadd.f32 0.0, %v397
  %v399 = vpop.f32.mrb[0].mxu0
  %v400 = vadd.f32 0.0, %v399
  %401 = vmatprep.mubr.f32.mxu0 0.0
  %402 = vmatmul.mubr.f32.gmra.mrb[0].mxu0 %v129
  %v403 = vpop.f32.mrb[0].mxu0
  %v404 = vadd.f32 0.0, %v403
  %v405 = vpop.f32.mrb[0].mxu0
  %v406 = vadd.f32 0.0, %v405
  %407 = vmatprep.mubr.f32.mxu0 0.0
  %408 = vmatmul.mubr.f32.gmra.mrb[0].mxu0 %v130
  %v409 = vpop.f32.mrb[0].mxu0
  %v410 = vadd.f32 0.0, %v409
  %v411 = vpop.f32.mrb[0].mxu0
  %v412 = vadd.f32 0.0, %v411
  %413 = vmatprep.mubr.f32.mxu0 0.0
  %414 = vmatmul.mubr.f32.gmra.mrb[0].mxu0 %v131
  %v415 = vpop.f32.mrb[0].mxu0
  %v416 = vadd.f32 0.0, %v415
  %v417 = vpop.f32.mrb[0].mxu0
  %v418 = vadd.f32 0.0, %v417
  %419 = vmatprep.mubr.f32.mxu0 0.0
  %420 = vmatmul.mubr.f32.gmra.mrb[0].mxu0 %v132
  %v421 = vpop.f32.mrb[0].mxu0
  %v422 = vadd.f32 0.0, %v421
  %v423 = vpop.f32.mrb[0].mxu0
  %v424 = vadd.f32 0.0, %v423
  %425 = vmatprep.mubr.f32.mxu0 0.0
  %426 = vmatmul.mubr.f32.gmra.mrb[0].mxu0 %v133
  %v427 = vpop.f32.mrb[0].mxu0
  %v428 = vadd.f32 0.0, %v427
  %v429 = vpop.f32.mrb[0].mxu0
  %v430 = vadd.f32 0.0, %v429
  %431 = vmatprep.mubr.f32.mxu0 0.0
  %432 = vmatmul.mubr.f32.gmra.mrb[0].mxu0 %v134
  %v433 = vpop.f32.mrb[0].mxu0
  %v434 = vadd.f32 0.0, %v433
  %v435 = vpop.f32.mrb[0].mxu0
  %v436 = vadd.f32 0.0, %v435
  %437 = vmatprep.mubr.f32.mxu0 0.0
  %438 = vmatmul.mubr.f32.gmra.mrb[0].mxu0 %v135
  %v439 = vpop.f32.mrb[0].mxu0
  %v440 = vadd.f32 0.0, %v439
  %v441 = vpop.f32.mrb[0].mxu0
  %v442 = vadd.f32 0.0, %v441
  %443 = vmatprep.mubr.f32.mxu0 0.0
  %444 = vmatmul.mubr.f32.gmra.mrb[0].mxu0 %v136
  %v445 = vpop.f32.mrb[0].mxu0
  %v446 = vadd.f32 0.0, %v445
  %v447 = vpop.f32.mrb[0].mxu0
  %v448 = vadd.f32 0.0, %v447
  %449 = vmatprep.mubr.f32.mxu0 0.0
  %450 = vmatmul.mubr.f32.gmra.mrb[0].mxu0 %v137
  %v451 = vpop.f32.mrb[0].mxu0
  %v452 = vadd.f32 0.0, %v451
  %v453 = vpop.f32.mrb[0].mxu0
  %v454 = vadd.f32 0.0, %v453
  %455 = vmatprep.mubr.f32.mxu0 0.0
  %456 = vmatmul.mubr.f32.gmra.mrb[0].mxu0 %v138
  %v457 = vpop.f32.mrb[0].mxu0
  %v458 = vadd.f32 0.0, %v457
  %v459 = vpop.f32.mrb[0].mxu0
  %v460 = vadd.f32 0.0, %v459
  %461 = vmatprep.mubr.f32.mxu0 0.0
  %462 = vmatmul.mubr.f32.gmra.mrb[0].mxu0 %v139
  %v463 = vpop.f32.mrb[0].mxu0
  %v464 = vadd.f32 0.0, %v463
  %v465 = vpop.f32.mrb[0].mxu0
  %v466 = vadd.f32 0.0, %v465
  %467 = vmatprep.mubr.f32.mxu0 0.0
  %468 = vmatmul.mubr.f32.gmra.mrb[0].mxu0 %v140
  %v469 = vpop.f32.mrb[0].mxu0
  %v470 = vadd.f32 0.0, %v469
  %v471 = vpop.f32.mrb[0].mxu0
  %v472 = vadd.f32 0.0, %v471
  %473 = vmatprep.mubr.f32.mxu0 0.0
  %474 = vmatmul.mubr.f32.gmra.mrb[0].mxu0 %v141
  %v475 = vpop.f32.mrb[0].mxu0
  %v476 = vadd.f32 0.0, %v475
  %v477 = vpop.f32.mrb[0].mxu0
  %v478 = vadd.f32 0.0, %v477
  %479 = vmatprep.mubr.f32.mxu0 0.0
  %480 = vmatmul.mubr.f32.gmra.mrb[0].mxu0 %v142
  %v481 = vpop.f32.mrb[0].mxu0
  %v482 = vadd.f32 0.0, %v481
  %v483 = vpop.f32.mrb[0].mxu0
  %v484 = vadd.f32 0.0, %v483
  %485 = vmatprep.mubr.f32.mxu0 0.0
  %486 = vmatmul.mubr.f32.gmra.mrb[0].mxu0 %v143
  %v487 = vpop.f32.mrb[0].mxu0
  %v488 = vadd.f32 0.0, %v487
  %v489 = vpop.f32.mrb[0].mxu0
  %v490 = vadd.f32 0.0, %v489
  %491 = vmatprep.mubr.f32.mxu0 0.0
  %492 = vmatmul.mubr.f32.gmra.mrb[0].mxu0 %v144
  %v493 = vpop.f32.mrb[0].mxu0
  %v494 = vadd.f32 0.0, %v493
  %v495 = vpop.f32.mrb[0].mxu0
  %v496 = vadd.f32 0.0, %v495
  %497 = vmatprep.mubr.f32.mxu0 0.0
  %498 = vmatmul.mubr.f32.gmra.mrb[0].mxu0 %v145
  %v499 = vpop.f32.mrb[0].mxu0
  %v500 = vadd.f32 0.0, %v499
  %v501 = vpop.f32.mrb[0].mxu0
  %v502 = vadd.f32 0.0, %v501
  %503 = vmatprep.mubr.f32.mxu0 0.0
  %504 = vmatmul.mubr.f32.gmra.mrb[0].mxu0 %v146
  %v505 = vpop.f32.mrb[0].mxu0
  %v506 = vadd.f32 0.0, %v505
  %v507 = vpop.f32.mrb[0].mxu0
  %v508 = vadd.f32 0.0, %v507
  %509 = vmatprep.mubr.f32.mxu0 0.0
  %510 = vmatmul.mubr.f32.gmra.mrb[0].mxu0 %v147
  %v511 = vpop.f32.mrb[0].mxu0
  %v512 = vadd.f32 0.0, %v511
  %v513 = vpop.f32.mrb[0].mxu0
  %v514 = vadd.f32 0.0, %v513
  %515 = vmatprep.mubr.f32.mxu0 0.0
  %516 = vmatmul.mubr.f32.gmra.mrb[0].mxu0 %v148
  %v517 = vpop.f32.mrb[0].mxu0
  %v518 = vadd.f32 0.0, %v517
  %v519 = vpop.f32.mrb[0].mxu0
  %v520 = vadd.f32 0.0, %v519
  %521 = vmatprep.mubr.f32.mxu0 0.0
  %522 = vmatmul.mubr.f32.gmra.mrb[0].mxu0 %v149
  %v523 = vpop.f32.mrb[0].mxu0
  %v524 = vadd.f32 0.0, %v523
  %v525 = vpop.f32.mrb[0].mxu0
  %v526 = vadd.f32 0.0, %v525
  %527 = vmatprep.mubr.f32.mxu0 0.0
  %528 = vmatmul.mubr.f32.gmra.mrb[0].mxu0 %v150
  %v529 = vpop.f32.mrb[0].mxu0
  %v530 = vadd.f32 0.0, %v529
  %v531 = vpop.f32.mrb[0].mxu0
  %v532 = vadd.f32 0.0, %v531
  %533 = vmatprep.mubr.f32.mxu0 0.0
  %534 = vmatmul.mubr.f32.gmra.mrb[0].mxu0 %v151
  %v535 = vpop.f32.mrb[0].mxu0
  %v536 = vadd.f32 0.0, %v535
  %v537 = vpop.f32.mrb[0].mxu0
  %v538 = vadd.f32 0.0, %v537
  %539 = vmatprep.mubr.f32.mxu0 0.0
  %540 = vmatmul.mubr.f32.gmra.mrb[0].mxu0 %v152
  %v541 = vpop.f32.mrb[0].mxu0
  %v542 = vadd.f32 0.0, %v541
  %v543 = vpop.f32.mrb[0].mxu0
  %v544 = vadd.f32 0.0, %v543
  %545 = vmatprep.mubr.f32.mxu0 0.0
  %546 = vmatmul.mubr.f32.gmra.mrb[0].mxu0 %v153
  %v547 = vpop.f32.mrb[0].mxu0
  %v548 = vadd.f32 0.0, %v547
  %v549 = vpop.f32.mrb[0].mxu0
  %v550 = vadd.f32 0.0, %v549
  %551 = vmatprep.mubr.f32.mxu0 0.0
  %552 = vmatmul.mubr.f32.gmra.mrb[0].mxu0 %v154
  %v553 = vpop.f32.mrb[0].mxu0
  %v554 = vadd.f32 0.0, %v553
  %v555 = vpop.f32.mrb[0].mxu0
  %v556 = vadd.f32 0.0, %v555
  %557 = vmatprep.mubr.f32.mxu0 0.0
  %558 = vmatmul.mubr.f32.gmra.mrb[0].mxu0 %v155
  %v559 = vpop.f32.mrb[0].mxu0
  %v560 = vadd.f32 0.0, %v559
  %v561 = vpop.f32.mrb[0].mxu0
  %v562 = vadd.f32 0.0, %v561
  %563 = vmatprep.mubr.f32.mxu0 0.0
  %564 = vmatmul.mubr.f32.gmra.mrb[0].mxu0 %v156
  %v565 = vpop.f32.mrb[0].mxu0
  %v566 = vadd.f32 0.0, %v565
  %v567 = vpop.f32.mrb[0].mxu0
  %v568 = vadd.f32 0.0, %v567
  %569 = vmatprep.mubr.f32.mxu0 0.0
  %570 = vmatmul.mubr.f32.gmra.mrb[0].mxu0 %v157
  %v571 = vpop.f32.mrb[0].mxu0
  %v572 = vadd.f32 0.0, %v571
  %v573 = vpop.f32.mrb[0].mxu0
  %v574 = vadd.f32 0.0, %v573
  %575 = vmatprep.mubr.f32.mxu0 0.0
  %576 = vmatmul.mubr.f32.gmra.mrb[0].mxu0 %v158
  %v577 = vpop.f32.mrb[0].mxu0
  %v578 = vadd.f32 0.0, %v577
  %v579 = vpop.f32.mrb[0].mxu0
  %v580 = vadd.f32 0.0, %v579
  %581 = vmatprep.mubr.f32.mxu0 0.0
  %582 = vmatmul.mubr.f32.gmra.mrb[0].mxu0 %v159
  %v583 = vpop.f32.mrb[0].mxu0
  %v584 = vadd.f32 0.0, %v583
  %v585 = vpop.f32.mrb[0].mxu0
  %v586 = vadd.f32 0.0, %v585
  %587 = vmatprep.mubr.f32.mxu0 0.0
  %588 = vmatmul.mubr.f32.gmra.mrb[0].mxu0 %v160
  %v589 = vpop.f32.mrb[0].mxu0
  %v590 = vadd.f32 0.0, %v589
  %v591 = vpop.f32.mrb[0].mxu0
  %v592 = vadd.f32 0.0, %v591
  %593 = vmatprep.mubr.f32.mxu0 0.0
  %594 = vmatmul.mubr.f32.gmra.mrb[0].mxu0 %v161
  %v595 = vpop.f32.mrb[0].mxu0
  %v596 = vadd.f32 0.0, %v595
  %v597 = vpop.f32.mrb[0].mxu0
  %v598 = vadd.f32 0.0, %v597
  %599 = vmatprep.mubr.f32.mxu0 0.0
  %600 = vmatmul.mubr.f32.gmra.mrb[0].mxu0 %v162
  %v601 = vpop.f32.mrb[0].mxu0
  %v602 = vadd.f32 0.0, %v601
  %v603 = vpop.f32.mrb[0].mxu0
  %v604 = vadd.f32 0.0, %v603
  %605 = vmatprep.mubr.f32.mxu0 0.0
  %606 = vmatmul.mubr.f32.gmra.mrb[0].mxu0 %v163
  %v607 = vpop.f32.mrb[0].mxu0
  %v608 = vadd.f32 0.0, %v607
  %v609 = vpop.f32.mrb[0].mxu0
  %v610 = vadd.f32 0.0, %v609
  %611 = vmatprep.mubr.f32.mxu0 0.0
  %612 = vmatmul.mubr.f32.gmra.mrb[0].mxu0 %v164
  %v613 = vpop.f32.mrb[0].mxu0
  %v614 = vadd.f32 0.0, %v613
  %v615 = vpop.f32.mrb[0].mxu0
  %v616 = vadd.f32 0.0, %v615
  %617 = vmatprep.mubr.f32.mxu0 0.0
  %618 = vmatmul.mubr.f32.gmra.mrb[0].mxu0 %v165
  %v619 = vpop.f32.mrb[0].mxu0
  %v620 = vadd.f32 0.0, %v619
  %v621 = vpop.f32.mrb[0].mxu0
  %v622 = vadd.f32 0.0, %v621
  %623 = vmatprep.mubr.f32.mxu0 0.0
  %624 = vmatmul.mubr.f32.gmra.mrb[0].mxu0 %v166
  %v625 = vpop.f32.mrb[0].mxu0
  %v626 = vadd.f32 0.0, %v625
  %v627 = vpop.f32.mrb[0].mxu0
  %v628 = vadd.f32 0.0, %v627
  %629 = vmatprep.mubr.f32.mxu0 0.0
  %630 = vmatmul.mubr.f32.gmra.mrb[0].mxu0 %v167
  %v631 = vpop.f32.mrb[0].mxu0
  %v632 = vadd.f32 0.0, %v631
  %v633 = vpop.f32.mrb[0].mxu0
  %v634 = vadd.f32 0.0, %v633
  %635 = vmatprep.mubr.f32.mxu0 0.0
  %636 = vmatmul.mubr.f32.gmra.mrb[0].mxu0 %v168
  %v637 = vpop.f32.mrb[0].mxu0
  %v638 = vadd.f32 0.0, %v637
  %v639 = vpop.f32.mrb[0].mxu0
  %v640 = vadd.f32 0.0, %v639
  %641 = vmatprep.mubr.f32.mxu0 0.0
  %642 = vmatmul.mubr.f32.gmra.mrb[0].mxu0 %v169
  %v643 = vpop.f32.mrb[0].mxu0
  %v644 = vadd.f32 0.0, %v643
  %v645 = vpop.f32.mrb[0].mxu0
  %v646 = vadd.f32 0.0, %v645
  %647 = vmatprep.mubr.f32.mxu0 0.0
  %648 = vmatmul.mubr.f32.gmra.mrb[0].mxu0 %v170
  %v649 = vpop.f32.mrb[0].mxu0
  %v650 = vadd.f32 0.0, %v649
  %v651 = vpop.f32.mrb[0].mxu0
  %v652 = vadd.f32 0.0, %v651
  %653 = vmatprep.mubr.f32.mxu0 0.0
  %654 = vmatmul.mubr.f32.gmra.mrb[0].mxu0 %v171
  %v655 = vpop.f32.mrb[0].mxu0
  %v656 = vadd.f32 0.0, %v655
  %v657 = vpop.f32.mrb[0].mxu0
  %v658 = vadd.f32 0.0, %v657
  %659 = vmatprep.mubr.f32.mxu0 0.0
  %660 = vmatmul.mubr.f32.gmra.mrb[0].mxu0 %v172
  %v661 = vpop.f32.mrb[0].mxu0
  %v662 = vadd.f32 0.0, %v661
  %v663 = vpop.f32.mrb[0].mxu0
  %v664 = vadd.f32 0.0, %v663
  %665 = vmatprep.mubr.f32.mxu0 0.0
  %666 = vmatmul.mubr.f32.gmra.mrb[0].mxu0 %v173
  %v667 = vpop.f32.mrb[0].mxu0
  %v668 = vadd.f32 0.0, %v667
  %v669 = vpop.f32.mrb[0].mxu0
  %v670 = vadd.f32 0.0, %v669
  %671 = vmatprep.mubr.f32.mxu0 0.0
  %672 = vmatmul.mubr.f32.gmra.mrb[0].mxu0 %v174
  %v673 = vpop.f32.mrb[0].mxu0
  %v674 = vadd.f32 0.0, %v673
  %v675 = vpop.f32.mrb[0].mxu0
  %v676 = vadd.f32 0.0, %v675
  %677 = vmatprep.mubr.f32.mxu0 0.0
  %678 = vmatmul.mubr.f32.gmra.mrb[0].mxu0 %v175
  %v679 = vpop.f32.mrb[0].mxu0
  %v680 = vadd.f32 0.0, %v679
  %v681 = vpop.f32.mrb[0].mxu0
  %v682 = vadd.f32 0.0, %v681
  %683 = vmatprep.mubr.f32.mxu0 0.0
  %684 = vmatmul.mubr.f32.gmra.mrb[0].mxu0 %v176
  %v685 = vpop.f32.mrb[0].mxu0
  %v686 = vadd.f32 0.0, %v685
  %v687 = vpop.f32.mrb[0].mxu0
  %v688 = vadd.f32 0.0, %v687
  %689 = vmatprep.mubr.f32.mxu0 0.0
  %690 = vmatmul.mubr.f32.gmra.mrb[0].mxu0 %v177
  %v691 = vpop.f32.mrb[0].mxu0
  %v692 = vadd.f32 0.0, %v691
  %v693 = vpop.f32.mrb[0].mxu0
  %v694 = vadd.f32 0.0, %v693
  %695 = vmatprep.mubr.f32.mxu0 0.0
  %696 = vmatmul.mubr.f32.gmra.mrb[0].mxu0 %v178
  %v697 = vpop.f32.mrb[0].mxu0
  %v698 = vadd.f32 0.0, %v697
  %v699 = vpop.f32.mrb[0].mxu0
  %v700 = vadd.f32 0.0, %v699
  %701 = vmatprep.mubr.f32.mxu0 0.0
  %702 = vmatmul.mubr.f32.gmra.mrb[0].mxu0 %v179
  %v703 = vpop.f32.mrb[0].mxu0
  %v704 = vadd.f32 0.0, %v703
  %v705 = vpop.f32.mrb[0].mxu0
  %v706 = vadd.f32 0.0, %v705
  %707 = vmatprep.mubr.f32.mxu0 0.0
  %708 = vmatmul.mubr.f32.gmra.mrb[0].mxu0 %v180
  %v709 = vpop.f32.mrb[0].mxu0
  %v710 = vadd.f32 0.0, %v709
  %v711 = vpop.f32.mrb[0].mxu0
  %v712 = vadd.f32 0.0, %v711
  %713 = vmatprep.mubr.f32.mxu0 0.0
  %714 = vmatmul.mubr.f32.gmra.mrb[0].mxu0 %v181
  %v715 = vpop.f32.mrb[0].mxu0
  %v716 = vadd.f32 0.0, %v715
  %v717 = vpop.f32.mrb[0].mxu0
  %v718 = vadd.f32 0.0, %v717
  %719 = vmatprep.mubr.f32.mxu0 0.0
  %720 = vmatmul.mubr.f32.gmra.mrb[0].mxu0 %v182
  %v721 = vpop.f32.mrb[0].mxu0
  %v722 = vadd.f32 0.0, %v721
  %v723 = vpop.f32.mrb[0].mxu0
  %v724 = vadd.f32 0.0, %v723
  %725 = vmatprep.mubr.f32.mxu0 0.0
  %726 = vmatmul.mubr.f32.gmra.mrb[0].mxu0 %v183
  %v727 = vpop.f32.mrb[0].mxu0
  %v728 = vadd.f32 0.0, %v727
  %v729 = vpop.f32.mrb[0].mxu0
  %v730 = vadd.f32 0.0, %v729
  %731 = vmatprep.mubr.f32.mxu0 0.0
  %732 = vmatmul.mubr.f32.gmra.mrb[0].mxu0 %v184
  %v733 = vpop.f32.mrb[0].mxu0
  %v734 = vadd.f32 0.0, %v733
  %v735 = vpop.f32.mrb[0].mxu0
  %v736 = vadd.f32 0.0, %v735
  %737 = vmatprep.mubr.f32.mxu0 0.0
  %738 = vmatmul.mubr.f32.gmra.mrb[0].mxu0 %v185
  %v739 = vpop.f32.mrb[0].mxu0
  %v740 = vadd.f32 0.0, %v739
  %v741 = vpop.f32.mrb[0].mxu0
  %v742 = vadd.f32 0.0, %v741
  %743 = vmatprep.mubr.f32.mxu0 0.0
  %744 = vmatmul.mubr.f32.gmra.mrb[0].mxu0 %v186
  %v745 = vpop.f32.mrb[0].mxu0
  %v746 = vadd.f32 0.0, %v745
  %v747 = vpop.f32.mrb[0].mxu0
  %v748 = vadd.f32 0.0, %v747
  %749 = vmatprep.mubr.f32.mxu0 0.0
  %750 = vmatmul.mubr.f32.gmra.mrb[0].mxu0 %v187
  %v751 = vpop.f32.mrb[0].mxu0
  %v752 = vadd.f32 0.0, %v751
  %v753 = vpop.f32.mrb[0].mxu0
  %v754 = vadd.f32 0.0, %v753
  %755 = vmatprep.mubr.f32.mxu0 0.0
  %756 = vmatmul.mubr.f32.gmra.mrb[0].mxu0 %v188
  %v757 = vpop.f32.mrb[0].mxu0
  %v758 = vadd.f32 0.0, %v757
  %v759 = vpop.f32.mrb[0].mxu0
  %v760 = vadd.f32 0.0, %v759
  %761 = vmatprep.mubr.f32.mxu0 0.0
  %762 = vmatmul.mubr.f32.gmra.mrb[0].mxu0 %v189
  %v763 = vpop.f32.mrb[0].mxu0
  %v764 = vadd.f32 0.0, %v763
  %v765 = vpop.f32.mrb[0].mxu0
  %v766 = vadd.f32 0.0, %v765
  %767 = vmatprep.mubr.f32.mxu0 0.0
  %768 = vmatmul.mubr.f32.gmra.mrb[0].mxu0 %v190
  %v769 = vpop.f32.mrb[0].mxu0
  %v770 = vadd.f32 0.0, %v769
  %v771 = vpop.f32.mrb[0].mxu0
  %v772 = vadd.f32 0.0, %v771
  %773 = vdwg.mxu0
  %v774 = vadd.f32 %v290, %v296
  %v775 = vadd.f32 %v774, %v302
  %v776 = vadd.f32 %v775, %v308
  %v777 = vadd.f32 %v776, %v314
  %v778 = vadd.f32 %v777, %v320
  %v779 = vadd.f32 %v778, %v326
  %v780 = vadd.f32 %v779, %v332
  %v781 = vadd.f32 %v780, %v338
  %v782 = vadd.f32 %v781, %v344
  %v783 = vadd.f32 %v782, %v350
  %v784 = vadd.f32 %v783, %v356
  %v785 = vadd.f32 %v784, %v362
  %v786 = vadd.f32 %v785, %v368
  %v787 = vadd.f32 %v786, %v374
  %v788 = vadd.f32 %v787, %v380
  %v789 = vadd.f32 %v788, %v386
  %v790 = vadd.f32 %v789, %v392
  %v791 = vadd.f32 %v790, %v398
  %v792 = vadd.f32 %v791, %v404
  %v793 = vadd.f32 %v792, %v410
  %v794 = vadd.f32 %v793, %v416
  %v795 = vadd.f32 %v794, %v422
  %v796 = vadd.f32 %v795, %v428
  %v797 = vadd.f32 %v796, %v434
  %v798 = vadd.f32 %v797, %v440
  %v799 = vadd.f32 %v798, %v446
  %v800 = vadd.f32 %v799, %v452
  %v801 = vadd.f32 %v800, %v458
  %v802 = vadd.f32 %v801, %v464
  %v803 = vadd.f32 %v802, %v470
  %v804 = vadd.f32 %v803, %v476
  %v805 = vadd.f32 %v804, %v482
  %v806 = vadd.f32 %v805, %v488
  %v807 = vadd.f32 %v806, %v494
  %v808 = vadd.f32 %v807, %v500
  %v809 = vadd.f32 %v808, %v506
  %v810 = vadd.f32 %v809, %v512
  %v811 = vadd.f32 %v810, %v518
  %v812 = vadd.f32 %v811, %v524
  %v813 = vadd.f32 %v812, %v530
  %v814 = vadd.f32 %v813, %v536
  %v815 = vadd.f32 %v814, %v542
  %v816 = vadd.f32 %v815, %v548
  %v817 = vadd.f32 %v816, %v554
  %v818 = vadd.f32 %v817, %v560
  %v819 = vadd.f32 %v818, %v566
  %v820 = vadd.f32 %v819, %v572
  %v821 = vadd.f32 %v820, %v578
  %v822 = vadd.f32 %v821, %v584
  %v823 = vadd.f32 %v822, %v590
  %v824 = vadd.f32 %v823, %v596
  %v825 = vadd.f32 %v824, %v602
  %v826 = vadd.f32 %v825, %v608
  %v827 = vadd.f32 %v826, %v614
  %v828 = vadd.f32 %v827, %v620
  %v829 = vadd.f32 %v828, %v626
  %v830 = vadd.f32 %v829, %v632
  %v831 = vadd.f32 %v830, %v638
  %v832 = vadd.f32 %v831, %v644
  %v833 = vadd.f32 %v832, %v650
  %v834 = vadd.f32 %v833, %v656
  %v835 = vadd.f32 %v834, %v662
  %v836 = vadd.f32 %v835, %v668
  %v837 = vadd.f32 %v836, %v674
  %v838 = vadd.f32 %v837, %v680
  %v839 = vadd.f32 %v838, %v686
  %v840 = vadd.f32 %v839, %v692
  %v841 = vadd.f32 %v840, %v698
  %v842 = vadd.f32 %v841, %v704
  %v843 = vadd.f32 %v842, %v710
  %v844 = vadd.f32 %v843, %v716
  %v845 = vadd.f32 %v844, %v722
  %v846 = vadd.f32 %v845, %v728
  %v847 = vadd.f32 %v846, %v734
  %v848 = vadd.f32 %v847, %v740
  %v849 = vadd.f32 %v848, %v746
  %v850 = vadd.f32 %v849, %v752
  %v851 = vadd.f32 %v850, %v758
  %v852 = vadd.f32 %v851, %v764
  %v853 = vadd.f32 %v852, %v770
  %v854 = vrot.slane %v853, 4
  %v855 = vadd.f32 %v853, %v854
  %v856 = vrot.slane %v855, 2
  %v857 = vadd.f32 %v855, %v856
  %v858 = vrot.slane %v857, 1
  %v859 = vadd.f32 %v857, %v858
  %v860 = vmul.f32 %v290, %v290
  %v861 = vmul.f32 %v296, %v296
  %v862 = vmul.f32 %v302, %v302
  %v863 = vmul.f32 %v308, %v308
  %v864 = vmul.f32 %v314, %v314
  %v865 = vmul.f32 %v320, %v320
  %v866 = vmul.f32 %v326, %v326
  %v867 = vmul.f32 %v332, %v332
  %v868 = vmul.f32 %v338, %v338
  %v869 = vmul.f32 %v344, %v344
  %v870 = vmul.f32 %v350, %v350
  %v871 = vmul.f32 %v356, %v356
  %v872 = vmul.f32 %v362, %v362
  %v873 = vmul.f32 %v368, %v368
  %v874 = vmul.f32 %v374, %v374
  %v875 = vmul.f32 %v380, %v380
  %v876 = vmul.f32 %v386, %v386
  %v877 = vmul.f32 %v392, %v392
  %v878 = vmul.f32 %v398, %v398
  %v879 = vmul.f32 %v404, %v404
  %v880 = vmul.f32 %v410, %v410
  %v881 = vmul.f32 %v416, %v416
  %v882 = vmul.f32 %v422, %v422
  %v883 = vmul.f32 %v428, %v428
  %v884 = vmul.f32 %v434, %v434
  %v885 = vmul.f32 %v440, %v440
  %v886 = vmul.f32 %v446, %v446
  %v887 = vmul.f32 %v452, %v452
  %v888 = vmul.f32 %v458, %v458
  %v889 = vmul.f32 %v464, %v464
  %v890 = vmul.f32 %v470, %v470
  %v891 = vmul.f32 %v476, %v476
  %v892 = vmul.f32 %v482, %v482
  %v893 = vmul.f32 %v488, %v488
  %v894 = vmul.f32 %v494, %v494
  %v895 = vmul.f32 %v500, %v500
  %v896 = vmul.f32 %v506, %v506
  %v897 = vmul.f32 %v512, %v512
  %v898 = vmul.f32 %v518, %v518
  %v899 = vmul.f32 %v524, %v524
  %v900 = vmul.f32 %v530, %v530
  %v901 = vmul.f32 %v536, %v536
  %v902 = vmul.f32 %v542, %v542
  %v903 = vmul.f32 %v548, %v548
  %v904 = vmul.f32 %v554, %v554
  %v905 = vmul.f32 %v560, %v560
  %v906 = vmul.f32 %v566, %v566
  %v907 = vmul.f32 %v572, %v572
  %v908 = vmul.f32 %v578, %v578
  %v909 = vmul.f32 %v584, %v584
  %v910 = vmul.f32 %v590, %v590
  %v911 = vmul.f32 %v596, %v596
  %v912 = vmul.f32 %v602, %v602
  %v913 = vmul.f32 %v608, %v608
  %v914 = vmul.f32 %v614, %v614
  %v915 = vmul.f32 %v620, %v620
  %v916 = vmul.f32 %v626, %v626
  %v917 = vmul.f32 %v632, %v632
  %v918 = vmul.f32 %v638, %v638
  %v919 = vmul.f32 %v644, %v644
  %v920 = vmul.f32 %v650, %v650
  %v921 = vmul.f32 %v656, %v656
  %v922 = vmul.f32 %v662, %v662
  %v923 = vmul.f32 %v668, %v668
  %v924 = vmul.f32 %v674, %v674
  %v925 = vmul.f32 %v680, %v680
  %v926 = vmul.f32 %v686, %v686
  %v927 = vmul.f32 %v692, %v692
  %v928 = vmul.f32 %v698, %v698
  %v929 = vmul.f32 %v704, %v704
  %v930 = vmul.f32 %v710, %v710
  %v931 = vmul.f32 %v716, %v716
  %v932 = vmul.f32 %v722, %v722
  %v933 = vmul.f32 %v728, %v728
  %v934 = vmul.f32 %v734, %v734
  %v935 = vmul.f32 %v740, %v740
  %v936 = vmul.f32 %v746, %v746
  %v937 = vmul.f32 %v752, %v752
  %v938 = vmul.f32 %v758, %v758
  %v939 = vmul.f32 %v764, %v764
  %v940 = vmul.f32 %v770, %v770
  %v941 = vadd.f32 %v860, %v861
  %v942 = vadd.f32 %v941, %v862
  %v943 = vadd.f32 %v942, %v863
  %v944 = vadd.f32 %v943, %v864
  %v945 = vadd.f32 %v944, %v865
  %v946 = vadd.f32 %v945, %v866
  %v947 = vadd.f32 %v946, %v867
  %v948 = vadd.f32 %v947, %v868
  %v949 = vadd.f32 %v948, %v869
  %v950 = vadd.f32 %v949, %v870
  %v951 = vadd.f32 %v950, %v871
  %v952 = vadd.f32 %v951, %v872
  %v953 = vadd.f32 %v952, %v873
  %v954 = vadd.f32 %v953, %v874
  %v955 = vadd.f32 %v954, %v875
  %v956 = vadd.f32 %v955, %v876
  %v957 = vadd.f32 %v956, %v877
  %v958 = vadd.f32 %v957, %v878
  %v959 = vadd.f32 %v958, %v879
  %v960 = vadd.f32 %v959, %v880
  %v961 = vadd.f32 %v960, %v881
  %v962 = vadd.f32 %v961, %v882
  %v963 = vadd.f32 %v962, %v883
  %v964 = vadd.f32 %v963, %v884
  %v965 = vadd.f32 %v964, %v885
  %v966 = vadd.f32 %v965, %v886
  %v967 = vadd.f32 %v966, %v887
  %v968 = vadd.f32 %v967, %v888
  %v969 = vadd.f32 %v968, %v889
  %v970 = vadd.f32 %v969, %v890
  %v971 = vadd.f32 %v970, %v891
  %v972 = vadd.f32 %v971, %v892
  %v973 = vadd.f32 %v972, %v893
  %v974 = vadd.f32 %v973, %v894
  %v975 = vadd.f32 %v974, %v895
  %v976 = vadd.f32 %v975, %v896
  %v977 = vadd.f32 %v976, %v897
  %v978 = vadd.f32 %v977, %v898
  %v979 = vadd.f32 %v978, %v899
  %v980 = vadd.f32 %v979, %v900
  %v981 = vadd.f32 %v980, %v901
  %v982 = vadd.f32 %v981, %v902
  %v983 = vadd.f32 %v982, %v903
  %v984 = vadd.f32 %v983, %v904
  %v985 = vadd.f32 %v984, %v905
  %v986 = vadd.f32 %v985, %v906
  %v987 = vadd.f32 %v986, %v907
  %v988 = vadd.f32 %v987, %v908
  %v989 = vadd.f32 %v988, %v909
  %v990 = vadd.f32 %v989, %v910
  %v991 = vadd.f32 %v990, %v911
  %v992 = vadd.f32 %v991, %v912
  %v993 = vadd.f32 %v992, %v913
  %v994 = vadd.f32 %v993, %v914
  %v995 = vadd.f32 %v994, %v915
  %v996 = vadd.f32 %v995, %v916
  %v997 = vadd.f32 %v996, %v917
  %v998 = vadd.f32 %v997, %v918
  %v999 = vadd.f32 %v998, %v919
  %v1000 = vadd.f32 %v999, %v920
  %v1001 = vadd.f32 %v1000, %v921
  %v1002 = vadd.f32 %v1001, %v922
  %v1003 = vadd.f32 %v1002, %v923
  %v1004 = vadd.f32 %v1003, %v924
  %v1005 = vadd.f32 %v1004, %v925
  %v1006 = vadd.f32 %v1005, %v926
  %v1007 = vadd.f32 %v1006, %v927
  %v1008 = vadd.f32 %v1007, %v928
  %v1009 = vadd.f32 %v1008, %v929
  %v1010 = vadd.f32 %v1009, %v930
  %v1011 = vadd.f32 %v1010, %v931
  %v1012 = vadd.f32 %v1011, %v932
  %v1013 = vadd.f32 %v1012, %v933
  %v1014 = vadd.f32 %v1013, %v934
  %v1015 = vadd.f32 %v1014, %v935
  %v1016 = vadd.f32 %v1015, %v936
  %v1017 = vadd.f32 %v1016, %v937
  %v1018 = vadd.f32 %v1017, %v938
  %v1019 = vadd.f32 %v1018, %v939
  %v1020 = vadd.f32 %v1019, %v940
  %v1021 = vrot.slane %v1020, 4
  %v1022 = vadd.f32 %v1020, %v1021
  %v1023 = vrot.slane %v1022, 2
  %v1024 = vadd.f32 %v1022, %v1023
  %v1025 = vrot.slane %v1024, 1
  %v1026 = vadd.f32 %v1024, %v1025
  %v1027 = vmul.f32 %v859, 0.001953125
  %v1028 = vmul.f32 %v1026, 0.001953125
  %v1029 = vmul.f32 %v1027, %v1027
  %v1030 = vsub.f32 %v1028, %v1029
  %v1031 = vadd.f32 %v1030, 1e-05
  %v1032 = vrsqrt.pop %v1031
  %v1033 = vmul.f32 %v104, %v1032
  %v1034 = vmul.f32 %v1027, %v1033
  %v1035 = vsub.f32 %v105, %v1034
  %v1036 = vlaneseq
  %v1037 = vshrl.u32 %v1036, 7
  %v1038 = vsub.s32 0, %v1037
  %v1039 = vrot.slane %v1033, %v1038
  %v1040 = vmul.f32 %v290, %v1039
  %v1041 = vmul.f32 %v296, %v1039
  %v1042 = vmul.f32 %v302, %v1039
  %v1043 = vmul.f32 %v308, %v1039
  %v1044 = vmul.f32 %v314, %v1039
  %v1045 = vmul.f32 %v320, %v1039
  %v1046 = vmul.f32 %v326, %v1039
  %v1047 = vmul.f32 %v332, %v1039
  %v1048 = vmul.f32 %v338, %v1039
  %v1049 = vmul.f32 %v344, %v1039
  %v1050 = vmul.f32 %v350, %v1039
  %v1051 = vmul.f32 %v356, %v1039
  %v1052 = vmul.f32 %v362, %v1039
  %v1053 = vmul.f32 %v368, %v1039
  %v1054 = vmul.f32 %v374, %v1039
  %v1055 = vmul.f32 %v380, %v1039
  %v1056 = vmul.f32 %v386, %v1039
  %v1057 = vmul.f32 %v392, %v1039
  %v1058 = vmul.f32 %v398, %v1039
  %v1059 = vmul.f32 %v404, %v1039
  %v1060 = vmul.f32 %v410, %v1039
  %v1061 = vmul.f32 %v416, %v1039
  %v1062 = vmul.f32 %v422, %v1039
  %v1063 = vmul.f32 %v428, %v1039
  %v1064 = vmul.f32 %v434, %v1039
  %v1065 = vmul.f32 %v440, %v1039
  %v1066 = vmul.f32 %v446, %v1039
  %v1067 = vmul.f32 %v452, %v1039
  %v1068 = vmul.f32 %v458, %v1039
  %v1069 = vmul.f32 %v464, %v1039
  %v1070 = vmul.f32 %v470, %v1039
  %v1071 = vmul.f32 %v476, %v1039
  %v1072 = vmul.f32 %v482, %v1039
  %v1073 = vmul.f32 %v488, %v1039
  %v1074 = vmul.f32 %v494, %v1039
  %v1075 = vmul.f32 %v500, %v1039
  %v1076 = vmul.f32 %v506, %v1039
  %v1077 = vmul.f32 %v512, %v1039
  %v1078 = vmul.f32 %v518, %v1039
  %v1079 = vmul.f32 %v524, %v1039
  %v1080 = vmul.f32 %v530, %v1039
  %v1081 = vmul.f32 %v536, %v1039
  %v1082 = vmul.f32 %v542, %v1039
  %v1083 = vmul.f32 %v548, %v1039
  %v1084 = vmul.f32 %v554, %v1039
  %v1085 = vmul.f32 %v560, %v1039
  %v1086 = vmul.f32 %v566, %v1039
  %v1087 = vmul.f32 %v572, %v1039
  %v1088 = vmul.f32 %v578, %v1039
  %v1089 = vmul.f32 %v584, %v1039
  %v1090 = vmul.f32 %v590, %v1039
  %v1091 = vmul.f32 %v596, %v1039
  %v1092 = vmul.f32 %v602, %v1039
  %v1093 = vmul.f32 %v608, %v1039
  %v1094 = vmul.f32 %v614, %v1039
  %v1095 = vmul.f32 %v620, %v1039
  %v1096 = vmul.f32 %v626, %v1039
  %v1097 = vmul.f32 %v632, %v1039
  %v1098 = vmul.f32 %v638, %v1039
  %v1099 = vmul.f32 %v644, %v1039
  %v1100 = vmul.f32 %v650, %v1039
  %v1101 = vmul.f32 %v656, %v1039
  %v1102 = vmul.f32 %v662, %v1039
  %v1103 = vmul.f32 %v668, %v1039
  %v1104 = vmul.f32 %v674, %v1039
  %v1105 = vmul.f32 %v680, %v1039
  %v1106 = vmul.f32 %v686, %v1039
  %v1107 = vmul.f32 %v692, %v1039
  %v1108 = vmul.f32 %v698, %v1039
  %v1109 = vmul.f32 %v704, %v1039
  %v1110 = vmul.f32 %v710, %v1039
  %v1111 = vmul.f32 %v716, %v1039
  %v1112 = vmul.f32 %v722, %v1039
  %v1113 = vmul.f32 %v728, %v1039
  %v1114 = vmul.f32 %v734, %v1039
  %v1115 = vmul.f32 %v740, %v1039
  %v1116 = vmul.f32 %v746, %v1039
  %v1117 = vmul.f32 %v752, %v1039
  %v1118 = vmul.f32 %v758, %v1039
  %v1119 = vmul.f32 %v764, %v1039
  %v1120 = vmul.f32 %v770, %v1039
  %v1121 = vlaneseq
  %v1122 = vshrl.u32 %v1121, 7
  %v1123 = vsub.s32 0, %v1122
  %v1124 = vrot.slane %v1035, %v1123
  %v1125 = vadd.f32 %v1040, %v1124
  %v1126 = vadd.f32 %v1041, %v1124
  %v1127 = vadd.f32 %v1042, %v1124
  %v1128 = vadd.f32 %v1043, %v1124
  %v1129 = vadd.f32 %v1044, %v1124
  %v1130 = vadd.f32 %v1045, %v1124
  %v1131 = vadd.f32 %v1046, %v1124
  %v1132 = vadd.f32 %v1047, %v1124
  %v1133 = vadd.f32 %v1048, %v1124
  %v1134 = vadd.f32 %v1049, %v1124
  %v1135 = vadd.f32 %v1050, %v1124
  %v1136 = vadd.f32 %v1051, %v1124
  %v1137 = vadd.f32 %v1052, %v1124
  %v1138 = vadd.f32 %v1053, %v1124
  %v1139 = vadd.f32 %v1054, %v1124
  %v1140 = vadd.f32 %v1055, %v1124
  %v1141 = vadd.f32 %v1056, %v1124
  %v1142 = vadd.f32 %v1057, %v1124
  %v1143 = vadd.f32 %v1058, %v1124
  %v1144 = vadd.f32 %v1059, %v1124
  %v1145 = vadd.f32 %v1060, %v1124
  %v1146 = vadd.f32 %v1061, %v1124
  %v1147 = vadd.f32 %v1062, %v1124
  %v1148 = vadd.f32 %v1063, %v1124
  %v1149 = vadd.f32 %v1064, %v1124
  %v1150 = vadd.f32 %v1065, %v1124
  %v1151 = vadd.f32 %v1066, %v1124
  %v1152 = vadd.f32 %v1067, %v1124
  %v1153 = vadd.f32 %v1068, %v1124
  %v1154 = vadd.f32 %v1069, %v1124
  %v1155 = vadd.f32 %v1070, %v1124
  %v1156 = vadd.f32 %v1071, %v1124
  %v1157 = vadd.f32 %v1072, %v1124
  %v1158 = vadd.f32 %v1073, %v1124
  %v1159 = vadd.f32 %v1074, %v1124
  %v1160 = vadd.f32 %v1075, %v1124
  %v1161 = vadd.f32 %v1076, %v1124
  %v1162 = vadd.f32 %v1077, %v1124
  %v1163 = vadd.f32 %v1078, %v1124
  %v1164 = vadd.f32 %v1079, %v1124
  %v1165 = vadd.f32 %v1080, %v1124
  %v1166 = vadd.f32 %v1081, %v1124
  %v1167 = vadd.f32 %v1082, %v1124
  %v1168 = vadd.f32 %v1083, %v1124
  %v1169 = vadd.f32 %v1084, %v1124
  %v1170 = vadd.f32 %v1085, %v1124
  %v1171 = vadd.f32 %v1086, %v1124
  %v1172 = vadd.f32 %v1087, %v1124
  %v1173 = vadd.f32 %v1088, %v1124
  %v1174 = vadd.f32 %v1089, %v1124
  %v1175 = vadd.f32 %v1090, %v1124
  %v1176 = vadd.f32 %v1091, %v1124
  %v1177 = vadd.f32 %v1092, %v1124
  %v1178 = vadd.f32 %v1093, %v1124
  %v1179 = vadd.f32 %v1094, %v1124
  %v1180 = vadd.f32 %v1095, %v1124
  %v1181 = vadd.f32 %v1096, %v1124
  %v1182 = vadd.f32 %v1097, %v1124
  %v1183 = vadd.f32 %v1098, %v1124
  %v1184 = vadd.f32 %v1099, %v1124
  %v1185 = vadd.f32 %v1100, %v1124
  %v1186 = vadd.f32 %v1101, %v1124
  %v1187 = vadd.f32 %v1102, %v1124
  %v1188 = vadd.f32 %v1103, %v1124
  %v1189 = vadd.f32 %v1104, %v1124
  %v1190 = vadd.f32 %v1105, %v1124
  %v1191 = vadd.f32 %v1106, %v1124
  %v1192 = vadd.f32 %v1107, %v1124
  %v1193 = vadd.f32 %v1108, %v1124
  %v1194 = vadd.f32 %v1109, %v1124
  %v1195 = vadd.f32 %v1110, %v1124
  %v1196 = vadd.f32 %v1111, %v1124
  %v1197 = vadd.f32 %v1112, %v1124
  %v1198 = vadd.f32 %v1113, %v1124
  %v1199 = vadd.f32 %v1114, %v1124
  %v1200 = vadd.f32 %v1115, %v1124
  %v1201 = vadd.f32 %v1116, %v1124
  %v1202 = vadd.f32 %v1117, %v1124
  %v1203 = vadd.f32 %v1118, %v1124
  %v1204 = vadd.f32 %v1119, %v1124
  %v1205 = vadd.f32 %v1120, %v1124
  %v1206 = vmax.f32 %v1125, 0.0
  %v1207 = vmax.f32 %v1126, 0.0
  %v1208 = vmax.f32 %v1127, 0.0
  %v1209 = vmax.f32 %v1128, 0.0
  %v1210 = vmax.f32 %v1129, 0.0
  %v1211 = vmax.f32 %v1130, 0.0
  %v1212 = vmax.f32 %v1131, 0.0
  %v1213 = vmax.f32 %v1132, 0.0
  %v1214 = vmax.f32 %v1133, 0.0
  %v1215 = vmax.f32 %v1134, 0.0
  %v1216 = vmax.f32 %v1135, 0.0
  %v1217 = vmax.f32 %v1136, 0.0
  %v1218 = vmax.f32 %v1137, 0.0
  %v1219 = vmax.f32 %v1138, 0.0
  %v1220 = vmax.f32 %v1139, 0.0
  %v1221 = vmax.f32 %v1140, 0.0
  %v1222 = vmax.f32 %v1141, 0.0
  %v1223 = vmax.f32 %v1142, 0.0
  %v1224 = vmax.f32 %v1143, 0.0
  %v1225 = vmax.f32 %v1144, 0.0
  %v1226 = vmax.f32 %v1145, 0.0
  %v1227 = vmax.f32 %v1146, 0.0
  %v1228 = vmax.f32 %v1147, 0.0
  %v1229 = vmax.f32 %v1148, 0.0
  %v1230 = vmax.f32 %v1149, 0.0
  %v1231 = vmax.f32 %v1150, 0.0
  %v1232 = vmax.f32 %v1151, 0.0
  %v1233 = vmax.f32 %v1152, 0.0
  %v1234 = vmax.f32 %v1153, 0.0
  %v1235 = vmax.f32 %v1154, 0.0
  %v1236 = vmax.f32 %v1155, 0.0
  %v1237 = vmax.f32 %v1156, 0.0
  %v1238 = vmax.f32 %v1157, 0.0
  %v1239 = vmax.f32 %v1158, 0.0
  %v1240 = vmax.f32 %v1159, 0.0
  %v1241 = vmax.f32 %v1160, 0.0
  %v1242 = vmax.f32 %v1161, 0.0
  %v1243 = vmax.f32 %v1162, 0.0
  %v1244 = vmax.f32 %v1163, 0.0
  %v1245 = vmax.f32 %v1164, 0.0
  %v1246 = vmax.f32 %v1165, 0.0
  %v1247 = vmax.f32 %v1166, 0.0
  %v1248 = vmax.f32 %v1167, 0.0
  %v1249 = vmax.f32 %v1168, 0.0
  %v1250 = vmax.f32 %v1169, 0.0
  %v1251 = vmax.f32 %v1170, 0.0
  %v1252 = vmax.f32 %v1171, 0.0
  %v1253 = vmax.f32 %v1172, 0.0
  %v1254 = vmax.f32 %v1173, 0.0
  %v1255 = vmax.f32 %v1174, 0.0
  %v1256 = vmax.f32 %v1175, 0.0
  %v1257 = vmax.f32 %v1176, 0.0
  %v1258 = vmax.f32 %v1177, 0.0
  %v1259 = vmax.f32 %v1178, 0.0
  %v1260 = vmax.f32 %v1179, 0.0
  %v1261 = vmax.f32 %v1180, 0.0
  %v1262 = vmax.f32 %v1181, 0.0
  %v1263 = vmax.f32 %v1182, 0.0
  %v1264 = vmax.f32 %v1183, 0.0
  %v1265 = vmax.f32 %v1184, 0.0
  %v1266 = vmax.f32 %v1185, 0.0
  %v1267 = vmax.f32 %v1186, 0.0
  %v1268 = vmax.f32 %v1187, 0.0
  %v1269 = vmax.f32 %v1188, 0.0
  %v1270 = vmax.f32 %v1189, 0.0
  %v1271 = vmax.f32 %v1190, 0.0
  %v1272 = vmax.f32 %v1191, 0.0
  %v1273 = vmax.f32 %v1192, 0.0
  %v1274 = vmax.f32 %v1193, 0.0
  %v1275 = vmax.f32 %v1194, 0.0
  %v1276 = vmax.f32 %v1195, 0.0
  %v1277 = vmax.f32 %v1196, 0.0
  %v1278 = vmax.f32 %v1197, 0.0
  %v1279 = vmax.f32 %v1198, 0.0
  %v1280 = vmax.f32 %v1199, 0.0
  %v1281 = vmax.f32 %v1200, 0.0
  %v1282 = vmax.f32 %v1201, 0.0
  %v1283 = vmax.f32 %v1202, 0.0
  %v1284 = vmax.f32 %v1203, 0.0
  %v1285 = vmax.f32 %v1204, 0.0
  %v1286 = vmax.f32 %v1205, 0.0
  %1288 = vset.pattern.permute.xlu0 0
  %1289 = vperm.xlu0 %1288, %v23
  %v1290 = vpop.permute.xlu0 %1289
  %1293 = vset.pattern.permute.xlu0 0
  %1294 = vperm.xlu0 %1293, %v24
  %v1295 = vpop.permute.xlu0 %1294
  %1298 = vset.pattern.permute.xlu0 0
  %1299 = vperm.xlu0 %1298, %v25
  %v1300 = vpop.permute.xlu0 %1299
  %1303 = vset.pattern.permute.xlu0 0
  %1304 = vperm.xlu0 %1303, %v26
  %v1305 = vpop.permute.xlu0 %1304
  %1308 = vset.pattern.permute.xlu0 0
  %1309 = vperm.xlu0 %1308, %v27
  %v1310 = vpop.permute.xlu0 %1309
  %1313 = vset.pattern.permute.xlu0 0
  %1314 = vperm.xlu0 %1313, %v28
  %v1315 = vpop.permute.xlu0 %1314
  %1318 = vset.pattern.permute.xlu0 0
  %1319 = vperm.xlu0 %1318, %v29
  %v1320 = vpop.permute.xlu0 %1319
  %1323 = vset.pattern.permute.xlu0 0
  %1324 = vperm.xlu0 %1323, %v30
  %v1325 = vpop.permute.xlu0 %1324
  %1328 = vset.pattern.permute.xlu0 0
  %1329 = vperm.xlu0 %1328, %v31
  %v1330 = vpop.permute.xlu0 %1329
  %1333 = vset.pattern.permute.xlu0 0
  %1334 = vperm.xlu0 %1333, %v32
  %v1335 = vpop.permute.xlu0 %1334
  %1338 = vset.pattern.permute.xlu0 0
  %1339 = vperm.xlu0 %1338, %v33
  %v1340 = vpop.permute.xlu0 %1339
  %1343 = vset.pattern.permute.xlu0 0
  %1344 = vperm.xlu0 %1343, %v34
  %v1345 = vpop.permute.xlu0 %1344
  %1348 = vset.pattern.permute.xlu0 0
  %1349 = vperm.xlu0 %1348, %v35
  %v1350 = vpop.permute.xlu0 %1349
  %1353 = vset.pattern.permute.xlu0 0
  %1354 = vperm.xlu0 %1353, %v36
  %v1355 = vpop.permute.xlu0 %1354
  %1358 = vset.pattern.permute.xlu0 0
  %1359 = vperm.xlu0 %1358, %v37
  %v1360 = vpop.permute.xlu0 %1359
  %1363 = vset.pattern.permute.xlu0 0
  %1364 = vperm.xlu0 %1363, %v38
  %v1365 = vpop.permute.xlu0 %1364
  %1368 = vset.pattern.permute.xlu0 0
  %1369 = vperm.xlu0 %1368, %v39
  %v1370 = vpop.permute.xlu0 %1369
  %1373 = vset.pattern.permute.xlu0 0
  %1374 = vperm.xlu0 %1373, %v40
  %v1375 = vpop.permute.xlu0 %1374
  %1378 = vset.pattern.permute.xlu0 0
  %1379 = vperm.xlu0 %1378, %v41
  %v1380 = vpop.permute.xlu0 %1379
  %1383 = vset.pattern.permute.xlu0 0
  %1384 = vperm.xlu0 %1383, %v42
  %v1385 = vpop.permute.xlu0 %1384
  %1388 = vset.pattern.permute.xlu0 0
  %1389 = vperm.xlu0 %1388, %v43
  %v1390 = vpop.permute.xlu0 %1389
  %1393 = vset.pattern.permute.xlu0 0
  %1394 = vperm.xlu0 %1393, %v44
  %v1395 = vpop.permute.xlu0 %1394
  %1398 = vset.pattern.permute.xlu0 0
  %1399 = vperm.xlu0 %1398, %v45
  %v1400 = vpop.permute.xlu0 %1399
  %1403 = vset.pattern.permute.xlu0 0
  %1404 = vperm.xlu0 %1403, %v46
  %v1405 = vpop.permute.xlu0 %1404
  %1408 = vset.pattern.permute.xlu0 0
  %1409 = vperm.xlu0 %1408, %v47
  %v1410 = vpop.permute.xlu0 %1409
  %1413 = vset.pattern.permute.xlu0 0
  %1414 = vperm.xlu0 %1413, %v48
  %v1415 = vpop.permute.xlu0 %1414
  %1418 = vset.pattern.permute.xlu0 0
  %1419 = vperm.xlu0 %1418, %v49
  %v1420 = vpop.permute.xlu0 %1419
  %1423 = vset.pattern.permute.xlu0 0
  %1424 = vperm.xlu0 %1423, %v50
  %v1425 = vpop.permute.xlu0 %1424
  %1428 = vset.pattern.permute.xlu0 0
  %1429 = vperm.xlu0 %1428, %v51
  %v1430 = vpop.permute.xlu0 %1429
  %1433 = vset.pattern.permute.xlu0 0
  %1434 = vperm.xlu0 %1433, %v52
  %v1435 = vpop.permute.xlu0 %1434
  %1438 = vset.pattern.permute.xlu0 0
  %1439 = vperm.xlu0 %1438, %v53
  %v1440 = vpop.permute.xlu0 %1439
  %1443 = vset.pattern.permute.xlu0 0
  %1444 = vperm.xlu0 %1443, %v54
  %v1445 = vpop.permute.xlu0 %1444
  %1448 = vset.pattern.permute.xlu0 0
  %1449 = vperm.xlu0 %1448, %v55
  %v1450 = vpop.permute.xlu0 %1449
  %1453 = vset.pattern.permute.xlu0 0
  %1454 = vperm.xlu0 %1453, %v56
  %v1455 = vpop.permute.xlu0 %1454
  %1458 = vset.pattern.permute.xlu0 0
  %1459 = vperm.xlu0 %1458, %v57
  %v1460 = vpop.permute.xlu0 %1459
  %1463 = vset.pattern.permute.xlu0 0
  %1464 = vperm.xlu0 %1463, %v58
  %v1465 = vpop.permute.xlu0 %1464
  %1468 = vset.pattern.permute.xlu0 0
  %1469 = vperm.xlu0 %1468, %v59
  %v1470 = vpop.permute.xlu0 %1469
  %1473 = vset.pattern.permute.xlu0 0
  %1474 = vperm.xlu0 %1473, %v60
  %v1475 = vpop.permute.xlu0 %1474
  %1478 = vset.pattern.permute.xlu0 0
  %1479 = vperm.xlu0 %1478, %v61
  %v1480 = vpop.permute.xlu0 %1479
  %1483 = vset.pattern.permute.xlu0 0
  %1484 = vperm.xlu0 %1483, %v62
  %v1485 = vpop.permute.xlu0 %1484
  %1488 = vset.pattern.permute.xlu0 0
  %1489 = vperm.xlu0 %1488, %v63
  %v1490 = vpop.permute.xlu0 %1489
  %1493 = vset.pattern.permute.xlu0 0
  %1494 = vperm.xlu0 %1493, %v64
  %v1495 = vpop.permute.xlu0 %1494
  %1498 = vset.pattern.permute.xlu0 0
  %1499 = vperm.xlu0 %1498, %v65
  %v1500 = vpop.permute.xlu0 %1499
  %1503 = vset.pattern.permute.xlu0 0
  %1504 = vperm.xlu0 %1503, %v66
  %v1505 = vpop.permute.xlu0 %1504
  %1508 = vset.pattern.permute.xlu0 0
  %1509 = vperm.xlu0 %1508, %v67
  %v1510 = vpop.permute.xlu0 %1509
  %1513 = vset.pattern.permute.xlu0 0
  %1514 = vperm.xlu0 %1513, %v68
  %v1515 = vpop.permute.xlu0 %1514
  %1518 = vset.pattern.permute.xlu0 0
  %1519 = vperm.xlu0 %1518, %v69
  %v1520 = vpop.permute.xlu0 %1519
  %1523 = vset.pattern.permute.xlu0 0
  %1524 = vperm.xlu0 %1523, %v70
  %v1525 = vpop.permute.xlu0 %1524
  %1528 = vset.pattern.permute.xlu0 0
  %1529 = vperm.xlu0 %1528, %v71
  %v1530 = vpop.permute.xlu0 %1529
  %1533 = vset.pattern.permute.xlu0 0
  %1534 = vperm.xlu0 %1533, %v72
  %v1535 = vpop.permute.xlu0 %1534
  %1538 = vset.pattern.permute.xlu0 0
  %1539 = vperm.xlu0 %1538, %v73
  %v1540 = vpop.permute.xlu0 %1539
  %1543 = vset.pattern.permute.xlu0 0
  %1544 = vperm.xlu0 %1543, %v74
  %v1545 = vpop.permute.xlu0 %1544
  %1548 = vset.pattern.permute.xlu0 0
  %1549 = vperm.xlu0 %1548, %v75
  %v1550 = vpop.permute.xlu0 %1549
  %1553 = vset.pattern.permute.xlu0 0
  %1554 = vperm.xlu0 %1553, %v76
  %v1555 = vpop.permute.xlu0 %1554
  %1558 = vset.pattern.permute.xlu0 0
  %1559 = vperm.xlu0 %1558, %v77
  %v1560 = vpop.permute.xlu0 %1559
  %1563 = vset.pattern.permute.xlu0 0
  %1564 = vperm.xlu0 %1563, %v78
  %v1565 = vpop.permute.xlu0 %1564
  %1568 = vset.pattern.permute.xlu0 0
  %1569 = vperm.xlu0 %1568, %v79
  %v1570 = vpop.permute.xlu0 %1569
  %1573 = vset.pattern.permute.xlu0 0
  %1574 = vperm.xlu0 %1573, %v80
  %v1575 = vpop.permute.xlu0 %1574
  %1578 = vset.pattern.permute.xlu0 0
  %1579 = vperm.xlu0 %1578, %v81
  %v1580 = vpop.permute.xlu0 %1579
  %1583 = vset.pattern.permute.xlu0 0
  %1584 = vperm.xlu0 %1583, %v82
  %v1585 = vpop.permute.xlu0 %1584
  %1588 = vset.pattern.permute.xlu0 0
  %1589 = vperm.xlu0 %1588, %v83
  %v1590 = vpop.permute.xlu0 %1589
  %1593 = vset.pattern.permute.xlu0 0
  %1594 = vperm.xlu0 %1593, %v84
  %v1595 = vpop.permute.xlu0 %1594
  %1598 = vset.pattern.permute.xlu0 0
  %1599 = vperm.xlu0 %1598, %v85
  %v1600 = vpop.permute.xlu0 %1599
  %1603 = vset.pattern.permute.xlu0 0
  %1604 = vperm.xlu0 %1603, %v86
  %v1605 = vpop.permute.xlu0 %1604
  %1608 = vset.pattern.permute.xlu0 0
  %1609 = vperm.xlu0 %1608, %v87
  %v1610 = vpop.permute.xlu0 %1609
  %1613 = vset.pattern.permute.xlu0 0
  %1614 = vperm.xlu0 %1613, %v88
  %v1615 = vpop.permute.xlu0 %1614
  %1618 = vset.pattern.permute.xlu0 0
  %1619 = vperm.xlu0 %1618, %v89
  %v1620 = vpop.permute.xlu0 %1619
  %1623 = vset.pattern.permute.xlu0 0
  %1624 = vperm.xlu0 %1623, %v90
  %v1625 = vpop.permute.xlu0 %1624
  %1628 = vset.pattern.permute.xlu0 0
  %1629 = vperm.xlu0 %1628, %v91
  %v1630 = vpop.permute.xlu0 %1629
  %1633 = vset.pattern.permute.xlu0 0
  %1634 = vperm.xlu0 %1633, %v92
  %v1635 = vpop.permute.xlu0 %1634
  %1638 = vset.pattern.permute.xlu0 0
  %1639 = vperm.xlu0 %1638, %v93
  %v1640 = vpop.permute.xlu0 %1639
  %1643 = vset.pattern.permute.xlu0 0
  %1644 = vperm.xlu0 %1643, %v94
  %v1645 = vpop.permute.xlu0 %1644
  %1648 = vset.pattern.permute.xlu0 0
  %1649 = vperm.xlu0 %1648, %v95
  %v1650 = vpop.permute.xlu0 %1649
  %1653 = vset.pattern.permute.xlu0 0
  %1654 = vperm.xlu0 %1653, %v96
  %v1655 = vpop.permute.xlu0 %1654
  %1658 = vset.pattern.permute.xlu0 0
  %1659 = vperm.xlu0 %1658, %v97
  %v1660 = vpop.permute.xlu0 %1659
  %1663 = vset.pattern.permute.xlu0 0
  %1664 = vperm.xlu0 %1663, %v98
  %v1665 = vpop.permute.xlu0 %1664
  %1668 = vset.pattern.permute.xlu0 0
  %1669 = vperm.xlu0 %1668, %v99
  %v1670 = vpop.permute.xlu0 %1669
  %1673 = vset.pattern.permute.xlu0 0
  %1674 = vperm.xlu0 %1673, %v100
  %v1675 = vpop.permute.xlu0 %1674
  %1678 = vset.pattern.permute.xlu0 0
  %1679 = vperm.xlu0 %1678, %v101
  %v1680 = vpop.permute.xlu0 %1679
  %1683 = vset.pattern.permute.xlu0 0
  %1684 = vperm.xlu0 %1683, %v102
  %v1685 = vpop.permute.xlu0 %1684
  %1688 = vset.pattern.permute.xlu0 0
  %1689 = vperm.xlu0 %1688, %v103
  %v1690 = vpop.permute.xlu0 %1689
  %v1692 = vmul.f32 %v1206, %v1290
  %v1693 = vmul.f32 %v1207, %v1295
  %v1694 = vmul.f32 %v1208, %v1300
  %v1695 = vmul.f32 %v1209, %v1305
  %v1696 = vmul.f32 %v1210, %v1310
  %v1697 = vmul.f32 %v1211, %v1315
  %v1698 = vmul.f32 %v1212, %v1320
  %v1699 = vmul.f32 %v1213, %v1325
  %v1700 = vmul.f32 %v1214, %v1330
  %v1701 = vmul.f32 %v1215, %v1335
  %v1702 = vmul.f32 %v1216, %v1340
  %v1703 = vmul.f32 %v1217, %v1345
  %v1704 = vmul.f32 %v1218, %v1350
  %v1705 = vmul.f32 %v1219, %v1355
  %v1706 = vmul.f32 %v1220, %v1360
  %v1707 = vmul.f32 %v1221, %v1365
  %v1708 = vmul.f32 %v1222, %v1370
  %v1709 = vmul.f32 %v1223, %v1375
  %v1710 = vmul.f32 %v1224, %v1380
  %v1711 = vmul.f32 %v1225, %v1385
  %v1712 = vmul.f32 %v1226, %v1390
  %v1713 = vmul.f32 %v1227, %v1395
  %v1714 = vmul.f32 %v1228, %v1400
  %v1715 = vmul.f32 %v1229, %v1405
  %v1716 = vmul.f32 %v1230, %v1410
  %v1717 = vmul.f32 %v1231, %v1415
  %v1718 = vmul.f32 %v1232, %v1420
  %v1719 = vmul.f32 %v1233, %v1425
  %v1720 = vmul.f32 %v1234, %v1430
  %v1721 = vmul.f32 %v1235, %v1435
  %v1722 = vmul.f32 %v1236, %v1440
  %v1723 = vmul.f32 %v1237, %v1445
  %v1724 = vmul.f32 %v1238, %v1450
  %v1725 = vmul.f32 %v1239, %v1455
  %v1726 = vmul.f32 %v1240, %v1460
  %v1727 = vmul.f32 %v1241, %v1465
  %v1728 = vmul.f32 %v1242, %v1470
  %v1729 = vmul.f32 %v1243, %v1475
  %v1730 = vmul.f32 %v1244, %v1480
  %v1731 = vmul.f32 %v1245, %v1485
  %v1732 = vmul.f32 %v1246, %v1490
  %v1733 = vmul.f32 %v1247, %v1495
  %v1734 = vmul.f32 %v1248, %v1500
  %v1735 = vmul.f32 %v1249, %v1505
  %v1736 = vmul.f32 %v1250, %v1510
  %v1737 = vmul.f32 %v1251, %v1515
  %v1738 = vmul.f32 %v1252, %v1520
  %v1739 = vmul.f32 %v1253, %v1525
  %v1740 = vmul.f32 %v1254, %v1530
  %v1741 = vmul.f32 %v1255, %v1535
  %v1742 = vmul.f32 %v1256, %v1540
  %v1743 = vmul.f32 %v1257, %v1545
  %v1744 = vmul.f32 %v1258, %v1550
  %v1745 = vmul.f32 %v1259, %v1555
  %v1746 = vmul.f32 %v1260, %v1560
  %v1747 = vmul.f32 %v1261, %v1565
  %v1748 = vmul.f32 %v1262, %v1570
  %v1749 = vmul.f32 %v1263, %v1575
  %v1750 = vmul.f32 %v1264, %v1580
  %v1751 = vmul.f32 %v1265, %v1585
  %v1752 = vmul.f32 %v1266, %v1590
  %v1753 = vmul.f32 %v1267, %v1595
  %v1754 = vmul.f32 %v1268, %v1600
  %v1755 = vmul.f32 %v1269, %v1605
  %v1756 = vmul.f32 %v1270, %v1610
  %v1757 = vmul.f32 %v1271, %v1615
  %v1758 = vmul.f32 %v1272, %v1620
  %v1759 = vmul.f32 %v1273, %v1625
  %v1760 = vmul.f32 %v1274, %v1630
  %v1761 = vmul.f32 %v1275, %v1635
  %v1762 = vmul.f32 %v1276, %v1640
  %v1763 = vmul.f32 %v1277, %v1645
  %v1764 = vmul.f32 %v1278, %v1650
  %v1765 = vmul.f32 %v1279, %v1655
  %v1766 = vmul.f32 %v1280, %v1660
  %v1767 = vmul.f32 %v1281, %v1665
  %v1768 = vmul.f32 %v1282, %v1670
  %v1769 = vmul.f32 %v1283, %v1675
  %v1770 = vmul.f32 %v1284, %v1680
  %v1771 = vmul.f32 %v1285, %v1685
  %v1772 = vmul.f32 %v1286, %v1690
  %1773 = vst [vmem:[#allocation2] sm:$0xff] 0.0
  %1774 = vst [vmem:[#allocation2 + $0x8] sm:$0xff] 0.0
  %1775 = vst [vmem:[#allocation2 + $0x10] sm:$0xff] 0.0
  %1776 = vst [vmem:[#allocation2 + $0x2a0] sm:$0xff] 0.0
  %1777 = vst [vmem:[#allocation2 + $0x2a8] sm:$0xff] 0.0
  %1778 = vst [vmem:[#allocation2 + $0x2b0] sm:$0xff] 0.0
  %1779 = vst [vmem:[#allocation2 + $0x18] sm:$0xff] %v1692
  %1780 = vst [vmem:[#allocation2 + $0x20] sm:$0xff] %v1693
  %1781 = vst [vmem:[#allocation2 + $0x28] sm:$0xff] %v1694
  %1782 = vst [vmem:[#allocation2 + $0x30] sm:$0xff] %v1695
  %1783 = vst [vmem:[#allocation2 + $0x38] sm:$0xff] %v1696
  %1784 = vst [vmem:[#allocation2 + $0x40] sm:$0xff] %v1697
  %1785 = vst [vmem:[#allocation2 + $0x48] sm:$0xff] %v1698
  %1786 = vst [vmem:[#allocation2 + $0x50] sm:$0xff] %v1699
  %1787 = vst [vmem:[#allocation2 + $0x58] sm:$0xff] %v1700
  %1788 = vst [vmem:[#allocation2 + $0x60] sm:$0xff] %v1701
  %1789 = vst [vmem:[#allocation2 + $0x68] sm:$0xff] %v1702
  %1790 = vst [vmem:[#allocation2 + $0x70] sm:$0xff] %v1703
  %1791 = vst [vmem:[#allocation2 + $0x78] sm:$0xff] %v1704
  %1792 = vst [vmem:[#allocation2 + $0x80] sm:$0xff] %v1705
  %1793 = vst [vmem:[#allocation2 + $0x88] sm:$0xff] %v1706
  %1794 = vst [vmem:[#allocation2 + $0x90] sm:$0xff] %v1707
  %1795 = vst [vmem:[#allocation2 + $0x98] sm:$0xff] %v1708
  %1796 = vst [vmem:[#allocation2 + $0xa0] sm:$0xff] %v1709
  %1797 = vst [vmem:[#allocation2 + $0xa8] sm:$0xff] %v1710
  %1798 = vst [vmem:[#allocation2 + $0xb0] sm:$0xff] %v1711
  %1799 = vst [vmem:[#allocation2 + $0xb8] sm:$0xff] %v1712
  %1800 = vst [vmem:[#allocation2 + $0xc0] sm:$0xff] %v1713
  %1801 = vst [vmem:[#allocation2 + $0xc8] sm:$0xff] %v1714
  %1802 = vst [vmem:[#allocation2 + $0xd0] sm:$0xff] %v1715
  %1803 = vst [vmem:[#allocation2 + $0xd8] sm:$0xff] %v1716
  %1804 = vst [vmem:[#allocation2 + $0xe0] sm:$0xff] %v1717
  %1805 = vst [vmem:[#allocation2 + $0xe8] sm:$0xff] %v1718
  %1806 = vst [vmem:[#allocation2 + $0xf0] sm:$0xff] %v1719
  %1807 = vst [vmem:[#allocation2 + $0xf8] sm:$0xff] %v1720
  %1808 = vst [vmem:[#allocation2 + $0x100] sm:$0xff] %v1721
  %1809 = vst [vmem:[#allocation2 + $0x108] sm:$0xff] %v1722
  %1810 = vst [vmem:[#allocation2 + $0x110] sm:$0xff] %v1723
  %1811 = vst [vmem:[#allocation2 + $0x118] sm:$0xff] %v1724
  %1812 = vst [vmem:[#allocation2 + $0x120] sm:$0xff] %v1725
  %1813 = vst [vmem:[#allocation2 + $0x128] sm:$0xff] %v1726
  %1814 = vst [vmem:[#allocation2 + $0x130] sm:$0xff] %v1727
  %1815 = vst [vmem:[#allocation2 + $0x138] sm:$0xff] %v1728
  %1816 = vst [vmem:[#allocation2 + $0x140] sm:$0xff] %v1729
  %1817 = vst [vmem:[#allocation2 + $0x148] sm:$0xff] %v1730
  %1818 = vst [vmem:[#allocation2 + $0x150] sm:$0xff] %v1731
  %1819 = vst [vmem:[#allocation2 + $0x158] sm:$0xff] %v1732
  %1820 = vst [vmem:[#allocation2 + $0x160] sm:$0xff] %v1733
  %1821 = vst [vmem:[#allocation2 + $0x168] sm:$0xff] %v1734
  %1822 = vst [vmem:[#allocation2 + $0x170] sm:$0xff] %v1735
  %1823 = vst [vmem:[#allocation2 + $0x178] sm:$0xff] %v1736
  %1824 = vst [vmem:[#allocation2 + $0x180] sm:$0xff] %v1737
  %1825 = vst [vmem:[#allocation2 + $0x188] sm:$0xff] %v1738
  %1826 = vst [vmem:[#allocation2 + $0x190] sm:$0xff] %v1739
  %1827 = vst [vmem:[#allocation2 + $0x198] sm:$0xff] %v1740
  %1828 = vst [vmem:[#allocation2 + $0x1a0] sm:$0xff] %v1741
  %1829 = vst [vmem:[#allocation2 + $0x1a8] sm:$0xff] %v1742
  %1830 = vst [vmem:[#allocation2 + $0x1b0] sm:$0xff] %v1743
  %1831 = vst [vmem:[#allocation2 + $0x1b8] sm:$0xff] %v1744
  %1832 = vst [vmem:[#allocation2 + $0x1c0] sm:$0xff] %v1745
  %1833 = vst [vmem:[#allocation2 + $0x1c8] sm:$0xff] %v1746
  %1834 = vst [vmem:[#allocation2 + $0x1d0] sm:$0xff] %v1747
  %1835 = vst [vmem:[#allocation2 + $0x1d8] sm:$0xff] %v1748
  %1836 = vst [vmem:[#allocation2 + $0x1e0] sm:$0xff] %v1749
  %1837 = vst [vmem:[#allocation2 + $0x1e8] sm:$0xff] %v1750
  %1838 = vst [vmem:[#allocation2 + $0x1f0] sm:$0xff] %v1751
  %1839 = vst [vmem:[#allocation2 + $0x1f8] sm:$0xff] %v1752
  %1840 = vst [vmem:[#allocation2 + $0x200] sm:$0xff] %v1753
  %1841 = vst [vmem:[#allocation2 + $0x208] sm:$0xff] %v1754
  %1842 = vst [vmem:[#allocation2 + $0x210] sm:$0xff] %v1755
  %1843 = vst [vmem:[#allocation2 + $0x218] sm:$0xff] %v1756
  %1844 = vst [vmem:[#allocation2 + $0x220] sm:$0xff] %v1757
  %1845 = vst [vmem:[#allocation2 + $0x228] sm:$0xff] %v1758
  %1846 = vst [vmem:[#allocation2 + $0x230] sm:$0xff] %v1759
  %1847 = vst [vmem:[#allocation2 + $0x238] sm:$0xff] %v1760
  %1848 = vst [vmem:[#allocation2 + $0x240] sm:$0xff] %v1761
  %1849 = vst [vmem:[#allocation2 + $0x248] sm:$0xff] %v1762
  %1850 = vst [vmem:[#allocation2 + $0x250] sm:$0xff] %v1763
  %1851 = vst [vmem:[#allocation2 + $0x258] sm:$0xff] %v1764
  %1852 = vst [vmem:[#allocation2 + $0x260] sm:$0xff] %v1765
  %1853 = vst [vmem:[#allocation2 + $0x268] sm:$0xff] %v1766
  %1854 = vst [vmem:[#allocation2 + $0x270] sm:$0xff] %v1767
  %1855 = vst [vmem:[#allocation2 + $0x278] sm:$0xff] %v1768
  %1856 = vst [vmem:[#allocation2 + $0x280] sm:$0xff] %v1769
  %1857 = vst [vmem:[#allocation2 + $0x288] sm:$0xff] %v1770
  %1858 = vst [vmem:[#allocation2 + $0x290] sm:$0xff] %v1771
  %1859 = vst [vmem:[#allocation2 + $0x298] sm:$0xff] %v1772
  %v1860 = vld [vmem:[#allocation2 + $0x5] sm:$0xff]
  %v1861 = vld [vmem:[#allocation2 + $0xd] sm:$0xff]
  %v1862 = vld [vmem:[#allocation2 + $0x15] sm:$0xff]
  %v1863 = vld [vmem:[#allocation2 + $0x1d] sm:$0xff]
  %v1864 = vld [vmem:[#allocation2 + $0x25] sm:$0xff]
  %v1865 = vld [vmem:[#allocation2 + $0x2d] sm:$0xff]
  %v1866 = vld [vmem:[#allocation2 + $0x35] sm:$0xff]
  %v1867 = vld [vmem:[#allocation2 + $0x3d] sm:$0xff]
  %v1868 = vld [vmem:[#allocation2 + $0x45] sm:$0xff]
  %v1869 = vld [vmem:[#allocation2 + $0x4d] sm:$0xff]
  %v1870 = vld [vmem:[#allocation2 + $0x55] sm:$0xff]
  %v1871 = vld [vmem:[#allocation2 + $0x5d] sm:$0xff]
  %v1872 = vld [vmem:[#allocation2 + $0x65] sm:$0xff]
  %v1873 = vld [vmem:[#allocation2 + $0x6d] sm:$0xff]
  %v1874 = vld [vmem:[#allocation2 + $0x75] sm:$0xff]
  %v1875 = vld [vmem:[#allocation2 + $0x7d] sm:$0xff]
  %v1876 = vld [vmem:[#allocation2 + $0x85] sm:$0xff]
  %v1877 = vld [vmem:[#allocation2 + $0x8d] sm:$0xff]
  %v1878 = vld [vmem:[#allocation2 + $0x95] sm:$0xff]
  %v1879 = vld [vmem:[#allocation2 + $0x9d] sm:$0xff]
  %v1880 = vld [vmem:[#allocation2 + $0xa5] sm:$0xff]
  %v1881 = vld [vmem:[#allocation2 + $0xad] sm:$0xff]
  %v1882 = vld [vmem:[#allocation2 + $0xb5] sm:$0xff]
  %v1883 = vld [vmem:[#allocation2 + $0xbd] sm:$0xff]
  %v1884 = vld [vmem:[#allocation2 + $0xc5] sm:$0xff]
  %v1885 = vld [vmem:[#allocation2 + $0xcd] sm:$0xff]
  %v1886 = vld [vmem:[#allocation2 + $0xd5] sm:$0xff]
  %v1887 = vld [vmem:[#allocation2 + $0xdd] sm:$0xff]
  %v1888 = vld [vmem:[#allocation2 + $0xe5] sm:$0xff]
  %v1889 = vld [vmem:[#allocation2 + $0xed] sm:$0xff]
  %v1890 = vld [vmem:[#allocation2 + $0xf5] sm:$0xff]
  %v1891 = vld [vmem:[#allocation2 + $0xfd] sm:$0xff]
  %v1892 = vld [vmem:[#allocation2 + $0x105] sm:$0xff]
  %v1893 = vld [vmem:[#allocation2 + $0x10d] sm:$0xff]
  %v1894 = vld [vmem:[#allocation2 + $0x115] sm:$0xff]
  %v1895 = vld [vmem:[#allocation2 + $0x11d] sm:$0xff]
  %v1896 = vld [vmem:[#allocation2 + $0x125] sm:$0xff]
  %v1897 = vld [vmem:[#allocation2 + $0x12d] sm:$0xff]
  %v1898 = vld [vmem:[#allocation2 + $0x135] sm:$0xff]
  %v1899 = vld [vmem:[#allocation2 + $0x13d] sm:$0xff]
  %v1900 = vld [vmem:[#allocation2 + $0x145] sm:$0xff]
  %v1901 = vld [vmem:[#allocation2 + $0x14d] sm:$0xff]
  %v1902 = vld [vmem:[#allocation2 + $0x155] sm:$0xff]
  %v1903 = vld [vmem:[#allocation2 + $0x15d] sm:$0xff]
  %v1904 = vld [vmem:[#allocation2 + $0x165] sm:$0xff]
  %v1905 = vld [vmem:[#allocation2 + $0x16d] sm:$0xff]
  %v1906 = vld [vmem:[#allocation2 + $0x175] sm:$0xff]
  %v1907 = vld [vmem:[#allocation2 + $0x17d] sm:$0xff]
  %v1908 = vld [vmem:[#allocation2 + $0x185] sm:$0xff]
  %v1909 = vld [vmem:[#allocation2 + $0x18d] sm:$0xff]
  %v1910 = vld [vmem:[#allocation2 + $0x195] sm:$0xff]
  %v1911 = vld [vmem:[#allocation2 + $0x19d] sm:$0xff]
  %v1912 = vld [vmem:[#allocation2 + $0x1a5] sm:$0xff]
  %v1913 = vld [vmem:[#allocation2 + $0x1ad] sm:$0xff]
  %v1914 = vld [vmem:[#allocation2 + $0x1b5] sm:$0xff]
  %v1915 = vld [vmem:[#allocation2 + $0x1bd] sm:$0xff]
  %v1916 = vld [vmem:[#allocation2 + $0x1c5] sm:$0xff]
  %v1917 = vld [vmem:[#allocation2 + $0x1cd] sm:$0xff]
  %v1918 = vld [vmem:[#allocation2 + $0x1d5] sm:$0xff]
  %v1919 = vld [vmem:[#allocation2 + $0x1dd] sm:$0xff]
  %v1920 = vld [vmem:[#allocation2 + $0x1e5] sm:$0xff]
  %v1921 = vld [vmem:[#allocation2 + $0x1ed] sm:$0xff]
  %v1922 = vld [vmem:[#allocation2 + $0x1f5] sm:$0xff]
  %v1923 = vld [vmem:[#allocation2 + $0x1fd] sm:$0xff]
  %v1924 = vld [vmem:[#allocation2 + $0x205] sm:$0xff]
  %v1925 = vld [vmem:[#allocation2 + $0x20d] sm:$0xff]
  %v1926 = vld [vmem:[#allocation2 + $0x215] sm:$0xff]
  %v1927 = vld [vmem:[#allocation2 + $0x21d] sm:$0xff]
  %v1928 = vld [vmem:[#allocation2 + $0x225] sm:$0xff]
  %v1929 = vld [vmem:[#allocation2 + $0x22d] sm:$0xff]
  %v1930 = vld [vmem:[#allocation2 + $0x235] sm:$0xff]
  %v1931 = vld [vmem:[#allocation2 + $0x23d] sm:$0xff]
  %v1932 = vld [vmem:[#allocation2 + $0x245] sm:$0xff]
  %v1933 = vld [vmem:[#allocation2 + $0x24d] sm:$0xff]
  %v1934 = vld [vmem:[#allocation2 + $0x255] sm:$0xff]
  %v1935 = vld [vmem:[#allocation2 + $0x25d] sm:$0xff]
  %v1936 = vld [vmem:[#allocation2 + $0x265] sm:$0xff]
  %v1937 = vld [vmem:[#allocation2 + $0x26d] sm:$0xff]
  %v1938 = vld [vmem:[#allocation2 + $0x275] sm:$0xff]
  %v1939 = vld [vmem:[#allocation2 + $0x27d] sm:$0xff]
  %v1940 = vld [vmem:[#allocation2 + $0x285] sm:$0xff]
  %v1941 = vld [vmem:[%s3] sm:$0xff]
  %v1942 = vld [vmem:[%s3 + $0x8] sm:$0xff]
  %v1943 = vld [vmem:[%s3 + $0x10] sm:$0xff]
  %v1944 = vld [vmem:[%s3 + $0x18] sm:$0xff]
  %v1945 = vld [vmem:[%s3 + $0x20] sm:$0xff]
  %v1946 = vld [vmem:[%s3 + $0x28] sm:$0xff]
  %v1947 = vld [vmem:[%s3 + $0x30] sm:$0xff]
  %v1948 = vld [vmem:[%s3 + $0x38] sm:$0xff]
  %v1949 = vld [vmem:[%s3 + $0x40] sm:$0xff]
  %v1950 = vld [vmem:[%s3 + $0x48] sm:$0xff]
  %v1951 = vld [vmem:[%s3 + $0x50] sm:$0xff]
  %v1952 = vld [vmem:[%s3 + $0x58] sm:$0xff]
  %v1953 = vld [vmem:[%s3 + $0x60] sm:$0xff]
  %v1954 = vld [vmem:[%s3 + $0x68] sm:$0xff]
  %v1955 = vld [vmem:[%s3 + $0x70] sm:$0xff]
  %v1956 = vld [vmem:[%s3 + $0x78] sm:$0xff]
  %v1957 = vld [vmem:[#allocation2 + $0x6] sm:$0xff]
  %v1958 = vld [vmem:[#allocation2 + $0xe] sm:$0xff]
  %v1959 = vld [vmem:[#allocation2 + $0x16] sm:$0xff]
  %v1960 = vld [vmem:[#allocation2 + $0x1e] sm:$0xff]
  %v1961 = vld [vmem:[#allocation2 + $0x26] sm:$0xff]
  %v1962 = vld [vmem:[#allocation2 + $0x2e] sm:$0xff]
  %v1963 = vld [vmem:[#allocation2 + $0x36] sm:$0xff]
  %v1964 = vld [vmem:[#allocation2 + $0x3e] sm:$0xff]
  %v1965 = vld [vmem:[#allocation2 + $0x46] sm:$0xff]
  %v1966 = vld [vmem:[#allocation2 + $0x4e] sm:$0xff]
  %v1967 = vld [vmem:[#allocation2 + $0x56] sm:$0xff]
  %v1968 = vld [vmem:[#allocation2 + $0x5e] sm:$0xff]
  %v1969 = vld [vmem:[#allocation2 + $0x66] sm:$0xff]
  %v1970 = vld [vmem:[#allocation2 + $0x6e] sm:$0xff]
  %v1971 = vld [vmem:[#allocation2 + $0x76] sm:$0xff]
  %v1972 = vld [vmem:[#allocation2 + $0x7e] sm:$0xff]
  %v1973 = vld [vmem:[#allocation2 + $0x86] sm:$0xff]
  %v1974 = vld [vmem:[#allocation2 + $0x8e] sm:$0xff]
  %v1975 = vld [vmem:[#allocation2 + $0x96] sm:$0xff]
  %v1976 = vld [vmem:[#allocation2 + $0x9e] sm:$0xff]
  %v1977 = vld [vmem:[#allocation2 + $0xa6] sm:$0xff]
  %v1978 = vld [vmem:[#allocation2 + $0xae] sm:$0xff]
  %v1979 = vld [vmem:[#allocation2 + $0xb6] sm:$0xff]
  %v1980 = vld [vmem:[#allocation2 + $0xbe] sm:$0xff]
  %v1981 = vld [vmem:[#allocation2 + $0xc6] sm:$0xff]
  %v1982 = vld [vmem:[#allocation2 + $0xce] sm:$0xff]
  %v1983 = vld [vmem:[#allocation2 + $0xd6] sm:$0xff]
  %v1984 = vld [vmem:[#allocation2 + $0xde] sm:$0xff]
  %v1985 = vld [vmem:[#allocation2 + $0xe6] sm:$0xff]
  %v1986 = vld [vmem:[#allocation2 + $0xee] sm:$0xff]
  %v1987 = vld [vmem:[#allocation2 + $0xf6] sm:$0xff]
  %v1988 = vld [vmem:[#allocation2 + $0xfe] sm:$0xff]
  %v1989 = vld [vmem:[#allocation2 + $0x106] sm:$0xff]
  %v1990 = vld [vmem:[#allocation2 + $0x10e] sm:$0xff]
  %v1991 = vld [vmem:[#allocation2 + $0x116] sm:$0xff]
  %v1992 = vld [vmem:[#allocation2 + $0x11e] sm:$0xff]
  %v1993 = vld [vmem:[#allocation2 + $0x126] sm:$0xff]
  %v1994 = vld [vmem:[#allocation2 + $0x12e] sm:$0xff]
  %v1995 = vld [vmem:[#allocation2 + $0x136] sm:$0xff]
  %v1996 = vld [vmem:[#allocation2 + $0x13e] sm:$0xff]
  %v1997 = vld [vmem:[#allocation2 + $0x146] sm:$0xff]
  %v1998 = vld [vmem:[#allocation2 + $0x14e] sm:$0xff]
  %v1999 = vld [vmem:[#allocation2 + $0x156] sm:$0xff]
  %v2000 = vld [vmem:[#allocation2 + $0x15e] sm:$0xff]
  %v2001 = vld [vmem:[#allocation2 + $0x166] sm:$0xff]
  %v2002 = vld [vmem:[#allocation2 + $0x16e] sm:$0xff]
  %v2003 = vld [vmem:[#allocation2 + $0x176] sm:$0xff]
  %v2004 = vld [vmem:[#allocation2 + $0x17e] sm:$0xff]
  %v2005 = vld [vmem:[#allocation2 + $0x186] sm:$0xff]
  %v2006 = vld [vmem:[#allocation2 + $0x18e] sm:$0xff]
  %v2007 = vld [vmem:[#allocation2 + $0x196] sm:$0xff]
  %v2008 = vld [vmem:[#allocation2 + $0x19e] sm:$0xff]
  %v2009 = vld [vmem:[#allocation2 + $0x1a6] sm:$0xff]
  %v2010 = vld [vmem:[#allocation2 + $0x1ae] sm:$0xff]
  %v2011 = vld [vmem:[#allocation2 + $0x1b6] sm:$0xff]
  %v2012 = vld [vmem:[#allocation2 + $0x1be] sm:$0xff]
  %v2013 = vld [vmem:[#allocation2 + $0x1c6] sm:$0xff]
  %v2014 = vld [vmem:[#allocation2 + $0x1ce] sm:$0xff]
  %v2015 = vld [vmem:[#allocation2 + $0x1d6] sm:$0xff]
  %v2016 = vld [vmem:[#allocation2 + $0x1de] sm:$0xff]
  %v2017 = vld [vmem:[#allocation2 + $0x1e6] sm:$0xff]
  %v2018 = vld [vmem:[#allocation2 + $0x1ee] sm:$0xff]
  %v2019 = vld [vmem:[#allocation2 + $0x1f6] sm:$0xff]
  %v2020 = vld [vmem:[#allocation2 + $0x1fe] sm:$0xff]
  %v2021 = vld [vmem:[#allocation2 + $0x206] sm:$0xff]
  %v2022 = vld [vmem:[#allocation2 + $0x20e] sm:$0xff]
  %v2023 = vld [vmem:[#allocation2 + $0x216] sm:$0xff]
  %v2024 = vld [vmem:[#allocation2 + $0x21e] sm:$0xff]
  %v2025 = vld [vmem:[#allocation2 + $0x226] sm:$0xff]
  %v2026 = vld [vmem:[#allocation2 + $0x22e] sm:$0xff]
  %v2027 = vld [vmem:[#allocation2 + $0x236] sm:$0xff]
  %v2028 = vld [vmem:[#allocation2 + $0x23e] sm:$0xff]
  %v2029 = vld [vmem:[#allocation2 + $0x246] sm:$0xff]
  %v2030 = vld [vmem:[#allocation2 + $0x24e] sm:$0xff]
  %v2031 = vld [vmem:[#allocation2 + $0x256] sm:$0xff]
  %v2032 = vld [vmem:[#allocation2 + $0x25e] sm:$0xff]
  %v2033 = vld [vmem:[#allocation2 + $0x266] sm:$0xff]
  %v2034 = vld [vmem:[#allocation2 + $0x26e] sm:$0xff]
  %v2035 = vld [vmem:[#allocation2 + $0x276] sm:$0xff]
  %v2036 = vld [vmem:[#allocation2 + $0x27e] sm:$0xff]
  %v2037 = vld [vmem:[#allocation2 + $0x286] sm:$0xff]
  %s2038 = scalar_lea.vmem %s3, 128
  %v2039 = vld [vmem:[%s2038] sm:$0xff]
  %v2040 = vld [vmem:[%s2038 + $0x8] sm:$0xff]
  %v2041 = vld [vmem:[%s2038 + $0x10] sm:$0xff]
  %v2042 = vld [vmem:[%s2038 + $0x18] sm:$0xff]
  %v2043 = vld [vmem:[%s2038 + $0x20] sm:$0xff]
  %v2044 = vld [vmem:[%s2038 + $0x28] sm:$0xff]
  %v2045 = vld [vmem:[%s2038 + $0x30] sm:$0xff]
  %v2046 = vld [vmem:[%s2038 + $0x38] sm:$0xff]
  %v2047 = vld [vmem:[%s2038 + $0x40] sm:$0xff]
  %v2048 = vld [vmem:[%s2038 + $0x48] sm:$0xff]
  %v2049 = vld [vmem:[%s2038 + $0x50] sm:$0xff]
  %v2050 = vld [vmem:[%s2038 + $0x58] sm:$0xff]
  %v2051 = vld [vmem:[%s2038 + $0x60] sm:$0xff]
  %v2052 = vld [vmem:[%s2038 + $0x68] sm:$0xff]
  %v2053 = vld [vmem:[%s2038 + $0x70] sm:$0xff]
  %v2054 = vld [vmem:[%s2038 + $0x78] sm:$0xff]
  %2055 = vmatprep.subr.mxu0 0.0
  %2056 = vmatpush1.msra.mxu0 %v2039
  %2057 = vmatprep.subr.mxu0 0.0
  %2058 = vmatpush1.msra.mxu0 %v2040
  %2059 = vmatprep.subr.mxu0 0.0
  %2060 = vmatpush1.msra.mxu0 %v2041
  %2061 = vmatprep.subr.mxu0 0.0
  %2062 = vmatpush1.msra.mxu0 %v2042
  %2063 = vmatprep.subr.mxu0 0.0
  %2064 = vmatpush1.msra.mxu0 %v2043
  %2065 = vmatprep.subr.mxu0 0.0
  %2066 = vmatpush1.msra.mxu0 %v2044
  %2067 = vmatprep.subr.mxu0 0.0
  %2068 = vmatpush1.msra.mxu0 %v2045
  %2069 = vmatprep.subr.mxu0 0.0
  %2070 = vmatpush1.msra.mxu0 %v2046
  %2071 = vmatprep.subr.mxu0 0.0
  %2072 = vmatpush1.msra.mxu0 %v2047
  %2073 = vmatprep.subr.mxu0 0.0
  %2074 = vmatpush1.msra.mxu0 %v2048
  %2075 = vmatprep.subr.mxu0 0.0
  %2076 = vmatpush1.msra.mxu0 %v2049
  %2077 = vmatprep.subr.mxu0 0.0
  %2078 = vmatpush1.msra.mxu0 %v2050
  %2079 = vmatprep.subr.mxu0 0.0
  %2080 = vmatpush1.msra.mxu0 %v2051
  %2081 = vmatprep.subr.mxu0 0.0
  %2082 = vmatpush1.msra.mxu0 %v2052
  %2083 = vmatprep.subr.mxu0 0.0
  %2084 = vmatpush1.msra.mxu0 %v2053
  %2085 = vmatprep.subr.mxu0 0.0
  %2086 = vmatpush1.msra.mxu0 %v2054
  %2087 = vmatprep.subr.mxu0 0.0
  %2088 = vmatpush1.msra.mxu0 0.0
  %2089 = vmatprep.subr.mxu0 0.0
  %2090 = vmatpush1.msra.mxu0 0.0
  %2091 = vmatprep.subr.mxu0 0.0
  %2092 = vmatpush1.msra.mxu0 0.0
  %2093 = vmatprep.subr.mxu0 0.0
  %2094 = vmatpush1.msra.mxu0 0.0
  %2095 = vmatprep.subr.mxu0 0.0
  %2096 = vmatpush1.msra.mxu0 0.0
  %2097 = vmatprep.subr.mxu0 0.0
  %2098 = vmatpush1.msra.mxu0 0.0
  %2099 = vmatprep.subr.mxu0 0.0
  %2100 = vmatpush1.msra.mxu0 0.0
  %2101 = vmatprep.subr.mxu0 0.0
  %2102 = vmatpush1.msra.mxu0 0.0
  %2103 = vmatprep.subr.mxu0 0.0
  %2104 = vmatpush1.msra.mxu0 0.0
  %2105 = vmatprep.subr.mxu0 0.0
  %2106 = vmatpush1.msra.mxu0 0.0
  %2107 = vmatprep.subr.mxu0 0.0
  %2108 = vmatpush1.msra.mxu0 0.0
  %2109 = vmatprep.subr.mxu0 0.0
  %2110 = vmatpush1.msra.mxu0 0.0
  %2111 = vmatprep.subr.mxu0 0.0
  %2112 = vmatpush1.msra.mxu0 0.0
  %2113 = vmatprep.subr.mxu0 0.0
  %2114 = vmatpush1.msra.mxu0 0.0
  %2115 = vmatprep.subr.mxu0 0.0
  %2116 = vmatpush1.msra.mxu0 0.0
  %2117 = vmatprep.subr.mxu0 0.0
  %2118 = vmatpush1.msra.mxu0 0.0
  %2119 = vmatprep.mubr.f32.mxu0 0.0
  %2120 = vmatmul.mubr.f32.gmra.mrb[0].mxu0 %v1957
  %v2121 = vpop.f32.mrb[0].mxu0
  %v2122 = vadd.f32 0.0, %v2121
  %v2123 = vpop.f32.mrb[0].mxu0
  %2124 = vmatprep.mubr.f32.mxu0 0.0
  %2125 = vmatmul.mubr.f32.gmra.mrb[0].mxu0 %v1958
  %v2126 = vpop.f32.mrb[0].mxu0
  %v2127 = vadd.f32 0.0, %v2126
  %v2128 = vpop.f32.mrb[0].mxu0
  %2129 = vmatprep.mubr.f32.mxu0 0.0
  %2130 = vmatmul.mubr.f32.gmra.mrb[0].mxu0 %v1959
  %v2131 = vpop.f32.mrb[0].mxu0
  %v2132 = vadd.f32 0.0, %v2131
  %v2133 = vpop.f32.mrb[0].mxu0
  %2134 = vmatprep.mubr.f32.mxu0 0.0
  %2135 = vmatmul.mubr.f32.gmra.mrb[0].mxu0 %v1960
  %v2136 = vpop.f32.mrb[0].mxu0
  %v2137 = vadd.f32 0.0, %v2136
  %v2138 = vpop.f32.mrb[0].mxu0
  %2139 = vmatprep.mubr.f32.mxu0 0.0
  %2140 = vmatmul.mubr.f32.gmra.mrb[0].mxu0 %v1961
  %v2141 = vpop.f32.mrb[0].mxu0
  %v2142 = vadd.f32 0.0, %v2141
  %v2143 = vpop.f32.mrb[0].mxu0
  %2144 = vmatprep.mubr.f32.mxu0 0.0
  %2145 = vmatmul.mubr.f32.gmra.mrb[0].mxu0 %v1962
  %v2146 = vpop.f32.mrb[0].mxu0
  %v2147 = vadd.f32 0.0, %v2146
  %v2148 = vpop.f32.mrb[0].mxu0
  %2149 = vmatprep.mubr.f32.mxu0 0.0
  %2150 = vmatmul.mubr.f32.gmra.mrb[0].mxu0 %v1963
  %v2151 = vpop.f32.mrb[0].mxu0
  %v2152 = vadd.f32 0.0, %v2151
  %v2153 = vpop.f32.mrb[0].mxu0
  %2154 = vmatprep.mubr.f32.mxu0 0.0
  %2155 = vmatmul.mubr.f32.gmra.mrb[0].mxu0 %v1964
  %v2156 = vpop.f32.mrb[0].mxu0
  %v2157 = vadd.f32 0.0, %v2156
  %v2158 = vpop.f32.mrb[0].mxu0
  %2159 = vmatprep.mubr.f32.mxu0 0.0
  %2160 = vmatmul.mubr.f32.gmra.mrb[0].mxu0 %v1965
  %v2161 = vpop.f32.mrb[0].mxu0
  %v2162 = vadd.f32 0.0, %v2161
  %v2163 = vpop.f32.mrb[0].mxu0
  %2164 = vmatprep.mubr.f32.mxu0 0.0
  %2165 = vmatmul.mubr.f32.gmra.mrb[0].mxu0 %v1966
  %v2166 = vpop.f32.mrb[0].mxu0
  %v2167 = vadd.f32 0.0, %v2166
  %v2168 = vpop.f32.mrb[0].mxu0
  %2169 = vmatprep.mubr.f32.mxu0 0.0
  %2170 = vmatmul.mubr.f32.gmra.mrb[0].mxu0 %v1967
  %v2171 = vpop.f32.mrb[0].mxu0
  %v2172 = vadd.f32 0.0, %v2171
  %v2173 = vpop.f32.mrb[0].mxu0
  %2174 = vmatprep.mubr.f32.mxu0 0.0
  %2175 = vmatmul.mubr.f32.gmra.mrb[0].mxu0 %v1968
  %v2176 = vpop.f32.mrb[0].mxu0
  %v2177 = vadd.f32 0.0, %v2176
  %v2178 = vpop.f32.mrb[0].mxu0
  %2179 = vmatprep.mubr.f32.mxu0 0.0
  %2180 = vmatmul.mubr.f32.gmra.mrb[0].mxu0 %v1969
  %v2181 = vpop.f32.mrb[0].mxu0
  %v2182 = vadd.f32 0.0, %v2181
  %v2183 = vpop.f32.mrb[0].mxu0
  %2184 = vmatprep.mubr.f32.mxu0 0.0
  %2185 = vmatmul.mubr.f32.gmra.mrb[0].mxu0 %v1970
  %v2186 = vpop.f32.mrb[0].mxu0
  %v2187 = vadd.f32 0.0, %v2186
  %v2188 = vpop.f32.mrb[0].mxu0
  %2189 = vmatprep.mubr.f32.mxu0 0.0
  %2190 = vmatmul.mubr.f32.gmra.mrb[0].mxu0 %v1971
  %v2191 = vpop.f32.mrb[0].mxu0
  %v2192 = vadd.f32 0.0, %v2191
  %v2193 = vpop.f32.mrb[0].mxu0
  %2194 = vmatprep.mubr.f32.mxu0 0.0
  %2195 = vmatmul.mubr.f32.gmra.mrb[0].mxu0 %v1972
  %v2196 = vpop.f32.mrb[0].mxu0
  %v2197 = vadd.f32 0.0, %v2196
  %v2198 = vpop.f32.mrb[0].mxu0
  %2199 = vmatprep.mubr.f32.mxu0 0.0
  %2200 = vmatmul.mubr.f32.gmra.mrb[0].mxu0 %v1973
  %v2201 = vpop.f32.mrb[0].mxu0
  %v2202 = vadd.f32 0.0, %v2201
  %v2203 = vpop.f32.mrb[0].mxu0
  %2204 = vmatprep.mubr.f32.mxu0 0.0
  %2205 = vmatmul.mubr.f32.gmra.mrb[0].mxu0 %v1974
  %v2206 = vpop.f32.mrb[0].mxu0
  %v2207 = vadd.f32 0.0, %v2206
  %v2208 = vpop.f32.mrb[0].mxu0
  %2209 = vmatprep.mubr.f32.mxu0 0.0
  %2210 = vmatmul.mubr.f32.gmra.mrb[0].mxu0 %v1975
  %v2211 = vpop.f32.mrb[0].mxu0
  %v2212 = vadd.f32 0.0, %v2211
  %v2213 = vpop.f32.mrb[0].mxu0
  %2214 = vmatprep.mubr.f32.mxu0 0.0
  %2215 = vmatmul.mubr.f32.gmra.mrb[0].mxu0 %v1976
  %v2216 = vpop.f32.mrb[0].mxu0
  %v2217 = vadd.f32 0.0, %v2216
  %v2218 = vpop.f32.mrb[0].mxu0
  %2219 = vmatprep.mubr.f32.mxu0 0.0
  %2220 = vmatmul.mubr.f32.gmra.mrb[0].mxu0 %v1977
  %v2221 = vpop.f32.mrb[0].mxu0
  %v2222 = vadd.f32 0.0, %v2221
  %v2223 = vpop.f32.mrb[0].mxu0
  %2224 = vmatprep.mubr.f32.mxu0 0.0
  %2225 = vmatmul.mubr.f32.gmra.mrb[0].mxu0 %v1978
  %v2226 = vpop.f32.mrb[0].mxu0
  %v2227 = vadd.f32 0.0, %v2226
  %v2228 = vpop.f32.mrb[0].mxu0
  %2229 = vmatprep.mubr.f32.mxu0 0.0
  %2230 = vmatmul.mubr.f32.gmra.mrb[0].mxu0 %v1979
  %v2231 = vpop.f32.mrb[0].mxu0
  %v2232 = vadd.f32 0.0, %v2231
  %v2233 = vpop.f32.mrb[0].mxu0
  %2234 = vmatprep.mubr.f32.mxu0 0.0
  %2235 = vmatmul.mubr.f32.gmra.mrb[0].mxu0 %v1980
  %v2236 = vpop.f32.mrb[0].mxu0
  %v2237 = vadd.f32 0.0, %v2236
  %v2238 = vpop.f32.mrb[0].mxu0
  %2239 = vmatprep.mubr.f32.mxu0 0.0
  %2240 = vmatmul.mubr.f32.gmra.mrb[0].mxu0 %v1981
  %v2241 = vpop.f32.mrb[0].mxu0
  %v2242 = vadd.f32 0.0, %v2241
  %v2243 = vpop.f32.mrb[0].mxu0
  %2244 = vmatprep.mubr.f32.mxu0 0.0
  %2245 = vmatmul.mubr.f32.gmra.mrb[0].mxu0 %v1982
  %v2246 = vpop.f32.mrb[0].mxu0
  %v2247 = vadd.f32 0.0, %v2246
  %v2248 = vpop.f32.mrb[0].mxu0
  %2249 = vmatprep.mubr.f32.mxu0 0.0
  %2250 = vmatmul.mubr.f32.gmra.mrb[0].mxu0 %v1983
  %v2251 = vpop.f32.mrb[0].mxu0
  %v2252 = vadd.f32 0.0, %v2251
  %v2253 = vpop.f32.mrb[0].mxu0
  %2254 = vmatprep.mubr.f32.mxu0 0.0
  %2255 = vmatmul.mubr.f32.gmra.mrb[0].mxu0 %v1984
  %v2256 = vpop.f32.mrb[0].mxu0
  %v2257 = vadd.f32 0.0, %v2256
  %v2258 = vpop.f32.mrb[0].mxu0
  %2259 = vmatprep.mubr.f32.mxu0 0.0
  %2260 = vmatmul.mubr.f32.gmra.mrb[0].mxu0 %v1985
  %v2261 = vpop.f32.mrb[0].mxu0
  %v2262 = vadd.f32 0.0, %v2261
  %v2263 = vpop.f32.mrb[0].mxu0
  %2264 = vmatprep.mubr.f32.mxu0 0.0
  %2265 = vmatmul.mubr.f32.gmra.mrb[0].mxu0 %v1986
  %v2266 = vpop.f32.mrb[0].mxu0
  %v2267 = vadd.f32 0.0, %v2266
  %v2268 = vpop.f32.mrb[0].mxu0
  %2269 = vmatprep.mubr.f32.mxu0 0.0
  %2270 = vmatmul.mubr.f32.gmra.mrb[0].mxu0 %v1987
  %v2271 = vpop.f32.mrb[0].mxu0
  %v2272 = vadd.f32 0.0, %v2271
  %v2273 = vpop.f32.mrb[0].mxu0
  %2274 = vmatprep.mubr.f32.mxu0 0.0
  %2275 = vmatmul.mubr.f32.gmra.mrb[0].mxu0 %v1988
  %v2276 = vpop.f32.mrb[0].mxu0
  %v2277 = vadd.f32 0.0, %v2276
  %v2278 = vpop.f32.mrb[0].mxu0
  %2279 = vmatprep.mubr.f32.mxu0 0.0
  %2280 = vmatmul.mubr.f32.gmra.mrb[0].mxu0 %v1989
  %v2281 = vpop.f32.mrb[0].mxu0
  %v2282 = vadd.f32 0.0, %v2281
  %v2283 = vpop.f32.mrb[0].mxu0
  %2284 = vmatprep.mubr.f32.mxu0 0.0
  %2285 = vmatmul.mubr.f32.gmra.mrb[0].mxu0 %v1990
  %v2286 = vpop.f32.mrb[0].mxu0
  %v2287 = vadd.f32 0.0, %v2286
  %v2288 = vpop.f32.mrb[0].mxu0
  %2289 = vmatprep.mubr.f32.mxu0 0.0
  %2290 = vmatmul.mubr.f32.gmra.mrb[0].mxu0 %v1991
  %v2291 = vpop.f32.mrb[0].mxu0
  %v2292 = vadd.f32 0.0, %v2291
  %v2293 = vpop.f32.mrb[0].mxu0
  %2294 = vmatprep.mubr.f32.mxu0 0.0
  %2295 = vmatmul.mubr.f32.gmra.mrb[0].mxu0 %v1992
  %v2296 = vpop.f32.mrb[0].mxu0
  %v2297 = vadd.f32 0.0, %v2296
  %v2298 = vpop.f32.mrb[0].mxu0
  %2299 = vmatprep.mubr.f32.mxu0 0.0
  %2300 = vmatmul.mubr.f32.gmra.mrb[0].mxu0 %v1993
  %v2301 = vpop.f32.mrb[0].mxu0
  %v2302 = vadd.f32 0.0, %v2301
  %v2303 = vpop.f32.mrb[0].mxu0
  %2304 = vmatprep.mubr.f32.mxu0 0.0
  %2305 = vmatmul.mubr.f32.gmra.mrb[0].mxu0 %v1994
  %v2306 = vpop.f32.mrb[0].mxu0
  %v2307 = vadd.f32 0.0, %v2306
  %v2308 = vpop.f32.mrb[0].mxu0
  %2309 = vmatprep.mubr.f32.mxu0 0.0
  %2310 = vmatmul.mubr.f32.gmra.mrb[0].mxu0 %v1995
  %v2311 = vpop.f32.mrb[0].mxu0
  %v2312 = vadd.f32 0.0, %v2311
  %v2313 = vpop.f32.mrb[0].mxu0
  %2314 = vmatprep.mubr.f32.mxu0 0.0
  %2315 = vmatmul.mubr.f32.gmra.mrb[0].mxu0 %v1996
  %v2316 = vpop.f32.mrb[0].mxu0
  %v2317 = vadd.f32 0.0, %v2316
  %v2318 = vpop.f32.mrb[0].mxu0
  %2319 = vmatprep.mubr.f32.mxu0 0.0
  %2320 = vmatmul.mubr.f32.gmra.mrb[0].mxu0 %v1997
  %v2321 = vpop.f32.mrb[0].mxu0
  %v2322 = vadd.f32 0.0, %v2321
  %v2323 = vpop.f32.mrb[0].mxu0
  %2324 = vmatprep.mubr.f32.mxu0 0.0
  %2325 = vmatmul.mubr.f32.gmra.mrb[0].mxu0 %v1998
  %v2326 = vpop.f32.mrb[0].mxu0
  %v2327 = vadd.f32 0.0, %v2326
  %v2328 = vpop.f32.mrb[0].mxu0
  %2329 = vmatprep.mubr.f32.mxu0 0.0
  %2330 = vmatmul.mubr.f32.gmra.mrb[0].mxu0 %v1999
  %v2331 = vpop.f32.mrb[0].mxu0
  %v2332 = vadd.f32 0.0, %v2331
  %v2333 = vpop.f32.mrb[0].mxu0
  %2334 = vmatprep.mubr.f32.mxu0 0.0
  %2335 = vmatmul.mubr.f32.gmra.mrb[0].mxu0 %v2000
  %v2336 = vpop.f32.mrb[0].mxu0
  %v2337 = vadd.f32 0.0, %v2336
  %v2338 = vpop.f32.mrb[0].mxu0
  %2339 = vmatprep.mubr.f32.mxu0 0.0
  %2340 = vmatmul.mubr.f32.gmra.mrb[0].mxu0 %v2001
  %v2341 = vpop.f32.mrb[0].mxu0
  %v2342 = vadd.f32 0.0, %v2341
  %v2343 = vpop.f32.mrb[0].mxu0
  %2344 = vmatprep.mubr.f32.mxu0 0.0
  %2345 = vmatmul.mubr.f32.gmra.mrb[0].mxu0 %v2002
  %v2346 = vpop.f32.mrb[0].mxu0
  %v2347 = vadd.f32 0.0, %v2346
  %v2348 = vpop.f32.mrb[0].mxu0
  %2349 = vmatprep.mubr.f32.mxu0 0.0
  %2350 = vmatmul.mubr.f32.gmra.mrb[0].mxu0 %v2003
  %v2351 = vpop.f32.mrb[0].mxu0
  %v2352 = vadd.f32 0.0, %v2351
  %v2353 = vpop.f32.mrb[0].mxu0
  %2354 = vmatprep.mubr.f32.mxu0 0.0
  %2355 = vmatmul.mubr.f32.gmra.mrb[0].mxu0 %v2004
  %v2356 = vpop.f32.mrb[0].mxu0
  %v2357 = vadd.f32 0.0, %v2356
  %v2358 = vpop.f32.mrb[0].mxu0
  %2359 = vmatprep.mubr.f32.mxu0 0.0
  %2360 = vmatmul.mubr.f32.gmra.mrb[0].mxu0 %v2005
  %v2361 = vpop.f32.mrb[0].mxu0
  %v2362 = vadd.f32 0.0, %v2361
  %v2363 = vpop.f32.mrb[0].mxu0
  %2364 = vmatprep.mubr.f32.mxu0 0.0
  %2365 = vmatmul.mubr.f32.gmra.mrb[0].mxu0 %v2006
  %v2366 = vpop.f32.mrb[0].mxu0
  %v2367 = vadd.f32 0.0, %v2366
  %v2368 = vpop.f32.mrb[0].mxu0
  %2369 = vmatprep.mubr.f32.mxu0 0.0
  %2370 = vmatmul.mubr.f32.gmra.mrb[0].mxu0 %v2007
  %v2371 = vpop.f32.mrb[0].mxu0
  %v2372 = vadd.f32 0.0, %v2371
  %v2373 = vpop.f32.mrb[0].mxu0
  %2374 = vmatprep.mubr.f32.mxu0 0.0
  %2375 = vmatmul.mubr.f32.gmra.mrb[0].mxu0 %v2008
  %v2376 = vpop.f32.mrb[0].mxu0
  %v2377 = vadd.f32 0.0, %v2376
  %v2378 = vpop.f32.mrb[0].mxu0
  %2379 = vmatprep.mubr.f32.mxu0 0.0
  %2380 = vmatmul.mubr.f32.gmra.mrb[0].mxu0 %v2009
  %v2381 = vpop.f32.mrb[0].mxu0
  %v2382 = vadd.f32 0.0, %v2381
  %v2383 = vpop.f32.mrb[0].mxu0
  %2384 = vmatprep.mubr.f32.mxu0 0.0
  %2385 = vmatmul.mubr.f32.gmra.mrb[0].mxu0 %v2010
  %v2386 = vpop.f32.mrb[0].mxu0
  %v2387 = vadd.f32 0.0, %v2386
  %v2388 = vpop.f32.mrb[0].mxu0
  %2389 = vmatprep.mubr.f32.mxu0 0.0
  %2390 = vmatmul.mubr.f32.gmra.mrb[0].mxu0 %v2011
  %v2391 = vpop.f32.mrb[0].mxu0
  %v2392 = vadd.f32 0.0, %v2391
  %v2393 = vpop.f32.mrb[0].mxu0
  %2394 = vmatprep.mubr.f32.mxu0 0.0
  %2395 = vmatmul.mubr.f32.gmra.mrb[0].mxu0 %v2012
  %v2396 = vpop.f32.mrb[0].mxu0
  %v2397 = vadd.f32 0.0, %v2396
  %v2398 = vpop.f32.mrb[0].mxu0
  %2399 = vmatprep.mubr.f32.mxu0 0.0
  %2400 = vmatmul.mubr.f32.gmra.mrb[0].mxu0 %v2013
  %v2401 = vpop.f32.mrb[0].mxu0
  %v2402 = vadd.f32 0.0, %v2401
  %v2403 = vpop.f32.mrb[0].mxu0
  %2404 = vmatprep.mubr.f32.mxu0 0.0
  %2405 = vmatmul.mubr.f32.gmra.mrb[0].mxu0 %v2014
  %v2406 = vpop.f32.mrb[0].mxu0
  %v2407 = vadd.f32 0.0, %v2406
  %v2408 = vpop.f32.mrb[0].mxu0
  %2409 = vmatprep.mubr.f32.mxu0 0.0
  %2410 = vmatmul.mubr.f32.gmra.mrb[0].mxu0 %v2015
  %v2411 = vpop.f32.mrb[0].mxu0
  %v2412 = vadd.f32 0.0, %v2411
  %v2413 = vpop.f32.mrb[0].mxu0
  %2414 = vmatprep.mubr.f32.mxu0 0.0
  %2415 = vmatmul.mubr.f32.gmra.mrb[0].mxu0 %v2016
  %v2416 = vpop.f32.mrb[0].mxu0
  %v2417 = vadd.f32 0.0, %v2416
  %v2418 = vpop.f32.mrb[0].mxu0
  %2419 = vmatprep.mubr.f32.mxu0 0.0
  %2420 = vmatmul.mubr.f32.gmra.mrb[0].mxu0 %v2017
  %v2421 = vpop.f32.mrb[0].mxu0
  %v2422 = vadd.f32 0.0, %v2421
  %v2423 = vpop.f32.mrb[0].mxu0
  %2424 = vmatprep.mubr.f32.mxu0 0.0
  %2425 = vmatmul.mubr.f32.gmra.mrb[0].mxu0 %v2018
  %v2426 = vpop.f32.mrb[0].mxu0
  %v2427 = vadd.f32 0.0, %v2426
  %v2428 = vpop.f32.mrb[0].mxu0
  %2429 = vmatprep.mubr.f32.mxu0 0.0
  %2430 = vmatmul.mubr.f32.gmra.mrb[0].mxu0 %v2019
  %v2431 = vpop.f32.mrb[0].mxu0
  %v2432 = vadd.f32 0.0, %v2431
  %v2433 = vpop.f32.mrb[0].mxu0
  %2434 = vmatprep.mubr.f32.mxu0 0.0
  %2435 = vmatmul.mubr.f32.gmra.mrb[0].mxu0 %v2020
  %v2436 = vpop.f32.mrb[0].mxu0
  %v2437 = vadd.f32 0.0, %v2436
  %v2438 = vpop.f32.mrb[0].mxu0
  %2439 = vmatprep.mubr.f32.mxu0 0.0
  %2440 = vmatmul.mubr.f32.gmra.mrb[0].mxu0 %v2021
  %v2441 = vpop.f32.mrb[0].mxu0
  %v2442 = vadd.f32 0.0, %v2441
  %v2443 = vpop.f32.mrb[0].mxu0
  %2444 = vmatprep.mubr.f32.mxu0 0.0
  %2445 = vmatmul.mubr.f32.gmra.mrb[0].mxu0 %v2022
  %v2446 = vpop.f32.mrb[0].mxu0
  %v2447 = vadd.f32 0.0, %v2446
  %v2448 = vpop.f32.mrb[0].mxu0
  %2449 = vmatprep.mubr.f32.mxu0 0.0
  %2450 = vmatmul.mubr.f32.gmra.mrb[0].mxu0 %v2023
  %v2451 = vpop.f32.mrb[0].mxu0
  %v2452 = vadd.f32 0.0, %v2451
  %v2453 = vpop.f32.mrb[0].mxu0
  %2454 = vmatprep.mubr.f32.mxu0 0.0
  %2455 = vmatmul.mubr.f32.gmra.mrb[0].mxu0 %v2024
  %v2456 = vpop.f32.mrb[0].mxu0
  %v2457 = vadd.f32 0.0, %v2456
  %v2458 = vpop.f32.mrb[0].mxu0
  %2459 = vmatprep.mubr.f32.mxu0 0.0
  %2460 = vmatmul.mubr.f32.gmra.mrb[0].mxu0 %v2025
  %v2461 = vpop.f32.mrb[0].mxu0
  %v2462 = vadd.f32 0.0, %v2461
  %v2463 = vpop.f32.mrb[0].mxu0
  %2464 = vmatprep.mubr.f32.mxu0 0.0
  %2465 = vmatmul.mubr.f32.gmra.mrb[0].mxu0 %v2026
  %v2466 = vpop.f32.mrb[0].mxu0
  %v2467 = vadd.f32 0.0, %v2466
  %v2468 = vpop.f32.mrb[0].mxu0
  %2469 = vmatprep.mubr.f32.mxu0 0.0
  %2470 = vmatmul.mubr.f32.gmra.mrb[0].mxu0 %v2027
  %v2471 = vpop.f32.mrb[0].mxu0
  %v2472 = vadd.f32 0.0, %v2471
  %v2473 = vpop.f32.mrb[0].mxu0
  %2474 = vmatprep.mubr.f32.mxu0 0.0
  %2475 = vmatmul.mubr.f32.gmra.mrb[0].mxu0 %v2028
  %v2476 = vpop.f32.mrb[0].mxu0
  %v2477 = vadd.f32 0.0, %v2476
  %v2478 = vpop.f32.mrb[0].mxu0
  %2479 = vmatprep.mubr.f32.mxu0 0.0
  %2480 = vmatmul.mubr.f32.gmra.mrb[0].mxu0 %v2029
  %v2481 = vpop.f32.mrb[0].mxu0
  %v2482 = vadd.f32 0.0, %v2481
  %v2483 = vpop.f32.mrb[0].mxu0
  %2484 = vmatprep.mubr.f32.mxu0 0.0
  %2485 = vmatmul.mubr.f32.gmra.mrb[0].mxu0 %v2030
  %v2486 = vpop.f32.mrb[0].mxu0
  %v2487 = vadd.f32 0.0, %v2486
  %v2488 = vpop.f32.mrb[0].mxu0
  %2489 = vmatprep.mubr.f32.mxu0 0.0
  %2490 = vmatmul.mubr.f32.gmra.mrb[0].mxu0 %v2031
  %v2491 = vpop.f32.mrb[0].mxu0
  %v2492 = vadd.f32 0.0, %v2491
  %v2493 = vpop.f32.mrb[0].mxu0
  %2494 = vmatprep.mubr.f32.mxu0 0.0
  %2495 = vmatmul.mubr.f32.gmra.mrb[0].mxu0 %v2032
  %v2496 = vpop.f32.mrb[0].mxu0
  %v2497 = vadd.f32 0.0, %v2496
  %v2498 = vpop.f32.mrb[0].mxu0
  %2499 = vmatprep.mubr.f32.mxu0 0.0
  %2500 = vmatmul.mubr.f32.gmra.mrb[0].mxu0 %v2033
  %v2501 = vpop.f32.mrb[0].mxu0
  %v2502 = vadd.f32 0.0, %v2501
  %v2503 = vpop.f32.mrb[0].mxu0
  %2504 = vmatprep.mubr.f32.mxu0 0.0
  %2505 = vmatmul.mubr.f32.gmra.mrb[0].mxu0 %v2034
  %v2506 = vpop.f32.mrb[0].mxu0
  %v2507 = vadd.f32 0.0, %v2506
  %v2508 = vpop.f32.mrb[0].mxu0
  %2509 = vmatprep.mubr.f32.mxu0 0.0
  %2510 = vmatmul.mubr.f32.gmra.mrb[0].mxu0 %v2035
  %v2511 = vpop.f32.mrb[0].mxu0
  %v2512 = vadd.f32 0.0, %v2511
  %v2513 = vpop.f32.mrb[0].mxu0
  %2514 = vmatprep.mubr.f32.mxu0 0.0
  %2515 = vmatmul.mubr.f32.gmra.mrb[0].mxu0 %v2036
  %v2516 = vpop.f32.mrb[0].mxu0
  %v2517 = vadd.f32 0.0, %v2516
  %v2518 = vpop.f32.mrb[0].mxu0
  %2519 = vmatprep.mubr.f32.mxu0 0.0
  %2520 = vmatmul.mubr.f32.gmra.mrb[0].mxu0 %v2037
  %v2521 = vpop.f32.mrb[0].mxu0
  %v2522 = vadd.f32 0.0, %v2521
  %v2523 = vpop.f32.mrb[0].mxu0
  %2524 = vdwg.mxu0
  %2525 = vmatprep.subr.mxu0 0.0
  %2526 = vmatpush1.msra.mxu0 %v1941
  %2527 = vmatprep.subr.mxu0 0.0
  %2528 = vmatpush1.msra.mxu0 %v1942
  %2529 = vmatprep.subr.mxu0 0.0
  %2530 = vmatpush1.msra.mxu0 %v1943
  %2531 = vmatprep.subr.mxu0 0.0
  %2532 = vmatpush1.msra.mxu0 %v1944
  %2533 = vmatprep.subr.mxu0 0.0
  %2534 = vmatpush1.msra.mxu0 %v1945
  %2535 = vmatprep.subr.mxu0 0.0
  %2536 = vmatpush1.msra.mxu0 %v1946
  %2537 = vmatprep.subr.mxu0 0.0
  %2538 = vmatpush1.msra.mxu0 %v1947
  %2539 = vmatprep.subr.mxu0 0.0
  %2540 = vmatpush1.msra.mxu0 %v1948
  %2541 = vmatprep.subr.mxu0 0.0
  %2542 = vmatpush1.msra.mxu0 %v1949
  %2543 = vmatprep.subr.mxu0 0.0
  %2544 = vmatpush1.msra.mxu0 %v1950
  %2545 = vmatprep.subr.mxu0 0.0
  %2546 = vmatpush1.msra.mxu0 %v1951
  %2547 = vmatprep.subr.mxu0 0.0
  %2548 = vmatpush1.msra.mxu0 %v1952
  %2549 = vmatprep.subr.mxu0 0.0
  %2550 = vmatpush1.msra.mxu0 %v1953
  %2551 = vmatprep.subr.mxu0 0.0
  %2552 = vmatpush1.msra.mxu0 %v1954
  %2553 = vmatprep.subr.mxu0 0.0
  %2554 = vmatpush1.msra.mxu0 %v1955
  %2555 = vmatprep.subr.mxu0 0.0
  %2556 = vmatpush1.msra.mxu0 %v1956
  %2557 = vmatprep.subr.mxu0 0.0
  %2558 = vmatpush1.msra.mxu0 0.0
  %2559 = vmatprep.subr.mxu0 0.0
  %2560 = vmatpush1.msra.mxu0 0.0
  %2561 = vmatprep.subr.mxu0 0.0
  %2562 = vmatpush1.msra.mxu0 0.0
  %2563 = vmatprep.subr.mxu0 0.0
  %2564 = vmatpush1.msra.mxu0 0.0
  %2565 = vmatprep.subr.mxu0 0.0
  %2566 = vmatpush1.msra.mxu0 0.0
  %2567 = vmatprep.subr.mxu0 0.0
  %2568 = vmatpush1.msra.mxu0 0.0
  %2569 = vmatprep.subr.mxu0 0.0
  %2570 = vmatpush1.msra.mxu0 0.0
  %2571 = vmatprep.subr.mxu0 0.0
  %2572 = vmatpush1.msra.mxu0 0.0
  %2573 = vmatprep.subr.mxu0 0.0
  %2574 = vmatpush1.msra.mxu0 0.0
  %2575 = vmatprep.subr.mxu0 0.0
  %2576 = vmatpush1.msra.mxu0 0.0
  %2577 = vmatprep.subr.mxu0 0.0
  %2578 = vmatpush1.msra.mxu0 0.0
  %2579 = vmatprep.subr.mxu0 0.0
  %2580 = vmatpush1.msra.mxu0 0.0
  %2581 = vmatprep.subr.mxu0 0.0
  %2582 = vmatpush1.msra.mxu0 0.0
  %2583 = vmatprep.subr.mxu0 0.0
  %2584 = vmatpush1.msra.mxu0 0.0
  %2585 = vmatprep.subr.mxu0 0.0
  %2586 = vmatpush1.msra.mxu0 0.0
  %2587 = vmatprep.subr.mxu0 0.0
  %2588 = vmatpush1.msra.mxu0 0.0
  %2589 = vmatprep.mubr.f32.mxu0 0.0
  %2590 = vmatmul.mubr.f32.gmra.mrb[0].mxu0 %v1860
  %v2591 = vpop.f32.mrb[0].mxu0
  %v2592 = vadd.f32 %v2122, %v2591
  %v2593 = vpop.f32.mrb[0].mxu0
  %2594 = vmatprep.mubr.f32.mxu0 0.0
  %2595 = vmatmul.mubr.f32.gmra.mrb[0].mxu0 %v1861
  %v2596 = vpop.f32.mrb[0].mxu0
  %v2597 = vadd.f32 %v2127, %v2596
  %v2598 = vpop.f32.mrb[0].mxu0
  %2599 = vmatprep.mubr.f32.mxu0 0.0
  %2600 = vmatmul.mubr.f32.gmra.mrb[0].mxu0 %v1862
  %v2601 = vpop.f32.mrb[0].mxu0
  %v2602 = vadd.f32 %v2132, %v2601
  %v2603 = vpop.f32.mrb[0].mxu0
  %2604 = vmatprep.mubr.f32.mxu0 0.0
  %2605 = vmatmul.mubr.f32.gmra.mrb[0].mxu0 %v1863
  %v2606 = vpop.f32.mrb[0].mxu0
  %v2607 = vadd.f32 %v2137, %v2606
  %v2608 = vpop.f32.mrb[0].mxu0
  %2609 = vmatprep.mubr.f32.mxu0 0.0
  %2610 = vmatmul.mubr.f32.gmra.mrb[0].mxu0 %v1864
  %v2611 = vpop.f32.mrb[0].mxu0
  %v2612 = vadd.f32 %v2142, %v2611
  %v2613 = vpop.f32.mrb[0].mxu0
  %2614 = vmatprep.mubr.f32.mxu0 0.0
  %2615 = vmatmul.mubr.f32.gmra.mrb[0].mxu0 %v1865
  %v2616 = vpop.f32.mrb[0].mxu0
  %v2617 = vadd.f32 %v2147, %v2616
  %v2618 = vpop.f32.mrb[0].mxu0
  %2619 = vmatprep.mubr.f32.mxu0 0.0
  %2620 = vmatmul.mubr.f32.gmra.mrb[0].mxu0 %v1866
  %v2621 = vpop.f32.mrb[0].mxu0
  %v2622 = vadd.f32 %v2152, %v2621
  %v2623 = vpop.f32.mrb[0].mxu0
  %2624 = vmatprep.mubr.f32.mxu0 0.0
  %2625 = vmatmul.mubr.f32.gmra.mrb[0].mxu0 %v1867
  %v2626 = vpop.f32.mrb[0].mxu0
  %v2627 = vadd.f32 %v2157, %v2626
  %v2628 = vpop.f32.mrb[0].mxu0
  %2629 = vmatprep.mubr.f32.mxu0 0.0
  %2630 = vmatmul.mubr.f32.gmra.mrb[0].mxu0 %v1868
  %v2631 = vpop.f32.mrb[0].mxu0
  %v2632 = vadd.f32 %v2162, %v2631
  %v2633 = vpop.f32.mrb[0].mxu0
  %2634 = vmatprep.mubr.f32.mxu0 0.0
  %2635 = vmatmul.mubr.f32.gmra.mrb[0].mxu0 %v1869
  %v2636 = vpop.f32.mrb[0].mxu0
  %v2637 = vadd.f32 %v2167, %v2636
  %v2638 = vpop.f32.mrb[0].mxu0
  %2639 = vmatprep.mubr.f32.mxu0 0.0
  %2640 = vmatmul.mubr.f32.gmra.mrb[0].mxu0 %v1870
  %v2641 = vpop.f32.mrb[0].mxu0
  %v2642 = vadd.f32 %v2172, %v2641
  %v2643 = vpop.f32.mrb[0].mxu0
  %2644 = vmatprep.mubr.f32.mxu0 0.0
  %2645 = vmatmul.mubr.f32.gmra.mrb[0].mxu0 %v1871
  %v2646 = vpop.f32.mrb[0].mxu0
  %v2647 = vadd.f32 %v2177, %v2646
  %v2648 = vpop.f32.mrb[0].mxu0
  %2649 = vmatprep.mubr.f32.mxu0 0.0
  %2650 = vmatmul.mubr.f32.gmra.mrb[0].mxu0 %v1872
  %v2651 = vpop.f32.mrb[0].mxu0
  %v2652 = vadd.f32 %v2182, %v2651
  %v2653 = vpop.f32.mrb[0].mxu0
  %2654 = vmatprep.mubr.f32.mxu0 0.0
  %2655 = vmatmul.mubr.f32.gmra.mrb[0].mxu0 %v1873
  %v2656 = vpop.f32.mrb[0].mxu0
  %v2657 = vadd.f32 %v2187, %v2656
  %v2658 = vpop.f32.mrb[0].mxu0
  %2659 = vmatprep.mubr.f32.mxu0 0.0
  %2660 = vmatmul.mubr.f32.gmra.mrb[0].mxu0 %v1874
  %v2661 = vpop.f32.mrb[0].mxu0
  %v2662 = vadd.f32 %v2192, %v2661
  %v2663 = vpop.f32.mrb[0].mxu0
  %2664 = vmatprep.mubr.f32.mxu0 0.0
  %2665 = vmatmul.mubr.f32.gmra.mrb[0].mxu0 %v1875
  %v2666 = vpop.f32.mrb[0].mxu0
  %v2667 = vadd.f32 %v2197, %v2666
  %v2668 = vpop.f32.mrb[0].mxu0
  %2669 = vmatprep.mubr.f32.mxu0 0.0
  %2670 = vmatmul.mubr.f32.gmra.mrb[0].mxu0 %v1876
  %v2671 = vpop.f32.mrb[0].mxu0
  %v2672 = vadd.f32 %v2202, %v2671
  %v2673 = vpop.f32.mrb[0].mxu0
  %2674 = vmatprep.mubr.f32.mxu0 0.0
  %2675 = vmatmul.mubr.f32.gmra.mrb[0].mxu0 %v1877
  %v2676 = vpop.f32.mrb[0].mxu0
  %v2677 = vadd.f32 %v2207, %v2676
  %v2678 = vpop.f32.mrb[0].mxu0
  %2679 = vmatprep.mubr.f32.mxu0 0.0
  %2680 = vmatmul.mubr.f32.gmra.mrb[0].mxu0 %v1878
  %v2681 = vpop.f32.mrb[0].mxu0
  %v2682 = vadd.f32 %v2212, %v2681
  %v2683 = vpop.f32.mrb[0].mxu0
  %2684 = vmatprep.mubr.f32.mxu0 0.0
  %2685 = vmatmul.mubr.f32.gmra.mrb[0].mxu0 %v1879
  %v2686 = vpop.f32.mrb[0].mxu0
  %v2687 = vadd.f32 %v2217, %v2686
  %v2688 = vpop.f32.mrb[0].mxu0
  %2689 = vmatprep.mubr.f32.mxu0 0.0
  %2690 = vmatmul.mubr.f32.gmra.mrb[0].mxu0 %v1880
  %v2691 = vpop.f32.mrb[0].mxu0
  %v2692 = vadd.f32 %v2222, %v2691
  %v2693 = vpop.f32.mrb[0].mxu0
  %2694 = vmatprep.mubr.f32.mxu0 0.0
  %2695 = vmatmul.mubr.f32.gmra.mrb[0].mxu0 %v1881
  %v2696 = vpop.f32.mrb[0].mxu0
  %v2697 = vadd.f32 %v2227, %v2696
  %v2698 = vpop.f32.mrb[0].mxu0
  %2699 = vmatprep.mubr.f32.mxu0 0.0
  %2700 = vmatmul.mubr.f32.gmra.mrb[0].mxu0 %v1882
  %v2701 = vpop.f32.mrb[0].mxu0
  %v2702 = vadd.f32 %v2232, %v2701
  %v2703 = vpop.f32.mrb[0].mxu0
  %2704 = vmatprep.mubr.f32.mxu0 0.0
  %2705 = vmatmul.mubr.f32.gmra.mrb[0].mxu0 %v1883
  %v2706 = vpop.f32.mrb[0].mxu0
  %v2707 = vadd.f32 %v2237, %v2706
  %v2708 = vpop.f32.mrb[0].mxu0
  %2709 = vmatprep.mubr.f32.mxu0 0.0
  %2710 = vmatmul.mubr.f32.gmra.mrb[0].mxu0 %v1884
  %v2711 = vpop.f32.mrb[0].mxu0
  %v2712 = vadd.f32 %v2242, %v2711
  %v2713 = vpop.f32.mrb[0].mxu0
  %2714 = vmatprep.mubr.f32.mxu0 0.0
  %2715 = vmatmul.mubr.f32.gmra.mrb[0].mxu0 %v1885
  %v2716 = vpop.f32.mrb[0].mxu0
  %v2717 = vadd.f32 %v2247, %v2716
  %v2718 = vpop.f32.mrb[0].mxu0
  %2719 = vmatprep.mubr.f32.mxu0 0.0
  %2720 = vmatmul.mubr.f32.gmra.mrb[0].mxu0 %v1886
  %v2721 = vpop.f32.mrb[0].mxu0
  %v2722 = vadd.f32 %v2252, %v2721
  %v2723 = vpop.f32.mrb[0].mxu0
  %2724 = vmatprep.mubr.f32.mxu0 0.0
  %2725 = vmatmul.mubr.f32.gmra.mrb[0].mxu0 %v1887
  %v2726 = vpop.f32.mrb[0].mxu0
  %v2727 = vadd.f32 %v2257, %v2726
  %v2728 = vpop.f32.mrb[0].mxu0
  %2729 = vmatprep.mubr.f32.mxu0 0.0
  %2730 = vmatmul.mubr.f32.gmra.mrb[0].mxu0 %v1888
  %v2731 = vpop.f32.mrb[0].mxu0
  %v2732 = vadd.f32 %v2262, %v2731
  %v2733 = vpop.f32.mrb[0].mxu0
  %2734 = vmatprep.mubr.f32.mxu0 0.0
  %2735 = vmatmul.mubr.f32.gmra.mrb[0].mxu0 %v1889
  %v2736 = vpop.f32.mrb[0].mxu0
  %v2737 = vadd.f32 %v2267, %v2736
  %v2738 = vpop.f32.mrb[0].mxu0
  %2739 = vmatprep.mubr.f32.mxu0 0.0
  %2740 = vmatmul.mubr.f32.gmra.mrb[0].mxu0 %v1890
  %v2741 = vpop.f32.mrb[0].mxu0
  %v2742 = vadd.f32 %v2272, %v2741
  %v2743 = vpop.f32.mrb[0].mxu0
  %2744 = vmatprep.mubr.f32.mxu0 0.0
  %2745 = vmatmul.mubr.f32.gmra.mrb[0].mxu0 %v1891
  %v2746 = vpop.f32.mrb[0].mxu0
  %v2747 = vadd.f32 %v2277, %v2746
  %v2748 = vpop.f32.mrb[0].mxu0
  %2749 = vmatprep.mubr.f32.mxu0 0.0
  %2750 = vmatmul.mubr.f32.gmra.mrb[0].mxu0 %v1892
  %v2751 = vpop.f32.mrb[0].mxu0
  %v2752 = vadd.f32 %v2282, %v2751
  %v2753 = vpop.f32.mrb[0].mxu0
  %2754 = vmatprep.mubr.f32.mxu0 0.0
  %2755 = vmatmul.mubr.f32.gmra.mrb[0].mxu0 %v1893
  %v2756 = vpop.f32.mrb[0].mxu0
  %v2757 = vadd.f32 %v2287, %v2756
  %v2758 = vpop.f32.mrb[0].mxu0
  %2759 = vmatprep.mubr.f32.mxu0 0.0
  %2760 = vmatmul.mubr.f32.gmra.mrb[0].mxu0 %v1894
  %v2761 = vpop.f32.mrb[0].mxu0
  %v2762 = vadd.f32 %v2292, %v2761
  %v2763 = vpop.f32.mrb[0].mxu0
  %2764 = vmatprep.mubr.f32.mxu0 0.0
  %2765 = vmatmul.mubr.f32.gmra.mrb[0].mxu0 %v1895
  %v2766 = vpop.f32.mrb[0].mxu0
  %v2767 = vadd.f32 %v2297, %v2766
  %v2768 = vpop.f32.mrb[0].mxu0
  %2769 = vmatprep.mubr.f32.mxu0 0.0
  %2770 = vmatmul.mubr.f32.gmra.mrb[0].mxu0 %v1896
  %v2771 = vpop.f32.mrb[0].mxu0
  %v2772 = vadd.f32 %v2302, %v2771
  %v2773 = vpop.f32.mrb[0].mxu0
  %2774 = vmatprep.mubr.f32.mxu0 0.0
  %2775 = vmatmul.mubr.f32.gmra.mrb[0].mxu0 %v1897
  %v2776 = vpop.f32.mrb[0].mxu0
  %v2777 = vadd.f32 %v2307, %v2776
  %v2778 = vpop.f32.mrb[0].mxu0
  %2779 = vmatprep.mubr.f32.mxu0 0.0
  %2780 = vmatmul.mubr.f32.gmra.mrb[0].mxu0 %v1898
  %v2781 = vpop.f32.mrb[0].mxu0
  %v2782 = vadd.f32 %v2312, %v2781
  %v2783 = vpop.f32.mrb[0].mxu0
  %2784 = vmatprep.mubr.f32.mxu0 0.0
  %2785 = vmatmul.mubr.f32.gmra.mrb[0].mxu0 %v1899
  %v2786 = vpop.f32.mrb[0].mxu0
  %v2787 = vadd.f32 %v2317, %v2786
  %v2788 = vpop.f32.mrb[0].mxu0
  %2789 = vmatprep.mubr.f32.mxu0 0.0
  %2790 = vmatmul.mubr.f32.gmra.mrb[0].mxu0 %v1900
  %v2791 = vpop.f32.mrb[0].mxu0
  %v2792 = vadd.f32 %v2322, %v2791
  %v2793 = vpop.f32.mrb[0].mxu0
  %2794 = vmatprep.mubr.f32.mxu0 0.0
  %2795 = vmatmul.mubr.f32.gmra.mrb[0].mxu0 %v1901
  %v2796 = vpop.f32.mrb[0].mxu0
  %v2797 = vadd.f32 %v2327, %v2796
  %v2798 = vpop.f32.mrb[0].mxu0
  %2799 = vmatprep.mubr.f32.mxu0 0.0
  %2800 = vmatmul.mubr.f32.gmra.mrb[0].mxu0 %v1902
  %v2801 = vpop.f32.mrb[0].mxu0
  %v2802 = vadd.f32 %v2332, %v2801
  %v2803 = vpop.f32.mrb[0].mxu0
  %2804 = vmatprep.mubr.f32.mxu0 0.0
  %2805 = vmatmul.mubr.f32.gmra.mrb[0].mxu0 %v1903
  %v2806 = vpop.f32.mrb[0].mxu0
  %v2807 = vadd.f32 %v2337, %v2806
  %v2808 = vpop.f32.mrb[0].mxu0
  %2809 = vmatprep.mubr.f32.mxu0 0.0
  %2810 = vmatmul.mubr.f32.gmra.mrb[0].mxu0 %v1904
  %v2811 = vpop.f32.mrb[0].mxu0
  %v2812 = vadd.f32 %v2342, %v2811
  %v2813 = vpop.f32.mrb[0].mxu0
  %2814 = vmatprep.mubr.f32.mxu0 0.0
  %2815 = vmatmul.mubr.f32.gmra.mrb[0].mxu0 %v1905
  %v2816 = vpop.f32.mrb[0].mxu0
  %v2817 = vadd.f32 %v2347, %v2816
  %v2818 = vpop.f32.mrb[0].mxu0
  %2819 = vmatprep.mubr.f32.mxu0 0.0
  %2820 = vmatmul.mubr.f32.gmra.mrb[0].mxu0 %v1906
  %v2821 = vpop.f32.mrb[0].mxu0
  %v2822 = vadd.f32 %v2352, %v2821
  %v2823 = vpop.f32.mrb[0].mxu0
  %2824 = vmatprep.mubr.f32.mxu0 0.0
  %2825 = vmatmul.mubr.f32.gmra.mrb[0].mxu0 %v1907
  %v2826 = vpop.f32.mrb[0].mxu0
  %v2827 = vadd.f32 %v2357, %v2826
  %v2828 = vpop.f32.mrb[0].mxu0
  %2829 = vmatprep.mubr.f32.mxu0 0.0
  %2830 = vmatmul.mubr.f32.gmra.mrb[0].mxu0 %v1908
  %v2831 = vpop.f32.mrb[0].mxu0
  %v2832 = vadd.f32 %v2362, %v2831
  %v2833 = vpop.f32.mrb[0].mxu0
  %2834 = vmatprep.mubr.f32.mxu0 0.0
  %2835 = vmatmul.mubr.f32.gmra.mrb[0].mxu0 %v1909
  %v2836 = vpop.f32.mrb[0].mxu0
  %v2837 = vadd.f32 %v2367, %v2836
  %v2838 = vpop.f32.mrb[0].mxu0
  %2839 = vmatprep.mubr.f32.mxu0 0.0
  %2840 = vmatmul.mubr.f32.gmra.mrb[0].mxu0 %v1910
  %v2841 = vpop.f32.mrb[0].mxu0
  %v2842 = vadd.f32 %v2372, %v2841
  %v2843 = vpop.f32.mrb[0].mxu0
  %2844 = vmatprep.mubr.f32.mxu0 0.0
  %2845 = vmatmul.mubr.f32.gmra.mrb[0].mxu0 %v1911
  %v2846 = vpop.f32.mrb[0].mxu0
  %v2847 = vadd.f32 %v2377, %v2846
  %v2848 = vpop.f32.mrb[0].mxu0
  %2849 = vmatprep.mubr.f32.mxu0 0.0
  %2850 = vmatmul.mubr.f32.gmra.mrb[0].mxu0 %v1912
  %v2851 = vpop.f32.mrb[0].mxu0
  %v2852 = vadd.f32 %v2382, %v2851
  %v2853 = vpop.f32.mrb[0].mxu0
  %2854 = vmatprep.mubr.f32.mxu0 0.0
  %2855 = vmatmul.mubr.f32.gmra.mrb[0].mxu0 %v1913
  %v2856 = vpop.f32.mrb[0].mxu0
  %v2857 = vadd.f32 %v2387, %v2856
  %v2858 = vpop.f32.mrb[0].mxu0
  %2859 = vmatprep.mubr.f32.mxu0 0.0
  %2860 = vmatmul.mubr.f32.gmra.mrb[0].mxu0 %v1914
  %v2861 = vpop.f32.mrb[0].mxu0
  %v2862 = vadd.f32 %v2392, %v2861
  %v2863 = vpop.f32.mrb[0].mxu0
  %2864 = vmatprep.mubr.f32.mxu0 0.0
  %2865 = vmatmul.mubr.f32.gmra.mrb[0].mxu0 %v1915
  %v2866 = vpop.f32.mrb[0].mxu0
  %v2867 = vadd.f32 %v2397, %v2866
  %v2868 = vpop.f32.mrb[0].mxu0
  %2869 = vmatprep.mubr.f32.mxu0 0.0
  %2870 = vmatmul.mubr.f32.gmra.mrb[0].mxu0 %v1916
  %v2871 = vpop.f32.mrb[0].mxu0
  %v2872 = vadd.f32 %v2402, %v2871
  %v2873 = vpop.f32.mrb[0].mxu0
  %2874 = vmatprep.mubr.f32.mxu0 0.0
  %2875 = vmatmul.mubr.f32.gmra.mrb[0].mxu0 %v1917
  %v2876 = vpop.f32.mrb[0].mxu0
  %v2877 = vadd.f32 %v2407, %v2876
  %v2878 = vpop.f32.mrb[0].mxu0
  %2879 = vmatprep.mubr.f32.mxu0 0.0
  %2880 = vmatmul.mubr.f32.gmra.mrb[0].mxu0 %v1918
  %v2881 = vpop.f32.mrb[0].mxu0
  %v2882 = vadd.f32 %v2412, %v2881
  %v2883 = vpop.f32.mrb[0].mxu0
  %2884 = vmatprep.mubr.f32.mxu0 0.0
  %2885 = vmatmul.mubr.f32.gmra.mrb[0].mxu0 %v1919
  %v2886 = vpop.f32.mrb[0].mxu0
  %v2887 = vadd.f32 %v2417, %v2886
  %v2888 = vpop.f32.mrb[0].mxu0
  %2889 = vmatprep.mubr.f32.mxu0 0.0
  %2890 = vmatmul.mubr.f32.gmra.mrb[0].mxu0 %v1920
  %v2891 = vpop.f32.mrb[0].mxu0
  %v2892 = vadd.f32 %v2422, %v2891
  %v2893 = vpop.f32.mrb[0].mxu0
  %2894 = vmatprep.mubr.f32.mxu0 0.0
  %2895 = vmatmul.mubr.f32.gmra.mrb[0].mxu0 %v1921
  %v2896 = vpop.f32.mrb[0].mxu0
  %v2897 = vadd.f32 %v2427, %v2896
  %v2898 = vpop.f32.mrb[0].mxu0
  %2899 = vmatprep.mubr.f32.mxu0 0.0
  %2900 = vmatmul.mubr.f32.gmra.mrb[0].mxu0 %v1922
  %v2901 = vpop.f32.mrb[0].mxu0
  %v2902 = vadd.f32 %v2432, %v2901
  %v2903 = vpop.f32.mrb[0].mxu0
  %2904 = vmatprep.mubr.f32.mxu0 0.0
  %2905 = vmatmul.mubr.f32.gmra.mrb[0].mxu0 %v1923
  %v2906 = vpop.f32.mrb[0].mxu0
  %v2907 = vadd.f32 %v2437, %v2906
  %v2908 = vpop.f32.mrb[0].mxu0
  %2909 = vmatprep.mubr.f32.mxu0 0.0
  %2910 = vmatmul.mubr.f32.gmra.mrb[0].mxu0 %v1924
  %v2911 = vpop.f32.mrb[0].mxu0
  %v2912 = vadd.f32 %v2442, %v2911
  %v2913 = vpop.f32.mrb[0].mxu0
  %2914 = vmatprep.mubr.f32.mxu0 0.0
  %2915 = vmatmul.mubr.f32.gmra.mrb[0].mxu0 %v1925
  %v2916 = vpop.f32.mrb[0].mxu0
  %v2917 = vadd.f32 %v2447, %v2916
  %v2918 = vpop.f32.mrb[0].mxu0
  %2919 = vmatprep.mubr.f32.mxu0 0.0
  %2920 = vmatmul.mubr.f32.gmra.mrb[0].mxu0 %v1926
  %v2921 = vpop.f32.mrb[0].mxu0
  %v2922 = vadd.f32 %v2452, %v2921
  %v2923 = vpop.f32.mrb[0].mxu0
  %2924 = vmatprep.mubr.f32.mxu0 0.0
  %2925 = vmatmul.mubr.f32.gmra.mrb[0].mxu0 %v1927
  %v2926 = vpop.f32.mrb[0].mxu0
  %v2927 = vadd.f32 %v2457, %v2926
  %v2928 = vpop.f32.mrb[0].mxu0
  %2929 = vmatprep.mubr.f32.mxu0 0.0
  %2930 = vmatmul.mubr.f32.gmra.mrb[0].mxu0 %v1928
  %v2931 = vpop.f32.mrb[0].mxu0
  %v2932 = vadd.f32 %v2462, %v2931
  %v2933 = vpop.f32.mrb[0].mxu0
  %2934 = vmatprep.mubr.f32.mxu0 0.0
  %2935 = vmatmul.mubr.f32.gmra.mrb[0].mxu0 %v1929
  %v2936 = vpop.f32.mrb[0].mxu0
  %v2937 = vadd.f32 %v2467, %v2936
  %v2938 = vpop.f32.mrb[0].mxu0
  %2939 = vmatprep.mubr.f32.mxu0 0.0
  %2940 = vmatmul.mubr.f32.gmra.mrb[0].mxu0 %v1930
  %v2941 = vpop.f32.mrb[0].mxu0
  %v2942 = vadd.f32 %v2472, %v2941
  %v2943 = vpop.f32.mrb[0].mxu0
  %2944 = vmatprep.mubr.f32.mxu0 0.0
  %2945 = vmatmul.mubr.f32.gmra.mrb[0].mxu0 %v1931
  %v2946 = vpop.f32.mrb[0].mxu0
  %v2947 = vadd.f32 %v2477, %v2946
  %v2948 = vpop.f32.mrb[0].mxu0
  %2949 = vmatprep.mubr.f32.mxu0 0.0
  %2950 = vmatmul.mubr.f32.gmra.mrb[0].mxu0 %v1932
  %v2951 = vpop.f32.mrb[0].mxu0
  %v2952 = vadd.f32 %v2482, %v2951
  %v2953 = vpop.f32.mrb[0].mxu0
  %2954 = vmatprep.mubr.f32.mxu0 0.0
  %2955 = vmatmul.mubr.f32.gmra.mrb[0].mxu0 %v1933
  %v2956 = vpop.f32.mrb[0].mxu0
  %v2957 = vadd.f32 %v2487, %v2956
  %v2958 = vpop.f32.mrb[0].mxu0
  %2959 = vmatprep.mubr.f32.mxu0 0.0
  %2960 = vmatmul.mubr.f32.gmra.mrb[0].mxu0 %v1934
  %v2961 = vpop.f32.mrb[0].mxu0
  %v2962 = vadd.f32 %v2492, %v2961
  %v2963 = vpop.f32.mrb[0].mxu0
  %2964 = vmatprep.mubr.f32.mxu0 0.0
  %2965 = vmatmul.mubr.f32.gmra.mrb[0].mxu0 %v1935
  %v2966 = vpop.f32.mrb[0].mxu0
  %v2967 = vadd.f32 %v2497, %v2966
  %v2968 = vpop.f32.mrb[0].mxu0
  %2969 = vmatprep.mubr.f32.mxu0 0.0
  %2970 = vmatmul.mubr.f32.gmra.mrb[0].mxu0 %v1936
  %v2971 = vpop.f32.mrb[0].mxu0
  %v2972 = vadd.f32 %v2502, %v2971
  %v2973 = vpop.f32.mrb[0].mxu0
  %2974 = vmatprep.mubr.f32.mxu0 0.0
  %2975 = vmatmul.mubr.f32.gmra.mrb[0].mxu0 %v1937
  %v2976 = vpop.f32.mrb[0].mxu0
  %v2977 = vadd.f32 %v2507, %v2976
  %v2978 = vpop.f32.mrb[0].mxu0
  %2979 = vmatprep.mubr.f32.mxu0 0.0
  %2980 = vmatmul.mubr.f32.gmra.mrb[0].mxu0 %v1938
  %v2981 = vpop.f32.mrb[0].mxu0
  %v2982 = vadd.f32 %v2512, %v2981
  %v2983 = vpop.f32.mrb[0].mxu0
  %2984 = vmatprep.mubr.f32.mxu0 0.0
  %2985 = vmatmul.mubr.f32.gmra.mrb[0].mxu0 %v1939
  %v2986 = vpop.f32.mrb[0].mxu0
  %v2987 = vadd.f32 %v2517, %v2986
  %v2988 = vpop.f32.mrb[0].mxu0
  %2989 = vmatprep.mubr.f32.mxu0 0.0
  %2990 = vmatmul.mubr.f32.gmra.mrb[0].mxu0 %v1940
  %v2991 = vpop.f32.mrb[0].mxu0
  %v2992 = vadd.f32 %v2522, %v2991
  %v2993 = vpop.f32.mrb[0].mxu0
  %2994 = vdwg.mxu0
  %v2995 = vld [vmem:[#allocation2 + $0x7] sm:$0xff]
  %v2996 = vld [vmem:[#allocation2 + $0xf] sm:$0xff]
  %v2997 = vld [vmem:[#allocation2 + $0x17] sm:$0xff]
  %v2998 = vld [vmem:[#allocation2 + $0x1f] sm:$0xff]
  %v2999 = vld [vmem:[#allocation2 + $0x27] sm:$0xff]
  %v3000 = vld [vmem:[#allocation2 + $0x2f] sm:$0xff]
  %v3001 = vld [vmem:[#allocation2 + $0x37] sm:$0xff]
  %v3002 = vld [vmem:[#allocation2 + $0x3f] sm:$0xff]
  %v3003 = vld [vmem:[#allocation2 + $0x47] sm:$0xff]
  %v3004 = vld [vmem:[#allocation2 + $0x4f] sm:$0xff]
  %v3005 = vld [vmem:[#allocation2 + $0x57] sm:$0xff]
  %v3006 = vld [vmem:[#allocation2 + $0x5f] sm:$0xff]
  %v3007 = vld [vmem:[#allocation2 + $0x67] sm:$0xff]
  %v3008 = vld [vmem:[#allocation2 + $0x6f] sm:$0xff]
  %v3009 = vld [vmem:[#allocation2 + $0x77] sm:$0xff]
  %v3010 = vld [vmem:[#allocation2 + $0x7f] sm:$0xff]
  %v3011 = vld [vmem:[#allocation2 + $0x87] sm:$0xff]
  %v3012 = vld [vmem:[#allocation2 + $0x8f] sm:$0xff]
  %v3013 = vld [vmem:[#allocation2 + $0x97] sm:$0xff]
  %v3014 = vld [vmem:[#allocation2 + $0x9f] sm:$0xff]
  %v3015 = vld [vmem:[#allocation2 + $0xa7] sm:$0xff]
  %v3016 = vld [vmem:[#allocation2 + $0xaf] sm:$0xff]
  %v3017 = vld [vmem:[#allocation2 + $0xb7] sm:$0xff]
  %v3018 = vld [vmem:[#allocation2 + $0xbf] sm:$0xff]
  %v3019 = vld [vmem:[#allocation2 + $0xc7] sm:$0xff]
  %v3020 = vld [vmem:[#allocation2 + $0xcf] sm:$0xff]
  %v3021 = vld [vmem:[#allocation2 + $0xd7] sm:$0xff]
  %v3022 = vld [vmem:[#allocation2 + $0xdf] sm:$0xff]
  %v3023 = vld [vmem:[#allocation2 + $0xe7] sm:$0xff]
  %v3024 = vld [vmem:[#allocation2 + $0xef] sm:$0xff]
  %v3025 = vld [vmem:[#allocation2 + $0xf7] sm:$0xff]
  %v3026 = vld [vmem:[#allocation2 + $0xff] sm:$0xff]
  %v3027 = vld [vmem:[#allocation2 + $0x107] sm:$0xff]
  %v3028 = vld [vmem:[#allocation2 + $0x10f] sm:$0xff]
  %v3029 = vld [vmem:[#allocation2 + $0x117] sm:$0xff]
  %v3030 = vld [vmem:[#allocation2 + $0x11f] sm:$0xff]
  %v3031 = vld [vmem:[#allocation2 + $0x127] sm:$0xff]
  %v3032 = vld [vmem:[#allocation2 + $0x12f] sm:$0xff]
  %v3033 = vld [vmem:[#allocation2 + $0x137] sm:$0xff]
  %v3034 = vld [vmem:[#allocation2 + $0x13f] sm:$0xff]
  %v3035 = vld [vmem:[#allocation2 + $0x147] sm:$0xff]
  %v3036 = vld [vmem:[#allocation2 + $0x14f] sm:$0xff]
  %v3037 = vld [vmem:[#allocation2 + $0x157] sm:$0xff]
  %v3038 = vld [vmem:[#allocation2 + $0x15f] sm:$0xff]
  %v3039 = vld [vmem:[#allocation2 + $0x167] sm:$0xff]
  %v3040 = vld [vmem:[#allocation2 + $0x16f] sm:$0xff]
  %v3041 = vld [vmem:[#allocation2 + $0x177] sm:$0xff]
  %v3042 = vld [vmem:[#allocation2 + $0x17f] sm:$0xff]
  %v3043 = vld [vmem:[#allocation2 + $0x187] sm:$0xff]
  %v3044 = vld [vmem:[#allocation2 + $0x18f] sm:$0xff]
  %v3045 = vld [vmem:[#allocation2 + $0x197] sm:$0xff]
  %v3046 = vld [vmem:[#allocation2 + $0x19f] sm:$0xff]
  %v3047 = vld [vmem:[#allocation2 + $0x1a7] sm:$0xff]
  %v3048 = vld [vmem:[#allocation2 + $0x1af] sm:$0xff]
  %v3049 = vld [vmem:[#allocation2 + $0x1b7] sm:$0xff]
  %v3050 = vld [vmem:[#allocation2 + $0x1bf] sm:$0xff]
  %v3051 = vld [vmem:[#allocation2 + $0x1c7] sm:$0xff]
  %v3052 = vld [vmem:[#allocation2 + $0x1cf] sm:$0xff]
  %v3053 = vld [vmem:[#allocation2 + $0x1d7] sm:$0xff]
  %v3054 = vld [vmem:[#allocation2 + $0x1df] sm:$0xff]
  %v3055 = vld [vmem:[#allocation2 + $0x1e7] sm:$0xff]
  %v3056 = vld [vmem:[#allocation2 + $0x1ef] sm:$0xff]
  %v3057 = vld [vmem:[#allocation2 + $0x1f7] sm:$0xff]
  %v3058 = vld [vmem:[#allocation2 + $0x1ff] sm:$0xff]
  %v3059 = vld [vmem:[#allocation2 + $0x207] sm:$0xff]
  %v3060 = vld [vmem:[#allocation2 + $0x20f] sm:$0xff]
  %v3061 = vld [vmem:[#allocation2 + $0x217] sm:$0xff]
  %v3062 = vld [vmem:[#allocation2 + $0x21f] sm:$0xff]
  %v3063 = vld [vmem:[#allocation2 + $0x227] sm:$0xff]
  %v3064 = vld [vmem:[#allocation2 + $0x22f] sm:$0xff]
  %v3065 = vld [vmem:[#allocation2 + $0x237] sm:$0xff]
  %v3066 = vld [vmem:[#allocation2 + $0x23f] sm:$0xff]
  %v3067 = vld [vmem:[#allocation2 + $0x247] sm:$0xff]
  %v3068 = vld [vmem:[#allocation2 + $0x24f] sm:$0xff]
  %v3069 = vld [vmem:[#allocation2 + $0x257] sm:$0xff]
  %v3070 = vld [vmem:[#allocation2 + $0x25f] sm:$0xff]
  %v3071 = vld [vmem:[#allocation2 + $0x267] sm:$0xff]
  %v3072 = vld [vmem:[#allocation2 + $0x26f] sm:$0xff]
  %v3073 = vld [vmem:[#allocation2 + $0x277] sm:$0xff]
  %v3074 = vld [vmem:[#allocation2 + $0x27f] sm:$0xff]
  %v3075 = vld [vmem:[#allocation2 + $0x287] sm:$0xff]
  %s3076 = scalar_lea.vmem %s3, 256
  %v3077 = vld [vmem:[%s3076] sm:$0xff]
  %v3078 = vld [vmem:[%s3076 + $0x8] sm:$0xff]
  %v3079 = vld [vmem:[%s3076 + $0x10] sm:$0xff]
  %v3080 = vld [vmem:[%s3076 + $0x18] sm:$0xff]
  %v3081 = vld [vmem:[%s3076 + $0x20] sm:$0xff]
  %v3082 = vld [vmem:[%s3076 + $0x28] sm:$0xff]
  %v3083 = vld [vmem:[%s3076 + $0x30] sm:$0xff]
  %v3084 = vld [vmem:[%s3076 + $0x38] sm:$0xff]
  %v3085 = vld [vmem:[%s3076 + $0x40] sm:$0xff]
  %v3086 = vld [vmem:[%s3076 + $0x48] sm:$0xff]
  %v3087 = vld [vmem:[%s3076 + $0x50] sm:$0xff]
  %v3088 = vld [vmem:[%s3076 + $0x58] sm:$0xff]
  %v3089 = vld [vmem:[%s3076 + $0x60] sm:$0xff]
  %v3090 = vld [vmem:[%s3076 + $0x68] sm:$0xff]
  %v3091 = vld [vmem:[%s3076 + $0x70] sm:$0xff]
  %v3092 = vld [vmem:[%s3076 + $0x78] sm:$0xff]
  %3093 = vmatprep.subr.mxu0 0.0
  %3094 = vmatpush1.msra.mxu0 %v3077
  %3095 = vmatprep.subr.mxu0 0.0
  %3096 = vmatpush1.msra.mxu0 %v3078
  %3097 = vmatprep.subr.mxu0 0.0
  %3098 = vmatpush1.msra.mxu0 %v3079
  %3099 = vmatprep.subr.mxu0 0.0
  %3100 = vmatpush1.msra.mxu0 %v3080
  %3101 = vmatprep.subr.mxu0 0.0
  %3102 = vmatpush1.msra.mxu0 %v3081
  %3103 = vmatprep.subr.mxu0 0.0
  %3104 = vmatpush1.msra.mxu0 %v3082
  %3105 = vmatprep.subr.mxu0 0.0
  %3106 = vmatpush1.msra.mxu0 %v3083
  %3107 = vmatprep.subr.mxu0 0.0
  %3108 = vmatpush1.msra.mxu0 %v3084
  %3109 = vmatprep.subr.mxu0 0.0
  %3110 = vmatpush1.msra.mxu0 %v3085
  %3111 = vmatprep.subr.mxu0 0.0
  %3112 = vmatpush1.msra.mxu0 %v3086
  %3113 = vmatprep.subr.mxu0 0.0
  %3114 = vmatpush1.msra.mxu0 %v3087
  %3115 = vmatprep.subr.mxu0 0.0
  %3116 = vmatpush1.msra.mxu0 %v3088
  %3117 = vmatprep.subr.mxu0 0.0
  %3118 = vmatpush1.msra.mxu0 %v3089
  %3119 = vmatprep.subr.mxu0 0.0
  %3120 = vmatpush1.msra.mxu0 %v3090
  %3121 = vmatprep.subr.mxu0 0.0
  %3122 = vmatpush1.msra.mxu0 %v3091
  %3123 = vmatprep.subr.mxu0 0.0
  %3124 = vmatpush1.msra.mxu0 %v3092
  %3125 = vmatprep.subr.mxu0 0.0
  %3126 = vmatpush1.msra.mxu0 0.0
  %3127 = vmatprep.subr.mxu0 0.0
  %3128 = vmatpush1.msra.mxu0 0.0
  %3129 = vmatprep.subr.mxu0 0.0
  %3130 = vmatpush1.msra.mxu0 0.0
  %3131 = vmatprep.subr.mxu0 0.0
  %3132 = vmatpush1.msra.mxu0 0.0
  %3133 = vmatprep.subr.mxu0 0.0
  %3134 = vmatpush1.msra.mxu0 0.0
  %3135 = vmatprep.subr.mxu0 0.0
  %3136 = vmatpush1.msra.mxu0 0.0
  %3137 = vmatprep.subr.mxu0 0.0
  %3138 = vmatpush1.msra.mxu0 0.0
  %3139 = vmatprep.subr.mxu0 0.0
  %3140 = vmatpush1.msra.mxu0 0.0
  %3141 = vmatprep.subr.mxu0 0.0
  %3142 = vmatpush1.msra.mxu0 0.0
  %3143 = vmatprep.subr.mxu0 0.0
  %3144 = vmatpush1.msra.mxu0 0.0
  %3145 = vmatprep.subr.mxu0 0.0
  %3146 = vmatpush1.msra.mxu0 0.0
  %3147 = vmatprep.subr.mxu0 0.0
  %3148 = vmatpush1.msra.mxu0 0.0
  %3149 = vmatprep.subr.mxu0 0.0
  %3150 = vmatpush1.msra.mxu0 0.0
  %3151 = vmatprep.subr.mxu0 0.0
  %3152 = vmatpush1.msra.mxu0 0.0
  %3153 = vmatprep.subr.mxu0 0.0
  %3154 = vmatpush1.msra.mxu0 0.0
  %3155 = vmatprep.subr.mxu0 0.0
  %3156 = vmatpush1.msra.mxu0 0.0
  %3157 = vmatprep.mubr.f32.mxu0 0.0
  %3158 = vmatmul.mubr.f32.gmra.mrb[0].mxu0 %v2995
  %v3159 = vpop.f32.mrb[0].mxu0
  %v3160 = vadd.f32 0.0, %v3159
  %v3161 = vpop.f32.mrb[0].mxu0
  %3162 = vmatprep.mubr.f32.mxu0 0.0
  %3163 = vmatmul.mubr.f32.gmra.mrb[0].mxu0 %v2996
  %v3164 = vpop.f32.mrb[0].mxu0
  %v3165 = vadd.f32 0.0, %v3164
  %v3166 = vpop.f32.mrb[0].mxu0
  %3167 = vmatprep.mubr.f32.mxu0 0.0
  %3168 = vmatmul.mubr.f32.gmra.mrb[0].mxu0 %v2997
  %v3169 = vpop.f32.mrb[0].mxu0
  %v3170 = vadd.f32 0.0, %v3169
  %v3171 = vpop.f32.mrb[0].mxu0
  %3172 = vmatprep.mubr.f32.mxu0 0.0
  %3173 = vmatmul.mubr.f32.gmra.mrb[0].mxu0 %v2998
  %v3174 = vpop.f32.mrb[0].mxu0
  %v3175 = vadd.f32 0.0, %v3174
  %v3176 = vpop.f32.mrb[0].mxu0
  %3177 = vmatprep.mubr.f32.mxu0 0.0
  %3178 = vmatmul.mubr.f32.gmra.mrb[0].mxu0 %v2999
  %v3179 = vpop.f32.mrb[0].mxu0
  %v3180 = vadd.f32 0.0, %v3179
  %v3181 = vpop.f32.mrb[0].mxu0
  %3182 = vmatprep.mubr.f32.mxu0 0.0
  %3183 = vmatmul.mubr.f32.gmra.mrb[0].mxu0 %v3000
  %v3184 = vpop.f32.mrb[0].mxu0
  %v3185 = vadd.f32 0.0, %v3184
  %v3186 = vpop.f32.mrb[0].mxu0
  %3187 = vmatprep.mubr.f32.mxu0 0.0
  %3188 = vmatmul.mubr.f32.gmra.mrb[0].mxu0 %v3001
  %v3189 = vpop.f32.mrb[0].mxu0
  %v3190 = vadd.f32 0.0, %v3189
  %v3191 = vpop.f32.mrb[0].mxu0
  %3192 = vmatprep.mubr.f32.mxu0 0.0
  %3193 = vmatmul.mubr.f32.gmra.mrb[0].mxu0 %v3002
  %v3194 = vpop.f32.mrb[0].mxu0
  %v3195 = vadd.f32 0.0, %v3194
  %v3196 = vpop.f32.mrb[0].mxu0
  %3197 = vmatprep.mubr.f32.mxu0 0.0
  %3198 = vmatmul.mubr.f32.gmra.mrb[0].mxu0 %v3003
  %v3199 = vpop.f32.mrb[0].mxu0
  %v3200 = vadd.f32 0.0, %v3199
  %v3201 = vpop.f32.mrb[0].mxu0
  %3202 = vmatprep.mubr.f32.mxu0 0.0
  %3203 = vmatmul.mubr.f32.gmra.mrb[0].mxu0 %v3004
  %v3204 = vpop.f32.mrb[0].mxu0
  %v3205 = vadd.f32 0.0, %v3204
  %v3206 = vpop.f32.mrb[0].mxu0
  %3207 = vmatprep.mubr.f32.mxu0 0.0
  %3208 = vmatmul.mubr.f32.gmra.mrb[0].mxu0 %v3005
  %v3209 = vpop.f32.mrb[0].mxu0
  %v3210 = vadd.f32 0.0, %v3209
  %v3211 = vpop.f32.mrb[0].mxu0
  %3212 = vmatprep.mubr.f32.mxu0 0.0
  %3213 = vmatmul.mubr.f32.gmra.mrb[0].mxu0 %v3006
  %v3214 = vpop.f32.mrb[0].mxu0
  %v3215 = vadd.f32 0.0, %v3214
  %v3216 = vpop.f32.mrb[0].mxu0
  %3217 = vmatprep.mubr.f32.mxu0 0.0
  %3218 = vmatmul.mubr.f32.gmra.mrb[0].mxu0 %v3007
  %v3219 = vpop.f32.mrb[0].mxu0
  %v3220 = vadd.f32 0.0, %v3219
  %v3221 = vpop.f32.mrb[0].mxu0
  %3222 = vmatprep.mubr.f32.mxu0 0.0
  %3223 = vmatmul.mubr.f32.gmra.mrb[0].mxu0 %v3008
  %v3224 = vpop.f32.mrb[0].mxu0
  %v3225 = vadd.f32 0.0, %v3224
  %v3226 = vpop.f32.mrb[0].mxu0
  %3227 = vmatprep.mubr.f32.mxu0 0.0
  %3228 = vmatmul.mubr.f32.gmra.mrb[0].mxu0 %v3009
  %v3229 = vpop.f32.mrb[0].mxu0
  %v3230 = vadd.f32 0.0, %v3229
  %v3231 = vpop.f32.mrb[0].mxu0
  %3232 = vmatprep.mubr.f32.mxu0 0.0
  %3233 = vmatmul.mubr.f32.gmra.mrb[0].mxu0 %v3010
  %v3234 = vpop.f32.mrb[0].mxu0
  %v3235 = vadd.f32 0.0, %v3234
  %v3236 = vpop.f32.mrb[0].mxu0
  %3237 = vmatprep.mubr.f32.mxu0 0.0
  %3238 = vmatmul.mubr.f32.gmra.mrb[0].mxu0 %v3011
  %v3239 = vpop.f32.mrb[0].mxu0
  %v3240 = vadd.f32 0.0, %v3239
  %v3241 = vpop.f32.mrb[0].mxu0
  %3242 = vmatprep.mubr.f32.mxu0 0.0
  %3243 = vmatmul.mubr.f32.gmra.mrb[0].mxu0 %v3012
  %v3244 = vpop.f32.mrb[0].mxu0
  %v3245 = vadd.f32 0.0, %v3244
  %v3246 = vpop.f32.mrb[0].mxu0
  %3247 = vmatprep.mubr.f32.mxu0 0.0
  %3248 = vmatmul.mubr.f32.gmra.mrb[0].mxu0 %v3013
  %v3249 = vpop.f32.mrb[0].mxu0
  %v3250 = vadd.f32 0.0, %v3249
  %v3251 = vpop.f32.mrb[0].mxu0
  %3252 = vmatprep.mubr.f32.mxu0 0.0
  %3253 = vmatmul.mubr.f32.gmra.mrb[0].mxu0 %v3014
  %v3254 = vpop.f32.mrb[0].mxu0
  %v3255 = vadd.f32 0.0, %v3254
  %v3256 = vpop.f32.mrb[0].mxu0
  %3257 = vmatprep.mubr.f32.mxu0 0.0
  %3258 = vmatmul.mubr.f32.gmra.mrb[0].mxu0 %v3015
  %v3259 = vpop.f32.mrb[0].mxu0
  %v3260 = vadd.f32 0.0, %v3259
  %v3261 = vpop.f32.mrb[0].mxu0
  %3262 = vmatprep.mubr.f32.mxu0 0.0
  %3263 = vmatmul.mubr.f32.gmra.mrb[0].mxu0 %v3016
  %v3264 = vpop.f32.mrb[0].mxu0
  %v3265 = vadd.f32 0.0, %v3264
  %v3266 = vpop.f32.mrb[0].mxu0
  %3267 = vmatprep.mubr.f32.mxu0 0.0
  %3268 = vmatmul.mubr.f32.gmra.mrb[0].mxu0 %v3017
  %v3269 = vpop.f32.mrb[0].mxu0
  %v3270 = vadd.f32 0.0, %v3269
  %v3271 = vpop.f32.mrb[0].mxu0
  %3272 = vmatprep.mubr.f32.mxu0 0.0
  %3273 = vmatmul.mubr.f32.gmra.mrb[0].mxu0 %v3018
  %v3274 = vpop.f32.mrb[0].mxu0
  %v3275 = vadd.f32 0.0, %v3274
  %v3276 = vpop.f32.mrb[0].mxu0
  %3277 = vmatprep.mubr.f32.mxu0 0.0
  %3278 = vmatmul.mubr.f32.gmra.mrb[0].mxu0 %v3019
  %v3279 = vpop.f32.mrb[0].mxu0
  %v3280 = vadd.f32 0.0, %v3279
  %v3281 = vpop.f32.mrb[0].mxu0
  %3282 = vmatprep.mubr.f32.mxu0 0.0
  %3283 = vmatmul.mubr.f32.gmra.mrb[0].mxu0 %v3020
  %v3284 = vpop.f32.mrb[0].mxu0
  %v3285 = vadd.f32 0.0, %v3284
  %v3286 = vpop.f32.mrb[0].mxu0
  %3287 = vmatprep.mubr.f32.mxu0 0.0
  %3288 = vmatmul.mubr.f32.gmra.mrb[0].mxu0 %v3021
  %v3289 = vpop.f32.mrb[0].mxu0
  %v3290 = vadd.f32 0.0, %v3289
  %v3291 = vpop.f32.mrb[0].mxu0
  %3292 = vmatprep.mubr.f32.mxu0 0.0
  %3293 = vmatmul.mubr.f32.gmra.mrb[0].mxu0 %v3022
  %v3294 = vpop.f32.mrb[0].mxu0
  %v3295 = vadd.f32 0.0, %v3294
  %v3296 = vpop.f32.mrb[0].mxu0
  %3297 = vmatprep.mubr.f32.mxu0 0.0
  %3298 = vmatmul.mubr.f32.gmra.mrb[0].mxu0 %v3023
  %v3299 = vpop.f32.mrb[0].mxu0
  %v3300 = vadd.f32 0.0, %v3299
  %v3301 = vpop.f32.mrb[0].mxu0
  %3302 = vmatprep.mubr.f32.mxu0 0.0
  %3303 = vmatmul.mubr.f32.gmra.mrb[0].mxu0 %v3024
  %v3304 = vpop.f32.mrb[0].mxu0
  %v3305 = vadd.f32 0.0, %v3304
  %v3306 = vpop.f32.mrb[0].mxu0
  %3307 = vmatprep.mubr.f32.mxu0 0.0
  %3308 = vmatmul.mubr.f32.gmra.mrb[0].mxu0 %v3025
  %v3309 = vpop.f32.mrb[0].mxu0
  %v3310 = vadd.f32 0.0, %v3309
  %v3311 = vpop.f32.mrb[0].mxu0
  %3312 = vmatprep.mubr.f32.mxu0 0.0
  %3313 = vmatmul.mubr.f32.gmra.mrb[0].mxu0 %v3026
  %v3314 = vpop.f32.mrb[0].mxu0
  %v3315 = vadd.f32 0.0, %v3314
  %v3316 = vpop.f32.mrb[0].mxu0
  %3317 = vmatprep.mubr.f32.mxu0 0.0
  %3318 = vmatmul.mubr.f32.gmra.mrb[0].mxu0 %v3027
  %v3319 = vpop.f32.mrb[0].mxu0
  %v3320 = vadd.f32 0.0, %v3319
  %v3321 = vpop.f32.mrb[0].mxu0
  %3322 = vmatprep.mubr.f32.mxu0 0.0
  %3323 = vmatmul.mubr.f32.gmra.mrb[0].mxu0 %v3028
  %v3324 = vpop.f32.mrb[0].mxu0
  %v3325 = vadd.f32 0.0, %v3324
  %v3326 = vpop.f32.mrb[0].mxu0
  %3327 = vmatprep.mubr.f32.mxu0 0.0
  %3328 = vmatmul.mubr.f32.gmra.mrb[0].mxu0 %v3029
  %v3329 = vpop.f32.mrb[0].mxu0
  %v3330 = vadd.f32 0.0, %v3329
  %v3331 = vpop.f32.mrb[0].mxu0
  %3332 = vmatprep.mubr.f32.mxu0 0.0
  %3333 = vmatmul.mubr.f32.gmra.mrb[0].mxu0 %v3030
  %v3334 = vpop.f32.mrb[0].mxu0
  %v3335 = vadd.f32 0.0, %v3334
  %v3336 = vpop.f32.mrb[0].mxu0
  %3337 = vmatprep.mubr.f32.mxu0 0.0
  %3338 = vmatmul.mubr.f32.gmra.mrb[0].mxu0 %v3031
  %v3339 = vpop.f32.mrb[0].mxu0
  %v3340 = vadd.f32 0.0, %v3339
  %v3341 = vpop.f32.mrb[0].mxu0
  %3342 = vmatprep.mubr.f32.mxu0 0.0
  %3343 = vmatmul.mubr.f32.gmra.mrb[0].mxu0 %v3032
  %v3344 = vpop.f32.mrb[0].mxu0
  %v3345 = vadd.f32 0.0, %v3344
  %v3346 = vpop.f32.mrb[0].mxu0
  %3347 = vmatprep.mubr.f32.mxu0 0.0
  %3348 = vmatmul.mubr.f32.gmra.mrb[0].mxu0 %v3033
  %v3349 = vpop.f32.mrb[0].mxu0
  %v3350 = vadd.f32 0.0, %v3349
  %v3351 = vpop.f32.mrb[0].mxu0
  %3352 = vmatprep.mubr.f32.mxu0 0.0
  %3353 = vmatmul.mubr.f32.gmra.mrb[0].mxu0 %v3034
  %v3354 = vpop.f32.mrb[0].mxu0
  %v3355 = vadd.f32 0.0, %v3354
  %v3356 = vpop.f32.mrb[0].mxu0
  %3357 = vmatprep.mubr.f32.mxu0 0.0
  %3358 = vmatmul.mubr.f32.gmra.mrb[0].mxu0 %v3035
  %v3359 = vpop.f32.mrb[0].mxu0
  %v3360 = vadd.f32 0.0, %v3359
  %v3361 = vpop.f32.mrb[0].mxu0
  %3362 = vmatprep.mubr.f32.mxu0 0.0
  %3363 = vmatmul.mubr.f32.gmra.mrb[0].mxu0 %v3036
  %v3364 = vpop.f32.mrb[0].mxu0
  %v3365 = vadd.f32 0.0, %v3364
  %v3366 = vpop.f32.mrb[0].mxu0
  %3367 = vmatprep.mubr.f32.mxu0 0.0
  %3368 = vmatmul.mubr.f32.gmra.mrb[0].mxu0 %v3037
  %v3369 = vpop.f32.mrb[0].mxu0
  %v3370 = vadd.f32 0.0, %v3369
  %v3371 = vpop.f32.mrb[0].mxu0
  %3372 = vmatprep.mubr.f32.mxu0 0.0
  %3373 = vmatmul.mubr.f32.gmra.mrb[0].mxu0 %v3038
  %v3374 = vpop.f32.mrb[0].mxu0
  %v3375 = vadd.f32 0.0, %v3374
  %v3376 = vpop.f32.mrb[0].mxu0
  %3377 = vmatprep.mubr.f32.mxu0 0.0
  %3378 = vmatmul.mubr.f32.gmra.mrb[0].mxu0 %v3039
  %v3379 = vpop.f32.mrb[0].mxu0
  %v3380 = vadd.f32 0.0, %v3379
  %v3381 = vpop.f32.mrb[0].mxu0
  %3382 = vmatprep.mubr.f32.mxu0 0.0
  %3383 = vmatmul.mubr.f32.gmra.mrb[0].mxu0 %v3040
  %v3384 = vpop.f32.mrb[0].mxu0
  %v3385 = vadd.f32 0.0, %v3384
  %v3386 = vpop.f32.mrb[0].mxu0
  %3387 = vmatprep.mubr.f32.mxu0 0.0
  %3388 = vmatmul.mubr.f32.gmra.mrb[0].mxu0 %v3041
  %v3389 = vpop.f32.mrb[0].mxu0
  %v3390 = vadd.f32 0.0, %v3389
  %v3391 = vpop.f32.mrb[0].mxu0
  %3392 = vmatprep.mubr.f32.mxu0 0.0
  %3393 = vmatmul.mubr.f32.gmra.mrb[0].mxu0 %v3042
  %v3394 = vpop.f32.mrb[0].mxu0
  %v3395 = vadd.f32 0.0, %v3394
  %v3396 = vpop.f32.mrb[0].mxu0
  %3397 = vmatprep.mubr.f32.mxu0 0.0
  %3398 = vmatmul.mubr.f32.gmra.mrb[0].mxu0 %v3043
  %v3399 = vpop.f32.mrb[0].mxu0
  %v3400 = vadd.f32 0.0, %v3399
  %v3401 = vpop.f32.mrb[0].mxu0
  %3402 = vmatprep.mubr.f32.mxu0 0.0
  %3403 = vmatmul.mubr.f32.gmra.mrb[0].mxu0 %v3044
  %v3404 = vpop.f32.mrb[0].mxu0
  %v3405 = vadd.f32 0.0, %v3404
  %v3406 = vpop.f32.mrb[0].mxu0
  %3407 = vmatprep.mubr.f32.mxu0 0.0
  %3408 = vmatmul.mubr.f32.gmra.mrb[0].mxu0 %v3045
  %v3409 = vpop.f32.mrb[0].mxu0
  %v3410 = vadd.f32 0.0, %v3409
  %v3411 = vpop.f32.mrb[0].mxu0
  %3412 = vmatprep.mubr.f32.mxu0 0.0
  %3413 = vmatmul.mubr.f32.gmra.mrb[0].mxu0 %v3046
  %v3414 = vpop.f32.mrb[0].mxu0
  %v3415 = vadd.f32 0.0, %v3414
  %v3416 = vpop.f32.mrb[0].mxu0
  %3417 = vmatprep.mubr.f32.mxu0 0.0
  %3418 = vmatmul.mubr.f32.gmra.mrb[0].mxu0 %v3047
  %v3419 = vpop.f32.mrb[0].mxu0
  %v3420 = vadd.f32 0.0, %v3419
  %v3421 = vpop.f32.mrb[0].mxu0
  %3422 = vmatprep.mubr.f32.mxu0 0.0
  %3423 = vmatmul.mubr.f32.gmra.mrb[0].mxu0 %v3048
  %v3424 = vpop.f32.mrb[0].mxu0
  %v3425 = vadd.f32 0.0, %v3424
  %v3426 = vpop.f32.mrb[0].mxu0
  %3427 = vmatprep.mubr.f32.mxu0 0.0
  %3428 = vmatmul.mubr.f32.gmra.mrb[0].mxu0 %v3049
  %v3429 = vpop.f32.mrb[0].mxu0
  %v3430 = vadd.f32 0.0, %v3429
  %v3431 = vpop.f32.mrb[0].mxu0
  %3432 = vmatprep.mubr.f32.mxu0 0.0
  %3433 = vmatmul.mubr.f32.gmra.mrb[0].mxu0 %v3050
  %v3434 = vpop.f32.mrb[0].mxu0
  %v3435 = vadd.f32 0.0, %v3434
  %v3436 = vpop.f32.mrb[0].mxu0
  %3437 = vmatprep.mubr.f32.mxu0 0.0
  %3438 = vmatmul.mubr.f32.gmra.mrb[0].mxu0 %v3051
  %v3439 = vpop.f32.mrb[0].mxu0
  %v3440 = vadd.f32 0.0, %v3439
  %v3441 = vpop.f32.mrb[0].mxu0
  %3442 = vmatprep.mubr.f32.mxu0 0.0
  %3443 = vmatmul.mubr.f32.gmra.mrb[0].mxu0 %v3052
  %v3444 = vpop.f32.mrb[0].mxu0
  %v3445 = vadd.f32 0.0, %v3444
  %v3446 = vpop.f32.mrb[0].mxu0
  %3447 = vmatprep.mubr.f32.mxu0 0.0
  %3448 = vmatmul.mubr.f32.gmra.mrb[0].mxu0 %v3053
  %v3449 = vpop.f32.mrb[0].mxu0
  %v3450 = vadd.f32 0.0, %v3449
  %v3451 = vpop.f32.mrb[0].mxu0
  %3452 = vmatprep.mubr.f32.mxu0 0.0
  %3453 = vmatmul.mubr.f32.gmra.mrb[0].mxu0 %v3054
  %v3454 = vpop.f32.mrb[0].mxu0
  %v3455 = vadd.f32 0.0, %v3454
  %v3456 = vpop.f32.mrb[0].mxu0
  %3457 = vmatprep.mubr.f32.mxu0 0.0
  %3458 = vmatmul.mubr.f32.gmra.mrb[0].mxu0 %v3055
  %v3459 = vpop.f32.mrb[0].mxu0
  %v3460 = vadd.f32 0.0, %v3459
  %v3461 = vpop.f32.mrb[0].mxu0
  %3462 = vmatprep.mubr.f32.mxu0 0.0
  %3463 = vmatmul.mubr.f32.gmra.mrb[0].mxu0 %v3056
  %v3464 = vpop.f32.mrb[0].mxu0
  %v3465 = vadd.f32 0.0, %v3464
  %v3466 = vpop.f32.mrb[0].mxu0
  %3467 = vmatprep.mubr.f32.mxu0 0.0
  %3468 = vmatmul.mubr.f32.gmra.mrb[0].mxu0 %v3057
  %v3469 = vpop.f32.mrb[0].mxu0
  %v3470 = vadd.f32 0.0, %v3469
  %v3471 = vpop.f32.mrb[0].mxu0
  %3472 = vmatprep.mubr.f32.mxu0 0.0
  %3473 = vmatmul.mubr.f32.gmra.mrb[0].mxu0 %v3058
  %v3474 = vpop.f32.mrb[0].mxu0
  %v3475 = vadd.f32 0.0, %v3474
  %v3476 = vpop.f32.mrb[0].mxu0
  %3477 = vmatprep.mubr.f32.mxu0 0.0
  %3478 = vmatmul.mubr.f32.gmra.mrb[0].mxu0 %v3059
  %v3479 = vpop.f32.mrb[0].mxu0
  %v3480 = vadd.f32 0.0, %v3479
  %v3481 = vpop.f32.mrb[0].mxu0
  %3482 = vmatprep.mubr.f32.mxu0 0.0
  %3483 = vmatmul.mubr.f32.gmra.mrb[0].mxu0 %v3060
  %v3484 = vpop.f32.mrb[0].mxu0
  %v3485 = vadd.f32 0.0, %v3484
  %v3486 = vpop.f32.mrb[0].mxu0
  %3487 = vmatprep.mubr.f32.mxu0 0.0
  %3488 = vmatmul.mubr.f32.gmra.mrb[0].mxu0 %v3061
  %v3489 = vpop.f32.mrb[0].mxu0
  %v3490 = vadd.f32 0.0, %v3489
  %v3491 = vpop.f32.mrb[0].mxu0
  %3492 = vmatprep.mubr.f32.mxu0 0.0
  %3493 = vmatmul.mubr.f32.gmra.mrb[0].mxu0 %v3062
  %v3494 = vpop.f32.mrb[0].mxu0
  %v3495 = vadd.f32 0.0, %v3494
  %v3496 = vpop.f32.mrb[0].mxu0
  %3497 = vmatprep.mubr.f32.mxu0 0.0
  %3498 = vmatmul.mubr.f32.gmra.mrb[0].mxu0 %v3063
  %v3499 = vpop.f32.mrb[0].mxu0
  %v3500 = vadd.f32 0.0, %v3499
  %v3501 = vpop.f32.mrb[0].mxu0
  %3502 = vmatprep.mubr.f32.mxu0 0.0
  %3503 = vmatmul.mubr.f32.gmra.mrb[0].mxu0 %v3064
  %v3504 = vpop.f32.mrb[0].mxu0
  %v3505 = vadd.f32 0.0, %v3504
  %v3506 = vpop.f32.mrb[0].mxu0
  %3507 = vmatprep.mubr.f32.mxu0 0.0
  %3508 = vmatmul.mubr.f32.gmra.mrb[0].mxu0 %v3065
  %v3509 = vpop.f32.mrb[0].mxu0
  %v3510 = vadd.f32 0.0, %v3509
  %v3511 = vpop.f32.mrb[0].mxu0
  %3512 = vmatprep.mubr.f32.mxu0 0.0
  %3513 = vmatmul.mubr.f32.gmra.mrb[0].mxu0 %v3066
  %v3514 = vpop.f32.mrb[0].mxu0
  %v3515 = vadd.f32 0.0, %v3514
  %v3516 = vpop.f32.mrb[0].mxu0
  %3517 = vmatprep.mubr.f32.mxu0 0.0
  %3518 = vmatmul.mubr.f32.gmra.mrb[0].mxu0 %v3067
  %v3519 = vpop.f32.mrb[0].mxu0
  %v3520 = vadd.f32 0.0, %v3519
  %v3521 = vpop.f32.mrb[0].mxu0
  %3522 = vmatprep.mubr.f32.mxu0 0.0
  %3523 = vmatmul.mubr.f32.gmra.mrb[0].mxu0 %v3068
  %v3524 = vpop.f32.mrb[0].mxu0
  %v3525 = vadd.f32 0.0, %v3524
  %v3526 = vpop.f32.mrb[0].mxu0
  %3527 = vmatprep.mubr.f32.mxu0 0.0
  %3528 = vmatmul.mubr.f32.gmra.mrb[0].mxu0 %v3069
  %v3529 = vpop.f32.mrb[0].mxu0
  %v3530 = vadd.f32 0.0, %v3529
  %v3531 = vpop.f32.mrb[0].mxu0
  %3532 = vmatprep.mubr.f32.mxu0 0.0
  %3533 = vmatmul.mubr.f32.gmra.mrb[0].mxu0 %v3070
  %v3534 = vpop.f32.mrb[0].mxu0
  %v3535 = vadd.f32 0.0, %v3534
  %v3536 = vpop.f32.mrb[0].mxu0
  %3537 = vmatprep.mubr.f32.mxu0 0.0
  %3538 = vmatmul.mubr.f32.gmra.mrb[0].mxu0 %v3071
  %v3539 = vpop.f32.mrb[0].mxu0
  %v3540 = vadd.f32 0.0, %v3539
  %v3541 = vpop.f32.mrb[0].mxu0
  %3542 = vmatprep.mubr.f32.mxu0 0.0
  %3543 = vmatmul.mubr.f32.gmra.mrb[0].mxu0 %v3072
  %v3544 = vpop.f32.mrb[0].mxu0
  %v3545 = vadd.f32 0.0, %v3544
  %v3546 = vpop.f32.mrb[0].mxu0
  %3547 = vmatprep.mubr.f32.mxu0 0.0
  %3548 = vmatmul.mubr.f32.gmra.mrb[0].mxu0 %v3073
  %v3549 = vpop.f32.mrb[0].mxu0
  %v3550 = vadd.f32 0.0, %v3549
  %v3551 = vpop.f32.mrb[0].mxu0
  %3552 = vmatprep.mubr.f32.mxu0 0.0
  %3553 = vmatmul.mubr.f32.gmra.mrb[0].mxu0 %v3074
  %v3554 = vpop.f32.mrb[0].mxu0
  %v3555 = vadd.f32 0.0, %v3554
  %v3556 = vpop.f32.mrb[0].mxu0
  %3557 = vmatprep.mubr.f32.mxu0 0.0
  %3558 = vmatmul.mubr.f32.gmra.mrb[0].mxu0 %v3075
  %v3559 = vpop.f32.mrb[0].mxu0
  %v3560 = vadd.f32 0.0, %v3559
  %v3561 = vpop.f32.mrb[0].mxu0
  %3562 = vdwg.mxu0
  %v3563 = vadd.f32 %v2592, %v3160
  %v3564 = vadd.f32 %v2597, %v3165
  %v3565 = vadd.f32 %v2602, %v3170
  %v3566 = vadd.f32 %v2607, %v3175
  %v3567 = vadd.f32 %v2612, %v3180
  %v3568 = vadd.f32 %v2617, %v3185
  %v3569 = vadd.f32 %v2622, %v3190
  %v3570 = vadd.f32 %v2627, %v3195
  %v3571 = vadd.f32 %v2632, %v3200
  %v3572 = vadd.f32 %v2637, %v3205
  %v3573 = vadd.f32 %v2642, %v3210
  %v3574 = vadd.f32 %v2647, %v3215
  %v3575 = vadd.f32 %v2652, %v3220
  %v3576 = vadd.f32 %v2657, %v3225
  %v3577 = vadd.f32 %v2662, %v3230
  %v3578 = vadd.f32 %v2667, %v3235
  %v3579 = vadd.f32 %v2672, %v3240
  %v3580 = vadd.f32 %v2677, %v3245
  %v3581 = vadd.f32 %v2682, %v3250
  %v3582 = vadd.f32 %v2687, %v3255
  %v3583 = vadd.f32 %v2692, %v3260
  %v3584 = vadd.f32 %v2697, %v3265
  %v3585 = vadd.f32 %v2702, %v3270
  %v3586 = vadd.f32 %v2707, %v3275
  %v3587 = vadd.f32 %v2712, %v3280
  %v3588 = vadd.f32 %v2717, %v3285
  %v3589 = vadd.f32 %v2722, %v3290
  %v3590 = vadd.f32 %v2727, %v3295
  %v3591 = vadd.f32 %v2732, %v3300
  %v3592 = vadd.f32 %v2737, %v3305
  %v3593 = vadd.f32 %v2742, %v3310
  %v3594 = vadd.f32 %v2747, %v3315
  %v3595 = vadd.f32 %v2752, %v3320
  %v3596 = vadd.f32 %v2757, %v3325
  %v3597 = vadd.f32 %v2762, %v3330
  %v3598 = vadd.f32 %v2767, %v3335
  %v3599 = vadd.f32 %v2772, %v3340
  %v3600 = vadd.f32 %v2777, %v3345
  %v3601 = vadd.f32 %v2782, %v3350
  %v3602 = vadd.f32 %v2787, %v3355
  %v3603 = vadd.f32 %v2792, %v3360
  %v3604 = vadd.f32 %v2797, %v3365
  %v3605 = vadd.f32 %v2802, %v3370
  %v3606 = vadd.f32 %v2807, %v3375
  %v3607 = vadd.f32 %v2812, %v3380
  %v3608 = vadd.f32 %v2817, %v3385
  %v3609 = vadd.f32 %v2822, %v3390
  %v3610 = vadd.f32 %v2827, %v3395
  %v3611 = vadd.f32 %v2832, %v3400
  %v3612 = vadd.f32 %v2837, %v3405
  %v3613 = vadd.f32 %v2842, %v3410
  %v3614 = vadd.f32 %v2847, %v3415
  %v3615 = vadd.f32 %v2852, %v3420
  %v3616 = vadd.f32 %v2857, %v3425
  %v3617 = vadd.f32 %v2862, %v3430
  %v3618 = vadd.f32 %v2867, %v3435
  %v3619 = vadd.f32 %v2872, %v3440
  %v3620 = vadd.f32 %v2877, %v3445
  %v3621 = vadd.f32 %v2882, %v3450
  %v3622 = vadd.f32 %v2887, %v3455
  %v3623 = vadd.f32 %v2892, %v3460
  %v3624 = vadd.f32 %v2897, %v3465
  %v3625 = vadd.f32 %v2902, %v3470
  %v3626 = vadd.f32 %v2907, %v3475
  %v3627 = vadd.f32 %v2912, %v3480
  %v3628 = vadd.f32 %v2917, %v3485
  %v3629 = vadd.f32 %v2922, %v3490
  %v3630 = vadd.f32 %v2927, %v3495
  %v3631 = vadd.f32 %v2932, %v3500
  %v3632 = vadd.f32 %v2937, %v3505
  %v3633 = vadd.f32 %v2942, %v3510
  %v3634 = vadd.f32 %v2947, %v3515
  %v3635 = vadd.f32 %v2952, %v3520
  %v3636 = vadd.f32 %v2957, %v3525
  %v3637 = vadd.f32 %v2962, %v3530
  %v3638 = vadd.f32 %v2967, %v3535
  %v3639 = vadd.f32 %v2972, %v3540
  %v3640 = vadd.f32 %v2977, %v3545
  %v3641 = vadd.f32 %v2982, %v3550
  %v3642 = vadd.f32 %v2987, %v3555
  %v3643 = vadd.f32 %v2992, %v3560
  %v3644 = vld [vmem:[#allocation2 + $0x17] sm:$0xff]
  %v3645 = vld [vmem:[#allocation2 + $0x1f] sm:$0xff]
  %v3646 = vld [vmem:[#allocation2 + $0x27] sm:$0xff]
  %v3647 = vld [vmem:[#allocation2 + $0x2f] sm:$0xff]
  %v3648 = vld [vmem:[#allocation2 + $0x37] sm:$0xff]
  %v3649 = vld [vmem:[#allocation2 + $0x3f] sm:$0xff]
  %v3650 = vld [vmem:[#allocation2 + $0x47] sm:$0xff]
  %v3651 = vld [vmem:[#allocation2 + $0x4f] sm:$0xff]
  %v3652 = vld [vmem:[#allocation2 + $0x57] sm:$0xff]
  %v3653 = vld [vmem:[#allocation2 + $0x5f] sm:$0xff]
  %v3654 = vld [vmem:[#allocation2 + $0x67] sm:$0xff]
  %v3655 = vld [vmem:[#allocation2 + $0x6f] sm:$0xff]
  %v3656 = vld [vmem:[#allocation2 + $0x77] sm:$0xff]
  %v3657 = vld [vmem:[#allocation2 + $0x7f] sm:$0xff]
  %v3658 = vld [vmem:[#allocation2 + $0x87] sm:$0xff]
  %v3659 = vld [vmem:[#allocation2 + $0x8f] sm:$0xff]
  %v3660 = vld [vmem:[#allocation2 + $0x97] sm:$0xff]
  %v3661 = vld [vmem:[#allocation2 + $0x9f] sm:$0xff]
  %v3662 = vld [vmem:[#allocation2 + $0xa7] sm:$0xff]
  %v3663 = vld [vmem:[#allocation2 + $0xaf] sm:$0xff]
  %v3664 = vld [vmem:[#allocation2 + $0xb7] sm:$0xff]
  %v3665 = vld [vmem:[#allocation2 + $0xbf] sm:$0xff]
  %v3666 = vld [vmem:[#allocation2 + $0xc7] sm:$0xff]
  %v3667 = vld [vmem:[#allocation2 + $0xcf] sm:$0xff]
  %v3668 = vld [vmem:[#allocation2 + $0xd7] sm:$0xff]
  %v3669 = vld [vmem:[#allocation2 + $0xdf] sm:$0xff]
  %v3670 = vld [vmem:[#allocation2 + $0xe7] sm:$0xff]
  %v3671 = vld [vmem:[#allocation2 + $0xef] sm:$0xff]
  %v3672 = vld [vmem:[#allocation2 + $0xf7] sm:$0xff]
  %v3673 = vld [vmem:[#allocation2 + $0xff] sm:$0xff]
  %v3674 = vld [vmem:[#allocation2 + $0x107] sm:$0xff]
  %v3675 = vld [vmem:[#allocation2 + $0x10f] sm:$0xff]
  %v3676 = vld [vmem:[#allocation2 + $0x117] sm:$0xff]
  %v3677 = vld [vmem:[#allocation2 + $0x11f] sm:$0xff]
  %v3678 = vld [vmem:[#allocation2 + $0x127] sm:$0xff]
  %v3679 = vld [vmem:[#allocation2 + $0x12f] sm:$0xff]
  %v3680 = vld [vmem:[#allocation2 + $0x137] sm:$0xff]
  %v3681 = vld [vmem:[#allocation2 + $0x13f] sm:$0xff]
  %v3682 = vld [vmem:[#allocation2 + $0x147] sm:$0xff]
  %v3683 = vld [vmem:[#allocation2 + $0x14f] sm:$0xff]
  %v3684 = vld [vmem:[#allocation2 + $0x157] sm:$0xff]
  %v3685 = vld [vmem:[#allocation2 + $0x15f] sm:$0xff]
  %v3686 = vld [vmem:[#allocation2 + $0x167] sm:$0xff]
  %v3687 = vld [vmem:[#allocation2 + $0x16f] sm:$0xff]
  %v3688 = vld [vmem:[#allocation2 + $0x177] sm:$0xff]
  %v3689 = vld [vmem:[#allocation2 + $0x17f] sm:$0xff]
  %v3690 = vld [vmem:[#allocation2 + $0x187] sm:$0xff]
  %v3691 = vld [vmem:[#allocation2 + $0x18f] sm:$0xff]
  %v3692 = vld [vmem:[#allocation2 + $0x197] sm:$0xff]
  %v3693 = vld [vmem:[#allocation2 + $0x19f] sm:$0xff]
  %v3694 = vld [vmem:[#allocation2 + $0x1a7] sm:$0xff]
  %v3695 = vld [vmem:[#allocation2 + $0x1af] sm:$0xff]
  %v3696 = vld [vmem:[#allocation2 + $0x1b7] sm:$0xff]
  %v3697 = vld [vmem:[#allocation2 + $0x1bf] sm:$0xff]
  %v3698 = vld [vmem:[#allocation2 + $0x1c7] sm:$0xff]
  %v3699 = vld [vmem:[#allocation2 + $0x1cf] sm:$0xff]
  %v3700 = vld [vmem:[#allocation2 + $0x1d7] sm:$0xff]
  %v3701 = vld [vmem:[#allocation2 + $0x1df] sm:$0xff]
  %v3702 = vld [vmem:[#allocation2 + $0x1e7] sm:$0xff]
  %v3703 = vld [vmem:[#allocation2 + $0x1ef] sm:$0xff]
  %v3704 = vld [vmem:[#allocation2 + $0x1f7] sm:$0xff]
  %v3705 = vld [vmem:[#allocation2 + $0x1ff] sm:$0xff]
  %v3706 = vld [vmem:[#allocation2 + $0x207] sm:$0xff]
  %v3707 = vld [vmem:[#allocation2 + $0x20f] sm:$0xff]
  %v3708 = vld [vmem:[#allocation2 + $0x217] sm:$0xff]
  %v3709 = vld [vmem:[#allocation2 + $0x21f] sm:$0xff]
  %v3710 = vld [vmem:[#allocation2 + $0x227] sm:$0xff]
  %v3711 = vld [vmem:[#allocation2 + $0x22f] sm:$0xff]
  %v3712 = vld [vmem:[#allocation2 + $0x237] sm:$0xff]
  %v3713 = vld [vmem:[#allocation2 + $0x23f] sm:$0xff]
  %v3714 = vld [vmem:[#allocation2 + $0x247] sm:$0xff]
  %v3715 = vld [vmem:[#allocation2 + $0x24f] sm:$0xff]
  %v3716 = vld [vmem:[#allocation2 + $0x257] sm:$0xff]
  %v3717 = vld [vmem:[#allocation2 + $0x25f] sm:$0xff]
  %v3718 = vld [vmem:[#allocation2 + $0x267] sm:$0xff]
  %v3719 = vld [vmem:[#allocation2 + $0x26f] sm:$0xff]
  %v3720 = vld [vmem:[#allocation2 + $0x277] sm:$0xff]
  %v3721 = vld [vmem:[#allocation2 + $0x27f] sm:$0xff]
  %v3722 = vld [vmem:[#allocation2 + $0x287] sm:$0xff]
  %v3723 = vld [vmem:[#allocation2 + $0x28f] sm:$0xff]
  %v3724 = vld [vmem:[#allocation2 + $0x297] sm:$0xff]
  %s3725 = scalar_lea.vmem %s3, 384
  %v3726 = vld [vmem:[%s3725] sm:$0xff]
  %v3727 = vld [vmem:[%s3725 + $0x8] sm:$0xff]
  %v3728 = vld [vmem:[%s3725 + $0x10] sm:$0xff]
  %v3729 = vld [vmem:[%s3725 + $0x18] sm:$0xff]
  %v3730 = vld [vmem:[%s3725 + $0x20] sm:$0xff]
  %v3731 = vld [vmem:[%s3725 + $0x28] sm:$0xff]
  %v3732 = vld [vmem:[%s3725 + $0x30] sm:$0xff]
  %v3733 = vld [vmem:[%s3725 + $0x38] sm:$0xff]
  %v3734 = vld [vmem:[%s3725 + $0x40] sm:$0xff]
  %v3735 = vld [vmem:[%s3725 + $0x48] sm:$0xff]
  %v3736 = vld [vmem:[%s3725 + $0x50] sm:$0xff]
  %v3737 = vld [vmem:[%s3725 + $0x58] sm:$0xff]
  %v3738 = vld [vmem:[%s3725 + $0x60] sm:$0xff]
  %v3739 = vld [vmem:[%s3725 + $0x68] sm:$0xff]
  %v3740 = vld [vmem:[%s3725 + $0x70] sm:$0xff]
  %v3741 = vld [vmem:[%s3725 + $0x78] sm:$0xff]
  %3742 = vmatprep.subr.mxu0 0.0
  %3743 = vmatpush1.msra.mxu0 %v3726
  %3744 = vmatprep.subr.mxu0 0.0
  %3745 = vmatpush1.msra.mxu0 %v3727
  %3746 = vmatprep.subr.mxu0 0.0
  %3747 = vmatpush1.msra.mxu0 %v3728
  %3748 = vmatprep.subr.mxu0 0.0
  %3749 = vmatpush1.msra.mxu0 %v3729
  %3750 = vmatprep.subr.mxu0 0.0
  %3751 = vmatpush1.msra.mxu0 %v3730
  %3752 = vmatprep.subr.mxu0 0.0
  %3753 = vmatpush1.msra.mxu0 %v3731
  %3754 = vmatprep.subr.mxu0 0.0
  %3755 = vmatpush1.msra.mxu0 %v3732
  %3756 = vmatprep.subr.mxu0 0.0
  %3757 = vmatpush1.msra.mxu0 %v3733
  %3758 = vmatprep.subr.mxu0 0.0
  %3759 = vmatpush1.msra.mxu0 %v3734
  %3760 = vmatprep.subr.mxu0 0.0
  %3761 = vmatpush1.msra.mxu0 %v3735
  %3762 = vmatprep.subr.mxu0 0.0
  %3763 = vmatpush1.msra.mxu0 %v3736
  %3764 = vmatprep.subr.mxu0 0.0
  %3765 = vmatpush1.msra.mxu0 %v3737
  %3766 = vmatprep.subr.mxu0 0.0
  %3767 = vmatpush1.msra.mxu0 %v3738
  %3768 = vmatprep.subr.mxu0 0.0
  %3769 = vmatpush1.msra.mxu0 %v3739
  %3770 = vmatprep.subr.mxu0 0.0
  %3771 = vmatpush1.msra.mxu0 %v3740
  %3772 = vmatprep.subr.mxu0 0.0
  %3773 = vmatpush1.msra.mxu0 %v3741
  %3774 = vmatprep.subr.mxu0 0.0
  %3775 = vmatpush1.msra.mxu0 0.0
  %3776 = vmatprep.subr.mxu0 0.0
  %3777 = vmatpush1.msra.mxu0 0.0
  %3778 = vmatprep.subr.mxu0 0.0
  %3779 = vmatpush1.msra.mxu0 0.0
  %3780 = vmatprep.subr.mxu0 0.0
  %3781 = vmatpush1.msra.mxu0 0.0
  %3782 = vmatprep.subr.mxu0 0.0
  %3783 = vmatpush1.msra.mxu0 0.0
  %3784 = vmatprep.subr.mxu0 0.0
  %3785 = vmatpush1.msra.mxu0 0.0
  %3786 = vmatprep.subr.mxu0 0.0
  %3787 = vmatpush1.msra.mxu0 0.0
  %3788 = vmatprep.subr.mxu0 0.0
  %3789 = vmatpush1.msra.mxu0 0.0
  %3790 = vmatprep.subr.mxu0 0.0
  %3791 = vmatpush1.msra.mxu0 0.0
  %3792 = vmatprep.subr.mxu0 0.0
  %3793 = vmatpush1.msra.mxu0 0.0
  %3794 = vmatprep.subr.mxu0 0.0
  %3795 = vmatpush1.msra.mxu0 0.0
  %3796 = vmatprep.subr.mxu0 0.0
  %3797 = vmatpush1.msra.mxu0 0.0
  %3798 = vmatprep.subr.mxu0 0.0
  %3799 = vmatpush1.msra.mxu0 0.0
  %3800 = vmatprep.subr.mxu0 0.0
  %3801 = vmatpush1.msra.mxu0 0.0
  %3802 = vmatprep.subr.mxu0 0.0
  %3803 = vmatpush1.msra.mxu0 0.0
  %3804 = vmatprep.subr.mxu0 0.0
  %3805 = vmatpush1.msra.mxu0 0.0
  %3806 = vmatprep.mubr.f32.mxu0 0.0
  %3807 = vmatmul.mubr.f32.gmra.mrb[0].mxu0 %v3644
  %v3808 = vpop.f32.mrb[0].mxu0
  %v3809 = vadd.f32 0.0, %v3808
  %v3810 = vpop.f32.mrb[0].mxu0
  %3811 = vmatprep.mubr.f32.mxu0 0.0
  %3812 = vmatmul.mubr.f32.gmra.mrb[0].mxu0 %v3645
  %v3813 = vpop.f32.mrb[0].mxu0
  %v3814 = vadd.f32 0.0, %v3813
  %v3815 = vpop.f32.mrb[0].mxu0
  %3816 = vmatprep.mubr.f32.mxu0 0.0
  %3817 = vmatmul.mubr.f32.gmra.mrb[0].mxu0 %v3646
  %v3818 = vpop.f32.mrb[0].mxu0
  %v3819 = vadd.f32 0.0, %v3818
  %v3820 = vpop.f32.mrb[0].mxu0
  %3821 = vmatprep.mubr.f32.mxu0 0.0
  %3822 = vmatmul.mubr.f32.gmra.mrb[0].mxu0 %v3647
  %v3823 = vpop.f32.mrb[0].mxu0
  %v3824 = vadd.f32 0.0, %v3823
  %v3825 = vpop.f32.mrb[0].mxu0
  %3826 = vmatprep.mubr.f32.mxu0 0.0
  %3827 = vmatmul.mubr.f32.gmra.mrb[0].mxu0 %v3648
  %v3828 = vpop.f32.mrb[0].mxu0
  %v3829 = vadd.f32 0.0, %v3828
  %v3830 = vpop.f32.mrb[0].mxu0
  %3831 = vmatprep.mubr.f32.mxu0 0.0
  %3832 = vmatmul.mubr.f32.gmra.mrb[0].mxu0 %v3649
  %v3833 = vpop.f32.mrb[0].mxu0
  %v3834 = vadd.f32 0.0, %v3833
  %v3835 = vpop.f32.mrb[0].mxu0
  %3836 = vmatprep.mubr.f32.mxu0 0.0
  %3837 = vmatmul.mubr.f32.gmra.mrb[0].mxu0 %v3650
  %v3838 = vpop.f32.mrb[0].mxu0
  %v3839 = vadd.f32 0.0, %v3838
  %v3840 = vpop.f32.mrb[0].mxu0
  %3841 = vmatprep.mubr.f32.mxu0 0.0
  %3842 = vmatmul.mubr.f32.gmra.mrb[0].mxu0 %v3651
  %v3843 = vpop.f32.mrb[0].mxu0
  %v3844 = vadd.f32 0.0, %v3843
  %v3845 = vpop.f32.mrb[0].mxu0
  %3846 = vmatprep.mubr.f32.mxu0 0.0
  %3847 = vmatmul.mubr.f32.gmra.mrb[0].mxu0 %v3652
  %v3848 = vpop.f32.mrb[0].mxu0
  %v3849 = vadd.f32 0.0, %v3848
  %v3850 = vpop.f32.mrb[0].mxu0
  %3851 = vmatprep.mubr.f32.mxu0 0.0
  %3852 = vmatmul.mubr.f32.gmra.mrb[0].mxu0 %v3653
  %v3853 = vpop.f32.mrb[0].mxu0
  %v3854 = vadd.f32 0.0, %v3853
  %v3855 = vpop.f32.mrb[0].mxu0
  %3856 = vmatprep.mubr.f32.mxu0 0.0
  %3857 = vmatmul.mubr.f32.gmra.mrb[0].mxu0 %v3654
  %v3858 = vpop.f32.mrb[0].mxu0
  %v3859 = vadd.f32 0.0, %v3858
  %v3860 = vpop.f32.mrb[0].mxu0
  %3861 = vmatprep.mubr.f32.mxu0 0.0
  %3862 = vmatmul.mubr.f32.gmra.mrb[0].mxu0 %v3655
  %v3863 = vpop.f32.mrb[0].mxu0
  %v3864 = vadd.f32 0.0, %v3863
  %v3865 = vpop.f32.mrb[0].mxu0
  %3866 = vmatprep.mubr.f32.mxu0 0.0
  %3867 = vmatmul.mubr.f32.gmra.mrb[0].mxu0 %v3656
  %v3868 = vpop.f32.mrb[0].mxu0
  %v3869 = vadd.f32 0.0, %v3868
  %v3870 = vpop.f32.mrb[0].mxu0
  %3871 = vmatprep.mubr.f32.mxu0 0.0
  %3872 = vmatmul.mubr.f32.gmra.mrb[0].mxu0 %v3657
  %v3873 = vpop.f32.mrb[0].mxu0
  %v3874 = vadd.f32 0.0, %v3873
  %v3875 = vpop.f32.mrb[0].mxu0
  %3876 = vmatprep.mubr.f32.mxu0 0.0
  %3877 = vmatmul.mubr.f32.gmra.mrb[0].mxu0 %v3658
  %v3878 = vpop.f32.mrb[0].mxu0
  %v3879 = vadd.f32 0.0, %v3878
  %v3880 = vpop.f32.mrb[0].mxu0
  %3881 = vmatprep.mubr.f32.mxu0 0.0
  %3882 = vmatmul.mubr.f32.gmra.mrb[0].mxu0 %v3659
  %v3883 = vpop.f32.mrb[0].mxu0
  %v3884 = vadd.f32 0.0, %v3883
  %v3885 = vpop.f32.mrb[0].mxu0
  %3886 = vmatprep.mubr.f32.mxu0 0.0
  %3887 = vmatmul.mubr.f32.gmra.mrb[0].mxu0 %v3660
  %v3888 = vpop.f32.mrb[0].mxu0
  %v3889 = vadd.f32 0.0, %v3888
  %v3890 = vpop.f32.mrb[0].mxu0
  %3891 = vmatprep.mubr.f32.mxu0 0.0
  %3892 = vmatmul.mubr.f32.gmra.mrb[0].mxu0 %v3661
  %v3893 = vpop.f32.mrb[0].mxu0
  %v3894 = vadd.f32 0.0, %v3893
  %v3895 = vpop.f32.mrb[0].mxu0
  %3896 = vmatprep.mubr.f32.mxu0 0.0
  %3897 = vmatmul.mubr.f32.gmra.mrb[0].mxu0 %v3662
  %v3898 = vpop.f32.mrb[0].mxu0
  %v3899 = vadd.f32 0.0, %v3898
  %v3900 = vpop.f32.mrb[0].mxu0
  %3901 = vmatprep.mubr.f32.mxu0 0.0
  %3902 = vmatmul.mubr.f32.gmra.mrb[0].mxu0 %v3663
  %v3903 = vpop.f32.mrb[0].mxu0
  %v3904 = vadd.f32 0.0, %v3903
  %v3905 = vpop.f32.mrb[0].mxu0
  %3906 = vmatprep.mubr.f32.mxu0 0.0
  %3907 = vmatmul.mubr.f32.gmra.mrb[0].mxu0 %v3664
  %v3908 = vpop.f32.mrb[0].mxu0
  %v3909 = vadd.f32 0.0, %v3908
  %v3910 = vpop.f32.mrb[0].mxu0
  %3911 = vmatprep.mubr.f32.mxu0 0.0
  %3912 = vmatmul.mubr.f32.gmra.mrb[0].mxu0 %v3665
  %v3913 = vpop.f32.mrb[0].mxu0
  %v3914 = vadd.f32 0.0, %v3913
  %v3915 = vpop.f32.mrb[0].mxu0
  %3916 = vmatprep.mubr.f32.mxu0 0.0
  %3917 = vmatmul.mubr.f32.gmra.mrb[0].mxu0 %v3666
  %v3918 = vpop.f32.mrb[0].mxu0
  %v3919 = vadd.f32 0.0, %v3918
  %v3920 = vpop.f32.mrb[0].mxu0
  %3921 = vmatprep.mubr.f32.mxu0 0.0
  %3922 = vmatmul.mubr.f32.gmra.mrb[0].mxu0 %v3667
  %v3923 = vpop.f32.mrb[0].mxu0
  %v3924 = vadd.f32 0.0, %v3923
  %v3925 = vpop.f32.mrb[0].mxu0
  %3926 = vmatprep.mubr.f32.mxu0 0.0
  %3927 = vmatmul.mubr.f32.gmra.mrb[0].mxu0 %v3668
  %v3928 = vpop.f32.mrb[0].mxu0
  %v3929 = vadd.f32 0.0, %v3928
  %v3930 = vpop.f32.mrb[0].mxu0
  %3931 = vmatprep.mubr.f32.mxu0 0.0
  %3932 = vmatmul.mubr.f32.gmra.mrb[0].mxu0 %v3669
  %v3933 = vpop.f32.mrb[0].mxu0
  %v3934 = vadd.f32 0.0, %v3933
  %v3935 = vpop.f32.mrb[0].mxu0
  %3936 = vmatprep.mubr.f32.mxu0 0.0
  %3937 = vmatmul.mubr.f32.gmra.mrb[0].mxu0 %v3670
  %v3938 = vpop.f32.mrb[0].mxu0
  %v3939 = vadd.f32 0.0, %v3938
  %v3940 = vpop.f32.mrb[0].mxu0
  %3941 = vmatprep.mubr.f32.mxu0 0.0
  %3942 = vmatmul.mubr.f32.gmra.mrb[0].mxu0 %v3671
  %v3943 = vpop.f32.mrb[0].mxu0
  %v3944 = vadd.f32 0.0, %v3943
  %v3945 = vpop.f32.mrb[0].mxu0
  %3946 = vmatprep.mubr.f32.mxu0 0.0
  %3947 = vmatmul.mubr.f32.gmra.mrb[0].mxu0 %v3672
  %v3948 = vpop.f32.mrb[0].mxu0
  %v3949 = vadd.f32 0.0, %v3948
  %v3950 = vpop.f32.mrb[0].mxu0
  %3951 = vmatprep.mubr.f32.mxu0 0.0
  %3952 = vmatmul.mubr.f32.gmra.mrb[0].mxu0 %v3673
  %v3953 = vpop.f32.mrb[0].mxu0
  %v3954 = vadd.f32 0.0, %v3953
  %v3955 = vpop.f32.mrb[0].mxu0
  %3956 = vmatprep.mubr.f32.mxu0 0.0
  %3957 = vmatmul.mubr.f32.gmra.mrb[0].mxu0 %v3674
  %v3958 = vpop.f32.mrb[0].mxu0
  %v3959 = vadd.f32 0.0, %v3958
  %v3960 = vpop.f32.mrb[0].mxu0
  %3961 = vmatprep.mubr.f32.mxu0 0.0
  %3962 = vmatmul.mubr.f32.gmra.mrb[0].mxu0 %v3675
  %v3963 = vpop.f32.mrb[0].mxu0
  %v3964 = vadd.f32 0.0, %v3963
  %v3965 = vpop.f32.mrb[0].mxu0
  %3966 = vmatprep.mubr.f32.mxu0 0.0
  %3967 = vmatmul.mubr.f32.gmra.mrb[0].mxu0 %v3676
  %v3968 = vpop.f32.mrb[0].mxu0
  %v3969 = vadd.f32 0.0, %v3968
  %v3970 = vpop.f32.mrb[0].mxu0
  %3971 = vmatprep.mubr.f32.mxu0 0.0
  %3972 = vmatmul.mubr.f32.gmra.mrb[0].mxu0 %v3677
  %v3973 = vpop.f32.mrb[0].mxu0
  %v3974 = vadd.f32 0.0, %v3973
  %v3975 = vpop.f32.mrb[0].mxu0
  %3976 = vmatprep.mubr.f32.mxu0 0.0
  %3977 = vmatmul.mubr.f32.gmra.mrb[0].mxu0 %v3678
  %v3978 = vpop.f32.mrb[0].mxu0
  %v3979 = vadd.f32 0.0, %v3978
  %v3980 = vpop.f32.mrb[0].mxu0
  %3981 = vmatprep.mubr.f32.mxu0 0.0
  %3982 = vmatmul.mubr.f32.gmra.mrb[0].mxu0 %v3679
  %v3983 = vpop.f32.mrb[0].mxu0
  %v3984 = vadd.f32 0.0, %v3983
  %v3985 = vpop.f32.mrb[0].mxu0
  %3986 = vmatprep.mubr.f32.mxu0 0.0
  %3987 = vmatmul.mubr.f32.gmra.mrb[0].mxu0 %v3680
  %v3988 = vpop.f32.mrb[0].mxu0
  %v3989 = vadd.f32 0.0, %v3988
  %v3990 = vpop.f32.mrb[0].mxu0
  %3991 = vmatprep.mubr.f32.mxu0 0.0
  %3992 = vmatmul.mubr.f32.gmra.mrb[0].mxu0 %v3681
  %v3993 = vpop.f32.mrb[0].mxu0
  %v3994 = vadd.f32 0.0, %v3993
  %v3995 = vpop.f32.mrb[0].mxu0
  %3996 = vmatprep.mubr.f32.mxu0 0.0
  %3997 = vmatmul.mubr.f32.gmra.mrb[0].mxu0 %v3682
  %v3998 = vpop.f32.mrb[0].mxu0
  %v3999 = vadd.f32 0.0, %v3998
  %v4000 = vpop.f32.mrb[0].mxu0
  %4001 = vmatprep.mubr.f32.mxu0 0.0
  %4002 = vmatmul.mubr.f32.gmra.mrb[0].mxu0 %v3683
  %v4003 = vpop.f32.mrb[0].mxu0
  %v4004 = vadd.f32 0.0, %v4003
  %v4005 = vpop.f32.mrb[0].mxu0
  %4006 = vmatprep.mubr.f32.mxu0 0.0
  %4007 = vmatmul.mubr.f32.gmra.mrb[0].mxu0 %v3684
  %v4008 = vpop.f32.mrb[0].mxu0
  %v4009 = vadd.f32 0.0, %v4008
  %v4010 = vpop.f32.mrb[0].mxu0
  %4011 = vmatprep.mubr.f32.mxu0 0.0
  %4012 = vmatmul.mubr.f32.gmra.mrb[0].mxu0 %v3685
  %v4013 = vpop.f32.mrb[0].mxu0
  %v4014 = vadd.f32 0.0, %v4013
  %v4015 = vpop.f32.mrb[0].mxu0
  %4016 = vmatprep.mubr.f32.mxu0 0.0
  %4017 = vmatmul.mubr.f32.gmra.mrb[0].mxu0 %v3686
  %v4018 = vpop.f32.mrb[0].mxu0
  %v4019 = vadd.f32 0.0, %v4018
  %v4020 = vpop.f32.mrb[0].mxu0
  %4021 = vmatprep.mubr.f32.mxu0 0.0
  %4022 = vmatmul.mubr.f32.gmra.mrb[0].mxu0 %v3687
  %v4023 = vpop.f32.mrb[0].mxu0
  %v4024 = vadd.f32 0.0, %v4023
  %v4025 = vpop.f32.mrb[0].mxu0
  %4026 = vmatprep.mubr.f32.mxu0 0.0
  %4027 = vmatmul.mubr.f32.gmra.mrb[0].mxu0 %v3688
  %v4028 = vpop.f32.mrb[0].mxu0
  %v4029 = vadd.f32 0.0, %v4028
  %v4030 = vpop.f32.mrb[0].mxu0
  %4031 = vmatprep.mubr.f32.mxu0 0.0
  %4032 = vmatmul.mubr.f32.gmra.mrb[0].mxu0 %v3689
  %v4033 = vpop.f32.mrb[0].mxu0
  %v4034 = vadd.f32 0.0, %v4033
  %v4035 = vpop.f32.mrb[0].mxu0
  %4036 = vmatprep.mubr.f32.mxu0 0.0
  %4037 = vmatmul.mubr.f32.gmra.mrb[0].mxu0 %v3690
  %v4038 = vpop.f32.mrb[0].mxu0
  %v4039 = vadd.f32 0.0, %v4038
  %v4040 = vpop.f32.mrb[0].mxu0
  %4041 = vmatprep.mubr.f32.mxu0 0.0
  %4042 = vmatmul.mubr.f32.gmra.mrb[0].mxu0 %v3691
  %v4043 = vpop.f32.mrb[0].mxu0
  %v4044 = vadd.f32 0.0, %v4043
  %v4045 = vpop.f32.mrb[0].mxu0
  %4046 = vmatprep.mubr.f32.mxu0 0.0
  %4047 = vmatmul.mubr.f32.gmra.mrb[0].mxu0 %v3692
  %v4048 = vpop.f32.mrb[0].mxu0
  %v4049 = vadd.f32 0.0, %v4048
  %v4050 = vpop.f32.mrb[0].mxu0
  %4051 = vmatprep.mubr.f32.mxu0 0.0
  %4052 = vmatmul.mubr.f32.gmra.mrb[0].mxu0 %v3693
  %v4053 = vpop.f32.mrb[0].mxu0
  %v4054 = vadd.f32 0.0, %v4053
  %v4055 = vpop.f32.mrb[0].mxu0
  %4056 = vmatprep.mubr.f32.mxu0 0.0
  %4057 = vmatmul.mubr.f32.gmra.mrb[0].mxu0 %v3694
  %v4058 = vpop.f32.mrb[0].mxu0
  %v4059 = vadd.f32 0.0, %v4058
  %v4060 = vpop.f32.mrb[0].mxu0
  %4061 = vmatprep.mubr.f32.mxu0 0.0
  %4062 = vmatmul.mubr.f32.gmra.mrb[0].mxu0 %v3695
  %v4063 = vpop.f32.mrb[0].mxu0
  %v4064 = vadd.f32 0.0, %v4063
  %v4065 = vpop.f32.mrb[0].mxu0
  %4066 = vmatprep.mubr.f32.mxu0 0.0
  %4067 = vmatmul.mubr.f32.gmra.mrb[0].mxu0 %v3696
  %v4068 = vpop.f32.mrb[0].mxu0
  %v4069 = vadd.f32 0.0, %v4068
  %v4070 = vpop.f32.mrb[0].mxu0
  %4071 = vmatprep.mubr.f32.mxu0 0.0
  %4072 = vmatmul.mubr.f32.gmra.mrb[0].mxu0 %v3697
  %v4073 = vpop.f32.mrb[0].mxu0
  %v4074 = vadd.f32 0.0, %v4073
  %v4075 = vpop.f32.mrb[0].mxu0
  %4076 = vmatprep.mubr.f32.mxu0 0.0
  %4077 = vmatmul.mubr.f32.gmra.mrb[0].mxu0 %v3698
  %v4078 = vpop.f32.mrb[0].mxu0
  %v4079 = vadd.f32 0.0, %v4078
  %v4080 = vpop.f32.mrb[0].mxu0
  %4081 = vmatprep.mubr.f32.mxu0 0.0
  %4082 = vmatmul.mubr.f32.gmra.mrb[0].mxu0 %v3699
  %v4083 = vpop.f32.mrb[0].mxu0
  %v4084 = vadd.f32 0.0, %v4083
  %v4085 = vpop.f32.mrb[0].mxu0
  %4086 = vmatprep.mubr.f32.mxu0 0.0
  %4087 = vmatmul.mubr.f32.gmra.mrb[0].mxu0 %v3700
  %v4088 = vpop.f32.mrb[0].mxu0
  %v4089 = vadd.f32 0.0, %v4088
  %v4090 = vpop.f32.mrb[0].mxu0
  %4091 = vmatprep.mubr.f32.mxu0 0.0
  %4092 = vmatmul.mubr.f32.gmra.mrb[0].mxu0 %v3701
  %v4093 = vpop.f32.mrb[0].mxu0
  %v4094 = vadd.f32 0.0, %v4093
  %v4095 = vpop.f32.mrb[0].mxu0
  %4096 = vmatprep.mubr.f32.mxu0 0.0
  %4097 = vmatmul.mubr.f32.gmra.mrb[0].mxu0 %v3702
  %v4098 = vpop.f32.mrb[0].mxu0
  %v4099 = vadd.f32 0.0, %v4098
  %v4100 = vpop.f32.mrb[0].mxu0
  %4101 = vmatprep.mubr.f32.mxu0 0.0
  %4102 = vmatmul.mubr.f32.gmra.mrb[0].mxu0 %v3703
  %v4103 = vpop.f32.mrb[0].mxu0
  %v4104 = vadd.f32 0.0, %v4103
  %v4105 = vpop.f32.mrb[0].mxu0
  %4106 = vmatprep.mubr.f32.mxu0 0.0
  %4107 = vmatmul.mubr.f32.gmra.mrb[0].mxu0 %v3704
  %v4108 = vpop.f32.mrb[0].mxu0
  %v4109 = vadd.f32 0.0, %v4108
  %v4110 = vpop.f32.mrb[0].mxu0
  %4111 = vmatprep.mubr.f32.mxu0 0.0
  %4112 = vmatmul.mubr.f32.gmra.mrb[0].mxu0 %v3705
  %v4113 = vpop.f32.mrb[0].mxu0
  %v4114 = vadd.f32 0.0, %v4113
  %v4115 = vpop.f32.mrb[0].mxu0
  %4116 = vmatprep.mubr.f32.mxu0 0.0
  %4117 = vmatmul.mubr.f32.gmra.mrb[0].mxu0 %v3706
  %v4118 = vpop.f32.mrb[0].mxu0
  %v4119 = vadd.f32 0.0, %v4118
  %v4120 = vpop.f32.mrb[0].mxu0
  %4121 = vmatprep.mubr.f32.mxu0 0.0
  %4122 = vmatmul.mubr.f32.gmra.mrb[0].mxu0 %v3707
  %v4123 = vpop.f32.mrb[0].mxu0
  %v4124 = vadd.f32 0.0, %v4123
  %v4125 = vpop.f32.mrb[0].mxu0
  %4126 = vmatprep.mubr.f32.mxu0 0.0
  %4127 = vmatmul.mubr.f32.gmra.mrb[0].mxu0 %v3708
  %v4128 = vpop.f32.mrb[0].mxu0
  %v4129 = vadd.f32 0.0, %v4128
  %v4130 = vpop.f32.mrb[0].mxu0
  %4131 = vmatprep.mubr.f32.mxu0 0.0
  %4132 = vmatmul.mubr.f32.gmra.mrb[0].mxu0 %v3709
  %v4133 = vpop.f32.mrb[0].mxu0
  %v4134 = vadd.f32 0.0, %v4133
  %v4135 = vpop.f32.mrb[0].mxu0
  %4136 = vmatprep.mubr.f32.mxu0 0.0
  %4137 = vmatmul.mubr.f32.gmra.mrb[0].mxu0 %v3710
  %v4138 = vpop.f32.mrb[0].mxu0
  %v4139 = vadd.f32 0.0, %v4138
  %v4140 = vpop.f32.mrb[0].mxu0
  %4141 = vmatprep.mubr.f32.mxu0 0.0
  %4142 = vmatmul.mubr.f32.gmra.mrb[0].mxu0 %v3711
  %v4143 = vpop.f32.mrb[0].mxu0
  %v4144 = vadd.f32 0.0, %v4143
  %v4145 = vpop.f32.mrb[0].mxu0
  %4146 = vmatprep.mubr.f32.mxu0 0.0
  %4147 = vmatmul.mubr.f32.gmra.mrb[0].mxu0 %v3712
  %v4148 = vpop.f32.mrb[0].mxu0
  %v4149 = vadd.f32 0.0, %v4148
  %v4150 = vpop.f32.mrb[0].mxu0
  %4151 = vmatprep.mubr.f32.mxu0 0.0
  %4152 = vmatmul.mubr.f32.gmra.mrb[0].mxu0 %v3713
  %v4153 = vpop.f32.mrb[0].mxu0
  %v4154 = vadd.f32 0.0, %v4153
  %v4155 = vpop.f32.mrb[0].mxu0
  %4156 = vmatprep.mubr.f32.mxu0 0.0
  %4157 = vmatmul.mubr.f32.gmra.mrb[0].mxu0 %v3714
  %v4158 = vpop.f32.mrb[0].mxu0
  %v4159 = vadd.f32 0.0, %v4158
  %v4160 = vpop.f32.mrb[0].mxu0
  %4161 = vmatprep.mubr.f32.mxu0 0.0
  %4162 = vmatmul.mubr.f32.gmra.mrb[0].mxu0 %v3715
  %v4163 = vpop.f32.mrb[0].mxu0
  %v4164 = vadd.f32 0.0, %v4163
  %v4165 = vpop.f32.mrb[0].mxu0
  %4166 = vmatprep.mubr.f32.mxu0 0.0
  %4167 = vmatmul.mubr.f32.gmra.mrb[0].mxu0 %v3716
  %v4168 = vpop.f32.mrb[0].mxu0
  %v4169 = vadd.f32 0.0, %v4168
  %v4170 = vpop.f32.mrb[0].mxu0
  %4171 = vmatprep.mubr.f32.mxu0 0.0
  %4172 = vmatmul.mubr.f32.gmra.mrb[0].mxu0 %v3717
  %v4173 = vpop.f32.mrb[0].mxu0
  %v4174 = vadd.f32 0.0, %v4173
  %v4175 = vpop.f32.mrb[0].mxu0
  %4176 = vmatprep.mubr.f32.mxu0 0.0
  %4177 = vmatmul.mubr.f32.gmra.mrb[0].mxu0 %v3718
  %v4178 = vpop.f32.mrb[0].mxu0
  %v4179 = vadd.f32 0.0, %v4178
  %v4180 = vpop.f32.mrb[0].mxu0
  %4181 = vmatprep.mubr.f32.mxu0 0.0
  %4182 = vmatmul.mubr.f32.gmra.mrb[0].mxu0 %v3719
  %v4183 = vpop.f32.mrb[0].mxu0
  %v4184 = vadd.f32 0.0, %v4183
  %v4185 = vpop.f32.mrb[0].mxu0
  %4186 = vmatprep.mubr.f32.mxu0 0.0
  %4187 = vmatmul.mubr.f32.gmra.mrb[0].mxu0 %v3720
  %v4188 = vpop.f32.mrb[0].mxu0
  %v4189 = vadd.f32 0.0, %v4188
  %v4190 = vpop.f32.mrb[0].mxu0
  %4191 = vmatprep.mubr.f32.mxu0 0.0
  %4192 = vmatmul.mubr.f32.gmra.mrb[0].mxu0 %v3721
  %v4193 = vpop.f32.mrb[0].mxu0
  %v4194 = vadd.f32 0.0, %v4193
  %v4195 = vpop.f32.mrb[0].mxu0
  %4196 = vmatprep.mubr.f32.mxu0 0.0
  %4197 = vmatmul.mubr.f32.gmra.mrb[0].mxu0 %v3722
  %v4198 = vpop.f32.mrb[0].mxu0
  %v4199 = vadd.f32 0.0, %v4198
  %v4200 = vpop.f32.mrb[0].mxu0
  %4201 = vmatprep.mubr.f32.mxu0 0.0
  %4202 = vmatmul.mubr.f32.gmra.mrb[0].mxu0 %v3723
  %v4203 = vpop.f32.mrb[0].mxu0
  %v4204 = vadd.f32 0.0, %v4203
  %v4205 = vpop.f32.mrb[0].mxu0
  %4206 = vmatprep.mubr.f32.mxu0 0.0
  %4207 = vmatmul.mubr.f32.gmra.mrb[0].mxu0 %v3724
  %v4208 = vpop.f32.mrb[0].mxu0
  %v4209 = vadd.f32 0.0, %v4208
  %v4210 = vpop.f32.mrb[0].mxu0
  %4211 = vdwg.mxu0
  %v4212 = vadd.f32 %v3563, %v3809
  %v4213 = vadd.f32 %v3564, %v3814
  %v4214 = vadd.f32 %v3565, %v3819
  %v4215 = vadd.f32 %v3566, %v3824
  %v4216 = vadd.f32 %v3567, %v3829
  %v4217 = vadd.f32 %v3568, %v3834
  %v4218 = vadd.f32 %v3569, %v3839
  %v4219 = vadd.f32 %v3570, %v3844
  %v4220 = vadd.f32 %v3571, %v3849
  %v4221 = vadd.f32 %v3572, %v3854
  %v4222 = vadd.f32 %v3573, %v3859
  %v4223 = vadd.f32 %v3574, %v3864
  %v4224 = vadd.f32 %v3575, %v3869
  %v4225 = vadd.f32 %v3576, %v3874
  %v4226 = vadd.f32 %v3577, %v3879
  %v4227 = vadd.f32 %v3578, %v3884
  %v4228 = vadd.f32 %v3579, %v3889
  %v4229 = vadd.f32 %v3580, %v3894
  %v4230 = vadd.f32 %v3581, %v3899
  %v4231 = vadd.f32 %v3582, %v3904
  %v4232 = vadd.f32 %v3583, %v3909
  %v4233 = vadd.f32 %v3584, %v3914
  %v4234 = vadd.f32 %v3585, %v3919
  %v4235 = vadd.f32 %v3586, %v3924
  %v4236 = vadd.f32 %v3587, %v3929
  %v4237 = vadd.f32 %v3588, %v3934
  %v4238 = vadd.f32 %v3589, %v3939
  %v4239 = vadd.f32 %v3590, %v3944
  %v4240 = vadd.f32 %v3591, %v3949
  %v4241 = vadd.f32 %v3592, %v3954
  %v4242 = vadd.f32 %v3593, %v3959
  %v4243 = vadd.f32 %v3594, %v3964
  %v4244 = vadd.f32 %v3595, %v3969
  %v4245 = vadd.f32 %v3596, %v3974
  %v4246 = vadd.f32 %v3597, %v3979
  %v4247 = vadd.f32 %v3598, %v3984
  %v4248 = vadd.f32 %v3599, %v3989
  %v4249 = vadd.f32 %v3600, %v3994
  %v4250 = vadd.f32 %v3601, %v3999
  %v4251 = vadd.f32 %v3602, %v4004
  %v4252 = vadd.f32 %v3603, %v4009
  %v4253 = vadd.f32 %v3604, %v4014
  %v4254 = vadd.f32 %v3605, %v4019
  %v4255 = vadd.f32 %v3606, %v4024
  %v4256 = vadd.f32 %v3607, %v4029
  %v4257 = vadd.f32 %v3608, %v4034
  %v4258 = vadd.f32 %v3609, %v4039
  %v4259 = vadd.f32 %v3610, %v4044
  %v4260 = vadd.f32 %v3611, %v4049
  %v4261 = vadd.f32 %v3612, %v4054
  %v4262 = vadd.f32 %v3613, %v4059
  %v4263 = vadd.f32 %v3614, %v4064
  %v4264 = vadd.f32 %v3615, %v4069
  %v4265 = vadd.f32 %v3616, %v4074
  %v4266 = vadd.f32 %v3617, %v4079
  %v4267 = vadd.f32 %v3618, %v4084
  %v4268 = vadd.f32 %v3619, %v4089
  %v4269 = vadd.f32 %v3620, %v4094
  %v4270 = vadd.f32 %v3621, %v4099
  %v4271 = vadd.f32 %v3622, %v4104
  %v4272 = vadd.f32 %v3623, %v4109
  %v4273 = vadd.f32 %v3624, %v4114
  %v4274 = vadd.f32 %v3625, %v4119
  %v4275 = vadd.f32 %v3626, %v4124
  %v4276 = vadd.f32 %v3627, %v4129
  %v4277 = vadd.f32 %v3628, %v4134
  %v4278 = vadd.f32 %v3629, %v4139
  %v4279 = vadd.f32 %v3630, %v4144
  %v4280 = vadd.f32 %v3631, %v4149
  %v4281 = vadd.f32 %v3632, %v4154
  %v4282 = vadd.f32 %v3633, %v4159
  %v4283 = vadd.f32 %v3634, %v4164
  %v4284 = vadd.f32 %v3635, %v4169
  %v4285 = vadd.f32 %v3636, %v4174
  %v4286 = vadd.f32 %v3637, %v4179
  %v4287 = vadd.f32 %v3638, %v4184
  %v4288 = vadd.f32 %v3639, %v4189
  %v4289 = vadd.f32 %v3640, %v4194
  %v4290 = vadd.f32 %v3641, %v4199
  %v4291 = vadd.f32 %v3642, %v4204
  %v4292 = vadd.f32 %v3643, %v4209
  %v4293 = vld [vmem:[#allocation2 + $0x18] sm:$0xff]
  %v4294 = vld [vmem:[#allocation2 + $0x20] sm:$0xff]
  %v4295 = vld [vmem:[#allocation2 + $0x28] sm:$0xff]
  %v4296 = vld [vmem:[#allocation2 + $0x30] sm:$0xff]
  %v4297 = vld [vmem:[#allocation2 + $0x38] sm:$0xff]
  %v4298 = vld [vmem:[#allocation2 + $0x40] sm:$0xff]
  %v4299 = vld [vmem:[#allocation2 + $0x48] sm:$0xff]
  %v4300 = vld [vmem:[#allocation2 + $0x50] sm:$0xff]
  %v4301 = vld [vmem:[#allocation2 + $0x58] sm:$0xff]
  %v4302 = vld [vmem:[#allocation2 + $0x60] sm:$0xff]
  %v4303 = vld [vmem:[#allocation2 + $0x68] sm:$0xff]
  %v4304 = vld [vmem:[#allocation2 + $0x70] sm:$0xff]
  %v4305 = vld [vmem:[#allocation2 + $0x78] sm:$0xff]
  %v4306 = vld [vmem:[#allocation2 + $0x80] sm:$0xff]
  %v4307 = vld [vmem:[#allocation2 + $0x88] sm:$0xff]
  %v4308 = vld [vmem:[#allocation2 + $0x90] sm:$0xff]
  %v4309 = vld [vmem:[#allocation2 + $0x98] sm:$0xff]
  %v4310 = vld [vmem:[#allocation2 + $0xa0] sm:$0xff]
  %v4311 = vld [vmem:[#allocation2 + $0xa8] sm:$0xff]
  %v4312 = vld [vmem:[#allocation2 + $0xb0] sm:$0xff]
  %v4313 = vld [vmem:[#allocation2 + $0xb8] sm:$0xff]
  %v4314 = vld [vmem:[#allocation2 + $0xc0] sm:$0xff]
  %v4315 = vld [vmem:[#allocation2 + $0xc8] sm:$0xff]
  %v4316 = vld [vmem:[#allocation2 + $0xd0] sm:$0xff]
  %v4317 = vld [vmem:[#allocation2 + $0xd8] sm:$0xff]
  %v4318 = vld [vmem:[#allocation2 + $0xe0] sm:$0xff]
  %v4319 = vld [vmem:[#allocation2 + $0xe8] sm:$0xff]
  %v4320 = vld [vmem:[#allocation2 + $0xf0] sm:$0xff]
  %v4321 = vld [vmem:[#allocation2 + $0xf8] sm:$0xff]
  %v4322 = vld [vmem:[#allocation2 + $0x100] sm:$0xff]
  %v4323 = vld [vmem:[#allocation2 + $0x108] sm:$0xff]
  %v4324 = vld [vmem:[#allocation2 + $0x110] sm:$0xff]
  %v4325 = vld [vmem:[#allocation2 + $0x118] sm:$0xff]
  %v4326 = vld [vmem:[#allocation2 + $0x120] sm:$0xff]
  %v4327 = vld [vmem:[#allocation2 + $0x128] sm:$0xff]
  %v4328 = vld [vmem:[#allocation2 + $0x130] sm:$0xff]
  %v4329 = vld [vmem:[#allocation2 + $0x138] sm:$0xff]
  %v4330 = vld [vmem:[#allocation2 + $0x140] sm:$0xff]
  %v4331 = vld [vmem:[#allocation2 + $0x148] sm:$0xff]
  %v4332 = vld [vmem:[#allocation2 + $0x150] sm:$0xff]
  %v4333 = vld [vmem:[#allocation2 + $0x158] sm:$0xff]
  %v4334 = vld [vmem:[#allocation2 + $0x160] sm:$0xff]
  %v4335 = vld [vmem:[#allocation2 + $0x168] sm:$0xff]
  %v4336 = vld [vmem:[#allocation2 + $0x170] sm:$0xff]
  %v4337 = vld [vmem:[#allocation2 + $0x178] sm:$0xff]
  %v4338 = vld [vmem:[#allocation2 + $0x180] sm:$0xff]
  %v4339 = vld [vmem:[#allocation2 + $0x188] sm:$0xff]
  %v4340 = vld [vmem:[#allocation2 + $0x190] sm:$0xff]
  %v4341 = vld [vmem:[#allocation2 + $0x198] sm:$0xff]
  %v4342 = vld [vmem:[#allocation2 + $0x1a0] sm:$0xff]
  %v4343 = vld [vmem:[#allocation2 + $0x1a8] sm:$0xff]
  %v4344 = vld [vmem:[#allocation2 + $0x1b0] sm:$0xff]
  %v4345 = vld [vmem:[#allocation2 + $0x1b8] sm:$0xff]
  %v4346 = vld [vmem:[#allocation2 + $0x1c0] sm:$0xff]
  %v4347 = vld [vmem:[#allocation2 + $0x1c8] sm:$0xff]
  %v4348 = vld [vmem:[#allocation2 + $0x1d0] sm:$0xff]
  %v4349 = vld [vmem:[#allocation2 + $0x1d8] sm:$0xff]
  %v4350 = vld [vmem:[#allocation2 + $0x1e0] sm:$0xff]
  %v4351 = vld [vmem:[#allocation2 + $0x1e8] sm:$0xff]
  %v4352 = vld [vmem:[#allocation2 + $0x1f0] sm:$0xff]
  %v4353 = vld [vmem:[#allocation2 + $0x1f8] sm:$0xff]
  %v4354 = vld [vmem:[#allocation2 + $0x200] sm:$0xff]
  %v4355 = vld [vmem:[#allocation2 + $0x208] sm:$0xff]
  %v4356 = vld [vmem:[#allocation2 + $0x210] sm:$0xff]
  %v4357 = vld [vmem:[#allocation2 + $0x218] sm:$0xff]
  %v4358 = vld [vmem:[#allocation2 + $0x220] sm:$0xff]
  %v4359 = vld [vmem:[#allocation2 + $0x228] sm:$0xff]
  %v4360 = vld [vmem:[#allocation2 + $0x230] sm:$0xff]
  %v4361 = vld [vmem:[#allocation2 + $0x238] sm:$0xff]
  %v4362 = vld [vmem:[#allocation2 + $0x240] sm:$0xff]
  %v4363 = vld [vmem:[#allocation2 + $0x248] sm:$0xff]
  %v4364 = vld [vmem:[#allocation2 + $0x250] sm:$0xff]
  %v4365 = vld [vmem:[#allocation2 + $0x258] sm:$0xff]
  %v4366 = vld [vmem:[#allocation2 + $0x260] sm:$0xff]
  %v4367 = vld [vmem:[#allocation2 + $0x268] sm:$0xff]
  %v4368 = vld [vmem:[#allocation2 + $0x270] sm:$0xff]
  %v4369 = vld [vmem:[#allocation2 + $0x278] sm:$0xff]
  %v4370 = vld [vmem:[#allocation2 + $0x280] sm:$0xff]
  %v4371 = vld [vmem:[#allocation2 + $0x288] sm:$0xff]
  %v4372 = vld [vmem:[#allocation2 + $0x290] sm:$0xff]
  %v4373 = vld [vmem:[#allocation2 + $0x298] sm:$0xff]
  %s4374 = scalar_lea.vmem %s3, 512
  %v4375 = vld [vmem:[%s4374] sm:$0xff]
  %v4376 = vld [vmem:[%s4374 + $0x8] sm:$0xff]
  %v4377 = vld [vmem:[%s4374 + $0x10] sm:$0xff]
  %v4378 = vld [vmem:[%s4374 + $0x18] sm:$0xff]
  %v4379 = vld [vmem:[%s4374 + $0x20] sm:$0xff]
  %v4380 = vld [vmem:[%s4374 + $0x28] sm:$0xff]
  %v4381 = vld [vmem:[%s4374 + $0x30] sm:$0xff]
  %v4382 = vld [vmem:[%s4374 + $0x38] sm:$0xff]
  %v4383 = vld [vmem:[%s4374 + $0x40] sm:$0xff]
  %v4384 = vld [vmem:[%s4374 + $0x48] sm:$0xff]
  %v4385 = vld [vmem:[%s4374 + $0x50] sm:$0xff]
  %v4386 = vld [vmem:[%s4374 + $0x58] sm:$0xff]
  %v4387 = vld [vmem:[%s4374 + $0x60] sm:$0xff]
  %v4388 = vld [vmem:[%s4374 + $0x68] sm:$0xff]
  %v4389 = vld [vmem:[%s4374 + $0x70] sm:$0xff]
  %v4390 = vld [vmem:[%s4374 + $0x78] sm:$0xff]
  %4391 = vmatprep.subr.mxu0 0.0
  %4392 = vmatpush1.msra.mxu0 %v4375
  %4393 = vmatprep.subr.mxu0 0.0
  %4394 = vmatpush1.msra.mxu0 %v4376
  %4395 = vmatprep.subr.mxu0 0.0
  %4396 = vmatpush1.msra.mxu0 %v4377
  %4397 = vmatprep.subr.mxu0 0.0
  %4398 = vmatpush1.msra.mxu0 %v4378
  %4399 = vmatprep.subr.mxu0 0.0
  %4400 = vmatpush1.msra.mxu0 %v4379
  %4401 = vmatprep.subr.mxu0 0.0
  %4402 = vmatpush1.msra.mxu0 %v4380
  %4403 = vmatprep.subr.mxu0 0.0
  %4404 = vmatpush1.msra.mxu0 %v4381
  %4405 = vmatprep.subr.mxu0 0.0
  %4406 = vmatpush1.msra.mxu0 %v4382
  %4407 = vmatprep.subr.mxu0 0.0
  %4408 = vmatpush1.msra.mxu0 %v4383
  %4409 = vmatprep.subr.mxu0 0.0
  %4410 = vmatpush1.msra.mxu0 %v4384
  %4411 = vmatprep.subr.mxu0 0.0
  %4412 = vmatpush1.msra.mxu0 %v4385
  %4413 = vmatprep.subr.mxu0 0.0
  %4414 = vmatpush1.msra.mxu0 %v4386
  %4415 = vmatprep.subr.mxu0 0.0
  %4416 = vmatpush1.msra.mxu0 %v4387
  %4417 = vmatprep.subr.mxu0 0.0
  %4418 = vmatpush1.msra.mxu0 %v4388
  %4419 = vmatprep.subr.mxu0 0.0
  %4420 = vmatpush1.msra.mxu0 %v4389
  %4421 = vmatprep.subr.mxu0 0.0
  %4422 = vmatpush1.msra.mxu0 %v4390
  %4423 = vmatprep.subr.mxu0 0.0
  %4424 = vmatpush1.msra.mxu0 0.0
  %4425 = vmatprep.subr.mxu0 0.0
  %4426 = vmatpush1.msra.mxu0 0.0
  %4427 = vmatprep.subr.mxu0 0.0
  %4428 = vmatpush1.msra.mxu0 0.0
  %4429 = vmatprep.subr.mxu0 0.0
  %4430 = vmatpush1.msra.mxu0 0.0
  %4431 = vmatprep.subr.mxu0 0.0
  %4432 = vmatpush1.msra.mxu0 0.0
  %4433 = vmatprep.subr.mxu0 0.0
  %4434 = vmatpush1.msra.mxu0 0.0
  %4435 = vmatprep.subr.mxu0 0.0
  %4436 = vmatpush1.msra.mxu0 0.0
  %4437 = vmatprep.subr.mxu0 0.0
  %4438 = vmatpush1.msra.mxu0 0.0
  %4439 = vmatprep.subr.mxu0 0.0
  %4440 = vmatpush1.msra.mxu0 0.0
  %4441 = vmatprep.subr.mxu0 0.0
  %4442 = vmatpush1.msra.mxu0 0.0
  %4443 = vmatprep.subr.mxu0 0.0
  %4444 = vmatpush1.msra.mxu0 0.0
  %4445 = vmatprep.subr.mxu0 0.0
  %4446 = vmatpush1.msra.mxu0 0.0
  %4447 = vmatprep.subr.mxu0 0.0
  %4448 = vmatpush1.msra.mxu0 0.0
  %4449 = vmatprep.subr.mxu0 0.0
  %4450 = vmatpush1.msra.mxu0 0.0
  %4451 = vmatprep.subr.mxu0 0.0
  %4452 = vmatpush1.msra.mxu0 0.0
  %4453 = vmatprep.subr.mxu0 0.0
  %4454 = vmatpush1.msra.mxu0 0.0
  %4455 = vmatprep.mubr.f32.mxu0 0.0
  %4456 = vmatmul.mubr.f32.gmra.mrb[0].mxu0 %v4293
  %v4457 = vpop.f32.mrb[0].mxu0
  %v4458 = vadd.f32 0.0, %v4457
  %v4459 = vpop.f32.mrb[0].mxu0
  %4460 = vmatprep.mubr.f32.mxu0 0.0
  %4461 = vmatmul.mubr.f32.gmra.mrb[0].mxu0 %v4294
  %v4462 = vpop.f32.mrb[0].mxu0
  %v4463 = vadd.f32 0.0, %v4462
  %v4464 = vpop.f32.mrb[0].mxu0
  %4465 = vmatprep.mubr.f32.mxu0 0.0
  %4466 = vmatmul.mubr.f32.gmra.mrb[0].mxu0 %v4295
  %v4467 = vpop.f32.mrb[0].mxu0
  %v4468 = vadd.f32 0.0, %v4467
  %v4469 = vpop.f32.mrb[0].mxu0
  %4470 = vmatprep.mubr.f32.mxu0 0.0
  %4471 = vmatmul.mubr.f32.gmra.mrb[0].mxu0 %v4296
  %v4472 = vpop.f32.mrb[0].mxu0
  %v4473 = vadd.f32 0.0, %v4472
  %v4474 = vpop.f32.mrb[0].mxu0
  %4475 = vmatprep.mubr.f32.mxu0 0.0
  %4476 = vmatmul.mubr.f32.gmra.mrb[0].mxu0 %v4297
  %v4477 = vpop.f32.mrb[0].mxu0
  %v4478 = vadd.f32 0.0, %v4477
  %v4479 = vpop.f32.mrb[0].mxu0
  %4480 = vmatprep.mubr.f32.mxu0 0.0
  %4481 = vmatmul.mubr.f32.gmra.mrb[0].mxu0 %v4298
  %v4482 = vpop.f32.mrb[0].mxu0
  %v4483 = vadd.f32 0.0, %v4482
  %v4484 = vpop.f32.mrb[0].mxu0
  %4485 = vmatprep.mubr.f32.mxu0 0.0
  %4486 = vmatmul.mubr.f32.gmra.mrb[0].mxu0 %v4299
  %v4487 = vpop.f32.mrb[0].mxu0
  %v4488 = vadd.f32 0.0, %v4487
  %v4489 = vpop.f32.mrb[0].mxu0
  %4490 = vmatprep.mubr.f32.mxu0 0.0
  %4491 = vmatmul.mubr.f32.gmra.mrb[0].mxu0 %v4300
  %v4492 = vpop.f32.mrb[0].mxu0
  %v4493 = vadd.f32 0.0, %v4492
  %v4494 = vpop.f32.mrb[0].mxu0
  %4495 = vmatprep.mubr.f32.mxu0 0.0
  %4496 = vmatmul.mubr.f32.gmra.mrb[0].mxu0 %v4301
  %v4497 = vpop.f32.mrb[0].mxu0
  %v4498 = vadd.f32 0.0, %v4497
  %v4499 = vpop.f32.mrb[0].mxu0
  %4500 = vmatprep.mubr.f32.mxu0 0.0
  %4501 = vmatmul.mubr.f32.gmra.mrb[0].mxu0 %v4302
  %v4502 = vpop.f32.mrb[0].mxu0
  %v4503 = vadd.f32 0.0, %v4502
  %v4504 = vpop.f32.mrb[0].mxu0
  %4505 = vmatprep.mubr.f32.mxu0 0.0
  %4506 = vmatmul.mubr.f32.gmra.mrb[0].mxu0 %v4303
  %v4507 = vpop.f32.mrb[0].mxu0
  %v4508 = vadd.f32 0.0, %v4507
  %v4509 = vpop.f32.mrb[0].mxu0
  %4510 = vmatprep.mubr.f32.mxu0 0.0
  %4511 = vmatmul.mubr.f32.gmra.mrb[0].mxu0 %v4304
  %v4512 = vpop.f32.mrb[0].mxu0
  %v4513 = vadd.f32 0.0, %v4512
  %v4514 = vpop.f32.mrb[0].mxu0
  %4515 = vmatprep.mubr.f32.mxu0 0.0
  %4516 = vmatmul.mubr.f32.gmra.mrb[0].mxu0 %v4305
  %v4517 = vpop.f32.mrb[0].mxu0
  %v4518 = vadd.f32 0.0, %v4517
  %v4519 = vpop.f32.mrb[0].mxu0
  %4520 = vmatprep.mubr.f32.mxu0 0.0
  %4521 = vmatmul.mubr.f32.gmra.mrb[0].mxu0 %v4306
  %v4522 = vpop.f32.mrb[0].mxu0
  %v4523 = vadd.f32 0.0, %v4522
  %v4524 = vpop.f32.mrb[0].mxu0
  %4525 = vmatprep.mubr.f32.mxu0 0.0
  %4526 = vmatmul.mubr.f32.gmra.mrb[0].mxu0 %v4307
  %v4527 = vpop.f32.mrb[0].mxu0
  %v4528 = vadd.f32 0.0, %v4527
  %v4529 = vpop.f32.mrb[0].mxu0
  %4530 = vmatprep.mubr.f32.mxu0 0.0
  %4531 = vmatmul.mubr.f32.gmra.mrb[0].mxu0 %v4308
  %v4532 = vpop.f32.mrb[0].mxu0
  %v4533 = vadd.f32 0.0, %v4532
  %v4534 = vpop.f32.mrb[0].mxu0
  %4535 = vmatprep.mubr.f32.mxu0 0.0
  %4536 = vmatmul.mubr.f32.gmra.mrb[0].mxu0 %v4309
  %v4537 = vpop.f32.mrb[0].mxu0
  %v4538 = vadd.f32 0.0, %v4537
  %v4539 = vpop.f32.mrb[0].mxu0
  %4540 = vmatprep.mubr.f32.mxu0 0.0
  %4541 = vmatmul.mubr.f32.gmra.mrb[0].mxu0 %v4310
  %v4542 = vpop.f32.mrb[0].mxu0
  %v4543 = vadd.f32 0.0, %v4542
  %v4544 = vpop.f32.mrb[0].mxu0
  %4545 = vmatprep.mubr.f32.mxu0 0.0
  %4546 = vmatmul.mubr.f32.gmra.mrb[0].mxu0 %v4311
  %v4547 = vpop.f32.mrb[0].mxu0
  %v4548 = vadd.f32 0.0, %v4547
  %v4549 = vpop.f32.mrb[0].mxu0
  %4550 = vmatprep.mubr.f32.mxu0 0.0
  %4551 = vmatmul.mubr.f32.gmra.mrb[0].mxu0 %v4312
  %v4552 = vpop.f32.mrb[0].mxu0
  %v4553 = vadd.f32 0.0, %v4552
  %v4554 = vpop.f32.mrb[0].mxu0
  %4555 = vmatprep.mubr.f32.mxu0 0.0
  %4556 = vmatmul.mubr.f32.gmra.mrb[0].mxu0 %v4313
  %v4557 = vpop.f32.mrb[0].mxu0
  %v4558 = vadd.f32 0.0, %v4557
  %v4559 = vpop.f32.mrb[0].mxu0
  %4560 = vmatprep.mubr.f32.mxu0 0.0
  %4561 = vmatmul.mubr.f32.gmra.mrb[0].mxu0 %v4314
  %v4562 = vpop.f32.mrb[0].mxu0
  %v4563 = vadd.f32 0.0, %v4562
  %v4564 = vpop.f32.mrb[0].mxu0
  %4565 = vmatprep.mubr.f32.mxu0 0.0
  %4566 = vmatmul.mubr.f32.gmra.mrb[0].mxu0 %v4315
  %v4567 = vpop.f32.mrb[0].mxu0
  %v4568 = vadd.f32 0.0, %v4567
  %v4569 = vpop.f32.mrb[0].mxu0
  %4570 = vmatprep.mubr.f32.mxu0 0.0
  %4571 = vmatmul.mubr.f32.gmra.mrb[0].mxu0 %v4316
  %v4572 = vpop.f32.mrb[0].mxu0
  %v4573 = vadd.f32 0.0, %v4572
  %v4574 = vpop.f32.mrb[0].mxu0
  %4575 = vmatprep.mubr.f32.mxu0 0.0
  %4576 = vmatmul.mubr.f32.gmra.mrb[0].mxu0 %v4317
  %v4577 = vpop.f32.mrb[0].mxu0
  %v4578 = vadd.f32 0.0, %v4577
  %v4579 = vpop.f32.mrb[0].mxu0
  %4580 = vmatprep.mubr.f32.mxu0 0.0
  %4581 = vmatmul.mubr.f32.gmra.mrb[0].mxu0 %v4318
  %v4582 = vpop.f32.mrb[0].mxu0
  %v4583 = vadd.f32 0.0, %v4582
  %v4584 = vpop.f32.mrb[0].mxu0
  %4585 = vmatprep.mubr.f32.mxu0 0.0
  %4586 = vmatmul.mubr.f32.gmra.mrb[0].mxu0 %v4319
  %v4587 = vpop.f32.mrb[0].mxu0
  %v4588 = vadd.f32 0.0, %v4587
  %v4589 = vpop.f32.mrb[0].mxu0
  %4590 = vmatprep.mubr.f32.mxu0 0.0
  %4591 = vmatmul.mubr.f32.gmra.mrb[0].mxu0 %v4320
  %v4592 = vpop.f32.mrb[0].mxu0
  %v4593 = vadd.f32 0.0, %v4592
  %v4594 = vpop.f32.mrb[0].mxu0
  %4595 = vmatprep.mubr.f32.mxu0 0.0
  %4596 = vmatmul.mubr.f32.gmra.mrb[0].mxu0 %v4321
  %v4597 = vpop.f32.mrb[0].mxu0
  %v4598 = vadd.f32 0.0, %v4597
  %v4599 = vpop.f32.mrb[0].mxu0
  %4600 = vmatprep.mubr.f32.mxu0 0.0
  %4601 = vmatmul.mubr.f32.gmra.mrb[0].mxu0 %v4322
  %v4602 = vpop.f32.mrb[0].mxu0
  %v4603 = vadd.f32 0.0, %v4602
  %v4604 = vpop.f32.mrb[0].mxu0
  %4605 = vmatprep.mubr.f32.mxu0 0.0
  %4606 = vmatmul.mubr.f32.gmra.mrb[0].mxu0 %v4323
  %v4607 = vpop.f32.mrb[0].mxu0
  %v4608 = vadd.f32 0.0, %v4607
  %v4609 = vpop.f32.mrb[0].mxu0
  %4610 = vmatprep.mubr.f32.mxu0 0.0
  %4611 = vmatmul.mubr.f32.gmra.mrb[0].mxu0 %v4324
  %v4612 = vpop.f32.mrb[0].mxu0
  %v4613 = vadd.f32 0.0, %v4612
  %v4614 = vpop.f32.mrb[0].mxu0
  %4615 = vmatprep.mubr.f32.mxu0 0.0
  %4616 = vmatmul.mubr.f32.gmra.mrb[0].mxu0 %v4325
  %v4617 = vpop.f32.mrb[0].mxu0
  %v4618 = vadd.f32 0.0, %v4617
  %v4619 = vpop.f32.mrb[0].mxu0
  %4620 = vmatprep.mubr.f32.mxu0 0.0
  %4621 = vmatmul.mubr.f32.gmra.mrb[0].mxu0 %v4326
  %v4622 = vpop.f32.mrb[0].mxu0
  %v4623 = vadd.f32 0.0, %v4622
  %v4624 = vpop.f32.mrb[0].mxu0
  %4625 = vmatprep.mubr.f32.mxu0 0.0
  %4626 = vmatmul.mubr.f32.gmra.mrb[0].mxu0 %v4327
  %v4627 = vpop.f32.mrb[0].mxu0
  %v4628 = vadd.f32 0.0, %v4627
  %v4629 = vpop.f32.mrb[0].mxu0
  %4630 = vmatprep.mubr.f32.mxu0 0.0
  %4631 = vmatmul.mubr.f32.gmra.mrb[0].mxu0 %v4328
  %v4632 = vpop.f32.mrb[0].mxu0
  %v4633 = vadd.f32 0.0, %v4632
  %v4634 = vpop.f32.mrb[0].mxu0
  %4635 = vmatprep.mubr.f32.mxu0 0.0
  %4636 = vmatmul.mubr.f32.gmra.mrb[0].mxu0 %v4329
  %v4637 = vpop.f32.mrb[0].mxu0
  %v4638 = vadd.f32 0.0, %v4637
  %v4639 = vpop.f32.mrb[0].mxu0
  %4640 = vmatprep.mubr.f32.mxu0 0.0
  %4641 = vmatmul.mubr.f32.gmra.mrb[0].mxu0 %v4330
  %v4642 = vpop.f32.mrb[0].mxu0
  %v4643 = vadd.f32 0.0, %v4642
  %v4644 = vpop.f32.mrb[0].mxu0
  %4645 = vmatprep.mubr.f32.mxu0 0.0
  %4646 = vmatmul.mubr.f32.gmra.mrb[0].mxu0 %v4331
  %v4647 = vpop.f32.mrb[0].mxu0
  %v4648 = vadd.f32 0.0, %v4647
  %v4649 = vpop.f32.mrb[0].mxu0
  %4650 = vmatprep.mubr.f32.mxu0 0.0
  %4651 = vmatmul.mubr.f32.gmra.mrb[0].mxu0 %v4332
  %v4652 = vpop.f32.mrb[0].mxu0
  %v4653 = vadd.f32 0.0, %v4652
  %v4654 = vpop.f32.mrb[0].mxu0
  %4655 = vmatprep.mubr.f32.mxu0 0.0
  %4656 = vmatmul.mubr.f32.gmra.mrb[0].mxu0 %v4333
  %v4657 = vpop.f32.mrb[0].mxu0
  %v4658 = vadd.f32 0.0, %v4657
  %v4659 = vpop.f32.mrb[0].mxu0
  %4660 = vmatprep.mubr.f32.mxu0 0.0
  %4661 = vmatmul.mubr.f32.gmra.mrb[0].mxu0 %v4334
  %v4662 = vpop.f32.mrb[0].mxu0
  %v4663 = vadd.f32 0.0, %v4662
  %v4664 = vpop.f32.mrb[0].mxu0
  %4665 = vmatprep.mubr.f32.mxu0 0.0
  %4666 = vmatmul.mubr.f32.gmra.mrb[0].mxu0 %v4335
  %v4667 = vpop.f32.mrb[0].mxu0
  %v4668 = vadd.f32 0.0, %v4667
  %v4669 = vpop.f32.mrb[0].mxu0
  %4670 = vmatprep.mubr.f32.mxu0 0.0
  %4671 = vmatmul.mubr.f32.gmra.mrb[0].mxu0 %v4336
  %v4672 = vpop.f32.mrb[0].mxu0
  %v4673 = vadd.f32 0.0, %v4672
  %v4674 = vpop.f32.mrb[0].mxu0
  %4675 = vmatprep.mubr.f32.mxu0 0.0
  %4676 = vmatmul.mubr.f32.gmra.mrb[0].mxu0 %v4337
  %v4677 = vpop.f32.mrb[0].mxu0
  %v4678 = vadd.f32 0.0, %v4677
  %v4679 = vpop.f32.mrb[0].mxu0
  %4680 = vmatprep.mubr.f32.mxu0 0.0
  %4681 = vmatmul.mubr.f32.gmra.mrb[0].mxu0 %v4338
  %v4682 = vpop.f32.mrb[0].mxu0
  %v4683 = vadd.f32 0.0, %v4682
  %v4684 = vpop.f32.mrb[0].mxu0
  %4685 = vmatprep.mubr.f32.mxu0 0.0
  %4686 = vmatmul.mubr.f32.gmra.mrb[0].mxu0 %v4339
  %v4687 = vpop.f32.mrb[0].mxu0
  %v4688 = vadd.f32 0.0, %v4687
  %v4689 = vpop.f32.mrb[0].mxu0
  %4690 = vmatprep.mubr.f32.mxu0 0.0
  %4691 = vmatmul.mubr.f32.gmra.mrb[0].mxu0 %v4340
  %v4692 = vpop.f32.mrb[0].mxu0
  %v4693 = vadd.f32 0.0, %v4692
  %v4694 = vpop.f32.mrb[0].mxu0
  %4695 = vmatprep.mubr.f32.mxu0 0.0
  %4696 = vmatmul.mubr.f32.gmra.mrb[0].mxu0 %v4341
  %v4697 = vpop.f32.mrb[0].mxu0
  %v4698 = vadd.f32 0.0, %v4697
  %v4699 = vpop.f32.mrb[0].mxu0
  %4700 = vmatprep.mubr.f32.mxu0 0.0
  %4701 = vmatmul.mubr.f32.gmra.mrb[0].mxu0 %v4342
  %v4702 = vpop.f32.mrb[0].mxu0
  %v4703 = vadd.f32 0.0, %v4702
  %v4704 = vpop.f32.mrb[0].mxu0
  %4705 = vmatprep.mubr.f32.mxu0 0.0
  %4706 = vmatmul.mubr.f32.gmra.mrb[0].mxu0 %v4343
  %v4707 = vpop.f32.mrb[0].mxu0
  %v4708 = vadd.f32 0.0, %v4707
  %v4709 = vpop.f32.mrb[0].mxu0
  %4710 = vmatprep.mubr.f32.mxu0 0.0
  %4711 = vmatmul.mubr.f32.gmra.mrb[0].mxu0 %v4344
  %v4712 = vpop.f32.mrb[0].mxu0
  %v4713 = vadd.f32 0.0, %v4712
  %v4714 = vpop.f32.mrb[0].mxu0
  %4715 = vmatprep.mubr.f32.mxu0 0.0
  %4716 = vmatmul.mubr.f32.gmra.mrb[0].mxu0 %v4345
  %v4717 = vpop.f32.mrb[0].mxu0
  %v4718 = vadd.f32 0.0, %v4717
  %v4719 = vpop.f32.mrb[0].mxu0
  %4720 = vmatprep.mubr.f32.mxu0 0.0
  %4721 = vmatmul.mubr.f32.gmra.mrb[0].mxu0 %v4346
  %v4722 = vpop.f32.mrb[0].mxu0
  %v4723 = vadd.f32 0.0, %v4722
  %v4724 = vpop.f32.mrb[0].mxu0
  %4725 = vmatprep.mubr.f32.mxu0 0.0
  %4726 = vmatmul.mubr.f32.gmra.mrb[0].mxu0 %v4347
  %v4727 = vpop.f32.mrb[0].mxu0
  %v4728 = vadd.f32 0.0, %v4727
  %v4729 = vpop.f32.mrb[0].mxu0
  %4730 = vmatprep.mubr.f32.mxu0 0.0
  %4731 = vmatmul.mubr.f32.gmra.mrb[0].mxu0 %v4348
  %v4732 = vpop.f32.mrb[0].mxu0
  %v4733 = vadd.f32 0.0, %v4732
  %v4734 = vpop.f32.mrb[0].mxu0
  %4735 = vmatprep.mubr.f32.mxu0 0.0
  %4736 = vmatmul.mubr.f32.gmra.mrb[0].mxu0 %v4349
  %v4737 = vpop.f32.mrb[0].mxu0
  %v4738 = vadd.f32 0.0, %v4737
  %v4739 = vpop.f32.mrb[0].mxu0
  %4740 = vmatprep.mubr.f32.mxu0 0.0
  %4741 = vmatmul.mubr.f32.gmra.mrb[0].mxu0 %v4350
  %v4742 = vpop.f32.mrb[0].mxu0
  %v4743 = vadd.f32 0.0, %v4742
  %v4744 = vpop.f32.mrb[0].mxu0
  %4745 = vmatprep.mubr.f32.mxu0 0.0
  %4746 = vmatmul.mubr.f32.gmra.mrb[0].mxu0 %v4351
  %v4747 = vpop.f32.mrb[0].mxu0
  %v4748 = vadd.f32 0.0, %v4747
  %v4749 = vpop.f32.mrb[0].mxu0
  %4750 = vmatprep.mubr.f32.mxu0 0.0
  %4751 = vmatmul.mubr.f32.gmra.mrb[0].mxu0 %v4352
  %v4752 = vpop.f32.mrb[0].mxu0
  %v4753 = vadd.f32 0.0, %v4752
  %v4754 = vpop.f32.mrb[0].mxu0
  %4755 = vmatprep.mubr.f32.mxu0 0.0
  %4756 = vmatmul.mubr.f32.gmra.mrb[0].mxu0 %v4353
  %v4757 = vpop.f32.mrb[0].mxu0
  %v4758 = vadd.f32 0.0, %v4757
  %v4759 = vpop.f32.mrb[0].mxu0
  %4760 = vmatprep.mubr.f32.mxu0 0.0
  %4761 = vmatmul.mubr.f32.gmra.mrb[0].mxu0 %v4354
  %v4762 = vpop.f32.mrb[0].mxu0
  %v4763 = vadd.f32 0.0, %v4762
  %v4764 = vpop.f32.mrb[0].mxu0
  %4765 = vmatprep.mubr.f32.mxu0 0.0
  %4766 = vmatmul.mubr.f32.gmra.mrb[0].mxu0 %v4355
  %v4767 = vpop.f32.mrb[0].mxu0
  %v4768 = vadd.f32 0.0, %v4767
  %v4769 = vpop.f32.mrb[0].mxu0
  %4770 = vmatprep.mubr.f32.mxu0 0.0
  %4771 = vmatmul.mubr.f32.gmra.mrb[0].mxu0 %v4356
  %v4772 = vpop.f32.mrb[0].mxu0
  %v4773 = vadd.f32 0.0, %v4772
  %v4774 = vpop.f32.mrb[0].mxu0
  %4775 = vmatprep.mubr.f32.mxu0 0.0
  %4776 = vmatmul.mubr.f32.gmra.mrb[0].mxu0 %v4357
  %v4777 = vpop.f32.mrb[0].mxu0
  %v4778 = vadd.f32 0.0, %v4777
  %v4779 = vpop.f32.mrb[0].mxu0
  %4780 = vmatprep.mubr.f32.mxu0 0.0
  %4781 = vmatmul.mubr.f32.gmra.mrb[0].mxu0 %v4358
  %v4782 = vpop.f32.mrb[0].mxu0
  %v4783 = vadd.f32 0.0, %v4782
  %v4784 = vpop.f32.mrb[0].mxu0
  %4785 = vmatprep.mubr.f32.mxu0 0.0
  %4786 = vmatmul.mubr.f32.gmra.mrb[0].mxu0 %v4359
  %v4787 = vpop.f32.mrb[0].mxu0
  %v4788 = vadd.f32 0.0, %v4787
  %v4789 = vpop.f32.mrb[0].mxu0
  %4790 = vmatprep.mubr.f32.mxu0 0.0
  %4791 = vmatmul.mubr.f32.gmra.mrb[0].mxu0 %v4360
  %v4792 = vpop.f32.mrb[0].mxu0
  %v4793 = vadd.f32 0.0, %v4792
  %v4794 = vpop.f32.mrb[0].mxu0
  %4795 = vmatprep.mubr.f32.mxu0 0.0
  %4796 = vmatmul.mubr.f32.gmra.mrb[0].mxu0 %v4361
  %v4797 = vpop.f32.mrb[0].mxu0
  %v4798 = vadd.f32 0.0, %v4797
  %v4799 = vpop.f32.mrb[0].mxu0
  %4800 = vmatprep.mubr.f32.mxu0 0.0
  %4801 = vmatmul.mubr.f32.gmra.mrb[0].mxu0 %v4362
  %v4802 = vpop.f32.mrb[0].mxu0
  %v4803 = vadd.f32 0.0, %v4802
  %v4804 = vpop.f32.mrb[0].mxu0
  %4805 = vmatprep.mubr.f32.mxu0 0.0
  %4806 = vmatmul.mubr.f32.gmra.mrb[0].mxu0 %v4363
  %v4807 = vpop.f32.mrb[0].mxu0
  %v4808 = vadd.f32 0.0, %v4807
  %v4809 = vpop.f32.mrb[0].mxu0
  %4810 = vmatprep.mubr.f32.mxu0 0.0
  %4811 = vmatmul.mubr.f32.gmra.mrb[0].mxu0 %v4364
  %v4812 = vpop.f32.mrb[0].mxu0
  %v4813 = vadd.f32 0.0, %v4812
  %v4814 = vpop.f32.mrb[0].mxu0
  %4815 = vmatprep.mubr.f32.mxu0 0.0
  %4816 = vmatmul.mubr.f32.gmra.mrb[0].mxu0 %v4365
  %v4817 = vpop.f32.mrb[0].mxu0
  %v4818 = vadd.f32 0.0, %v4817
  %v4819 = vpop.f32.mrb[0].mxu0
  %4820 = vmatprep.mubr.f32.mxu0 0.0
  %4821 = vmatmul.mubr.f32.gmra.mrb[0].mxu0 %v4366
  %v4822 = vpop.f32.mrb[0].mxu0
  %v4823 = vadd.f32 0.0, %v4822
  %v4824 = vpop.f32.mrb[0].mxu0
  %4825 = vmatprep.mubr.f32.mxu0 0.0
  %4826 = vmatmul.mubr.f32.gmra.mrb[0].mxu0 %v4367
  %v4827 = vpop.f32.mrb[0].mxu0
  %v4828 = vadd.f32 0.0, %v4827
  %v4829 = vpop.f32.mrb[0].mxu0
  %4830 = vmatprep.mubr.f32.mxu0 0.0
  %4831 = vmatmul.mubr.f32.gmra.mrb[0].mxu0 %v4368
  %v4832 = vpop.f32.mrb[0].mxu0
  %v4833 = vadd.f32 0.0, %v4832
  %v4834 = vpop.f32.mrb[0].mxu0
  %4835 = vmatprep.mubr.f32.mxu0 0.0
  %4836 = vmatmul.mubr.f32.gmra.mrb[0].mxu0 %v4369
  %v4837 = vpop.f32.mrb[0].mxu0
  %v4838 = vadd.f32 0.0, %v4837
  %v4839 = vpop.f32.mrb[0].mxu0
  %4840 = vmatprep.mubr.f32.mxu0 0.0
  %4841 = vmatmul.mubr.f32.gmra.mrb[0].mxu0 %v4370
  %v4842 = vpop.f32.mrb[0].mxu0
  %v4843 = vadd.f32 0.0, %v4842
  %v4844 = vpop.f32.mrb[0].mxu0
  %4845 = vmatprep.mubr.f32.mxu0 0.0
  %4846 = vmatmul.mubr.f32.gmra.mrb[0].mxu0 %v4371
  %v4847 = vpop.f32.mrb[0].mxu0
  %v4848 = vadd.f32 0.0, %v4847
  %v4849 = vpop.f32.mrb[0].mxu0
  %4850 = vmatprep.mubr.f32.mxu0 0.0
  %4851 = vmatmul.mubr.f32.gmra.mrb[0].mxu0 %v4372
  %v4852 = vpop.f32.mrb[0].mxu0
  %v4853 = vadd.f32 0.0, %v4852
  %v4854 = vpop.f32.mrb[0].mxu0
  %4855 = vmatprep.mubr.f32.mxu0 0.0
  %4856 = vmatmul.mubr.f32.gmra.mrb[0].mxu0 %v4373
  %v4857 = vpop.f32.mrb[0].mxu0
  %v4858 = vadd.f32 0.0, %v4857
  %v4859 = vpop.f32.mrb[0].mxu0
  %4860 = vdwg.mxu0
  %v4861 = vadd.f32 %v4212, %v4458
  %v4862 = vadd.f32 %v4213, %v4463
  %v4863 = vadd.f32 %v4214, %v4468
  %v4864 = vadd.f32 %v4215, %v4473
  %v4865 = vadd.f32 %v4216, %v4478
  %v4866 = vadd.f32 %v4217, %v4483
  %v4867 = vadd.f32 %v4218, %v4488
  %v4868 = vadd.f32 %v4219, %v4493
  %v4869 = vadd.f32 %v4220, %v4498
  %v4870 = vadd.f32 %v4221, %v4503
  %v4871 = vadd.f32 %v4222, %v4508
  %v4872 = vadd.f32 %v4223, %v4513
  %v4873 = vadd.f32 %v4224, %v4518
  %v4874 = vadd.f32 %v4225, %v4523
  %v4875 = vadd.f32 %v4226, %v4528
  %v4876 = vadd.f32 %v4227, %v4533
  %v4877 = vadd.f32 %v4228, %v4538
  %v4878 = vadd.f32 %v4229, %v4543
  %v4879 = vadd.f32 %v4230, %v4548
  %v4880 = vadd.f32 %v4231, %v4553
  %v4881 = vadd.f32 %v4232, %v4558
  %v4882 = vadd.f32 %v4233, %v4563
  %v4883 = vadd.f32 %v4234, %v4568
  %v4884 = vadd.f32 %v4235, %v4573
  %v4885 = vadd.f32 %v4236, %v4578
  %v4886 = vadd.f32 %v4237, %v4583
  %v4887 = vadd.f32 %v4238, %v4588
  %v4888 = vadd.f32 %v4239, %v4593
  %v4889 = vadd.f32 %v4240, %v4598
  %v4890 = vadd.f32 %v4241, %v4603
  %v4891 = vadd.f32 %v4242, %v4608
  %v4892 = vadd.f32 %v4243, %v4613
  %v4893 = vadd.f32 %v4244, %v4618
  %v4894 = vadd.f32 %v4245, %v4623
  %v4895 = vadd.f32 %v4246, %v4628
  %v4896 = vadd.f32 %v4247, %v4633
  %v4897 = vadd.f32 %v4248, %v4638
  %v4898 = vadd.f32 %v4249, %v4643
  %v4899 = vadd.f32 %v4250, %v4648
  %v4900 = vadd.f32 %v4251, %v4653
  %v4901 = vadd.f32 %v4252, %v4658
  %v4902 = vadd.f32 %v4253, %v4663
  %v4903 = vadd.f32 %v4254, %v4668
  %v4904 = vadd.f32 %v4255, %v4673
  %v4905 = vadd.f32 %v4256, %v4678
  %v4906 = vadd.f32 %v4257, %v4683
  %v4907 = vadd.f32 %v4258, %v4688
  %v4908 = vadd.f32 %v4259, %v4693
  %v4909 = vadd.f32 %v4260, %v4698
  %v4910 = vadd.f32 %v4261, %v4703
  %v4911 = vadd.f32 %v4262, %v4708
  %v4912 = vadd.f32 %v4263, %v4713
  %v4913 = vadd.f32 %v4264, %v4718
  %v4914 = vadd.f32 %v4265, %v4723
  %v4915 = vadd.f32 %v4266, %v4728
  %v4916 = vadd.f32 %v4267, %v4733
  %v4917 = vadd.f32 %v4268, %v4738
  %v4918 = vadd.f32 %v4269, %v4743
  %v4919 = vadd.f32 %v4270, %v4748
  %v4920 = vadd.f32 %v4271, %v4753
  %v4921 = vadd.f32 %v4272, %v4758
  %v4922 = vadd.f32 %v4273, %v4763
  %v4923 = vadd.f32 %v4274, %v4768
  %v4924 = vadd.f32 %v4275, %v4773
  %v4925 = vadd.f32 %v4276, %v4778
  %v4926 = vadd.f32 %v4277, %v4783
  %v4927 = vadd.f32 %v4278, %v4788
  %v4928 = vadd.f32 %v4279, %v4793
  %v4929 = vadd.f32 %v4280, %v4798
  %v4930 = vadd.f32 %v4281, %v4803
  %v4931 = vadd.f32 %v4282, %v4808
  %v4932 = vadd.f32 %v4283, %v4813
  %v4933 = vadd.f32 %v4284, %v4818
  %v4934 = vadd.f32 %v4285, %v4823
  %v4935 = vadd.f32 %v4286, %v4828
  %v4936 = vadd.f32 %v4287, %v4833
  %v4937 = vadd.f32 %v4288, %v4838
  %v4938 = vadd.f32 %v4289, %v4843
  %v4939 = vadd.f32 %v4290, %v4848
  %v4940 = vadd.f32 %v4291, %v4853
  %v4941 = vadd.f32 %v4292, %v4858
  %v4942 = vld [vmem:[#allocation2 + $0x19] sm:$0xff]
  %v4943 = vld [vmem:[#allocation2 + $0x21] sm:$0xff]
  %v4944 = vld [vmem:[#allocation2 + $0x29] sm:$0xff]
  %v4945 = vld [vmem:[#allocation2 + $0x31] sm:$0xff]
  %v4946 = vld [vmem:[#allocation2 + $0x39] sm:$0xff]
  %v4947 = vld [vmem:[#allocation2 + $0x41] sm:$0xff]
  %v4948 = vld [vmem:[#allocation2 + $0x49] sm:$0xff]
  %v4949 = vld [vmem:[#allocation2 + $0x51] sm:$0xff]
  %v4950 = vld [vmem:[#allocation2 + $0x59] sm:$0xff]
  %v4951 = vld [vmem:[#allocation2 + $0x61] sm:$0xff]
  %v4952 = vld [vmem:[#allocation2 + $0x69] sm:$0xff]
  %v4953 = vld [vmem:[#allocation2 + $0x71] sm:$0xff]
  %v4954 = vld [vmem:[#allocation2 + $0x79] sm:$0xff]
  %v4955 = vld [vmem:[#allocation2 + $0x81] sm:$0xff]
  %v4956 = vld [vmem:[#allocation2 + $0x89] sm:$0xff]
  %v4957 = vld [vmem:[#allocation2 + $0x91] sm:$0xff]
  %v4958 = vld [vmem:[#allocation2 + $0x99] sm:$0xff]
  %v4959 = vld [vmem:[#allocation2 + $0xa1] sm:$0xff]
  %v4960 = vld [vmem:[#allocation2 + $0xa9] sm:$0xff]
  %v4961 = vld [vmem:[#allocation2 + $0xb1] sm:$0xff]
  %v4962 = vld [vmem:[#allocation2 + $0xb9] sm:$0xff]
  %v4963 = vld [vmem:[#allocation2 + $0xc1] sm:$0xff]
  %v4964 = vld [vmem:[#allocation2 + $0xc9] sm:$0xff]
  %v4965 = vld [vmem:[#allocation2 + $0xd1] sm:$0xff]
  %v4966 = vld [vmem:[#allocation2 + $0xd9] sm:$0xff]
  %v4967 = vld [vmem:[#allocation2 + $0xe1] sm:$0xff]
  %v4968 = vld [vmem:[#allocation2 + $0xe9] sm:$0xff]
  %v4969 = vld [vmem:[#allocation2 + $0xf1] sm:$0xff]
  %v4970 = vld [vmem:[#allocation2 + $0xf9] sm:$0xff]
  %v4971 = vld [vmem:[#allocation2 + $0x101] sm:$0xff]
  %v4972 = vld [vmem:[#allocation2 + $0x109] sm:$0xff]
  %v4973 = vld [vmem:[#allocation2 + $0x111] sm:$0xff]
  %v4974 = vld [vmem:[#allocation2 + $0x119] sm:$0xff]
  %v4975 = vld [vmem:[#allocation2 + $0x121] sm:$0xff]
  %v4976 = vld [vmem:[#allocation2 + $0x129] sm:$0xff]
  %v4977 = vld [vmem:[#allocation2 + $0x131] sm:$0xff]
  %v4978 = vld [vmem:[#allocation2 + $0x139] sm:$0xff]
  %v4979 = vld [vmem:[#allocation2 + $0x141] sm:$0xff]
  %v4980 = vld [vmem:[#allocation2 + $0x149] sm:$0xff]
  %v4981 = vld [vmem:[#allocation2 + $0x151] sm:$0xff]
  %v4982 = vld [vmem:[#allocation2 + $0x159] sm:$0xff]
  %v4983 = vld [vmem:[#allocation2 + $0x161] sm:$0xff]
  %v4984 = vld [vmem:[#allocation2 + $0x169] sm:$0xff]
  %v4985 = vld [vmem:[#allocation2 + $0x171] sm:$0xff]
  %v4986 = vld [vmem:[#allocation2 + $0x179] sm:$0xff]
  %v4987 = vld [vmem:[#allocation2 + $0x181] sm:$0xff]
  %v4988 = vld [vmem:[#allocation2 + $0x189] sm:$0xff]
  %v4989 = vld [vmem:[#allocation2 + $0x191] sm:$0xff]
  %v4990 = vld [vmem:[#allocation2 + $0x199] sm:$0xff]
  %v4991 = vld [vmem:[#allocation2 + $0x1a1] sm:$0xff]
  %v4992 = vld [vmem:[#allocation2 + $0x1a9] sm:$0xff]
  %v4993 = vld [vmem:[#allocation2 + $0x1b1] sm:$0xff]
  %v4994 = vld [vmem:[#allocation2 + $0x1b9] sm:$0xff]
  %v4995 = vld [vmem:[#allocation2 + $0x1c1] sm:$0xff]
  %v4996 = vld [vmem:[#allocation2 + $0x1c9] sm:$0xff]
  %v4997 = vld [vmem:[#allocation2 + $0x1d1] sm:$0xff]
  %v4998 = vld [vmem:[#allocation2 + $0x1d9] sm:$0xff]
  %v4999 = vld [vmem:[#allocation2 + $0x1e1] sm:$0xff]
  %v5000 = vld [vmem:[#allocation2 + $0x1e9] sm:$0xff]
  %v5001 = vld [vmem:[#allocation2 + $0x1f1] sm:$0xff]
  %v5002 = vld [vmem:[#allocation2 + $0x1f9] sm:$0xff]
  %v5003 = vld [vmem:[#allocation2 + $0x201] sm:$0xff]
  %v5004 = vld [vmem:[#allocation2 + $0x209] sm:$0xff]
  %v5005 = vld [vmem:[#allocation2 + $0x211] sm:$0xff]
  %v5006 = vld [vmem:[#allocation2 + $0x219] sm:$0xff]
  %v5007 = vld [vmem:[#allocation2 + $0x221] sm:$0xff]
  %v5008 = vld [vmem:[#allocation2 + $0x229] sm:$0xff]
  %v5009 = vld [vmem:[#allocation2 + $0x231] sm:$0xff]
  %v5010 = vld [vmem:[#allocation2 + $0x239] sm:$0xff]
  %v5011 = vld [vmem:[#allocation2 + $0x241] sm:$0xff]
  %v5012 = vld [vmem:[#allocation2 + $0x249] sm:$0xff]
  %v5013 = vld [vmem:[#allocation2 + $0x251] sm:$0xff]
  %v5014 = vld [vmem:[#allocation2 + $0x259] sm:$0xff]
  %v5015 = vld [vmem:[#allocation2 + $0x261] sm:$0xff]
  %v5016 = vld [vmem:[#allocation2 + $0x269] sm:$0xff]
  %v5017 = vld [vmem:[#allocation2 + $0x271] sm:$0xff]
  %v5018 = vld [vmem:[#allocation2 + $0x279] sm:$0xff]
  %v5019 = vld [vmem:[#allocation2 + $0x281] sm:$0xff]
  %v5020 = vld [vmem:[#allocation2 + $0x289] sm:$0xff]
  %v5021 = vld [vmem:[#allocation2 + $0x291] sm:$0xff]
  %v5022 = vld [vmem:[#allocation2 + $0x299] sm:$0xff]
  %s5023 = scalar_lea.vmem %s3, 640
  %v5024 = vld [vmem:[%s5023] sm:$0xff]
  %v5025 = vld [vmem:[%s5023 + $0x8] sm:$0xff]
  %v5026 = vld [vmem:[%s5023 + $0x10] sm:$0xff]
  %v5027 = vld [vmem:[%s5023 + $0x18] sm:$0xff]
  %v5028 = vld [vmem:[%s5023 + $0x20] sm:$0xff]
  %v5029 = vld [vmem:[%s5023 + $0x28] sm:$0xff]
  %v5030 = vld [vmem:[%s5023 + $0x30] sm:$0xff]
  %v5031 = vld [vmem:[%s5023 + $0x38] sm:$0xff]
  %v5032 = vld [vmem:[%s5023 + $0x40] sm:$0xff]
  %v5033 = vld [vmem:[%s5023 + $0x48] sm:$0xff]
  %v5034 = vld [vmem:[%s5023 + $0x50] sm:$0xff]
  %v5035 = vld [vmem:[%s5023 + $0x58] sm:$0xff]
  %v5036 = vld [vmem:[%s5023 + $0x60] sm:$0xff]
  %v5037 = vld [vmem:[%s5023 + $0x68] sm:$0xff]
  %v5038 = vld [vmem:[%s5023 + $0x70] sm:$0xff]
  %v5039 = vld [vmem:[%s5023 + $0x78] sm:$0xff]
  %5040 = vmatprep.subr.mxu0 0.0
  %5041 = vmatpush1.msra.mxu0 %v5024
  %5042 = vmatprep.subr.mxu0 0.0
  %5043 = vmatpush1.msra.mxu0 %v5025
  %5044 = vmatprep.subr.mxu0 0.0
  %5045 = vmatpush1.msra.mxu0 %v5026
  %5046 = vmatprep.subr.mxu0 0.0
  %5047 = vmatpush1.msra.mxu0 %v5027
  %5048 = vmatprep.subr.mxu0 0.0
  %5049 = vmatpush1.msra.mxu0 %v5028
  %5050 = vmatprep.subr.mxu0 0.0
  %5051 = vmatpush1.msra.mxu0 %v5029
  %5052 = vmatprep.subr.mxu0 0.0
  %5053 = vmatpush1.msra.mxu0 %v5030
  %5054 = vmatprep.subr.mxu0 0.0
  %5055 = vmatpush1.msra.mxu0 %v5031
  %5056 = vmatprep.subr.mxu0 0.0
  %5057 = vmatpush1.msra.mxu0 %v5032
  %5058 = vmatprep.subr.mxu0 0.0
  %5059 = vmatpush1.msra.mxu0 %v5033
  %5060 = vmatprep.subr.mxu0 0.0
  %5061 = vmatpush1.msra.mxu0 %v5034
  %5062 = vmatprep.subr.mxu0 0.0
  %5063 = vmatpush1.msra.mxu0 %v5035
  %5064 = vmatprep.subr.mxu0 0.0
  %5065 = vmatpush1.msra.mxu0 %v5036
  %5066 = vmatprep.subr.mxu0 0.0
  %5067 = vmatpush1.msra.mxu0 %v5037
  %5068 = vmatprep.subr.mxu0 0.0
  %5069 = vmatpush1.msra.mxu0 %v5038
  %5070 = vmatprep.subr.mxu0 0.0
  %5071 = vmatpush1.msra.mxu0 %v5039
  %5072 = vmatprep.subr.mxu0 0.0
  %5073 = vmatpush1.msra.mxu0 0.0
  %5074 = vmatprep.subr.mxu0 0.0
  %5075 = vmatpush1.msra.mxu0 0.0
  %5076 = vmatprep.subr.mxu0 0.0
  %5077 = vmatpush1.msra.mxu0 0.0
  %5078 = vmatprep.subr.mxu0 0.0
  %5079 = vmatpush1.msra.mxu0 0.0
  %5080 = vmatprep.subr.mxu0 0.0
  %5081 = vmatpush1.msra.mxu0 0.0
  %5082 = vmatprep.subr.mxu0 0.0
  %5083 = vmatpush1.msra.mxu0 0.0
  %5084 = vmatprep.subr.mxu0 0.0
  %5085 = vmatpush1.msra.mxu0 0.0
  %5086 = vmatprep.subr.mxu0 0.0
  %5087 = vmatpush1.msra.mxu0 0.0
  %5088 = vmatprep.subr.mxu0 0.0
  %5089 = vmatpush1.msra.mxu0 0.0
  %5090 = vmatprep.subr.mxu0 0.0
  %5091 = vmatpush1.msra.mxu0 0.0
  %5092 = vmatprep.subr.mxu0 0.0
  %5093 = vmatpush1.msra.mxu0 0.0
  %5094 = vmatprep.subr.mxu0 0.0
  %5095 = vmatpush1.msra.mxu0 0.0
  %5096 = vmatprep.subr.mxu0 0.0
  %5097 = vmatpush1.msra.mxu0 0.0
  %5098 = vmatprep.subr.mxu0 0.0
  %5099 = vmatpush1.msra.mxu0 0.0
  %5100 = vmatprep.subr.mxu0 0.0
  %5101 = vmatpush1.msra.mxu0 0.0
  %5102 = vmatprep.subr.mxu0 0.0
  %5103 = vmatpush1.msra.mxu0 0.0
  %5104 = vmatprep.mubr.f32.mxu0 0.0
  %5105 = vmatmul.mubr.f32.gmra.mrb[0].mxu0 %v4942
  %v5106 = vpop.f32.mrb[0].mxu0
  %v5107 = vadd.f32 0.0, %v5106
  %v5108 = vpop.f32.mrb[0].mxu0
  %5109 = vmatprep.mubr.f32.mxu0 0.0
  %5110 = vmatmul.mubr.f32.gmra.mrb[0].mxu0 %v4943
  %v5111 = vpop.f32.mrb[0].mxu0
  %v5112 = vadd.f32 0.0, %v5111
  %v5113 = vpop.f32.mrb[0].mxu0
  %5114 = vmatprep.mubr.f32.mxu0 0.0
  %5115 = vmatmul.mubr.f32.gmra.mrb[0].mxu0 %v4944
  %v5116 = vpop.f32.mrb[0].mxu0
  %v5117 = vadd.f32 0.0, %v5116
  %v5118 = vpop.f32.mrb[0].mxu0
  %5119 = vmatprep.mubr.f32.mxu0 0.0
  %5120 = vmatmul.mubr.f32.gmra.mrb[0].mxu0 %v4945
  %v5121 = vpop.f32.mrb[0].mxu0
  %v5122 = vadd.f32 0.0, %v5121
  %v5123 = vpop.f32.mrb[0].mxu0
  %5124 = vmatprep.mubr.f32.mxu0 0.0
  %5125 = vmatmul.mubr.f32.gmra.mrb[0].mxu0 %v4946
  %v5126 = vpop.f32.mrb[0].mxu0
  %v5127 = vadd.f32 0.0, %v5126
  %v5128 = vpop.f32.mrb[0].mxu0
  %5129 = vmatprep.mubr.f32.mxu0 0.0
  %5130 = vmatmul.mubr.f32.gmra.mrb[0].mxu0 %v4947
  %v5131 = vpop.f32.mrb[0].mxu0
  %v5132 = vadd.f32 0.0, %v5131
  %v5133 = vpop.f32.mrb[0].mxu0
  %5134 = vmatprep.mubr.f32.mxu0 0.0
  %5135 = vmatmul.mubr.f32.gmra.mrb[0].mxu0 %v4948
  %v5136 = vpop.f32.mrb[0].mxu0
  %v5137 = vadd.f32 0.0, %v5136
  %v5138 = vpop.f32.mrb[0].mxu0
  %5139 = vmatprep.mubr.f32.mxu0 0.0
  %5140 = vmatmul.mubr.f32.gmra.mrb[0].mxu0 %v4949
  %v5141 = vpop.f32.mrb[0].mxu0
  %v5142 = vadd.f32 0.0, %v5141
  %v5143 = vpop.f32.mrb[0].mxu0
  %5144 = vmatprep.mubr.f32.mxu0 0.0
  %5145 = vmatmul.mubr.f32.gmra.mrb[0].mxu0 %v4950
  %v5146 = vpop.f32.mrb[0].mxu0
  %v5147 = vadd.f32 0.0, %v5146
  %v5148 = vpop.f32.mrb[0].mxu0
  %5149 = vmatprep.mubr.f32.mxu0 0.0
  %5150 = vmatmul.mubr.f32.gmra.mrb[0].mxu0 %v4951
  %v5151 = vpop.f32.mrb[0].mxu0
  %v5152 = vadd.f32 0.0, %v5151
  %v5153 = vpop.f32.mrb[0].mxu0
  %5154 = vmatprep.mubr.f32.mxu0 0.0
  %5155 = vmatmul.mubr.f32.gmra.mrb[0].mxu0 %v4952
  %v5156 = vpop.f32.mrb[0].mxu0
  %v5157 = vadd.f32 0.0, %v5156
  %v5158 = vpop.f32.mrb[0].mxu0
  %5159 = vmatprep.mubr.f32.mxu0 0.0
  %5160 = vmatmul.mubr.f32.gmra.mrb[0].mxu0 %v4953
  %v5161 = vpop.f32.mrb[0].mxu0
  %v5162 = vadd.f32 0.0, %v5161
  %v5163 = vpop.f32.mrb[0].mxu0
  %5164 = vmatprep.mubr.f32.mxu0 0.0
  %5165 = vmatmul.mubr.f32.gmra.mrb[0].mxu0 %v4954
  %v5166 = vpop.f32.mrb[0].mxu0
  %v5167 = vadd.f32 0.0, %v5166
  %v5168 = vpop.f32.mrb[0].mxu0
  %5169 = vmatprep.mubr.f32.mxu0 0.0
  %5170 = vmatmul.mubr.f32.gmra.mrb[0].mxu0 %v4955
  %v5171 = vpop.f32.mrb[0].mxu0
  %v5172 = vadd.f32 0.0, %v5171
  %v5173 = vpop.f32.mrb[0].mxu0
  %5174 = vmatprep.mubr.f32.mxu0 0.0
  %5175 = vmatmul.mubr.f32.gmra.mrb[0].mxu0 %v4956
  %v5176 = vpop.f32.mrb[0].mxu0
  %v5177 = vadd.f32 0.0, %v5176
  %v5178 = vpop.f32.mrb[0].mxu0
  %5179 = vmatprep.mubr.f32.mxu0 0.0
  %5180 = vmatmul.mubr.f32.gmra.mrb[0].mxu0 %v4957
  %v5181 = vpop.f32.mrb[0].mxu0
  %v5182 = vadd.f32 0.0, %v5181
  %v5183 = vpop.f32.mrb[0].mxu0
  %5184 = vmatprep.mubr.f32.mxu0 0.0
  %5185 = vmatmul.mubr.f32.gmra.mrb[0].mxu0 %v4958
  %v5186 = vpop.f32.mrb[0].mxu0
  %v5187 = vadd.f32 0.0, %v5186
  %v5188 = vpop.f32.mrb[0].mxu0
  %5189 = vmatprep.mubr.f32.mxu0 0.0
  %5190 = vmatmul.mubr.f32.gmra.mrb[0].mxu0 %v4959
  %v5191 = vpop.f32.mrb[0].mxu0
  %v5192 = vadd.f32 0.0, %v5191
  %v5193 = vpop.f32.mrb[0].mxu0
  %5194 = vmatprep.mubr.f32.mxu0 0.0
  %5195 = vmatmul.mubr.f32.gmra.mrb[0].mxu0 %v4960
  %v5196 = vpop.f32.mrb[0].mxu0
  %v5197 = vadd.f32 0.0, %v5196
  %v5198 = vpop.f32.mrb[0].mxu0
  %5199 = vmatprep.mubr.f32.mxu0 0.0
  %5200 = vmatmul.mubr.f32.gmra.mrb[0].mxu0 %v4961
  %v5201 = vpop.f32.mrb[0].mxu0
  %v5202 = vadd.f32 0.0, %v5201
  %v5203 = vpop.f32.mrb[0].mxu0
  %5204 = vmatprep.mubr.f32.mxu0 0.0
  %5205 = vmatmul.mubr.f32.gmra.mrb[0].mxu0 %v4962
  %v5206 = vpop.f32.mrb[0].mxu0
  %v5207 = vadd.f32 0.0, %v5206
  %v5208 = vpop.f32.mrb[0].mxu0
  %5209 = vmatprep.mubr.f32.mxu0 0.0
  %5210 = vmatmul.mubr.f32.gmra.mrb[0].mxu0 %v4963
  %v5211 = vpop.f32.mrb[0].mxu0
  %v5212 = vadd.f32 0.0, %v5211
  %v5213 = vpop.f32.mrb[0].mxu0
  %5214 = vmatprep.mubr.f32.mxu0 0.0
  %5215 = vmatmul.mubr.f32.gmra.mrb[0].mxu0 %v4964
  %v5216 = vpop.f32.mrb[0].mxu0
  %v5217 = vadd.f32 0.0, %v5216
  %v5218 = vpop.f32.mrb[0].mxu0
  %5219 = vmatprep.mubr.f32.mxu0 0.0
  %5220 = vmatmul.mubr.f32.gmra.mrb[0].mxu0 %v4965
  %v5221 = vpop.f32.mrb[0].mxu0
  %v5222 = vadd.f32 0.0, %v5221
  %v5223 = vpop.f32.mrb[0].mxu0
  %5224 = vmatprep.mubr.f32.mxu0 0.0
  %5225 = vmatmul.mubr.f32.gmra.mrb[0].mxu0 %v4966
  %v5226 = vpop.f32.mrb[0].mxu0
  %v5227 = vadd.f32 0.0, %v5226
  %v5228 = vpop.f32.mrb[0].mxu0
  %5229 = vmatprep.mubr.f32.mxu0 0.0
  %5230 = vmatmul.mubr.f32.gmra.mrb[0].mxu0 %v4967
  %v5231 = vpop.f32.mrb[0].mxu0
  %v5232 = vadd.f32 0.0, %v5231
  %v5233 = vpop.f32.mrb[0].mxu0
  %5234 = vmatprep.mubr.f32.mxu0 0.0
  %5235 = vmatmul.mubr.f32.gmra.mrb[0].mxu0 %v4968
  %v5236 = vpop.f32.mrb[0].mxu0
  %v5237 = vadd.f32 0.0, %v5236
  %v5238 = vpop.f32.mrb[0].mxu0
  %5239 = vmatprep.mubr.f32.mxu0 0.0
  %5240 = vmatmul.mubr.f32.gmra.mrb[0].mxu0 %v4969
  %v5241 = vpop.f32.mrb[0].mxu0
  %v5242 = vadd.f32 0.0, %v5241
  %v5243 = vpop.f32.mrb[0].mxu0
  %5244 = vmatprep.mubr.f32.mxu0 0.0
  %5245 = vmatmul.mubr.f32.gmra.mrb[0].mxu0 %v4970
  %v5246 = vpop.f32.mrb[0].mxu0
  %v5247 = vadd.f32 0.0, %v5246
  %v5248 = vpop.f32.mrb[0].mxu0
  %5249 = vmatprep.mubr.f32.mxu0 0.0
  %5250 = vmatmul.mubr.f32.gmra.mrb[0].mxu0 %v4971
  %v5251 = vpop.f32.mrb[0].mxu0
  %v5252 = vadd.f32 0.0, %v5251
  %v5253 = vpop.f32.mrb[0].mxu0
  %5254 = vmatprep.mubr.f32.mxu0 0.0
  %5255 = vmatmul.mubr.f32.gmra.mrb[0].mxu0 %v4972
  %v5256 = vpop.f32.mrb[0].mxu0
  %v5257 = vadd.f32 0.0, %v5256
  %v5258 = vpop.f32.mrb[0].mxu0
  %5259 = vmatprep.mubr.f32.mxu0 0.0
  %5260 = vmatmul.mubr.f32.gmra.mrb[0].mxu0 %v4973
  %v5261 = vpop.f32.mrb[0].mxu0
  %v5262 = vadd.f32 0.0, %v5261
  %v5263 = vpop.f32.mrb[0].mxu0
  %5264 = vmatprep.mubr.f32.mxu0 0.0
  %5265 = vmatmul.mubr.f32.gmra.mrb[0].mxu0 %v4974
  %v5266 = vpop.f32.mrb[0].mxu0
  %v5267 = vadd.f32 0.0, %v5266
  %v5268 = vpop.f32.mrb[0].mxu0
  %5269 = vmatprep.mubr.f32.mxu0 0.0
  %5270 = vmatmul.mubr.f32.gmra.mrb[0].mxu0 %v4975
  %v5271 = vpop.f32.mrb[0].mxu0
  %v5272 = vadd.f32 0.0, %v5271
  %v5273 = vpop.f32.mrb[0].mxu0
  %5274 = vmatprep.mubr.f32.mxu0 0.0
  %5275 = vmatmul.mubr.f32.gmra.mrb[0].mxu0 %v4976
  %v5276 = vpop.f32.mrb[0].mxu0
  %v5277 = vadd.f32 0.0, %v5276
  %v5278 = vpop.f32.mrb[0].mxu0
  %5279 = vmatprep.mubr.f32.mxu0 0.0
  %5280 = vmatmul.mubr.f32.gmra.mrb[0].mxu0 %v4977
  %v5281 = vpop.f32.mrb[0].mxu0
  %v5282 = vadd.f32 0.0, %v5281
  %v5283 = vpop.f32.mrb[0].mxu0
  %5284 = vmatprep.mubr.f32.mxu0 0.0
  %5285 = vmatmul.mubr.f32.gmra.mrb[0].mxu0 %v4978
  %v5286 = vpop.f32.mrb[0].mxu0
  %v5287 = vadd.f32 0.0, %v5286
  %v5288 = vpop.f32.mrb[0].mxu0
  %5289 = vmatprep.mubr.f32.mxu0 0.0
  %5290 = vmatmul.mubr.f32.gmra.mrb[0].mxu0 %v4979
  %v5291 = vpop.f32.mrb[0].mxu0
  %v5292 = vadd.f32 0.0, %v5291
  %v5293 = vpop.f32.mrb[0].mxu0
  %5294 = vmatprep.mubr.f32.mxu0 0.0
  %5295 = vmatmul.mubr.f32.gmra.mrb[0].mxu0 %v4980
  %v5296 = vpop.f32.mrb[0].mxu0
  %v5297 = vadd.f32 0.0, %v5296
  %v5298 = vpop.f32.mrb[0].mxu0
  %5299 = vmatprep.mubr.f32.mxu0 0.0
  %5300 = vmatmul.mubr.f32.gmra.mrb[0].mxu0 %v4981
  %v5301 = vpop.f32.mrb[0].mxu0
  %v5302 = vadd.f32 0.0, %v5301
  %v5303 = vpop.f32.mrb[0].mxu0
  %5304 = vmatprep.mubr.f32.mxu0 0.0
  %5305 = vmatmul.mubr.f32.gmra.mrb[0].mxu0 %v4982
  %v5306 = vpop.f32.mrb[0].mxu0
  %v5307 = vadd.f32 0.0, %v5306
  %v5308 = vpop.f32.mrb[0].mxu0
  %5309 = vmatprep.mubr.f32.mxu0 0.0
  %5310 = vmatmul.mubr.f32.gmra.mrb[0].mxu0 %v4983
  %v5311 = vpop.f32.mrb[0].mxu0
  %v5312 = vadd.f32 0.0, %v5311
  %v5313 = vpop.f32.mrb[0].mxu0
  %5314 = vmatprep.mubr.f32.mxu0 0.0
  %5315 = vmatmul.mubr.f32.gmra.mrb[0].mxu0 %v4984
  %v5316 = vpop.f32.mrb[0].mxu0
  %v5317 = vadd.f32 0.0, %v5316
  %v5318 = vpop.f32.mrb[0].mxu0
  %5319 = vmatprep.mubr.f32.mxu0 0.0
  %5320 = vmatmul.mubr.f32.gmra.mrb[0].mxu0 %v4985
  %v5321 = vpop.f32.mrb[0].mxu0
  %v5322 = vadd.f32 0.0, %v5321
  %v5323 = vpop.f32.mrb[0].mxu0
  %5324 = vmatprep.mubr.f32.mxu0 0.0
  %5325 = vmatmul.mubr.f32.gmra.mrb[0].mxu0 %v4986
  %v5326 = vpop.f32.mrb[0].mxu0
  %v5327 = vadd.f32 0.0, %v5326
  %v5328 = vpop.f32.mrb[0].mxu0
  %5329 = vmatprep.mubr.f32.mxu0 0.0
  %5330 = vmatmul.mubr.f32.gmra.mrb[0].mxu0 %v4987
  %v5331 = vpop.f32.mrb[0].mxu0
  %v5332 = vadd.f32 0.0, %v5331
  %v5333 = vpop.f32.mrb[0].mxu0
  %5334 = vmatprep.mubr.f32.mxu0 0.0
  %5335 = vmatmul.mubr.f32.gmra.mrb[0].mxu0 %v4988
  %v5336 = vpop.f32.mrb[0].mxu0
  %v5337 = vadd.f32 0.0, %v5336
  %v5338 = vpop.f32.mrb[0].mxu0
  %5339 = vmatprep.mubr.f32.mxu0 0.0
  %5340 = vmatmul.mubr.f32.gmra.mrb[0].mxu0 %v4989
  %v5341 = vpop.f32.mrb[0].mxu0
  %v5342 = vadd.f32 0.0, %v5341
  %v5343 = vpop.f32.mrb[0].mxu0
  %5344 = vmatprep.mubr.f32.mxu0 0.0
  %5345 = vmatmul.mubr.f32.gmra.mrb[0].mxu0 %v4990
  %v5346 = vpop.f32.mrb[0].mxu0
  %v5347 = vadd.f32 0.0, %v5346
  %v5348 = vpop.f32.mrb[0].mxu0
  %5349 = vmatprep.mubr.f32.mxu0 0.0
  %5350 = vmatmul.mubr.f32.gmra.mrb[0].mxu0 %v4991
  %v5351 = vpop.f32.mrb[0].mxu0
  %v5352 = vadd.f32 0.0, %v5351
  %v5353 = vpop.f32.mrb[0].mxu0
  %5354 = vmatprep.mubr.f32.mxu0 0.0
  %5355 = vmatmul.mubr.f32.gmra.mrb[0].mxu0 %v4992
  %v5356 = vpop.f32.mrb[0].mxu0
  %v5357 = vadd.f32 0.0, %v5356
  %v5358 = vpop.f32.mrb[0].mxu0
  %5359 = vmatprep.mubr.f32.mxu0 0.0
  %5360 = vmatmul.mubr.f32.gmra.mrb[0].mxu0 %v4993
  %v5361 = vpop.f32.mrb[0].mxu0
  %v5362 = vadd.f32 0.0, %v5361
  %v5363 = vpop.f32.mrb[0].mxu0
  %5364 = vmatprep.mubr.f32.mxu0 0.0
  %5365 = vmatmul.mubr.f32.gmra.mrb[0].mxu0 %v4994
  %v5366 = vpop.f32.mrb[0].mxu0
  %v5367 = vadd.f32 0.0, %v5366
  %v5368 = vpop.f32.mrb[0].mxu0
  %5369 = vmatprep.mubr.f32.mxu0 0.0
  %5370 = vmatmul.mubr.f32.gmra.mrb[0].mxu0 %v4995
  %v5371 = vpop.f32.mrb[0].mxu0
  %v5372 = vadd.f32 0.0, %v5371
  %v5373 = vpop.f32.mrb[0].mxu0
  %5374 = vmatprep.mubr.f32.mxu0 0.0
  %5375 = vmatmul.mubr.f32.gmra.mrb[0].mxu0 %v4996
  %v5376 = vpop.f32.mrb[0].mxu0
  %v5377 = vadd.f32 0.0, %v5376
  %v5378 = vpop.f32.mrb[0].mxu0
  %5379 = vmatprep.mubr.f32.mxu0 0.0
  %5380 = vmatmul.mubr.f32.gmra.mrb[0].mxu0 %v4997
  %v5381 = vpop.f32.mrb[0].mxu0
  %v5382 = vadd.f32 0.0, %v5381
  %v5383 = vpop.f32.mrb[0].mxu0
  %5384 = vmatprep.mubr.f32.mxu0 0.0
  %5385 = vmatmul.mubr.f32.gmra.mrb[0].mxu0 %v4998
  %v5386 = vpop.f32.mrb[0].mxu0
  %v5387 = vadd.f32 0.0, %v5386
  %v5388 = vpop.f32.mrb[0].mxu0
  %5389 = vmatprep.mubr.f32.mxu0 0.0
  %5390 = vmatmul.mubr.f32.gmra.mrb[0].mxu0 %v4999
  %v5391 = vpop.f32.mrb[0].mxu0
  %v5392 = vadd.f32 0.0, %v5391
  %v5393 = vpop.f32.mrb[0].mxu0
  %5394 = vmatprep.mubr.f32.mxu0 0.0
  %5395 = vmatmul.mubr.f32.gmra.mrb[0].mxu0 %v5000
  %v5396 = vpop.f32.mrb[0].mxu0
  %v5397 = vadd.f32 0.0, %v5396
  %v5398 = vpop.f32.mrb[0].mxu0
  %5399 = vmatprep.mubr.f32.mxu0 0.0
  %5400 = vmatmul.mubr.f32.gmra.mrb[0].mxu0 %v5001
  %v5401 = vpop.f32.mrb[0].mxu0
  %v5402 = vadd.f32 0.0, %v5401
  %v5403 = vpop.f32.mrb[0].mxu0
  %5404 = vmatprep.mubr.f32.mxu0 0.0
  %5405 = vmatmul.mubr.f32.gmra.mrb[0].mxu0 %v5002
  %v5406 = vpop.f32.mrb[0].mxu0
  %v5407 = vadd.f32 0.0, %v5406
  %v5408 = vpop.f32.mrb[0].mxu0
  %5409 = vmatprep.mubr.f32.mxu0 0.0
  %5410 = vmatmul.mubr.f32.gmra.mrb[0].mxu0 %v5003
  %v5411 = vpop.f32.mrb[0].mxu0
  %v5412 = vadd.f32 0.0, %v5411
  %v5413 = vpop.f32.mrb[0].mxu0
  %5414 = vmatprep.mubr.f32.mxu0 0.0
  %5415 = vmatmul.mubr.f32.gmra.mrb[0].mxu0 %v5004
  %v5416 = vpop.f32.mrb[0].mxu0
  %v5417 = vadd.f32 0.0, %v5416
  %v5418 = vpop.f32.mrb[0].mxu0
  %5419 = vmatprep.mubr.f32.mxu0 0.0
  %5420 = vmatmul.mubr.f32.gmra.mrb[0].mxu0 %v5005
  %v5421 = vpop.f32.mrb[0].mxu0
  %v5422 = vadd.f32 0.0, %v5421
  %v5423 = vpop.f32.mrb[0].mxu0
  %5424 = vmatprep.mubr.f32.mxu0 0.0
  %5425 = vmatmul.mubr.f32.gmra.mrb[0].mxu0 %v5006
  %v5426 = vpop.f32.mrb[0].mxu0
  %v5427 = vadd.f32 0.0, %v5426
  %v5428 = vpop.f32.mrb[0].mxu0
  %5429 = vmatprep.mubr.f32.mxu0 0.0
  %5430 = vmatmul.mubr.f32.gmra.mrb[0].mxu0 %v5007
  %v5431 = vpop.f32.mrb[0].mxu0
  %v5432 = vadd.f32 0.0, %v5431
  %v5433 = vpop.f32.mrb[0].mxu0
  %5434 = vmatprep.mubr.f32.mxu0 0.0
  %5435 = vmatmul.mubr.f32.gmra.mrb[0].mxu0 %v5008
  %v5436 = vpop.f32.mrb[0].mxu0
  %v5437 = vadd.f32 0.0, %v5436
  %v5438 = vpop.f32.mrb[0].mxu0
  %5439 = vmatprep.mubr.f32.mxu0 0.0
  %5440 = vmatmul.mubr.f32.gmra.mrb[0].mxu0 %v5009
  %v5441 = vpop.f32.mrb[0].mxu0
  %v5442 = vadd.f32 0.0, %v5441
  %v5443 = vpop.f32.mrb[0].mxu0
  %5444 = vmatprep.mubr.f32.mxu0 0.0
  %5445 = vmatmul.mubr.f32.gmra.mrb[0].mxu0 %v5010
  %v5446 = vpop.f32.mrb[0].mxu0
  %v5447 = vadd.f32 0.0, %v5446
  %v5448 = vpop.f32.mrb[0].mxu0
  %5449 = vmatprep.mubr.f32.mxu0 0.0
  %5450 = vmatmul.mubr.f32.gmra.mrb[0].mxu0 %v5011
  %v5451 = vpop.f32.mrb[0].mxu0
  %v5452 = vadd.f32 0.0, %v5451
  %v5453 = vpop.f32.mrb[0].mxu0
  %5454 = vmatprep.mubr.f32.mxu0 0.0
  %5455 = vmatmul.mubr.f32.gmra.mrb[0].mxu0 %v5012
  %v5456 = vpop.f32.mrb[0].mxu0
  %v5457 = vadd.f32 0.0, %v5456
  %v5458 = vpop.f32.mrb[0].mxu0
  %5459 = vmatprep.mubr.f32.mxu0 0.0
  %5460 = vmatmul.mubr.f32.gmra.mrb[0].mxu0 %v5013
  %v5461 = vpop.f32.mrb[0].mxu0
  %v5462 = vadd.f32 0.0, %v5461
  %v5463 = vpop.f32.mrb[0].mxu0
  %5464 = vmatprep.mubr.f32.mxu0 0.0
  %5465 = vmatmul.mubr.f32.gmra.mrb[0].mxu0 %v5014
  %v5466 = vpop.f32.mrb[0].mxu0
  %v5467 = vadd.f32 0.0, %v5466
  %v5468 = vpop.f32.mrb[0].mxu0
  %5469 = vmatprep.mubr.f32.mxu0 0.0
  %5470 = vmatmul.mubr.f32.gmra.mrb[0].mxu0 %v5015
  %v5471 = vpop.f32.mrb[0].mxu0
  %v5472 = vadd.f32 0.0, %v5471
  %v5473 = vpop.f32.mrb[0].mxu0
  %5474 = vmatprep.mubr.f32.mxu0 0.0
  %5475 = vmatmul.mubr.f32.gmra.mrb[0].mxu0 %v5016
  %v5476 = vpop.f32.mrb[0].mxu0
  %v5477 = vadd.f32 0.0, %v5476
  %v5478 = vpop.f32.mrb[0].mxu0
  %5479 = vmatprep.mubr.f32.mxu0 0.0
  %5480 = vmatmul.mubr.f32.gmra.mrb[0].mxu0 %v5017
  %v5481 = vpop.f32.mrb[0].mxu0
  %v5482 = vadd.f32 0.0, %v5481
  %v5483 = vpop.f32.mrb[0].mxu0
  %5484 = vmatprep.mubr.f32.mxu0 0.0
  %5485 = vmatmul.mubr.f32.gmra.mrb[0].mxu0 %v5018
  %v5486 = vpop.f32.mrb[0].mxu0
  %v5487 = vadd.f32 0.0, %v5486
  %v5488 = vpop.f32.mrb[0].mxu0
  %5489 = vmatprep.mubr.f32.mxu0 0.0
  %5490 = vmatmul.mubr.f32.gmra.mrb[0].mxu0 %v5019
  %v5491 = vpop.f32.mrb[0].mxu0
  %v5492 = vadd.f32 0.0, %v5491
  %v5493 = vpop.f32.mrb[0].mxu0
  %5494 = vmatprep.mubr.f32.mxu0 0.0
  %5495 = vmatmul.mubr.f32.gmra.mrb[0].mxu0 %v5020
  %v5496 = vpop.f32.mrb[0].mxu0
  %v5497 = vadd.f32 0.0, %v5496
  %v5498 = vpop.f32.mrb[0].mxu0
  %5499 = vmatprep.mubr.f32.mxu0 0.0
  %5500 = vmatmul.mubr.f32.gmra.mrb[0].mxu0 %v5021
  %v5501 = vpop.f32.mrb[0].mxu0
  %v5502 = vadd.f32 0.0, %v5501
  %v5503 = vpop.f32.mrb[0].mxu0
  %5504 = vmatprep.mubr.f32.mxu0 0.0
  %5505 = vmatmul.mubr.f32.gmra.mrb[0].mxu0 %v5022
  %v5506 = vpop.f32.mrb[0].mxu0
  %v5507 = vadd.f32 0.0, %v5506
  %v5508 = vpop.f32.mrb[0].mxu0
  %5509 = vdwg.mxu0
  %v5510 = vadd.f32 %v4861, %v5107
  %v5511 = vadd.f32 %v4862, %v5112
  %v5512 = vadd.f32 %v4863, %v5117
  %v5513 = vadd.f32 %v4864, %v5122
  %v5514 = vadd.f32 %v4865, %v5127
  %v5515 = vadd.f32 %v4866, %v5132
  %v5516 = vadd.f32 %v4867, %v5137
  %v5517 = vadd.f32 %v4868, %v5142
  %v5518 = vadd.f32 %v4869, %v5147
  %v5519 = vadd.f32 %v4870, %v5152
  %v5520 = vadd.f32 %v4871, %v5157
  %v5521 = vadd.f32 %v4872, %v5162
  %v5522 = vadd.f32 %v4873, %v5167
  %v5523 = vadd.f32 %v4874, %v5172
  %v5524 = vadd.f32 %v4875, %v5177
  %v5525 = vadd.f32 %v4876, %v5182
  %v5526 = vadd.f32 %v4877, %v5187
  %v5527 = vadd.f32 %v4878, %v5192
  %v5528 = vadd.f32 %v4879, %v5197
  %v5529 = vadd.f32 %v4880, %v5202
  %v5530 = vadd.f32 %v4881, %v5207
  %v5531 = vadd.f32 %v4882, %v5212
  %v5532 = vadd.f32 %v4883, %v5217
  %v5533 = vadd.f32 %v4884, %v5222
  %v5534 = vadd.f32 %v4885, %v5227
  %v5535 = vadd.f32 %v4886, %v5232
  %v5536 = vadd.f32 %v4887, %v5237
  %v5537 = vadd.f32 %v4888, %v5242
  %v5538 = vadd.f32 %v4889, %v5247
  %v5539 = vadd.f32 %v4890, %v5252
  %v5540 = vadd.f32 %v4891, %v5257
  %v5541 = vadd.f32 %v4892, %v5262
  %v5542 = vadd.f32 %v4893, %v5267
  %v5543 = vadd.f32 %v4894, %v5272
  %v5544 = vadd.f32 %v4895, %v5277
  %v5545 = vadd.f32 %v4896, %v5282
  %v5546 = vadd.f32 %v4897, %v5287
  %v5547 = vadd.f32 %v4898, %v5292
  %v5548 = vadd.f32 %v4899, %v5297
  %v5549 = vadd.f32 %v4900, %v5302
  %v5550 = vadd.f32 %v4901, %v5307
  %v5551 = vadd.f32 %v4902, %v5312
  %v5552 = vadd.f32 %v4903, %v5317
  %v5553 = vadd.f32 %v4904, %v5322
  %v5554 = vadd.f32 %v4905, %v5327
  %v5555 = vadd.f32 %v4906, %v5332
  %v5556 = vadd.f32 %v4907, %v5337
  %v5557 = vadd.f32 %v4908, %v5342
  %v5558 = vadd.f32 %v4909, %v5347
  %v5559 = vadd.f32 %v4910, %v5352
  %v5560 = vadd.f32 %v4911, %v5357
  %v5561 = vadd.f32 %v4912, %v5362
  %v5562 = vadd.f32 %v4913, %v5367
  %v5563 = vadd.f32 %v4914, %v5372
  %v5564 = vadd.f32 %v4915, %v5377
  %v5565 = vadd.f32 %v4916, %v5382
  %v5566 = vadd.f32 %v4917, %v5387
  %v5567 = vadd.f32 %v4918, %v5392
  %v5568 = vadd.f32 %v4919, %v5397
  %v5569 = vadd.f32 %v4920, %v5402
  %v5570 = vadd.f32 %v4921, %v5407
  %v5571 = vadd.f32 %v4922, %v5412
  %v5572 = vadd.f32 %v4923, %v5417
  %v5573 = vadd.f32 %v4924, %v5422
  %v5574 = vadd.f32 %v4925, %v5427
  %v5575 = vadd.f32 %v4926, %v5432
  %v5576 = vadd.f32 %v4927, %v5437
  %v5577 = vadd.f32 %v4928, %v5442
  %v5578 = vadd.f32 %v4929, %v5447
  %v5579 = vadd.f32 %v4930, %v5452
  %v5580 = vadd.f32 %v4931, %v5457
  %v5581 = vadd.f32 %v4932, %v5462
  %v5582 = vadd.f32 %v4933, %v5467
  %v5583 = vadd.f32 %v4934, %v5472
  %v5584 = vadd.f32 %v4935, %v5477
  %v5585 = vadd.f32 %v4936, %v5482
  %v5586 = vadd.f32 %v4937, %v5487
  %v5587 = vadd.f32 %v4938, %v5492
  %v5588 = vadd.f32 %v4939, %v5497
  %v5589 = vadd.f32 %v4940, %v5502
  %v5590 = vadd.f32 %v4941, %v5507
  %v5591 = vld [vmem:[#allocation2 + $0x29] sm:$0xff]
  %v5592 = vld [vmem:[#allocation2 + $0x31] sm:$0xff]
  %v5593 = vld [vmem:[#allocation2 + $0x39] sm:$0xff]
  %v5594 = vld [vmem:[#allocation2 + $0x41] sm:$0xff]
  %v5595 = vld [vmem:[#allocation2 + $0x49] sm:$0xff]
  %v5596 = vld [vmem:[#allocation2 + $0x51] sm:$0xff]
  %v5597 = vld [vmem:[#allocation2 + $0x59] sm:$0xff]
  %v5598 = vld [vmem:[#allocation2 + $0x61] sm:$0xff]
  %v5599 = vld [vmem:[#allocation2 + $0x69] sm:$0xff]
  %v5600 = vld [vmem:[#allocation2 + $0x71] sm:$0xff]
  %v5601 = vld [vmem:[#allocation2 + $0x79] sm:$0xff]
  %v5602 = vld [vmem:[#allocation2 + $0x81] sm:$0xff]
  %v5603 = vld [vmem:[#allocation2 + $0x89] sm:$0xff]
  %v5604 = vld [vmem:[#allocation2 + $0x91] sm:$0xff]
  %v5605 = vld [vmem:[#allocation2 + $0x99] sm:$0xff]
  %v5606 = vld [vmem:[#allocation2 + $0xa1] sm:$0xff]
  %v5607 = vld [vmem:[#allocation2 + $0xa9] sm:$0xff]
  %v5608 = vld [vmem:[#allocation2 + $0xb1] sm:$0xff]
  %v5609 = vld [vmem:[#allocation2 + $0xb9] sm:$0xff]
  %v5610 = vld [vmem:[#allocation2 + $0xc1] sm:$0xff]
  %v5611 = vld [vmem:[#allocation2 + $0xc9] sm:$0xff]
  %v5612 = vld [vmem:[#allocation2 + $0xd1] sm:$0xff]
  %v5613 = vld [vmem:[#allocation2 + $0xd9] sm:$0xff]
  %v5614 = vld [vmem:[#allocation2 + $0xe1] sm:$0xff]
  %v5615 = vld [vmem:[#allocation2 + $0xe9] sm:$0xff]
  %v5616 = vld [vmem:[#allocation2 + $0xf1] sm:$0xff]
  %v5617 = vld [vmem:[#allocation2 + $0xf9] sm:$0xff]
  %v5618 = vld [vmem:[#allocation2 + $0x101] sm:$0xff]
  %v5619 = vld [vmem:[#allocation2 + $0x109] sm:$0xff]
  %v5620 = vld [vmem:[#allocation2 + $0x111] sm:$0xff]
  %v5621 = vld [vmem:[#allocation2 + $0x119] sm:$0xff]
  %v5622 = vld [vmem:[#allocation2 + $0x121] sm:$0xff]
  %v5623 = vld [vmem:[#allocation2 + $0x129] sm:$0xff]
  %v5624 = vld [vmem:[#allocation2 + $0x131] sm:$0xff]
  %v5625 = vld [vmem:[#allocation2 + $0x139] sm:$0xff]
  %v5626 = vld [vmem:[#allocation2 + $0x141] sm:$0xff]
  %v5627 = vld [vmem:[#allocation2 + $0x149] sm:$0xff]
  %v5628 = vld [vmem:[#allocation2 + $0x151] sm:$0xff]
  %v5629 = vld [vmem:[#allocation2 + $0x159] sm:$0xff]
  %v5630 = vld [vmem:[#allocation2 + $0x161] sm:$0xff]
  %v5631 = vld [vmem:[#allocation2 + $0x169] sm:$0xff]
  %v5632 = vld [vmem:[#allocation2 + $0x171] sm:$0xff]
  %v5633 = vld [vmem:[#allocation2 + $0x179] sm:$0xff]
  %v5634 = vld [vmem:[#allocation2 + $0x181] sm:$0xff]
  %v5635 = vld [vmem:[#allocation2 + $0x189] sm:$0xff]
  %v5636 = vld [vmem:[#allocation2 + $0x191] sm:$0xff]
  %v5637 = vld [vmem:[#allocation2 + $0x199] sm:$0xff]
  %v5638 = vld [vmem:[#allocation2 + $0x1a1] sm:$0xff]
  %v5639 = vld [vmem:[#allocation2 + $0x1a9] sm:$0xff]
  %v5640 = vld [vmem:[#allocation2 + $0x1b1] sm:$0xff]
  %v5641 = vld [vmem:[#allocation2 + $0x1b9] sm:$0xff]
  %v5642 = vld [vmem:[#allocation2 + $0x1c1] sm:$0xff]
  %v5643 = vld [vmem:[#allocation2 + $0x1c9] sm:$0xff]
  %v5644 = vld [vmem:[#allocation2 + $0x1d1] sm:$0xff]
  %v5645 = vld [vmem:[#allocation2 + $0x1d9] sm:$0xff]
  %v5646 = vld [vmem:[#allocation2 + $0x1e1] sm:$0xff]
  %v5647 = vld [vmem:[#allocation2 + $0x1e9] sm:$0xff]
  %v5648 = vld [vmem:[#allocation2 + $0x1f1] sm:$0xff]
  %v5649 = vld [vmem:[#allocation2 + $0x1f9] sm:$0xff]
  %v5650 = vld [vmem:[#allocation2 + $0x201] sm:$0xff]
  %v5651 = vld [vmem:[#allocation2 + $0x209] sm:$0xff]
  %v5652 = vld [vmem:[#allocation2 + $0x211] sm:$0xff]
  %v5653 = vld [vmem:[#allocation2 + $0x219] sm:$0xff]
  %v5654 = vld [vmem:[#allocation2 + $0x221] sm:$0xff]
  %v5655 = vld [vmem:[#allocation2 + $0x229] sm:$0xff]
  %v5656 = vld [vmem:[#allocation2 + $0x231] sm:$0xff]
  %v5657 = vld [vmem:[#allocation2 + $0x239] sm:$0xff]
  %v5658 = vld [vmem:[#allocation2 + $0x241] sm:$0xff]
  %v5659 = vld [vmem:[#allocation2 + $0x249] sm:$0xff]
  %v5660 = vld [vmem:[#allocation2 + $0x251] sm:$0xff]
  %v5661 = vld [vmem:[#allocation2 + $0x259] sm:$0xff]
  %v5662 = vld [vmem:[#allocation2 + $0x261] sm:$0xff]
  %v5663 = vld [vmem:[#allocation2 + $0x269] sm:$0xff]
  %v5664 = vld [vmem:[#allocation2 + $0x271] sm:$0xff]
  %v5665 = vld [vmem:[#allocation2 + $0x279] sm:$0xff]
  %v5666 = vld [vmem:[#allocation2 + $0x281] sm:$0xff]
  %v5667 = vld [vmem:[#allocation2 + $0x289] sm:$0xff]
  %v5668 = vld [vmem:[#allocation2 + $0x291] sm:$0xff]
  %v5669 = vld [vmem:[#allocation2 + $0x299] sm:$0xff]
  %v5670 = vld [vmem:[#allocation2 + $0x2a1] sm:$0xff]
  %v5671 = vld [vmem:[#allocation2 + $0x2a9] sm:$0xff]
  %s5672 = scalar_lea.vmem %s3, 768
  %v5673 = vld [vmem:[%s5672] sm:$0xff]
  %v5674 = vld [vmem:[%s5672 + $0x8] sm:$0xff]
  %v5675 = vld [vmem:[%s5672 + $0x10] sm:$0xff]
  %v5676 = vld [vmem:[%s5672 + $0x18] sm:$0xff]
  %v5677 = vld [vmem:[%s5672 + $0x20] sm:$0xff]
  %v5678 = vld [vmem:[%s5672 + $0x28] sm:$0xff]
  %v5679 = vld [vmem:[%s5672 + $0x30] sm:$0xff]
  %v5680 = vld [vmem:[%s5672 + $0x38] sm:$0xff]
  %v5681 = vld [vmem:[%s5672 + $0x40] sm:$0xff]
  %v5682 = vld [vmem:[%s5672 + $0x48] sm:$0xff]
  %v5683 = vld [vmem:[%s5672 + $0x50] sm:$0xff]
  %v5684 = vld [vmem:[%s5672 + $0x58] sm:$0xff]
  %v5685 = vld [vmem:[%s5672 + $0x60] sm:$0xff]
  %v5686 = vld [vmem:[%s5672 + $0x68] sm:$0xff]
  %v5687 = vld [vmem:[%s5672 + $0x70] sm:$0xff]
  %v5688 = vld [vmem:[%s5672 + $0x78] sm:$0xff]
  %5689 = vmatprep.subr.mxu0 0.0
  %5690 = vmatpush1.msra.mxu0 %v5673
  %5691 = vmatprep.subr.mxu0 0.0
  %5692 = vmatpush1.msra.mxu0 %v5674
  %5693 = vmatprep.subr.mxu0 0.0
  %5694 = vmatpush1.msra.mxu0 %v5675
  %5695 = vmatprep.subr.mxu0 0.0
  %5696 = vmatpush1.msra.mxu0 %v5676
  %5697 = vmatprep.subr.mxu0 0.0
  %5698 = vmatpush1.msra.mxu0 %v5677
  %5699 = vmatprep.subr.mxu0 0.0
  %5700 = vmatpush1.msra.mxu0 %v5678
  %5701 = vmatprep.subr.mxu0 0.0
  %5702 = vmatpush1.msra.mxu0 %v5679
  %5703 = vmatprep.subr.mxu0 0.0
  %5704 = vmatpush1.msra.mxu0 %v5680
  %5705 = vmatprep.subr.mxu0 0.0
  %5706 = vmatpush1.msra.mxu0 %v5681
  %5707 = vmatprep.subr.mxu0 0.0
  %5708 = vmatpush1.msra.mxu0 %v5682
  %5709 = vmatprep.subr.mxu0 0.0
  %5710 = vmatpush1.msra.mxu0 %v5683
  %5711 = vmatprep.subr.mxu0 0.0
  %5712 = vmatpush1.msra.mxu0 %v5684
  %5713 = vmatprep.subr.mxu0 0.0
  %5714 = vmatpush1.msra.mxu0 %v5685
  %5715 = vmatprep.subr.mxu0 0.0
  %5716 = vmatpush1.msra.mxu0 %v5686
  %5717 = vmatprep.subr.mxu0 0.0
  %5718 = vmatpush1.msra.mxu0 %v5687
  %5719 = vmatprep.subr.mxu0 0.0
  %5720 = vmatpush1.msra.mxu0 %v5688
  %5721 = vmatprep.subr.mxu0 0.0
  %5722 = vmatpush1.msra.mxu0 0.0
  %5723 = vmatprep.subr.mxu0 0.0
  %5724 = vmatpush1.msra.mxu0 0.0
  %5725 = vmatprep.subr.mxu0 0.0
  %5726 = vmatpush1.msra.mxu0 0.0
  %5727 = vmatprep.subr.mxu0 0.0
  %5728 = vmatpush1.msra.mxu0 0.0
  %5729 = vmatprep.subr.mxu0 0.0
  %5730 = vmatpush1.msra.mxu0 0.0
  %5731 = vmatprep.subr.mxu0 0.0
  %5732 = vmatpush1.msra.mxu0 0.0
  %5733 = vmatprep.subr.mxu0 0.0
  %5734 = vmatpush1.msra.mxu0 0.0
  %5735 = vmatprep.subr.mxu0 0.0
  %5736 = vmatpush1.msra.mxu0 0.0
  %5737 = vmatprep.subr.mxu0 0.0
  %5738 = vmatpush1.msra.mxu0 0.0
  %5739 = vmatprep.subr.mxu0 0.0
  %5740 = vmatpush1.msra.mxu0 0.0
  %5741 = vmatprep.subr.mxu0 0.0
  %5742 = vmatpush1.msra.mxu0 0.0
  %5743 = vmatprep.subr.mxu0 0.0
  %5744 = vmatpush1.msra.mxu0 0.0
  %5745 = vmatprep.subr.mxu0 0.0
  %5746 = vmatpush1.msra.mxu0 0.0
  %5747 = vmatprep.subr.mxu0 0.0
  %5748 = vmatpush1.msra.mxu0 0.0
  %5749 = vmatprep.subr.mxu0 0.0
  %5750 = vmatpush1.msra.mxu0 0.0
  %5751 = vmatprep.subr.mxu0 0.0
  %5752 = vmatpush1.msra.mxu0 0.0
  %5753 = vmatprep.mubr.f32.mxu0 0.0
  %5754 = vmatmul.mubr.f32.gmra.mrb[0].mxu0 %v5591
  %v5755 = vpop.f32.mrb[0].mxu0
  %v5756 = vadd.f32 0.0, %v5755
  %v5757 = vpop.f32.mrb[0].mxu0
  %5758 = vmatprep.mubr.f32.mxu0 0.0
  %5759 = vmatmul.mubr.f32.gmra.mrb[0].mxu0 %v5592
  %v5760 = vpop.f32.mrb[0].mxu0
  %v5761 = vadd.f32 0.0, %v5760
  %v5762 = vpop.f32.mrb[0].mxu0
  %5763 = vmatprep.mubr.f32.mxu0 0.0
  %5764 = vmatmul.mubr.f32.gmra.mrb[0].mxu0 %v5593
  %v5765 = vpop.f32.mrb[0].mxu0
  %v5766 = vadd.f32 0.0, %v5765
  %v5767 = vpop.f32.mrb[0].mxu0
  %5768 = vmatprep.mubr.f32.mxu0 0.0
  %5769 = vmatmul.mubr.f32.gmra.mrb[0].mxu0 %v5594
  %v5770 = vpop.f32.mrb[0].mxu0
  %v5771 = vadd.f32 0.0, %v5770
  %v5772 = vpop.f32.mrb[0].mxu0
  %5773 = vmatprep.mubr.f32.mxu0 0.0
  %5774 = vmatmul.mubr.f32.gmra.mrb[0].mxu0 %v5595
  %v5775 = vpop.f32.mrb[0].mxu0
  %v5776 = vadd.f32 0.0, %v5775
  %v5777 = vpop.f32.mrb[0].mxu0
  %5778 = vmatprep.mubr.f32.mxu0 0.0
  %5779 = vmatmul.mubr.f32.gmra.mrb[0].mxu0 %v5596
  %v5780 = vpop.f32.mrb[0].mxu0
  %v5781 = vadd.f32 0.0, %v5780
  %v5782 = vpop.f32.mrb[0].mxu0
  %5783 = vmatprep.mubr.f32.mxu0 0.0
  %5784 = vmatmul.mubr.f32.gmra.mrb[0].mxu0 %v5597
  %v5785 = vpop.f32.mrb[0].mxu0
  %v5786 = vadd.f32 0.0, %v5785
  %v5787 = vpop.f32.mrb[0].mxu0
  %5788 = vmatprep.mubr.f32.mxu0 0.0
  %5789 = vmatmul.mubr.f32.gmra.mrb[0].mxu0 %v5598
  %v5790 = vpop.f32.mrb[0].mxu0
  %v5791 = vadd.f32 0.0, %v5790
  %v5792 = vpop.f32.mrb[0].mxu0
  %5793 = vmatprep.mubr.f32.mxu0 0.0
  %5794 = vmatmul.mubr.f32.gmra.mrb[0].mxu0 %v5599
  %v5795 = vpop.f32.mrb[0].mxu0
  %v5796 = vadd.f32 0.0, %v5795
  %v5797 = vpop.f32.mrb[0].mxu0
  %5798 = vmatprep.mubr.f32.mxu0 0.0
  %5799 = vmatmul.mubr.f32.gmra.mrb[0].mxu0 %v5600
  %v5800 = vpop.f32.mrb[0].mxu0
  %v5801 = vadd.f32 0.0, %v5800
  %v5802 = vpop.f32.mrb[0].mxu0
  %5803 = vmatprep.mubr.f32.mxu0 0.0
  %5804 = vmatmul.mubr.f32.gmra.mrb[0].mxu0 %v5601
  %v5805 = vpop.f32.mrb[0].mxu0
  %v5806 = vadd.f32 0.0, %v5805
  %v5807 = vpop.f32.mrb[0].mxu0
  %5808 = vmatprep.mubr.f32.mxu0 0.0
  %5809 = vmatmul.mubr.f32.gmra.mrb[0].mxu0 %v5602
  %v5810 = vpop.f32.mrb[0].mxu0
  %v5811 = vadd.f32 0.0, %v5810
  %v5812 = vpop.f32.mrb[0].mxu0
  %5813 = vmatprep.mubr.f32.mxu0 0.0
  %5814 = vmatmul.mubr.f32.gmra.mrb[0].mxu0 %v5603
  %v5815 = vpop.f32.mrb[0].mxu0
  %v5816 = vadd.f32 0.0, %v5815
  %v5817 = vpop.f32.mrb[0].mxu0
  %5818 = vmatprep.mubr.f32.mxu0 0.0
  %5819 = vmatmul.mubr.f32.gmra.mrb[0].mxu0 %v5604
  %v5820 = vpop.f32.mrb[0].mxu0
  %v5821 = vadd.f32 0.0, %v5820
  %v5822 = vpop.f32.mrb[0].mxu0
  %5823 = vmatprep.mubr.f32.mxu0 0.0
  %5824 = vmatmul.mubr.f32.gmra.mrb[0].mxu0 %v5605
  %v5825 = vpop.f32.mrb[0].mxu0
  %v5826 = vadd.f32 0.0, %v5825
  %v5827 = vpop.f32.mrb[0].mxu0
  %5828 = vmatprep.mubr.f32.mxu0 0.0
  %5829 = vmatmul.mubr.f32.gmra.mrb[0].mxu0 %v5606
  %v5830 = vpop.f32.mrb[0].mxu0
  %v5831 = vadd.f32 0.0, %v5830
  %v5832 = vpop.f32.mrb[0].mxu0
  %5833 = vmatprep.mubr.f32.mxu0 0.0
  %5834 = vmatmul.mubr.f32.gmra.mrb[0].mxu0 %v5607
  %v5835 = vpop.f32.mrb[0].mxu0
  %v5836 = vadd.f32 0.0, %v5835
  %v5837 = vpop.f32.mrb[0].mxu0
  %5838 = vmatprep.mubr.f32.mxu0 0.0
  %5839 = vmatmul.mubr.f32.gmra.mrb[0].mxu0 %v5608
  %v5840 = vpop.f32.mrb[0].mxu0
  %v5841 = vadd.f32 0.0, %v5840
  %v5842 = vpop.f32.mrb[0].mxu0
  %5843 = vmatprep.mubr.f32.mxu0 0.0
  %5844 = vmatmul.mubr.f32.gmra.mrb[0].mxu0 %v5609
  %v5845 = vpop.f32.mrb[0].mxu0
  %v5846 = vadd.f32 0.0, %v5845
  %v5847 = vpop.f32.mrb[0].mxu0
  %5848 = vmatprep.mubr.f32.mxu0 0.0
  %5849 = vmatmul.mubr.f32.gmra.mrb[0].mxu0 %v5610
  %v5850 = vpop.f32.mrb[0].mxu0
  %v5851 = vadd.f32 0.0, %v5850
  %v5852 = vpop.f32.mrb[0].mxu0
  %5853 = vmatprep.mubr.f32.mxu0 0.0
  %5854 = vmatmul.mubr.f32.gmra.mrb[0].mxu0 %v5611
  %v5855 = vpop.f32.mrb[0].mxu0
  %v5856 = vadd.f32 0.0, %v5855
  %v5857 = vpop.f32.mrb[0].mxu0
  %5858 = vmatprep.mubr.f32.mxu0 0.0
  %5859 = vmatmul.mubr.f32.gmra.mrb[0].mxu0 %v5612
  %v5860 = vpop.f32.mrb[0].mxu0
  %v5861 = vadd.f32 0.0, %v5860
  %v5862 = vpop.f32.mrb[0].mxu0
  %5863 = vmatprep.mubr.f32.mxu0 0.0
  %5864 = vmatmul.mubr.f32.gmra.mrb[0].mxu0 %v5613
  %v5865 = vpop.f32.mrb[0].mxu0
  %v5866 = vadd.f32 0.0, %v5865
  %v5867 = vpop.f32.mrb[0].mxu0
  %5868 = vmatprep.mubr.f32.mxu0 0.0
  %5869 = vmatmul.mubr.f32.gmra.mrb[0].mxu0 %v5614
  %v5870 = vpop.f32.mrb[0].mxu0
  %v5871 = vadd.f32 0.0, %v5870
  %v5872 = vpop.f32.mrb[0].mxu0
  %5873 = vmatprep.mubr.f32.mxu0 0.0
  %5874 = vmatmul.mubr.f32.gmra.mrb[0].mxu0 %v5615
  %v5875 = vpop.f32.mrb[0].mxu0
  %v5876 = vadd.f32 0.0, %v5875
  %v5877 = vpop.f32.mrb[0].mxu0
  %5878 = vmatprep.mubr.f32.mxu0 0.0
  %5879 = vmatmul.mubr.f32.gmra.mrb[0].mxu0 %v5616
  %v5880 = vpop.f32.mrb[0].mxu0
  %v5881 = vadd.f32 0.0, %v5880
  %v5882 = vpop.f32.mrb[0].mxu0
  %5883 = vmatprep.mubr.f32.mxu0 0.0
  %5884 = vmatmul.mubr.f32.gmra.mrb[0].mxu0 %v5617
  %v5885 = vpop.f32.mrb[0].mxu0
  %v5886 = vadd.f32 0.0, %v5885
  %v5887 = vpop.f32.mrb[0].mxu0
  %5888 = vmatprep.mubr.f32.mxu0 0.0
  %5889 = vmatmul.mubr.f32.gmra.mrb[0].mxu0 %v5618
  %v5890 = vpop.f32.mrb[0].mxu0
  %v5891 = vadd.f32 0.0, %v5890
  %v5892 = vpop.f32.mrb[0].mxu0
  %5893 = vmatprep.mubr.f32.mxu0 0.0
  %5894 = vmatmul.mubr.f32.gmra.mrb[0].mxu0 %v5619
  %v5895 = vpop.f32.mrb[0].mxu0
  %v5896 = vadd.f32 0.0, %v5895
  %v5897 = vpop.f32.mrb[0].mxu0
  %5898 = vmatprep.mubr.f32.mxu0 0.0
  %5899 = vmatmul.mubr.f32.gmra.mrb[0].mxu0 %v5620
  %v5900 = vpop.f32.mrb[0].mxu0
  %v5901 = vadd.f32 0.0, %v5900
  %v5902 = vpop.f32.mrb[0].mxu0
  %5903 = vmatprep.mubr.f32.mxu0 0.0
  %5904 = vmatmul.mubr.f32.gmra.mrb[0].mxu0 %v5621
  %v5905 = vpop.f32.mrb[0].mxu0
  %v5906 = vadd.f32 0.0, %v5905
  %v5907 = vpop.f32.mrb[0].mxu0
  %5908 = vmatprep.mubr.f32.mxu0 0.0
  %5909 = vmatmul.mubr.f32.gmra.mrb[0].mxu0 %v5622
  %v5910 = vpop.f32.mrb[0].mxu0
  %v5911 = vadd.f32 0.0, %v5910
  %v5912 = vpop.f32.mrb[0].mxu0
  %5913 = vmatprep.mubr.f32.mxu0 0.0
  %5914 = vmatmul.mubr.f32.gmra.mrb[0].mxu0 %v5623
  %v5915 = vpop.f32.mrb[0].mxu0
  %v5916 = vadd.f32 0.0, %v5915
  %v5917 = vpop.f32.mrb[0].mxu0
  %5918 = vmatprep.mubr.f32.mxu0 0.0
  %5919 = vmatmul.mubr.f32.gmra.mrb[0].mxu0 %v5624
  %v5920 = vpop.f32.mrb[0].mxu0
  %v5921 = vadd.f32 0.0, %v5920
  %v5922 = vpop.f32.mrb[0].mxu0
  %5923 = vmatprep.mubr.f32.mxu0 0.0
  %5924 = vmatmul.mubr.f32.gmra.mrb[0].mxu0 %v5625
  %v5925 = vpop.f32.mrb[0].mxu0
  %v5926 = vadd.f32 0.0, %v5925
  %v5927 = vpop.f32.mrb[0].mxu0
  %5928 = vmatprep.mubr.f32.mxu0 0.0
  %5929 = vmatmul.mubr.f32.gmra.mrb[0].mxu0 %v5626
  %v5930 = vpop.f32.mrb[0].mxu0
  %v5931 = vadd.f32 0.0, %v5930
  %v5932 = vpop.f32.mrb[0].mxu0
  %5933 = vmatprep.mubr.f32.mxu0 0.0
  %5934 = vmatmul.mubr.f32.gmra.mrb[0].mxu0 %v5627
  %v5935 = vpop.f32.mrb[0].mxu0
  %v5936 = vadd.f32 0.0, %v5935
  %v5937 = vpop.f32.mrb[0].mxu0
  %5938 = vmatprep.mubr.f32.mxu0 0.0
  %5939 = vmatmul.mubr.f32.gmra.mrb[0].mxu0 %v5628
  %v5940 = vpop.f32.mrb[0].mxu0
  %v5941 = vadd.f32 0.0, %v5940
  %v5942 = vpop.f32.mrb[0].mxu0
  %5943 = vmatprep.mubr.f32.mxu0 0.0
  %5944 = vmatmul.mubr.f32.gmra.mrb[0].mxu0 %v5629
  %v5945 = vpop.f32.mrb[0].mxu0
  %v5946 = vadd.f32 0.0, %v5945
  %v5947 = vpop.f32.mrb[0].mxu0
  %5948 = vmatprep.mubr.f32.mxu0 0.0
  %5949 = vmatmul.mubr.f32.gmra.mrb[0].mxu0 %v5630
  %v5950 = vpop.f32.mrb[0].mxu0
  %v5951 = vadd.f32 0.0, %v5950
  %v5952 = vpop.f32.mrb[0].mxu0
  %5953 = vmatprep.mubr.f32.mxu0 0.0
  %5954 = vmatmul.mubr.f32.gmra.mrb[0].mxu0 %v5631
  %v5955 = vpop.f32.mrb[0].mxu0
  %v5956 = vadd.f32 0.0, %v5955
  %v5957 = vpop.f32.mrb[0].mxu0
  %5958 = vmatprep.mubr.f32.mxu0 0.0
  %5959 = vmatmul.mubr.f32.gmra.mrb[0].mxu0 %v5632
  %v5960 = vpop.f32.mrb[0].mxu0
  %v5961 = vadd.f32 0.0, %v5960
  %v5962 = vpop.f32.mrb[0].mxu0
  %5963 = vmatprep.mubr.f32.mxu0 0.0
  %5964 = vmatmul.mubr.f32.gmra.mrb[0].mxu0 %v5633
  %v5965 = vpop.f32.mrb[0].mxu0
  %v5966 = vadd.f32 0.0, %v5965
  %v5967 = vpop.f32.mrb[0].mxu0
  %5968 = vmatprep.mubr.f32.mxu0 0.0
  %5969 = vmatmul.mubr.f32.gmra.mrb[0].mxu0 %v5634
  %v5970 = vpop.f32.mrb[0].mxu0
  %v5971 = vadd.f32 0.0, %v5970
  %v5972 = vpop.f32.mrb[0].mxu0
  %5973 = vmatprep.mubr.f32.mxu0 0.0
  %5974 = vmatmul.mubr.f32.gmra.mrb[0].mxu0 %v5635
  %v5975 = vpop.f32.mrb[0].mxu0
  %v5976 = vadd.f32 0.0, %v5975
  %v5977 = vpop.f32.mrb[0].mxu0
  %5978 = vmatprep.mubr.f32.mxu0 0.0
  %5979 = vmatmul.mubr.f32.gmra.mrb[0].mxu0 %v5636
  %v5980 = vpop.f32.mrb[0].mxu0
  %v5981 = vadd.f32 0.0, %v5980
  %v5982 = vpop.f32.mrb[0].mxu0
  %5983 = vmatprep.mubr.f32.mxu0 0.0
  %5984 = vmatmul.mubr.f32.gmra.mrb[0].mxu0 %v5637
  %v5985 = vpop.f32.mrb[0].mxu0
  %v5986 = vadd.f32 0.0, %v5985
  %v5987 = vpop.f32.mrb[0].mxu0
  %5988 = vmatprep.mubr.f32.mxu0 0.0
  %5989 = vmatmul.mubr.f32.gmra.mrb[0].mxu0 %v5638
  %v5990 = vpop.f32.mrb[0].mxu0
  %v5991 = vadd.f32 0.0, %v5990
  %v5992 = vpop.f32.mrb[0].mxu0
  %5993 = vmatprep.mubr.f32.mxu0 0.0
  %5994 = vmatmul.mubr.f32.gmra.mrb[0].mxu0 %v5639
  %v5995 = vpop.f32.mrb[0].mxu0
  %v5996 = vadd.f32 0.0, %v5995
  %v5997 = vpop.f32.mrb[0].mxu0
  %5998 = vmatprep.mubr.f32.mxu0 0.0
  %5999 = vmatmul.mubr.f32.gmra.mrb[0].mxu0 %v5640
  %v6000 = vpop.f32.mrb[0].mxu0
  %v6001 = vadd.f32 0.0, %v6000
  %v6002 = vpop.f32.mrb[0].mxu0
  %6003 = vmatprep.mubr.f32.mxu0 0.0
  %6004 = vmatmul.mubr.f32.gmra.mrb[0].mxu0 %v5641
  %v6005 = vpop.f32.mrb[0].mxu0
  %v6006 = vadd.f32 0.0, %v6005
  %v6007 = vpop.f32.mrb[0].mxu0
  %6008 = vmatprep.mubr.f32.mxu0 0.0
  %6009 = vmatmul.mubr.f32.gmra.mrb[0].mxu0 %v5642
  %v6010 = vpop.f32.mrb[0].mxu0
  %v6011 = vadd.f32 0.0, %v6010
  %v6012 = vpop.f32.mrb[0].mxu0
  %6013 = vmatprep.mubr.f32.mxu0 0.0
  %6014 = vmatmul.mubr.f32.gmra.mrb[0].mxu0 %v5643
  %v6015 = vpop.f32.mrb[0].mxu0
  %v6016 = vadd.f32 0.0, %v6015
  %v6017 = vpop.f32.mrb[0].mxu0
  %6018 = vmatprep.mubr.f32.mxu0 0.0
  %6019 = vmatmul.mubr.f32.gmra.mrb[0].mxu0 %v5644
  %v6020 = vpop.f32.mrb[0].mxu0
  %v6021 = vadd.f32 0.0, %v6020
  %v6022 = vpop.f32.mrb[0].mxu0
  %6023 = vmatprep.mubr.f32.mxu0 0.0
  %6024 = vmatmul.mubr.f32.gmra.mrb[0].mxu0 %v5645
  %v6025 = vpop.f32.mrb[0].mxu0
  %v6026 = vadd.f32 0.0, %v6025
  %v6027 = vpop.f32.mrb[0].mxu0
  %6028 = vmatprep.mubr.f32.mxu0 0.0
  %6029 = vmatmul.mubr.f32.gmra.mrb[0].mxu0 %v5646
  %v6030 = vpop.f32.mrb[0].mxu0
  %v6031 = vadd.f32 0.0, %v6030
  %v6032 = vpop.f32.mrb[0].mxu0
  %6033 = vmatprep.mubr.f32.mxu0 0.0
  %6034 = vmatmul.mubr.f32.gmra.mrb[0].mxu0 %v5647
  %v6035 = vpop.f32.mrb[0].mxu0
  %v6036 = vadd.f32 0.0, %v6035
  %v6037 = vpop.f32.mrb[0].mxu0
  %6038 = vmatprep.mubr.f32.mxu0 0.0
  %6039 = vmatmul.mubr.f32.gmra.mrb[0].mxu0 %v5648
  %v6040 = vpop.f32.mrb[0].mxu0
  %v6041 = vadd.f32 0.0, %v6040
  %v6042 = vpop.f32.mrb[0].mxu0
  %6043 = vmatprep.mubr.f32.mxu0 0.0
  %6044 = vmatmul.mubr.f32.gmra.mrb[0].mxu0 %v5649
  %v6045 = vpop.f32.mrb[0].mxu0
  %v6046 = vadd.f32 0.0, %v6045
  %v6047 = vpop.f32.mrb[0].mxu0
  %6048 = vmatprep.mubr.f32.mxu0 0.0
  %6049 = vmatmul.mubr.f32.gmra.mrb[0].mxu0 %v5650
  %v6050 = vpop.f32.mrb[0].mxu0
  %v6051 = vadd.f32 0.0, %v6050
  %v6052 = vpop.f32.mrb[0].mxu0
  %6053 = vmatprep.mubr.f32.mxu0 0.0
  %6054 = vmatmul.mubr.f32.gmra.mrb[0].mxu0 %v5651
  %v6055 = vpop.f32.mrb[0].mxu0
  %v6056 = vadd.f32 0.0, %v6055
  %v6057 = vpop.f32.mrb[0].mxu0
  %6058 = vmatprep.mubr.f32.mxu0 0.0
  %6059 = vmatmul.mubr.f32.gmra.mrb[0].mxu0 %v5652
  %v6060 = vpop.f32.mrb[0].mxu0
  %v6061 = vadd.f32 0.0, %v6060
  %v6062 = vpop.f32.mrb[0].mxu0
  %6063 = vmatprep.mubr.f32.mxu0 0.0
  %6064 = vmatmul.mubr.f32.gmra.mrb[0].mxu0 %v5653
  %v6065 = vpop.f32.mrb[0].mxu0
  %v6066 = vadd.f32 0.0, %v6065
  %v6067 = vpop.f32.mrb[0].mxu0
  %6068 = vmatprep.mubr.f32.mxu0 0.0
  %6069 = vmatmul.mubr.f32.gmra.mrb[0].mxu0 %v5654
  %v6070 = vpop.f32.mrb[0].mxu0
  %v6071 = vadd.f32 0.0, %v6070
  %v6072 = vpop.f32.mrb[0].mxu0
  %6073 = vmatprep.mubr.f32.mxu0 0.0
  %6074 = vmatmul.mubr.f32.gmra.mrb[0].mxu0 %v5655
  %v6075 = vpop.f32.mrb[0].mxu0
  %v6076 = vadd.f32 0.0, %v6075
  %v6077 = vpop.f32.mrb[0].mxu0
  %6078 = vmatprep.mubr.f32.mxu0 0.0
  %6079 = vmatmul.mubr.f32.gmra.mrb[0].mxu0 %v5656
  %v6080 = vpop.f32.mrb[0].mxu0
  %v6081 = vadd.f32 0.0, %v6080
  %v6082 = vpop.f32.mrb[0].mxu0
  %6083 = vmatprep.mubr.f32.mxu0 0.0
  %6084 = vmatmul.mubr.f32.gmra.mrb[0].mxu0 %v5657
  %v6085 = vpop.f32.mrb[0].mxu0
  %v6086 = vadd.f32 0.0, %v6085
  %v6087 = vpop.f32.mrb[0].mxu0
  %6088 = vmatprep.mubr.f32.mxu0 0.0
  %6089 = vmatmul.mubr.f32.gmra.mrb[0].mxu0 %v5658
  %v6090 = vpop.f32.mrb[0].mxu0
  %v6091 = vadd.f32 0.0, %v6090
  %v6092 = vpop.f32.mrb[0].mxu0
  %6093 = vmatprep.mubr.f32.mxu0 0.0
  %6094 = vmatmul.mubr.f32.gmra.mrb[0].mxu0 %v5659
  %v6095 = vpop.f32.mrb[0].mxu0
  %v6096 = vadd.f32 0.0, %v6095
  %v6097 = vpop.f32.mrb[0].mxu0
  %6098 = vmatprep.mubr.f32.mxu0 0.0
  %6099 = vmatmul.mubr.f32.gmra.mrb[0].mxu0 %v5660
  %v6100 = vpop.f32.mrb[0].mxu0
  %v6101 = vadd.f32 0.0, %v6100
  %v6102 = vpop.f32.mrb[0].mxu0
  %6103 = vmatprep.mubr.f32.mxu0 0.0
  %6104 = vmatmul.mubr.f32.gmra.mrb[0].mxu0 %v5661
  %v6105 = vpop.f32.mrb[0].mxu0
  %v6106 = vadd.f32 0.0, %v6105
  %v6107 = vpop.f32.mrb[0].mxu0
  %6108 = vmatprep.mubr.f32.mxu0 0.0
  %6109 = vmatmul.mubr.f32.gmra.mrb[0].mxu0 %v5662
  %v6110 = vpop.f32.mrb[0].mxu0
  %v6111 = vadd.f32 0.0, %v6110
  %v6112 = vpop.f32.mrb[0].mxu0
  %6113 = vmatprep.mubr.f32.mxu0 0.0
  %6114 = vmatmul.mubr.f32.gmra.mrb[0].mxu0 %v5663
  %v6115 = vpop.f32.mrb[0].mxu0
  %v6116 = vadd.f32 0.0, %v6115
  %v6117 = vpop.f32.mrb[0].mxu0
  %6118 = vmatprep.mubr.f32.mxu0 0.0
  %6119 = vmatmul.mubr.f32.gmra.mrb[0].mxu0 %v5664
  %v6120 = vpop.f32.mrb[0].mxu0
  %v6121 = vadd.f32 0.0, %v6120
  %v6122 = vpop.f32.mrb[0].mxu0
  %6123 = vmatprep.mubr.f32.mxu0 0.0
  %6124 = vmatmul.mubr.f32.gmra.mrb[0].mxu0 %v5665
  %v6125 = vpop.f32.mrb[0].mxu0
  %v6126 = vadd.f32 0.0, %v6125
  %v6127 = vpop.f32.mrb[0].mxu0
  %6128 = vmatprep.mubr.f32.mxu0 0.0
  %6129 = vmatmul.mubr.f32.gmra.mrb[0].mxu0 %v5666
  %v6130 = vpop.f32.mrb[0].mxu0
  %v6131 = vadd.f32 0.0, %v6130
  %v6132 = vpop.f32.mrb[0].mxu0
  %6133 = vmatprep.mubr.f32.mxu0 0.0
  %6134 = vmatmul.mubr.f32.gmra.mrb[0].mxu0 %v5667
  %v6135 = vpop.f32.mrb[0].mxu0
  %v6136 = vadd.f32 0.0, %v6135
  %v6137 = vpop.f32.mrb[0].mxu0
  %6138 = vmatprep.mubr.f32.mxu0 0.0
  %6139 = vmatmul.mubr.f32.gmra.mrb[0].mxu0 %v5668
  %v6140 = vpop.f32.mrb[0].mxu0
  %v6141 = vadd.f32 0.0, %v6140
  %v6142 = vpop.f32.mrb[0].mxu0
  %6143 = vmatprep.mubr.f32.mxu0 0.0
  %6144 = vmatmul.mubr.f32.gmra.mrb[0].mxu0 %v5669
  %v6145 = vpop.f32.mrb[0].mxu0
  %v6146 = vadd.f32 0.0, %v6145
  %v6147 = vpop.f32.mrb[0].mxu0
  %6148 = vmatprep.mubr.f32.mxu0 0.0
  %6149 = vmatmul.mubr.f32.gmra.mrb[0].mxu0 %v5670
  %v6150 = vpop.f32.mrb[0].mxu0
  %v6151 = vadd.f32 0.0, %v6150
  %v6152 = vpop.f32.mrb[0].mxu0
  %6153 = vmatprep.mubr.f32.mxu0 0.0
  %6154 = vmatmul.mubr.f32.gmra.mrb[0].mxu0 %v5671
  %v6155 = vpop.f32.mrb[0].mxu0
  %v6156 = vadd.f32 0.0, %v6155
  %v6157 = vpop.f32.mrb[0].mxu0
  %6158 = vdwg.mxu0
  %v6159 = vadd.f32 %v5510, %v5756
  %v6160 = vadd.f32 %v5511, %v5761
  %v6161 = vadd.f32 %v5512, %v5766
  %v6162 = vadd.f32 %v5513, %v5771
  %v6163 = vadd.f32 %v5514, %v5776
  %v6164 = vadd.f32 %v5515, %v5781
  %v6165 = vadd.f32 %v5516, %v5786
  %v6166 = vadd.f32 %v5517, %v5791
  %v6167 = vadd.f32 %v5518, %v5796
  %v6168 = vadd.f32 %v5519, %v5801
  %v6169 = vadd.f32 %v5520, %v5806
  %v6170 = vadd.f32 %v5521, %v5811
  %v6171 = vadd.f32 %v5522, %v5816
  %v6172 = vadd.f32 %v5523, %v5821
  %v6173 = vadd.f32 %v5524, %v5826
  %v6174 = vadd.f32 %v5525, %v5831
  %v6175 = vadd.f32 %v5526, %v5836
  %v6176 = vadd.f32 %v5527, %v5841
  %v6177 = vadd.f32 %v5528, %v5846
  %v6178 = vadd.f32 %v5529, %v5851
  %v6179 = vadd.f32 %v5530, %v5856
  %v6180 = vadd.f32 %v5531, %v5861
  %v6181 = vadd.f32 %v5532, %v5866
  %v6182 = vadd.f32 %v5533, %v5871
  %v6183 = vadd.f32 %v5534, %v5876
  %v6184 = vadd.f32 %v5535, %v5881
  %v6185 = vadd.f32 %v5536, %v5886
  %v6186 = vadd.f32 %v5537, %v5891
  %v6187 = vadd.f32 %v5538, %v5896
  %v6188 = vadd.f32 %v5539, %v5901
  %v6189 = vadd.f32 %v5540, %v5906
  %v6190 = vadd.f32 %v5541, %v5911
  %v6191 = vadd.f32 %v5542, %v5916
  %v6192 = vadd.f32 %v5543, %v5921
  %v6193 = vadd.f32 %v5544, %v5926
  %v6194 = vadd.f32 %v5545, %v5931
  %v6195 = vadd.f32 %v5546, %v5936
  %v6196 = vadd.f32 %v5547, %v5941
  %v6197 = vadd.f32 %v5548, %v5946
  %v6198 = vadd.f32 %v5549, %v5951
  %v6199 = vadd.f32 %v5550, %v5956
  %v6200 = vadd.f32 %v5551, %v5961
  %v6201 = vadd.f32 %v5552, %v5966
  %v6202 = vadd.f32 %v5553, %v5971
  %v6203 = vadd.f32 %v5554, %v5976
  %v6204 = vadd.f32 %v5555, %v5981
  %v6205 = vadd.f32 %v5556, %v5986
  %v6206 = vadd.f32 %v5557, %v5991
  %v6207 = vadd.f32 %v5558, %v5996
  %v6208 = vadd.f32 %v5559, %v6001
  %v6209 = vadd.f32 %v5560, %v6006
  %v6210 = vadd.f32 %v5561, %v6011
  %v6211 = vadd.f32 %v5562, %v6016
  %v6212 = vadd.f32 %v5563, %v6021
  %v6213 = vadd.f32 %v5564, %v6026
  %v6214 = vadd.f32 %v5565, %v6031
  %v6215 = vadd.f32 %v5566, %v6036
  %v6216 = vadd.f32 %v5567, %v6041
  %v6217 = vadd.f32 %v5568, %v6046
  %v6218 = vadd.f32 %v5569, %v6051
  %v6219 = vadd.f32 %v5570, %v6056
  %v6220 = vadd.f32 %v5571, %v6061
  %v6221 = vadd.f32 %v5572, %v6066
  %v6222 = vadd.f32 %v5573, %v6071
  %v6223 = vadd.f32 %v5574, %v6076
  %v6224 = vadd.f32 %v5575, %v6081
  %v6225 = vadd.f32 %v5576, %v6086
  %v6226 = vadd.f32 %v5577, %v6091
  %v6227 = vadd.f32 %v5578, %v6096
  %v6228 = vadd.f32 %v5579, %v6101
  %v6229 = vadd.f32 %v5580, %v6106
  %v6230 = vadd.f32 %v5581, %v6111
  %v6231 = vadd.f32 %v5582, %v6116
  %v6232 = vadd.f32 %v5583, %v6121
  %v6233 = vadd.f32 %v5584, %v6126
  %v6234 = vadd.f32 %v5585, %v6131
  %v6235 = vadd.f32 %v5586, %v6136
  %v6236 = vadd.f32 %v5587, %v6141
  %v6237 = vadd.f32 %v5588, %v6146
  %v6238 = vadd.f32 %v5589, %v6151
  %v6239 = vadd.f32 %v5590, %v6156
  %v6240 = vld [vmem:[#allocation2 + $0x2a] sm:$0xff]
  %v6241 = vld [vmem:[#allocation2 + $0x32] sm:$0xff]
  %v6242 = vld [vmem:[#allocation2 + $0x3a] sm:$0xff]
  %v6243 = vld [vmem:[#allocation2 + $0x42] sm:$0xff]
  %v6244 = vld [vmem:[#allocation2 + $0x4a] sm:$0xff]
  %v6245 = vld [vmem:[#allocation2 + $0x52] sm:$0xff]
  %v6246 = vld [vmem:[#allocation2 + $0x5a] sm:$0xff]
  %v6247 = vld [vmem:[#allocation2 + $0x62] sm:$0xff]
  %v6248 = vld [vmem:[#allocation2 + $0x6a] sm:$0xff]
  %v6249 = vld [vmem:[#allocation2 + $0x72] sm:$0xff]
  %v6250 = vld [vmem:[#allocation2 + $0x7a] sm:$0xff]
  %v6251 = vld [vmem:[#allocation2 + $0x82] sm:$0xff]
  %v6252 = vld [vmem:[#allocation2 + $0x8a] sm:$0xff]
  %v6253 = vld [vmem:[#allocation2 + $0x92] sm:$0xff]
  %v6254 = vld [vmem:[#allocation2 + $0x9a] sm:$0xff]
  %v6255 = vld [vmem:[#allocation2 + $0xa2] sm:$0xff]
  %v6256 = vld [vmem:[#allocation2 + $0xaa] sm:$0xff]
  %v6257 = vld [vmem:[#allocation2 + $0xb2] sm:$0xff]
  %v6258 = vld [vmem:[#allocation2 + $0xba] sm:$0xff]
  %v6259 = vld [vmem:[#allocation2 + $0xc2] sm:$0xff]
  %v6260 = vld [vmem:[#allocation2 + $0xca] sm:$0xff]
  %v6261 = vld [vmem:[#allocation2 + $0xd2] sm:$0xff]
  %v6262 = vld [vmem:[#allocation2 + $0xda] sm:$0xff]
  %v6263 = vld [vmem:[#allocation2 + $0xe2] sm:$0xff]
  %v6264 = vld [vmem:[#allocation2 + $0xea] sm:$0xff]
  %v6265 = vld [vmem:[#allocation2 + $0xf2] sm:$0xff]
  %v6266 = vld [vmem:[#allocation2 + $0xfa] sm:$0xff]
  %v6267 = vld [vmem:[#allocation2 + $0x102] sm:$0xff]
  %v6268 = vld [vmem:[#allocation2 + $0x10a] sm:$0xff]
  %v6269 = vld [vmem:[#allocation2 + $0x112] sm:$0xff]
  %v6270 = vld [vmem:[#allocation2 + $0x11a] sm:$0xff]
  %v6271 = vld [vmem:[#allocation2 + $0x122] sm:$0xff]
  %v6272 = vld [vmem:[#allocation2 + $0x12a] sm:$0xff]
  %v6273 = vld [vmem:[#allocation2 + $0x132] sm:$0xff]
  %v6274 = vld [vmem:[#allocation2 + $0x13a] sm:$0xff]
  %v6275 = vld [vmem:[#allocation2 + $0x142] sm:$0xff]
  %v6276 = vld [vmem:[#allocation2 + $0x14a] sm:$0xff]
  %v6277 = vld [vmem:[#allocation2 + $0x152] sm:$0xff]
  %v6278 = vld [vmem:[#allocation2 + $0x15a] sm:$0xff]
  %v6279 = vld [vmem:[#allocation2 + $0x162] sm:$0xff]
  %v6280 = vld [vmem:[#allocation2 + $0x16a] sm:$0xff]
  %v6281 = vld [vmem:[#allocation2 + $0x172] sm:$0xff]
  %v6282 = vld [vmem:[#allocation2 + $0x17a] sm:$0xff]
  %v6283 = vld [vmem:[#allocation2 + $0x182] sm:$0xff]
  %v6284 = vld [vmem:[#allocation2 + $0x18a] sm:$0xff]
  %v6285 = vld [vmem:[#allocation2 + $0x192] sm:$0xff]
  %v6286 = vld [vmem:[#allocation2 + $0x19a] sm:$0xff]
  %v6287 = vld [vmem:[#allocation2 + $0x1a2] sm:$0xff]
  %v6288 = vld [vmem:[#allocation2 + $0x1aa] sm:$0xff]
  %v6289 = vld [vmem:[#allocation2 + $0x1b2] sm:$0xff]
  %v6290 = vld [vmem:[#allocation2 + $0x1ba] sm:$0xff]
  %v6291 = vld [vmem:[#allocation2 + $0x1c2] sm:$0xff]
  %v6292 = vld [vmem:[#allocation2 + $0x1ca] sm:$0xff]
  %v6293 = vld [vmem:[#allocation2 + $0x1d2] sm:$0xff]
  %v6294 = vld [vmem:[#allocation2 + $0x1da] sm:$0xff]
  %v6295 = vld [vmem:[#allocation2 + $0x1e2] sm:$0xff]
  %v6296 = vld [vmem:[#allocation2 + $0x1ea] sm:$0xff]
  %v6297 = vld [vmem:[#allocation2 + $0x1f2] sm:$0xff]
  %v6298 = vld [vmem:[#allocation2 + $0x1fa] sm:$0xff]
  %v6299 = vld [vmem:[#allocation2 + $0x202] sm:$0xff]
  %v6300 = vld [vmem:[#allocation2 + $0x20a] sm:$0xff]
  %v6301 = vld [vmem:[#allocation2 + $0x212] sm:$0xff]
  %v6302 = vld [vmem:[#allocation2 + $0x21a] sm:$0xff]
  %v6303 = vld [vmem:[#allocation2 + $0x222] sm:$0xff]
  %v6304 = vld [vmem:[#allocation2 + $0x22a] sm:$0xff]
  %v6305 = vld [vmem:[#allocation2 + $0x232] sm:$0xff]
  %v6306 = vld [vmem:[#allocation2 + $0x23a] sm:$0xff]
  %v6307 = vld [vmem:[#allocation2 + $0x242] sm:$0xff]
  %v6308 = vld [vmem:[#allocation2 + $0x24a] sm:$0xff]
  %v6309 = vld [vmem:[#allocation2 + $0x252] sm:$0xff]
  %v6310 = vld [vmem:[#allocation2 + $0x25a] sm:$0xff]
  %v6311 = vld [vmem:[#allocation2 + $0x262] sm:$0xff]
  %v6312 = vld [vmem:[#allocation2 + $0x26a] sm:$0xff]
  %v6313 = vld [vmem:[#allocation2 + $0x272] sm:$0xff]
  %v6314 = vld [vmem:[#allocation2 + $0x27a] sm:$0xff]
  %v6315 = vld [vmem:[#allocation2 + $0x282] sm:$0xff]
  %v6316 = vld [vmem:[#allocation2 + $0x28a] sm:$0xff]
  %v6317 = vld [vmem:[#allocation2 + $0x292] sm:$0xff]
  %v6318 = vld [vmem:[#allocation2 + $0x29a] sm:$0xff]
  %v6319 = vld [vmem:[#allocation2 + $0x2a2] sm:$0xff]
  %v6320 = vld [vmem:[#allocation2 + $0x2aa] sm:$0xff]
  %s6321 = scalar_lea.vmem %s3, 896
  %v6322 = vld [vmem:[%s6321] sm:$0xff]
  %v6323 = vld [vmem:[%s6321 + $0x8] sm:$0xff]
  %v6324 = vld [vmem:[%s6321 + $0x10] sm:$0xff]
  %v6325 = vld [vmem:[%s6321 + $0x18] sm:$0xff]
  %v6326 = vld [vmem:[%s6321 + $0x20] sm:$0xff]
  %v6327 = vld [vmem:[%s6321 + $0x28] sm:$0xff]
  %v6328 = vld [vmem:[%s6321 + $0x30] sm:$0xff]
  %v6329 = vld [vmem:[%s6321 + $0x38] sm:$0xff]
  %v6330 = vld [vmem:[%s6321 + $0x40] sm:$0xff]
  %v6331 = vld [vmem:[%s6321 + $0x48] sm:$0xff]
  %v6332 = vld [vmem:[%s6321 + $0x50] sm:$0xff]
  %v6333 = vld [vmem:[%s6321 + $0x58] sm:$0xff]
  %v6334 = vld [vmem:[%s6321 + $0x60] sm:$0xff]
  %v6335 = vld [vmem:[%s6321 + $0x68] sm:$0xff]
  %v6336 = vld [vmem:[%s6321 + $0x70] sm:$0xff]
  %v6337 = vld [vmem:[%s6321 + $0x78] sm:$0xff]
  %6338 = vmatprep.subr.mxu0 0.0
  %6339 = vmatpush1.msra.mxu0 %v6322
  %6340 = vmatprep.subr.mxu0 0.0
  %6341 = vmatpush1.msra.mxu0 %v6323
  %6342 = vmatprep.subr.mxu0 0.0
  %6343 = vmatpush1.msra.mxu0 %v6324
  %6344 = vmatprep.subr.mxu0 0.0
  %6345 = vmatpush1.msra.mxu0 %v6325
  %6346 = vmatprep.subr.mxu0 0.0
  %6347 = vmatpush1.msra.mxu0 %v6326
  %6348 = vmatprep.subr.mxu0 0.0
  %6349 = vmatpush1.msra.mxu0 %v6327
  %6350 = vmatprep.subr.mxu0 0.0
  %6351 = vmatpush1.msra.mxu0 %v6328
  %6352 = vmatprep.subr.mxu0 0.0
  %6353 = vmatpush1.msra.mxu0 %v6329
  %6354 = vmatprep.subr.mxu0 0.0
  %6355 = vmatpush1.msra.mxu0 %v6330
  %6356 = vmatprep.subr.mxu0 0.0
  %6357 = vmatpush1.msra.mxu0 %v6331
  %6358 = vmatprep.subr.mxu0 0.0
  %6359 = vmatpush1.msra.mxu0 %v6332
  %6360 = vmatprep.subr.mxu0 0.0
  %6361 = vmatpush1.msra.mxu0 %v6333
  %6362 = vmatprep.subr.mxu0 0.0
  %6363 = vmatpush1.msra.mxu0 %v6334
  %6364 = vmatprep.subr.mxu0 0.0
  %6365 = vmatpush1.msra.mxu0 %v6335
  %6366 = vmatprep.subr.mxu0 0.0
  %6367 = vmatpush1.msra.mxu0 %v6336
  %6368 = vmatprep.subr.mxu0 0.0
  %6369 = vmatpush1.msra.mxu0 %v6337
  %6370 = vmatprep.subr.mxu0 0.0
  %6371 = vmatpush1.msra.mxu0 0.0
  %6372 = vmatprep.subr.mxu0 0.0
  %6373 = vmatpush1.msra.mxu0 0.0
  %6374 = vmatprep.subr.mxu0 0.0
  %6375 = vmatpush1.msra.mxu0 0.0
  %6376 = vmatprep.subr.mxu0 0.0
  %6377 = vmatpush1.msra.mxu0 0.0
  %6378 = vmatprep.subr.mxu0 0.0
  %6379 = vmatpush1.msra.mxu0 0.0
  %6380 = vmatprep.subr.mxu0 0.0
  %6381 = vmatpush1.msra.mxu0 0.0
  %6382 = vmatprep.subr.mxu0 0.0
  %6383 = vmatpush1.msra.mxu0 0.0
  %6384 = vmatprep.subr.mxu0 0.0
  %6385 = vmatpush1.msra.mxu0 0.0
  %6386 = vmatprep.subr.mxu0 0.0
  %6387 = vmatpush1.msra.mxu0 0.0
  %6388 = vmatprep.subr.mxu0 0.0
  %6389 = vmatpush1.msra.mxu0 0.0
  %6390 = vmatprep.subr.mxu0 0.0
  %6391 = vmatpush1.msra.mxu0 0.0
  %6392 = vmatprep.subr.mxu0 0.0
  %6393 = vmatpush1.msra.mxu0 0.0
  %6394 = vmatprep.subr.mxu0 0.0
  %6395 = vmatpush1.msra.mxu0 0.0
  %6396 = vmatprep.subr.mxu0 0.0
  %6397 = vmatpush1.msra.mxu0 0.0
  %6398 = vmatprep.subr.mxu0 0.0
  %6399 = vmatpush1.msra.mxu0 0.0
  %6400 = vmatprep.subr.mxu0 0.0
  %6401 = vmatpush1.msra.mxu0 0.0
  %6402 = vmatprep.mubr.f32.mxu0 0.0
  %6403 = vmatmul.mubr.f32.gmra.mrb[0].mxu0 %v6240
  %v6404 = vpop.f32.mrb[0].mxu0
  %v6405 = vadd.f32 0.0, %v6404
  %v6406 = vpop.f32.mrb[0].mxu0
  %6407 = vmatprep.mubr.f32.mxu0 0.0
  %6408 = vmatmul.mubr.f32.gmra.mrb[0].mxu0 %v6241
  %v6409 = vpop.f32.mrb[0].mxu0
  %v6410 = vadd.f32 0.0, %v6409
  %v6411 = vpop.f32.mrb[0].mxu0
  %6412 = vmatprep.mubr.f32.mxu0 0.0
  %6413 = vmatmul.mubr.f32.gmra.mrb[0].mxu0 %v6242
  %v6414 = vpop.f32.mrb[0].mxu0
  %v6415 = vadd.f32 0.0, %v6414
  %v6416 = vpop.f32.mrb[0].mxu0
  %6417 = vmatprep.mubr.f32.mxu0 0.0
  %6418 = vmatmul.mubr.f32.gmra.mrb[0].mxu0 %v6243
  %v6419 = vpop.f32.mrb[0].mxu0
  %v6420 = vadd.f32 0.0, %v6419
  %v6421 = vpop.f32.mrb[0].mxu0
  %6422 = vmatprep.mubr.f32.mxu0 0.0
  %6423 = vmatmul.mubr.f32.gmra.mrb[0].mxu0 %v6244
  %v6424 = vpop.f32.mrb[0].mxu0
  %v6425 = vadd.f32 0.0, %v6424
  %v6426 = vpop.f32.mrb[0].mxu0
  %6427 = vmatprep.mubr.f32.mxu0 0.0
  %6428 = vmatmul.mubr.f32.gmra.mrb[0].mxu0 %v6245
  %v6429 = vpop.f32.mrb[0].mxu0
  %v6430 = vadd.f32 0.0, %v6429
  %v6431 = vpop.f32.mrb[0].mxu0
  %6432 = vmatprep.mubr.f32.mxu0 0.0
  %6433 = vmatmul.mubr.f32.gmra.mrb[0].mxu0 %v6246
  %v6434 = vpop.f32.mrb[0].mxu0
  %v6435 = vadd.f32 0.0, %v6434
  %v6436 = vpop.f32.mrb[0].mxu0
  %6437 = vmatprep.mubr.f32.mxu0 0.0
  %6438 = vmatmul.mubr.f32.gmra.mrb[0].mxu0 %v6247
  %v6439 = vpop.f32.mrb[0].mxu0
  %v6440 = vadd.f32 0.0, %v6439
  %v6441 = vpop.f32.mrb[0].mxu0
  %6442 = vmatprep.mubr.f32.mxu0 0.0
  %6443 = vmatmul.mubr.f32.gmra.mrb[0].mxu0 %v6248
  %v6444 = vpop.f32.mrb[0].mxu0
  %v6445 = vadd.f32 0.0, %v6444
  %v6446 = vpop.f32.mrb[0].mxu0
  %6447 = vmatprep.mubr.f32.mxu0 0.0
  %6448 = vmatmul.mubr.f32.gmra.mrb[0].mxu0 %v6249
  %v6449 = vpop.f32.mrb[0].mxu0
  %v6450 = vadd.f32 0.0, %v6449
  %v6451 = vpop.f32.mrb[0].mxu0
  %6452 = vmatprep.mubr.f32.mxu0 0.0
  %6453 = vmatmul.mubr.f32.gmra.mrb[0].mxu0 %v6250
  %v6454 = vpop.f32.mrb[0].mxu0
  %v6455 = vadd.f32 0.0, %v6454
  %v6456 = vpop.f32.mrb[0].mxu0
  %6457 = vmatprep.mubr.f32.mxu0 0.0
  %6458 = vmatmul.mubr.f32.gmra.mrb[0].mxu0 %v6251
  %v6459 = vpop.f32.mrb[0].mxu0
  %v6460 = vadd.f32 0.0, %v6459
  %v6461 = vpop.f32.mrb[0].mxu0
  %6462 = vmatprep.mubr.f32.mxu0 0.0
  %6463 = vmatmul.mubr.f32.gmra.mrb[0].mxu0 %v6252
  %v6464 = vpop.f32.mrb[0].mxu0
  %v6465 = vadd.f32 0.0, %v6464
  %v6466 = vpop.f32.mrb[0].mxu0
  %6467 = vmatprep.mubr.f32.mxu0 0.0
  %6468 = vmatmul.mubr.f32.gmra.mrb[0].mxu0 %v6253
  %v6469 = vpop.f32.mrb[0].mxu0
  %v6470 = vadd.f32 0.0, %v6469
  %v6471 = vpop.f32.mrb[0].mxu0
  %6472 = vmatprep.mubr.f32.mxu0 0.0
  %6473 = vmatmul.mubr.f32.gmra.mrb[0].mxu0 %v6254
  %v6474 = vpop.f32.mrb[0].mxu0
  %v6475 = vadd.f32 0.0, %v6474
  %v6476 = vpop.f32.mrb[0].mxu0
  %6477 = vmatprep.mubr.f32.mxu0 0.0
  %6478 = vmatmul.mubr.f32.gmra.mrb[0].mxu0 %v6255
  %v6479 = vpop.f32.mrb[0].mxu0
  %v6480 = vadd.f32 0.0, %v6479
  %v6481 = vpop.f32.mrb[0].mxu0
  %6482 = vmatprep.mubr.f32.mxu0 0.0
  %6483 = vmatmul.mubr.f32.gmra.mrb[0].mxu0 %v6256
  %v6484 = vpop.f32.mrb[0].mxu0
  %v6485 = vadd.f32 0.0, %v6484
  %v6486 = vpop.f32.mrb[0].mxu0
  %6487 = vmatprep.mubr.f32.mxu0 0.0
  %6488 = vmatmul.mubr.f32.gmra.mrb[0].mxu0 %v6257
  %v6489 = vpop.f32.mrb[0].mxu0
  %v6490 = vadd.f32 0.0, %v6489
  %v6491 = vpop.f32.mrb[0].mxu0
  %6492 = vmatprep.mubr.f32.mxu0 0.0
  %6493 = vmatmul.mubr.f32.gmra.mrb[0].mxu0 %v6258
  %v6494 = vpop.f32.mrb[0].mxu0
  %v6495 = vadd.f32 0.0, %v6494
  %v6496 = vpop.f32.mrb[0].mxu0
  %6497 = vmatprep.mubr.f32.mxu0 0.0
  %6498 = vmatmul.mubr.f32.gmra.mrb[0].mxu0 %v6259
  %v6499 = vpop.f32.mrb[0].mxu0
  %v6500 = vadd.f32 0.0, %v6499
  %v6501 = vpop.f32.mrb[0].mxu0
  %6502 = vmatprep.mubr.f32.mxu0 0.0
  %6503 = vmatmul.mubr.f32.gmra.mrb[0].mxu0 %v6260
  %v6504 = vpop.f32.mrb[0].mxu0
  %v6505 = vadd.f32 0.0, %v6504
  %v6506 = vpop.f32.mrb[0].mxu0
  %6507 = vmatprep.mubr.f32.mxu0 0.0
  %6508 = vmatmul.mubr.f32.gmra.mrb[0].mxu0 %v6261
  %v6509 = vpop.f32.mrb[0].mxu0
  %v6510 = vadd.f32 0.0, %v6509
  %v6511 = vpop.f32.mrb[0].mxu0
  %6512 = vmatprep.mubr.f32.mxu0 0.0
  %6513 = vmatmul.mubr.f32.gmra.mrb[0].mxu0 %v6262
  %v6514 = vpop.f32.mrb[0].mxu0
  %v6515 = vadd.f32 0.0, %v6514
  %v6516 = vpop.f32.mrb[0].mxu0
  %6517 = vmatprep.mubr.f32.mxu0 0.0
  %6518 = vmatmul.mubr.f32.gmra.mrb[0].mxu0 %v6263
  %v6519 = vpop.f32.mrb[0].mxu0
  %v6520 = vadd.f32 0.0, %v6519
  %v6521 = vpop.f32.mrb[0].mxu0
  %6522 = vmatprep.mubr.f32.mxu0 0.0
  %6523 = vmatmul.mubr.f32.gmra.mrb[0].mxu0 %v6264
  %v6524 = vpop.f32.mrb[0].mxu0
  %v6525 = vadd.f32 0.0, %v6524
  %v6526 = vpop.f32.mrb[0].mxu0
  %6527 = vmatprep.mubr.f32.mxu0 0.0
  %6528 = vmatmul.mubr.f32.gmra.mrb[0].mxu0 %v6265
  %v6529 = vpop.f32.mrb[0].mxu0
  %v6530 = vadd.f32 0.0, %v6529
  %v6531 = vpop.f32.mrb[0].mxu0
  %6532 = vmatprep.mubr.f32.mxu0 0.0
  %6533 = vmatmul.mubr.f32.gmra.mrb[0].mxu0 %v6266
  %v6534 = vpop.f32.mrb[0].mxu0
  %v6535 = vadd.f32 0.0, %v6534
  %v6536 = vpop.f32.mrb[0].mxu0
  %6537 = vmatprep.mubr.f32.mxu0 0.0
  %6538 = vmatmul.mubr.f32.gmra.mrb[0].mxu0 %v6267
  %v6539 = vpop.f32.mrb[0].mxu0
  %v6540 = vadd.f32 0.0, %v6539
  %v6541 = vpop.f32.mrb[0].mxu0
  %6542 = vmatprep.mubr.f32.mxu0 0.0
  %6543 = vmatmul.mubr.f32.gmra.mrb[0].mxu0 %v6268
  %v6544 = vpop.f32.mrb[0].mxu0
  %v6545 = vadd.f32 0.0, %v6544
  %v6546 = vpop.f32.mrb[0].mxu0
  %6547 = vmatprep.mubr.f32.mxu0 0.0
  %6548 = vmatmul.mubr.f32.gmra.mrb[0].mxu0 %v6269
  %v6549 = vpop.f32.mrb[0].mxu0
  %v6550 = vadd.f32 0.0, %v6549
  %v6551 = vpop.f32.mrb[0].mxu0
  %6552 = vmatprep.mubr.f32.mxu0 0.0
  %6553 = vmatmul.mubr.f32.gmra.mrb[0].mxu0 %v6270
  %v6554 = vpop.f32.mrb[0].mxu0
  %v6555 = vadd.f32 0.0, %v6554
  %v6556 = vpop.f32.mrb[0].mxu0
  %6557 = vmatprep.mubr.f32.mxu0 0.0
  %6558 = vmatmul.mubr.f32.gmra.mrb[0].mxu0 %v6271
  %v6559 = vpop.f32.mrb[0].mxu0
  %v6560 = vadd.f32 0.0, %v6559
  %v6561 = vpop.f32.mrb[0].mxu0
  %6562 = vmatprep.mubr.f32.mxu0 0.0
  %6563 = vmatmul.mubr.f32.gmra.mrb[0].mxu0 %v6272
  %v6564 = vpop.f32.mrb[0].mxu0
  %v6565 = vadd.f32 0.0, %v6564
  %v6566 = vpop.f32.mrb[0].mxu0
  %6567 = vmatprep.mubr.f32.mxu0 0.0
  %6568 = vmatmul.mubr.f32.gmra.mrb[0].mxu0 %v6273
  %v6569 = vpop.f32.mrb[0].mxu0
  %v6570 = vadd.f32 0.0, %v6569
  %v6571 = vpop.f32.mrb[0].mxu0
  %6572 = vmatprep.mubr.f32.mxu0 0.0
  %6573 = vmatmul.mubr.f32.gmra.mrb[0].mxu0 %v6274
  %v6574 = vpop.f32.mrb[0].mxu0
  %v6575 = vadd.f32 0.0, %v6574
  %v6576 = vpop.f32.mrb[0].mxu0
  %6577 = vmatprep.mubr.f32.mxu0 0.0
  %6578 = vmatmul.mubr.f32.gmra.mrb[0].mxu0 %v6275
  %v6579 = vpop.f32.mrb[0].mxu0
  %v6580 = vadd.f32 0.0, %v6579
  %v6581 = vpop.f32.mrb[0].mxu0
  %6582 = vmatprep.mubr.f32.mxu0 0.0
  %6583 = vmatmul.mubr.f32.gmra.mrb[0].mxu0 %v6276
  %v6584 = vpop.f32.mrb[0].mxu0
  %v6585 = vadd.f32 0.0, %v6584
  %v6586 = vpop.f32.mrb[0].mxu0
  %6587 = vmatprep.mubr.f32.mxu0 0.0
  %6588 = vmatmul.mubr.f32.gmra.mrb[0].mxu0 %v6277
  %v6589 = vpop.f32.mrb[0].mxu0
  %v6590 = vadd.f32 0.0, %v6589
  %v6591 = vpop.f32.mrb[0].mxu0
  %6592 = vmatprep.mubr.f32.mxu0 0.0
  %6593 = vmatmul.mubr.f32.gmra.mrb[0].mxu0 %v6278
  %v6594 = vpop.f32.mrb[0].mxu0
  %v6595 = vadd.f32 0.0, %v6594
  %v6596 = vpop.f32.mrb[0].mxu0
  %6597 = vmatprep.mubr.f32.mxu0 0.0
  %6598 = vmatmul.mubr.f32.gmra.mrb[0].mxu0 %v6279
  %v6599 = vpop.f32.mrb[0].mxu0
  %v6600 = vadd.f32 0.0, %v6599
  %v6601 = vpop.f32.mrb[0].mxu0
  %6602 = vmatprep.mubr.f32.mxu0 0.0
  %6603 = vmatmul.mubr.f32.gmra.mrb[0].mxu0 %v6280
  %v6604 = vpop.f32.mrb[0].mxu0
  %v6605 = vadd.f32 0.0, %v6604
  %v6606 = vpop.f32.mrb[0].mxu0
  %6607 = vmatprep.mubr.f32.mxu0 0.0
  %6608 = vmatmul.mubr.f32.gmra.mrb[0].mxu0 %v6281
  %v6609 = vpop.f32.mrb[0].mxu0
  %v6610 = vadd.f32 0.0, %v6609
  %v6611 = vpop.f32.mrb[0].mxu0
  %6612 = vmatprep.mubr.f32.mxu0 0.0
  %6613 = vmatmul.mubr.f32.gmra.mrb[0].mxu0 %v6282
  %v6614 = vpop.f32.mrb[0].mxu0
  %v6615 = vadd.f32 0.0, %v6614
  %v6616 = vpop.f32.mrb[0].mxu0
  %6617 = vmatprep.mubr.f32.mxu0 0.0
  %6618 = vmatmul.mubr.f32.gmra.mrb[0].mxu0 %v6283
  %v6619 = vpop.f32.mrb[0].mxu0
  %v6620 = vadd.f32 0.0, %v6619
  %v6621 = vpop.f32.mrb[0].mxu0
  %6622 = vmatprep.mubr.f32.mxu0 0.0
  %6623 = vmatmul.mubr.f32.gmra.mrb[0].mxu0 %v6284
  %v6624 = vpop.f32.mrb[0].mxu0
  %v6625 = vadd.f32 0.0, %v6624
  %v6626 = vpop.f32.mrb[0].mxu0
  %6627 = vmatprep.mubr.f32.mxu0 0.0
  %6628 = vmatmul.mubr.f32.gmra.mrb[0].mxu0 %v6285
  %v6629 = vpop.f32.mrb[0].mxu0
  %v6630 = vadd.f32 0.0, %v6629
  %v6631 = vpop.f32.mrb[0].mxu0
  %6632 = vmatprep.mubr.f32.mxu0 0.0
  %6633 = vmatmul.mubr.f32.gmra.mrb[0].mxu0 %v6286
  %v6634 = vpop.f32.mrb[0].mxu0
  %v6635 = vadd.f32 0.0, %v6634
  %v6636 = vpop.f32.mrb[0].mxu0
  %6637 = vmatprep.mubr.f32.mxu0 0.0
  %6638 = vmatmul.mubr.f32.gmra.mrb[0].mxu0 %v6287
  %v6639 = vpop.f32.mrb[0].mxu0
  %v6640 = vadd.f32 0.0, %v6639
  %v6641 = vpop.f32.mrb[0].mxu0
  %6642 = vmatprep.mubr.f32.mxu0 0.0
  %6643 = vmatmul.mubr.f32.gmra.mrb[0].mxu0 %v6288
  %v6644 = vpop.f32.mrb[0].mxu0
  %v6645 = vadd.f32 0.0, %v6644
  %v6646 = vpop.f32.mrb[0].mxu0
  %6647 = vmatprep.mubr.f32.mxu0 0.0
  %6648 = vmatmul.mubr.f32.gmra.mrb[0].mxu0 %v6289
  %v6649 = vpop.f32.mrb[0].mxu0
  %v6650 = vadd.f32 0.0, %v6649
  %v6651 = vpop.f32.mrb[0].mxu0
  %6652 = vmatprep.mubr.f32.mxu0 0.0
  %6653 = vmatmul.mubr.f32.gmra.mrb[0].mxu0 %v6290
  %v6654 = vpop.f32.mrb[0].mxu0
  %v6655 = vadd.f32 0.0, %v6654
  %v6656 = vpop.f32.mrb[0].mxu0
  %6657 = vmatprep.mubr.f32.mxu0 0.0
  %6658 = vmatmul.mubr.f32.gmra.mrb[0].mxu0 %v6291
  %v6659 = vpop.f32.mrb[0].mxu0
  %v6660 = vadd.f32 0.0, %v6659
  %v6661 = vpop.f32.mrb[0].mxu0
  %6662 = vmatprep.mubr.f32.mxu0 0.0
  %6663 = vmatmul.mubr.f32.gmra.mrb[0].mxu0 %v6292
  %v6664 = vpop.f32.mrb[0].mxu0
  %v6665 = vadd.f32 0.0, %v6664
  %v6666 = vpop.f32.mrb[0].mxu0
  %6667 = vmatprep.mubr.f32.mxu0 0.0
  %6668 = vmatmul.mubr.f32.gmra.mrb[0].mxu0 %v6293
  %v6669 = vpop.f32.mrb[0].mxu0
  %v6670 = vadd.f32 0.0, %v6669
  %v6671 = vpop.f32.mrb[0].mxu0
  %6672 = vmatprep.mubr.f32.mxu0 0.0
  %6673 = vmatmul.mubr.f32.gmra.mrb[0].mxu0 %v6294
  %v6674 = vpop.f32.mrb[0].mxu0
  %v6675 = vadd.f32 0.0, %v6674
  %v6676 = vpop.f32.mrb[0].mxu0
  %6677 = vmatprep.mubr.f32.mxu0 0.0
  %6678 = vmatmul.mubr.f32.gmra.mrb[0].mxu0 %v6295
  %v6679 = vpop.f32.mrb[0].mxu0
  %v6680 = vadd.f32 0.0, %v6679
  %v6681 = vpop.f32.mrb[0].mxu0
  %6682 = vmatprep.mubr.f32.mxu0 0.0
  %6683 = vmatmul.mubr.f32.gmra.mrb[0].mxu0 %v6296
  %v6684 = vpop.f32.mrb[0].mxu0
  %v6685 = vadd.f32 0.0, %v6684
  %v6686 = vpop.f32.mrb[0].mxu0
  %6687 = vmatprep.mubr.f32.mxu0 0.0
  %6688 = vmatmul.mubr.f32.gmra.mrb[0].mxu0 %v6297
  %v6689 = vpop.f32.mrb[0].mxu0
  %v6690 = vadd.f32 0.0, %v6689
  %v6691 = vpop.f32.mrb[0].mxu0
  %6692 = vmatprep.mubr.f32.mxu0 0.0
  %6693 = vmatmul.mubr.f32.gmra.mrb[0].mxu0 %v6298
  %v6694 = vpop.f32.mrb[0].mxu0
  %v6695 = vadd.f32 0.0, %v6694
  %v6696 = vpop.f32.mrb[0].mxu0
  %6697 = vmatprep.mubr.f32.mxu0 0.0
  %6698 = vmatmul.mubr.f32.gmra.mrb[0].mxu0 %v6299
  %v6699 = vpop.f32.mrb[0].mxu0
  %v6700 = vadd.f32 0.0, %v6699
  %v6701 = vpop.f32.mrb[0].mxu0
  %6702 = vmatprep.mubr.f32.mxu0 0.0
  %6703 = vmatmul.mubr.f32.gmra.mrb[0].mxu0 %v6300
  %v6704 = vpop.f32.mrb[0].mxu0
  %v6705 = vadd.f32 0.0, %v6704
  %v6706 = vpop.f32.mrb[0].mxu0
  %6707 = vmatprep.mubr.f32.mxu0 0.0
  %6708 = vmatmul.mubr.f32.gmra.mrb[0].mxu0 %v6301
  %v6709 = vpop.f32.mrb[0].mxu0
  %v6710 = vadd.f32 0.0, %v6709
  %v6711 = vpop.f32.mrb[0].mxu0
  %6712 = vmatprep.mubr.f32.mxu0 0.0
  %6713 = vmatmul.mubr.f32.gmra.mrb[0].mxu0 %v6302
  %v6714 = vpop.f32.mrb[0].mxu0
  %v6715 = vadd.f32 0.0, %v6714
  %v6716 = vpop.f32.mrb[0].mxu0
  %6717 = vmatprep.mubr.f32.mxu0 0.0
  %6718 = vmatmul.mubr.f32.gmra.mrb[0].mxu0 %v6303
  %v6719 = vpop.f32.mrb[0].mxu0
  %v6720 = vadd.f32 0.0, %v6719
  %v6721 = vpop.f32.mrb[0].mxu0
  %6722 = vmatprep.mubr.f32.mxu0 0.0
  %6723 = vmatmul.mubr.f32.gmra.mrb[0].mxu0 %v6304
  %v6724 = vpop.f32.mrb[0].mxu0
  %v6725 = vadd.f32 0.0, %v6724
  %v6726 = vpop.f32.mrb[0].mxu0
  %6727 = vmatprep.mubr.f32.mxu0 0.0
  %6728 = vmatmul.mubr.f32.gmra.mrb[0].mxu0 %v6305
  %v6729 = vpop.f32.mrb[0].mxu0
  %v6730 = vadd.f32 0.0, %v6729
  %v6731 = vpop.f32.mrb[0].mxu0
  %6732 = vmatprep.mubr.f32.mxu0 0.0
  %6733 = vmatmul.mubr.f32.gmra.mrb[0].mxu0 %v6306
  %v6734 = vpop.f32.mrb[0].mxu0
  %v6735 = vadd.f32 0.0, %v6734
  %v6736 = vpop.f32.mrb[0].mxu0
  %6737 = vmatprep.mubr.f32.mxu0 0.0
  %6738 = vmatmul.mubr.f32.gmra.mrb[0].mxu0 %v6307
  %v6739 = vpop.f32.mrb[0].mxu0
  %v6740 = vadd.f32 0.0, %v6739
  %v6741 = vpop.f32.mrb[0].mxu0
  %6742 = vmatprep.mubr.f32.mxu0 0.0
  %6743 = vmatmul.mubr.f32.gmra.mrb[0].mxu0 %v6308
  %v6744 = vpop.f32.mrb[0].mxu0
  %v6745 = vadd.f32 0.0, %v6744
  %v6746 = vpop.f32.mrb[0].mxu0
  %6747 = vmatprep.mubr.f32.mxu0 0.0
  %6748 = vmatmul.mubr.f32.gmra.mrb[0].mxu0 %v6309
  %v6749 = vpop.f32.mrb[0].mxu0
  %v6750 = vadd.f32 0.0, %v6749
  %v6751 = vpop.f32.mrb[0].mxu0
  %6752 = vmatprep.mubr.f32.mxu0 0.0
  %6753 = vmatmul.mubr.f32.gmra.mrb[0].mxu0 %v6310
  %v6754 = vpop.f32.mrb[0].mxu0
  %v6755 = vadd.f32 0.0, %v6754
  %v6756 = vpop.f32.mrb[0].mxu0
  %6757 = vmatprep.mubr.f32.mxu0 0.0
  %6758 = vmatmul.mubr.f32.gmra.mrb[0].mxu0 %v6311
  %v6759 = vpop.f32.mrb[0].mxu0
  %v6760 = vadd.f32 0.0, %v6759
  %v6761 = vpop.f32.mrb[0].mxu0
  %6762 = vmatprep.mubr.f32.mxu0 0.0
  %6763 = vmatmul.mubr.f32.gmra.mrb[0].mxu0 %v6312
  %v6764 = vpop.f32.mrb[0].mxu0
  %v6765 = vadd.f32 0.0, %v6764
  %v6766 = vpop.f32.mrb[0].mxu0
  %6767 = vmatprep.mubr.f32.mxu0 0.0
  %6768 = vmatmul.mubr.f32.gmra.mrb[0].mxu0 %v6313
  %v6769 = vpop.f32.mrb[0].mxu0
  %v6770 = vadd.f32 0.0, %v6769
  %v6771 = vpop.f32.mrb[0].mxu0
  %6772 = vmatprep.mubr.f32.mxu0 0.0
  %6773 = vmatmul.mubr.f32.gmra.mrb[0].mxu0 %v6314
  %v6774 = vpop.f32.mrb[0].mxu0
  %v6775 = vadd.f32 0.0, %v6774
  %v6776 = vpop.f32.mrb[0].mxu0
  %6777 = vmatprep.mubr.f32.mxu0 0.0
  %6778 = vmatmul.mubr.f32.gmra.mrb[0].mxu0 %v6315
  %v6779 = vpop.f32.mrb[0].mxu0
  %v6780 = vadd.f32 0.0, %v6779
  %v6781 = vpop.f32.mrb[0].mxu0
  %6782 = vmatprep.mubr.f32.mxu0 0.0
  %6783 = vmatmul.mubr.f32.gmra.mrb[0].mxu0 %v6316
  %v6784 = vpop.f32.mrb[0].mxu0
  %v6785 = vadd.f32 0.0, %v6784
  %v6786 = vpop.f32.mrb[0].mxu0
  %6787 = vmatprep.mubr.f32.mxu0 0.0
  %6788 = vmatmul.mubr.f32.gmra.mrb[0].mxu0 %v6317
  %v6789 = vpop.f32.mrb[0].mxu0
  %v6790 = vadd.f32 0.0, %v6789
  %v6791 = vpop.f32.mrb[0].mxu0
  %6792 = vmatprep.mubr.f32.mxu0 0.0
  %6793 = vmatmul.mubr.f32.gmra.mrb[0].mxu0 %v6318
  %v6794 = vpop.f32.mrb[0].mxu0
  %v6795 = vadd.f32 0.0, %v6794
  %v6796 = vpop.f32.mrb[0].mxu0
  %6797 = vmatprep.mubr.f32.mxu0 0.0
  %6798 = vmatmul.mubr.f32.gmra.mrb[0].mxu0 %v6319
  %v6799 = vpop.f32.mrb[0].mxu0
  %v6800 = vadd.f32 0.0, %v6799
  %v6801 = vpop.f32.mrb[0].mxu0
  %6802 = vmatprep.mubr.f32.mxu0 0.0
  %6803 = vmatmul.mubr.f32.gmra.mrb[0].mxu0 %v6320
  %v6804 = vpop.f32.mrb[0].mxu0
  %v6805 = vadd.f32 0.0, %v6804
  %v6806 = vpop.f32.mrb[0].mxu0
  %6807 = vdwg.mxu0
  %v6808 = vadd.f32 %v6159, %v6405
  %v6809 = vadd.f32 %v6160, %v6410
  %v6810 = vadd.f32 %v6161, %v6415
  %v6811 = vadd.f32 %v6162, %v6420
  %v6812 = vadd.f32 %v6163, %v6425
  %v6813 = vadd.f32 %v6164, %v6430
  %v6814 = vadd.f32 %v6165, %v6435
  %v6815 = vadd.f32 %v6166, %v6440
  %v6816 = vadd.f32 %v6167, %v6445
  %v6817 = vadd.f32 %v6168, %v6450
  %v6818 = vadd.f32 %v6169, %v6455
  %v6819 = vadd.f32 %v6170, %v6460
  %v6820 = vadd.f32 %v6171, %v6465
  %v6821 = vadd.f32 %v6172, %v6470
  %v6822 = vadd.f32 %v6173, %v6475
  %v6823 = vadd.f32 %v6174, %v6480
  %v6824 = vadd.f32 %v6175, %v6485
  %v6825 = vadd.f32 %v6176, %v6490
  %v6826 = vadd.f32 %v6177, %v6495
  %v6827 = vadd.f32 %v6178, %v6500
  %v6828 = vadd.f32 %v6179, %v6505
  %v6829 = vadd.f32 %v6180, %v6510
  %v6830 = vadd.f32 %v6181, %v6515
  %v6831 = vadd.f32 %v6182, %v6520
  %v6832 = vadd.f32 %v6183, %v6525
  %v6833 = vadd.f32 %v6184, %v6530
  %v6834 = vadd.f32 %v6185, %v6535
  %v6835 = vadd.f32 %v6186, %v6540
  %v6836 = vadd.f32 %v6187, %v6545
  %v6837 = vadd.f32 %v6188, %v6550
  %v6838 = vadd.f32 %v6189, %v6555
  %v6839 = vadd.f32 %v6190, %v6560
  %v6840 = vadd.f32 %v6191, %v6565
  %v6841 = vadd.f32 %v6192, %v6570
  %v6842 = vadd.f32 %v6193, %v6575
  %v6843 = vadd.f32 %v6194, %v6580
  %v6844 = vadd.f32 %v6195, %v6585
  %v6845 = vadd.f32 %v6196, %v6590
  %v6846 = vadd.f32 %v6197, %v6595
  %v6847 = vadd.f32 %v6198, %v6600
  %v6848 = vadd.f32 %v6199, %v6605
  %v6849 = vadd.f32 %v6200, %v6610
  %v6850 = vadd.f32 %v6201, %v6615
  %v6851 = vadd.f32 %v6202, %v6620
  %v6852 = vadd.f32 %v6203, %v6625
  %v6853 = vadd.f32 %v6204, %v6630
  %v6854 = vadd.f32 %v6205, %v6635
  %v6855 = vadd.f32 %v6206, %v6640
  %v6856 = vadd.f32 %v6207, %v6645
  %v6857 = vadd.f32 %v6208, %v6650
  %v6858 = vadd.f32 %v6209, %v6655
  %v6859 = vadd.f32 %v6210, %v6660
  %v6860 = vadd.f32 %v6211, %v6665
  %v6861 = vadd.f32 %v6212, %v6670
  %v6862 = vadd.f32 %v6213, %v6675
  %v6863 = vadd.f32 %v6214, %v6680
  %v6864 = vadd.f32 %v6215, %v6685
  %v6865 = vadd.f32 %v6216, %v6690
  %v6866 = vadd.f32 %v6217, %v6695
  %v6867 = vadd.f32 %v6218, %v6700
  %v6868 = vadd.f32 %v6219, %v6705
  %v6869 = vadd.f32 %v6220, %v6710
  %v6870 = vadd.f32 %v6221, %v6715
  %v6871 = vadd.f32 %v6222, %v6720
  %v6872 = vadd.f32 %v6223, %v6725
  %v6873 = vadd.f32 %v6224, %v6730
  %v6874 = vadd.f32 %v6225, %v6735
  %v6875 = vadd.f32 %v6226, %v6740
  %v6876 = vadd.f32 %v6227, %v6745
  %v6877 = vadd.f32 %v6228, %v6750
  %v6878 = vadd.f32 %v6229, %v6755
  %v6879 = vadd.f32 %v6230, %v6760
  %v6880 = vadd.f32 %v6231, %v6765
  %v6881 = vadd.f32 %v6232, %v6770
  %v6882 = vadd.f32 %v6233, %v6775
  %v6883 = vadd.f32 %v6234, %v6780
  %v6884 = vadd.f32 %v6235, %v6785
  %v6885 = vadd.f32 %v6236, %v6790
  %v6886 = vadd.f32 %v6237, %v6795
  %v6887 = vadd.f32 %v6238, %v6800
  %v6888 = vadd.f32 %v6239, %v6805
  %v6889 = vld [vmem:[#allocation2 + $0x2b] sm:$0xff]
  %v6890 = vld [vmem:[#allocation2 + $0x33] sm:$0xff]
  %v6891 = vld [vmem:[#allocation2 + $0x3b] sm:$0xff]
  %v6892 = vld [vmem:[#allocation2 + $0x43] sm:$0xff]
  %v6893 = vld [vmem:[#allocation2 + $0x4b] sm:$0xff]
  %v6894 = vld [vmem:[#allocation2 + $0x53] sm:$0xff]
  %v6895 = vld [vmem:[#allocation2 + $0x5b] sm:$0xff]
  %v6896 = vld [vmem:[#allocation2 + $0x63] sm:$0xff]
  %v6897 = vld [vmem:[#allocation2 + $0x6b] sm:$0xff]
  %v6898 = vld [vmem:[#allocation2 + $0x73] sm:$0xff]
  %v6899 = vld [vmem:[#allocation2 + $0x7b] sm:$0xff]
  %v6900 = vld [vmem:[#allocation2 + $0x83] sm:$0xff]
  %v6901 = vld [vmem:[#allocation2 + $0x8b] sm:$0xff]
  %v6902 = vld [vmem:[#allocation2 + $0x93] sm:$0xff]
  %v6903 = vld [vmem:[#allocation2 + $0x9b] sm:$0xff]
  %v6904 = vld [vmem:[#allocation2 + $0xa3] sm:$0xff]
  %v6905 = vld [vmem:[#allocation2 + $0xab] sm:$0xff]
  %v6906 = vld [vmem:[#allocation2 + $0xb3] sm:$0xff]
  %v6907 = vld [vmem:[#allocation2 + $0xbb] sm:$0xff]
  %v6908 = vld [vmem:[#allocation2 + $0xc3] sm:$0xff]
  %v6909 = vld [vmem:[#allocation2 + $0xcb] sm:$0xff]
  %v6910 = vld [vmem:[#allocation2 + $0xd3] sm:$0xff]
  %v6911 = vld [vmem:[#allocation2 + $0xdb] sm:$0xff]
  %v6912 = vld [vmem:[#allocation2 + $0xe3] sm:$0xff]
  %v6913 = vld [vmem:[#allocation2 + $0xeb] sm:$0xff]
  %v6914 = vld [vmem:[#allocation2 + $0xf3] sm:$0xff]
  %v6915 = vld [vmem:[#allocation2 + $0xfb] sm:$0xff]
  %v6916 = vld [vmem:[#allocation2 + $0x103] sm:$0xff]
  %v6917 = vld [vmem:[#allocation2 + $0x10b] sm:$0xff]
  %v6918 = vld [vmem:[#allocation2 + $0x113] sm:$0xff]
  %v6919 = vld [vmem:[#allocation2 + $0x11b] sm:$0xff]
  %v6920 = vld [vmem:[#allocation2 + $0x123] sm:$0xff]
  %v6921 = vld [vmem:[#allocation2 + $0x12b] sm:$0xff]
  %v6922 = vld [vmem:[#allocation2 + $0x133] sm:$0xff]
  %v6923 = vld [vmem:[#allocation2 + $0x13b] sm:$0xff]
  %v6924 = vld [vmem:[#allocation2 + $0x143] sm:$0xff]
  %v6925 = vld [vmem:[#allocation2 + $0x14b] sm:$0xff]
  %v6926 = vld [vmem:[#allocation2 + $0x153] sm:$0xff]
  %v6927 = vld [vmem:[#allocation2 + $0x15b] sm:$0xff]
  %v6928 = vld [vmem:[#allocation2 + $0x163] sm:$0xff]
  %v6929 = vld [vmem:[#allocation2 + $0x16b] sm:$0xff]
  %v6930 = vld [vmem:[#allocation2 + $0x173] sm:$0xff]
  %v6931 = vld [vmem:[#allocation2 + $0x17b] sm:$0xff]
  %v6932 = vld [vmem:[#allocation2 + $0x183] sm:$0xff]
  %v6933 = vld [vmem:[#allocation2 + $0x18b] sm:$0xff]
  %v6934 = vld [vmem:[#allocation2 + $0x193] sm:$0xff]
  %v6935 = vld [vmem:[#allocation2 + $0x19b] sm:$0xff]
  %v6936 = vld [vmem:[#allocation2 + $0x1a3] sm:$0xff]
  %v6937 = vld [vmem:[#allocation2 + $0x1ab] sm:$0xff]
  %v6938 = vld [vmem:[#allocation2 + $0x1b3] sm:$0xff]
  %v6939 = vld [vmem:[#allocation2 + $0x1bb] sm:$0xff]
  %v6940 = vld [vmem:[#allocation2 + $0x1c3] sm:$0xff]
  %v6941 = vld [vmem:[#allocation2 + $0x1cb] sm:$0xff]
  %v6942 = vld [vmem:[#allocation2 + $0x1d3] sm:$0xff]
  %v6943 = vld [vmem:[#allocation2 + $0x1db] sm:$0xff]
  %v6944 = vld [vmem:[#allocation2 + $0x1e3] sm:$0xff]
  %v6945 = vld [vmem:[#allocation2 + $0x1eb] sm:$0xff]
  %v6946 = vld [vmem:[#allocation2 + $0x1f3] sm:$0xff]
  %v6947 = vld [vmem:[#allocation2 + $0x1fb] sm:$0xff]
  %v6948 = vld [vmem:[#allocation2 + $0x203] sm:$0xff]
  %v6949 = vld [vmem:[#allocation2 + $0x20b] sm:$0xff]
  %v6950 = vld [vmem:[#allocation2 + $0x213] sm:$0xff]
  %v6951 = vld [vmem:[#allocation2 + $0x21b] sm:$0xff]
  %v6952 = vld [vmem:[#allocation2 + $0x223] sm:$0xff]
  %v6953 = vld [vmem:[#allocation2 + $0x22b] sm:$0xff]
  %v6954 = vld [vmem:[#allocation2 + $0x233] sm:$0xff]
  %v6955 = vld [vmem:[#allocation2 + $0x23b] sm:$0xff]
  %v6956 = vld [vmem:[#allocation2 + $0x243] sm:$0xff]
  %v6957 = vld [vmem:[#allocation2 + $0x24b] sm:$0xff]
  %v6958 = vld [vmem:[#allocation2 + $0x253] sm:$0xff]
  %v6959 = vld [vmem:[#allocation2 + $0x25b] sm:$0xff]
  %v6960 = vld [vmem:[#allocation2 + $0x263] sm:$0xff]
  %v6961 = vld [vmem:[#allocation2 + $0x26b] sm:$0xff]
  %v6962 = vld [vmem:[#allocation2 + $0x273] sm:$0xff]
  %v6963 = vld [vmem:[#allocation2 + $0x27b] sm:$0xff]
  %v6964 = vld [vmem:[#allocation2 + $0x283] sm:$0xff]
  %v6965 = vld [vmem:[#allocation2 + $0x28b] sm:$0xff]
  %v6966 = vld [vmem:[#allocation2 + $0x293] sm:$0xff]
  %v6967 = vld [vmem:[#allocation2 + $0x29b] sm:$0xff]
  %v6968 = vld [vmem:[#allocation2 + $0x2a3] sm:$0xff]
  %v6969 = vld [vmem:[#allocation2 + $0x2ab] sm:$0xff]
  %s6970 = scalar_lea.vmem %s3, 1024
  %v6971 = vld [vmem:[%s6970] sm:$0xff]
  %v6972 = vld [vmem:[%s6970 + $0x8] sm:$0xff]
  %v6973 = vld [vmem:[%s6970 + $0x10] sm:$0xff]
  %v6974 = vld [vmem:[%s6970 + $0x18] sm:$0xff]
  %v6975 = vld [vmem:[%s6970 + $0x20] sm:$0xff]
  %v6976 = vld [vmem:[%s6970 + $0x28] sm:$0xff]
  %v6977 = vld [vmem:[%s6970 + $0x30] sm:$0xff]
  %v6978 = vld [vmem:[%s6970 + $0x38] sm:$0xff]
  %v6979 = vld [vmem:[%s6970 + $0x40] sm:$0xff]
  %v6980 = vld [vmem:[%s6970 + $0x48] sm:$0xff]
  %v6981 = vld [vmem:[%s6970 + $0x50] sm:$0xff]
  %v6982 = vld [vmem:[%s6970 + $0x58] sm:$0xff]
  %v6983 = vld [vmem:[%s6970 + $0x60] sm:$0xff]
  %v6984 = vld [vmem:[%s6970 + $0x68] sm:$0xff]
  %v6985 = vld [vmem:[%s6970 + $0x70] sm:$0xff]
  %v6986 = vld [vmem:[%s6970 + $0x78] sm:$0xff]
  %6987 = vmatprep.subr.mxu0 0.0
  %6988 = vmatpush1.msra.mxu0 %v6971
  %6989 = vmatprep.subr.mxu0 0.0
  %6990 = vmatpush1.msra.mxu0 %v6972
  %6991 = vmatprep.subr.mxu0 0.0
  %6992 = vmatpush1.msra.mxu0 %v6973
  %6993 = vmatprep.subr.mxu0 0.0
  %6994 = vmatpush1.msra.mxu0 %v6974
  %6995 = vmatprep.subr.mxu0 0.0
  %6996 = vmatpush1.msra.mxu0 %v6975
  %6997 = vmatprep.subr.mxu0 0.0
  %6998 = vmatpush1.msra.mxu0 %v6976
  %6999 = vmatprep.subr.mxu0 0.0
  %7000 = vmatpush1.msra.mxu0 %v6977
  %7001 = vmatprep.subr.mxu0 0.0
  %7002 = vmatpush1.msra.mxu0 %v6978
  %7003 = vmatprep.subr.mxu0 0.0
  %7004 = vmatpush1.msra.mxu0 %v6979
  %7005 = vmatprep.subr.mxu0 0.0
  %7006 = vmatpush1.msra.mxu0 %v6980
  %7007 = vmatprep.subr.mxu0 0.0
  %7008 = vmatpush1.msra.mxu0 %v6981
  %7009 = vmatprep.subr.mxu0 0.0
  %7010 = vmatpush1.msra.mxu0 %v6982
  %7011 = vmatprep.subr.mxu0 0.0
  %7012 = vmatpush1.msra.mxu0 %v6983
  %7013 = vmatprep.subr.mxu0 0.0
  %7014 = vmatpush1.msra.mxu0 %v6984
  %7015 = vmatprep.subr.mxu0 0.0
  %7016 = vmatpush1.msra.mxu0 %v6985
  %7017 = vmatprep.subr.mxu0 0.0
  %7018 = vmatpush1.msra.mxu0 %v6986
  %7019 = vmatprep.subr.mxu0 0.0
  %7020 = vmatpush1.msra.mxu0 0.0
  %7021 = vmatprep.subr.mxu0 0.0
  %7022 = vmatpush1.msra.mxu0 0.0
  %7023 = vmatprep.subr.mxu0 0.0
  %7024 = vmatpush1.msra.mxu0 0.0
  %7025 = vmatprep.subr.mxu0 0.0
  %7026 = vmatpush1.msra.mxu0 0.0
  %7027 = vmatprep.subr.mxu0 0.0
  %7028 = vmatpush1.msra.mxu0 0.0
  %7029 = vmatprep.subr.mxu0 0.0
  %7030 = vmatpush1.msra.mxu0 0.0
  %7031 = vmatprep.subr.mxu0 0.0
  %7032 = vmatpush1.msra.mxu0 0.0
  %7033 = vmatprep.subr.mxu0 0.0
  %7034 = vmatpush1.msra.mxu0 0.0
  %7035 = vmatprep.subr.mxu0 0.0
  %7036 = vmatpush1.msra.mxu0 0.0
  %7037 = vmatprep.subr.mxu0 0.0
  %7038 = vmatpush1.msra.mxu0 0.0
  %7039 = vmatprep.subr.mxu0 0.0
  %7040 = vmatpush1.msra.mxu0 0.0
  %7041 = vmatprep.subr.mxu0 0.0
  %7042 = vmatpush1.msra.mxu0 0.0
  %7043 = vmatprep.subr.mxu0 0.0
  %7044 = vmatpush1.msra.mxu0 0.0
  %7045 = vmatprep.subr.mxu0 0.0
  %7046 = vmatpush1.msra.mxu0 0.0
  %7047 = vmatprep.subr.mxu0 0.0
  %7048 = vmatpush1.msra.mxu0 0.0
  %7049 = vmatprep.subr.mxu0 0.0
  %7050 = vmatpush1.msra.mxu0 0.0
  %7051 = vmatprep.mubr.f32.mxu0 0.0
  %7052 = vmatmul.mubr.f32.gmra.mrb[0].mxu0 %v6889
  %v7053 = vpop.f32.mrb[0].mxu0
  %v7054 = vadd.f32 0.0, %v7053
  %v7055 = vpop.f32.mrb[0].mxu0
  %7056 = vmatprep.mubr.f32.mxu0 0.0
  %7057 = vmatmul.mubr.f32.gmra.mrb[0].mxu0 %v6890
  %v7058 = vpop.f32.mrb[0].mxu0
  %v7059 = vadd.f32 0.0, %v7058
  %v7060 = vpop.f32.mrb[0].mxu0
  %7061 = vmatprep.mubr.f32.mxu0 0.0
  %7062 = vmatmul.mubr.f32.gmra.mrb[0].mxu0 %v6891
  %v7063 = vpop.f32.mrb[0].mxu0
  %v7064 = vadd.f32 0.0, %v7063
  %v7065 = vpop.f32.mrb[0].mxu0
  %7066 = vmatprep.mubr.f32.mxu0 0.0
  %7067 = vmatmul.mubr.f32.gmra.mrb[0].mxu0 %v6892
  %v7068 = vpop.f32.mrb[0].mxu0
  %v7069 = vadd.f32 0.0, %v7068
  %v7070 = vpop.f32.mrb[0].mxu0
  %7071 = vmatprep.mubr.f32.mxu0 0.0
  %7072 = vmatmul.mubr.f32.gmra.mrb[0].mxu0 %v6893
  %v7073 = vpop.f32.mrb[0].mxu0
  %v7074 = vadd.f32 0.0, %v7073
  %v7075 = vpop.f32.mrb[0].mxu0
  %7076 = vmatprep.mubr.f32.mxu0 0.0
  %7077 = vmatmul.mubr.f32.gmra.mrb[0].mxu0 %v6894
  %v7078 = vpop.f32.mrb[0].mxu0
  %v7079 = vadd.f32 0.0, %v7078
  %v7080 = vpop.f32.mrb[0].mxu0
  %7081 = vmatprep.mubr.f32.mxu0 0.0
  %7082 = vmatmul.mubr.f32.gmra.mrb[0].mxu0 %v6895
  %v7083 = vpop.f32.mrb[0].mxu0
  %v7084 = vadd.f32 0.0, %v7083
  %v7085 = vpop.f32.mrb[0].mxu0
  %7086 = vmatprep.mubr.f32.mxu0 0.0
  %7087 = vmatmul.mubr.f32.gmra.mrb[0].mxu0 %v6896
  %v7088 = vpop.f32.mrb[0].mxu0
  %v7089 = vadd.f32 0.0, %v7088
  %v7090 = vpop.f32.mrb[0].mxu0
  %7091 = vmatprep.mubr.f32.mxu0 0.0
  %7092 = vmatmul.mubr.f32.gmra.mrb[0].mxu0 %v6897
  %v7093 = vpop.f32.mrb[0].mxu0
  %v7094 = vadd.f32 0.0, %v7093
  %v7095 = vpop.f32.mrb[0].mxu0
  %7096 = vmatprep.mubr.f32.mxu0 0.0
  %7097 = vmatmul.mubr.f32.gmra.mrb[0].mxu0 %v6898
  %v7098 = vpop.f32.mrb[0].mxu0
  %v7099 = vadd.f32 0.0, %v7098
  %v7100 = vpop.f32.mrb[0].mxu0
  %7101 = vmatprep.mubr.f32.mxu0 0.0
  %7102 = vmatmul.mubr.f32.gmra.mrb[0].mxu0 %v6899
  %v7103 = vpop.f32.mrb[0].mxu0
  %v7104 = vadd.f32 0.0, %v7103
  %v7105 = vpop.f32.mrb[0].mxu0
  %7106 = vmatprep.mubr.f32.mxu0 0.0
  %7107 = vmatmul.mubr.f32.gmra.mrb[0].mxu0 %v6900
  %v7108 = vpop.f32.mrb[0].mxu0
  %v7109 = vadd.f32 0.0, %v7108
  %v7110 = vpop.f32.mrb[0].mxu0
  %7111 = vmatprep.mubr.f32.mxu0 0.0
  %7112 = vmatmul.mubr.f32.gmra.mrb[0].mxu0 %v6901
  %v7113 = vpop.f32.mrb[0].mxu0
  %v7114 = vadd.f32 0.0, %v7113
  %v7115 = vpop.f32.mrb[0].mxu0
  %7116 = vmatprep.mubr.f32.mxu0 0.0
  %7117 = vmatmul.mubr.f32.gmra.mrb[0].mxu0 %v6902
  %v7118 = vpop.f32.mrb[0].mxu0
  %v7119 = vadd.f32 0.0, %v7118
  %v7120 = vpop.f32.mrb[0].mxu0
  %7121 = vmatprep.mubr.f32.mxu0 0.0
  %7122 = vmatmul.mubr.f32.gmra.mrb[0].mxu0 %v6903
  %v7123 = vpop.f32.mrb[0].mxu0
  %v7124 = vadd.f32 0.0, %v7123
  %v7125 = vpop.f32.mrb[0].mxu0
  %7126 = vmatprep.mubr.f32.mxu0 0.0
  %7127 = vmatmul.mubr.f32.gmra.mrb[0].mxu0 %v6904
  %v7128 = vpop.f32.mrb[0].mxu0
  %v7129 = vadd.f32 0.0, %v7128
  %v7130 = vpop.f32.mrb[0].mxu0
  %7131 = vmatprep.mubr.f32.mxu0 0.0
  %7132 = vmatmul.mubr.f32.gmra.mrb[0].mxu0 %v6905
  %v7133 = vpop.f32.mrb[0].mxu0
  %v7134 = vadd.f32 0.0, %v7133
  %v7135 = vpop.f32.mrb[0].mxu0
  %7136 = vmatprep.mubr.f32.mxu0 0.0
  %7137 = vmatmul.mubr.f32.gmra.mrb[0].mxu0 %v6906
  %v7138 = vpop.f32.mrb[0].mxu0
  %v7139 = vadd.f32 0.0, %v7138
  %v7140 = vpop.f32.mrb[0].mxu0
  %7141 = vmatprep.mubr.f32.mxu0 0.0
  %7142 = vmatmul.mubr.f32.gmra.mrb[0].mxu0 %v6907
  %v7143 = vpop.f32.mrb[0].mxu0
  %v7144 = vadd.f32 0.0, %v7143
  %v7145 = vpop.f32.mrb[0].mxu0
  %7146 = vmatprep.mubr.f32.mxu0 0.0
  %7147 = vmatmul.mubr.f32.gmra.mrb[0].mxu0 %v6908
  %v7148 = vpop.f32.mrb[0].mxu0
  %v7149 = vadd.f32 0.0, %v7148
  %v7150 = vpop.f32.mrb[0].mxu0
  %7151 = vmatprep.mubr.f32.mxu0 0.0
  %7152 = vmatmul.mubr.f32.gmra.mrb[0].mxu0 %v6909
  %v7153 = vpop.f32.mrb[0].mxu0
  %v7154 = vadd.f32 0.0, %v7153
  %v7155 = vpop.f32.mrb[0].mxu0
  %7156 = vmatprep.mubr.f32.mxu0 0.0
  %7157 = vmatmul.mubr.f32.gmra.mrb[0].mxu0 %v6910
  %v7158 = vpop.f32.mrb[0].mxu0
  %v7159 = vadd.f32 0.0, %v7158
  %v7160 = vpop.f32.mrb[0].mxu0
  %7161 = vmatprep.mubr.f32.mxu0 0.0
  %7162 = vmatmul.mubr.f32.gmra.mrb[0].mxu0 %v6911
  %v7163 = vpop.f32.mrb[0].mxu0
  %v7164 = vadd.f32 0.0, %v7163
  %v7165 = vpop.f32.mrb[0].mxu0
  %7166 = vmatprep.mubr.f32.mxu0 0.0
  %7167 = vmatmul.mubr.f32.gmra.mrb[0].mxu0 %v6912
  %v7168 = vpop.f32.mrb[0].mxu0
  %v7169 = vadd.f32 0.0, %v7168
  %v7170 = vpop.f32.mrb[0].mxu0
  %7171 = vmatprep.mubr.f32.mxu0 0.0
  %7172 = vmatmul.mubr.f32.gmra.mrb[0].mxu0 %v6913
  %v7173 = vpop.f32.mrb[0].mxu0
  %v7174 = vadd.f32 0.0, %v7173
  %v7175 = vpop.f32.mrb[0].mxu0
  %7176 = vmatprep.mubr.f32.mxu0 0.0
  %7177 = vmatmul.mubr.f32.gmra.mrb[0].mxu0 %v6914
  %v7178 = vpop.f32.mrb[0].mxu0
  %v7179 = vadd.f32 0.0, %v7178
  %v7180 = vpop.f32.mrb[0].mxu0
  %7181 = vmatprep.mubr.f32.mxu0 0.0
  %7182 = vmatmul.mubr.f32.gmra.mrb[0].mxu0 %v6915
  %v7183 = vpop.f32.mrb[0].mxu0
  %v7184 = vadd.f32 0.0, %v7183
  %v7185 = vpop.f32.mrb[0].mxu0
  %7186 = vmatprep.mubr.f32.mxu0 0.0
  %7187 = vmatmul.mubr.f32.gmra.mrb[0].mxu0 %v6916
  %v7188 = vpop.f32.mrb[0].mxu0
  %v7189 = vadd.f32 0.0, %v7188
  %v7190 = vpop.f32.mrb[0].mxu0
  %7191 = vmatprep.mubr.f32.mxu0 0.0
  %7192 = vmatmul.mubr.f32.gmra.mrb[0].mxu0 %v6917
  %v7193 = vpop.f32.mrb[0].mxu0
  %v7194 = vadd.f32 0.0, %v7193
  %v7195 = vpop.f32.mrb[0].mxu0
  %7196 = vmatprep.mubr.f32.mxu0 0.0
  %7197 = vmatmul.mubr.f32.gmra.mrb[0].mxu0 %v6918
  %v7198 = vpop.f32.mrb[0].mxu0
  %v7199 = vadd.f32 0.0, %v7198
  %v7200 = vpop.f32.mrb[0].mxu0
  %7201 = vmatprep.mubr.f32.mxu0 0.0
  %7202 = vmatmul.mubr.f32.gmra.mrb[0].mxu0 %v6919
  %v7203 = vpop.f32.mrb[0].mxu0
  %v7204 = vadd.f32 0.0, %v7203
  %v7205 = vpop.f32.mrb[0].mxu0
  %7206 = vmatprep.mubr.f32.mxu0 0.0
  %7207 = vmatmul.mubr.f32.gmra.mrb[0].mxu0 %v6920
  %v7208 = vpop.f32.mrb[0].mxu0
  %v7209 = vadd.f32 0.0, %v7208
  %v7210 = vpop.f32.mrb[0].mxu0
  %7211 = vmatprep.mubr.f32.mxu0 0.0
  %7212 = vmatmul.mubr.f32.gmra.mrb[0].mxu0 %v6921
  %v7213 = vpop.f32.mrb[0].mxu0
  %v7214 = vadd.f32 0.0, %v7213
  %v7215 = vpop.f32.mrb[0].mxu0
  %7216 = vmatprep.mubr.f32.mxu0 0.0
  %7217 = vmatmul.mubr.f32.gmra.mrb[0].mxu0 %v6922
  %v7218 = vpop.f32.mrb[0].mxu0
  %v7219 = vadd.f32 0.0, %v7218
  %v7220 = vpop.f32.mrb[0].mxu0
  %7221 = vmatprep.mubr.f32.mxu0 0.0
  %7222 = vmatmul.mubr.f32.gmra.mrb[0].mxu0 %v6923
  %v7223 = vpop.f32.mrb[0].mxu0
  %v7224 = vadd.f32 0.0, %v7223
  %v7225 = vpop.f32.mrb[0].mxu0
  %7226 = vmatprep.mubr.f32.mxu0 0.0
  %7227 = vmatmul.mubr.f32.gmra.mrb[0].mxu0 %v6924
  %v7228 = vpop.f32.mrb[0].mxu0
  %v7229 = vadd.f32 0.0, %v7228
  %v7230 = vpop.f32.mrb[0].mxu0
  %7231 = vmatprep.mubr.f32.mxu0 0.0
  %7232 = vmatmul.mubr.f32.gmra.mrb[0].mxu0 %v6925
  %v7233 = vpop.f32.mrb[0].mxu0
  %v7234 = vadd.f32 0.0, %v7233
  %v7235 = vpop.f32.mrb[0].mxu0
  %7236 = vmatprep.mubr.f32.mxu0 0.0
  %7237 = vmatmul.mubr.f32.gmra.mrb[0].mxu0 %v6926
  %v7238 = vpop.f32.mrb[0].mxu0
  %v7239 = vadd.f32 0.0, %v7238
  %v7240 = vpop.f32.mrb[0].mxu0
  %7241 = vmatprep.mubr.f32.mxu0 0.0
  %7242 = vmatmul.mubr.f32.gmra.mrb[0].mxu0 %v6927
  %v7243 = vpop.f32.mrb[0].mxu0
  %v7244 = vadd.f32 0.0, %v7243
  %v7245 = vpop.f32.mrb[0].mxu0
  %7246 = vmatprep.mubr.f32.mxu0 0.0
  %7247 = vmatmul.mubr.f32.gmra.mrb[0].mxu0 %v6928
  %v7248 = vpop.f32.mrb[0].mxu0
  %v7249 = vadd.f32 0.0, %v7248
  %v7250 = vpop.f32.mrb[0].mxu0
  %7251 = vmatprep.mubr.f32.mxu0 0.0
  %7252 = vmatmul.mubr.f32.gmra.mrb[0].mxu0 %v6929
  %v7253 = vpop.f32.mrb[0].mxu0
  %v7254 = vadd.f32 0.0, %v7253
  %v7255 = vpop.f32.mrb[0].mxu0
  %7256 = vmatprep.mubr.f32.mxu0 0.0
  %7257 = vmatmul.mubr.f32.gmra.mrb[0].mxu0 %v6930
  %v7258 = vpop.f32.mrb[0].mxu0
  %v7259 = vadd.f32 0.0, %v7258
  %v7260 = vpop.f32.mrb[0].mxu0
  %7261 = vmatprep.mubr.f32.mxu0 0.0
  %7262 = vmatmul.mubr.f32.gmra.mrb[0].mxu0 %v6931
  %v7263 = vpop.f32.mrb[0].mxu0
  %v7264 = vadd.f32 0.0, %v7263
  %v7265 = vpop.f32.mrb[0].mxu0
  %7266 = vmatprep.mubr.f32.mxu0 0.0
  %7267 = vmatmul.mubr.f32.gmra.mrb[0].mxu0 %v6932
  %v7268 = vpop.f32.mrb[0].mxu0
  %v7269 = vadd.f32 0.0, %v7268
  %v7270 = vpop.f32.mrb[0].mxu0
  %7271 = vmatprep.mubr.f32.mxu0 0.0
  %7272 = vmatmul.mubr.f32.gmra.mrb[0].mxu0 %v6933
  %v7273 = vpop.f32.mrb[0].mxu0
  %v7274 = vadd.f32 0.0, %v7273
  %v7275 = vpop.f32.mrb[0].mxu0
  %7276 = vmatprep.mubr.f32.mxu0 0.0
  %7277 = vmatmul.mubr.f32.gmra.mrb[0].mxu0 %v6934
  %v7278 = vpop.f32.mrb[0].mxu0
  %v7279 = vadd.f32 0.0, %v7278
  %v7280 = vpop.f32.mrb[0].mxu0
  %7281 = vmatprep.mubr.f32.mxu0 0.0
  %7282 = vmatmul.mubr.f32.gmra.mrb[0].mxu0 %v6935
  %v7283 = vpop.f32.mrb[0].mxu0
  %v7284 = vadd.f32 0.0, %v7283
  %v7285 = vpop.f32.mrb[0].mxu0
  %7286 = vmatprep.mubr.f32.mxu0 0.0
  %7287 = vmatmul.mubr.f32.gmra.mrb[0].mxu0 %v6936
  %v7288 = vpop.f32.mrb[0].mxu0
  %v7289 = vadd.f32 0.0, %v7288
  %v7290 = vpop.f32.mrb[0].mxu0
  %7291 = vmatprep.mubr.f32.mxu0 0.0
  %7292 = vmatmul.mubr.f32.gmra.mrb[0].mxu0 %v6937
  %v7293 = vpop.f32.mrb[0].mxu0
  %v7294 = vadd.f32 0.0, %v7293
  %v7295 = vpop.f32.mrb[0].mxu0
  %7296 = vmatprep.mubr.f32.mxu0 0.0
  %7297 = vmatmul.mubr.f32.gmra.mrb[0].mxu0 %v6938
  %v7298 = vpop.f32.mrb[0].mxu0
  %v7299 = vadd.f32 0.0, %v7298
  %v7300 = vpop.f32.mrb[0].mxu0
  %7301 = vmatprep.mubr.f32.mxu0 0.0
  %7302 = vmatmul.mubr.f32.gmra.mrb[0].mxu0 %v6939
  %v7303 = vpop.f32.mrb[0].mxu0
  %v7304 = vadd.f32 0.0, %v7303
  %v7305 = vpop.f32.mrb[0].mxu0
  %7306 = vmatprep.mubr.f32.mxu0 0.0
  %7307 = vmatmul.mubr.f32.gmra.mrb[0].mxu0 %v6940
  %v7308 = vpop.f32.mrb[0].mxu0
  %v7309 = vadd.f32 0.0, %v7308
  %v7310 = vpop.f32.mrb[0].mxu0
  %7311 = vmatprep.mubr.f32.mxu0 0.0
  %7312 = vmatmul.mubr.f32.gmra.mrb[0].mxu0 %v6941
  %v7313 = vpop.f32.mrb[0].mxu0
  %v7314 = vadd.f32 0.0, %v7313
  %v7315 = vpop.f32.mrb[0].mxu0
  %7316 = vmatprep.mubr.f32.mxu0 0.0
  %7317 = vmatmul.mubr.f32.gmra.mrb[0].mxu0 %v6942
  %v7318 = vpop.f32.mrb[0].mxu0
  %v7319 = vadd.f32 0.0, %v7318
  %v7320 = vpop.f32.mrb[0].mxu0
  %7321 = vmatprep.mubr.f32.mxu0 0.0
  %7322 = vmatmul.mubr.f32.gmra.mrb[0].mxu0 %v6943
  %v7323 = vpop.f32.mrb[0].mxu0
  %v7324 = vadd.f32 0.0, %v7323
  %v7325 = vpop.f32.mrb[0].mxu0
  %7326 = vmatprep.mubr.f32.mxu0 0.0
  %7327 = vmatmul.mubr.f32.gmra.mrb[0].mxu0 %v6944
  %v7328 = vpop.f32.mrb[0].mxu0
  %v7329 = vadd.f32 0.0, %v7328
  %v7330 = vpop.f32.mrb[0].mxu0
  %7331 = vmatprep.mubr.f32.mxu0 0.0
  %7332 = vmatmul.mubr.f32.gmra.mrb[0].mxu0 %v6945
  %v7333 = vpop.f32.mrb[0].mxu0
  %v7334 = vadd.f32 0.0, %v7333
  %v7335 = vpop.f32.mrb[0].mxu0
  %7336 = vmatprep.mubr.f32.mxu0 0.0
  %7337 = vmatmul.mubr.f32.gmra.mrb[0].mxu0 %v6946
  %v7338 = vpop.f32.mrb[0].mxu0
  %v7339 = vadd.f32 0.0, %v7338
  %v7340 = vpop.f32.mrb[0].mxu0
  %7341 = vmatprep.mubr.f32.mxu0 0.0
  %7342 = vmatmul.mubr.f32.gmra.mrb[0].mxu0 %v6947
  %v7343 = vpop.f32.mrb[0].mxu0
  %v7344 = vadd.f32 0.0, %v7343
  %v7345 = vpop.f32.mrb[0].mxu0
  %7346 = vmatprep.mubr.f32.mxu0 0.0
  %7347 = vmatmul.mubr.f32.gmra.mrb[0].mxu0 %v6948
  %v7348 = vpop.f32.mrb[0].mxu0
  %v7349 = vadd.f32 0.0, %v7348
  %v7350 = vpop.f32.mrb[0].mxu0
  %7351 = vmatprep.mubr.f32.mxu0 0.0
  %7352 = vmatmul.mubr.f32.gmra.mrb[0].mxu0 %v6949
  %v7353 = vpop.f32.mrb[0].mxu0
  %v7354 = vadd.f32 0.0, %v7353
  %v7355 = vpop.f32.mrb[0].mxu0
  %7356 = vmatprep.mubr.f32.mxu0 0.0
  %7357 = vmatmul.mubr.f32.gmra.mrb[0].mxu0 %v6950
  %v7358 = vpop.f32.mrb[0].mxu0
  %v7359 = vadd.f32 0.0, %v7358
  %v7360 = vpop.f32.mrb[0].mxu0
  %7361 = vmatprep.mubr.f32.mxu0 0.0
  %7362 = vmatmul.mubr.f32.gmra.mrb[0].mxu0 %v6951
  %v7363 = vpop.f32.mrb[0].mxu0
  %v7364 = vadd.f32 0.0, %v7363
  %v7365 = vpop.f32.mrb[0].mxu0
  %7366 = vmatprep.mubr.f32.mxu0 0.0
  %7367 = vmatmul.mubr.f32.gmra.mrb[0].mxu0 %v6952
  %v7368 = vpop.f32.mrb[0].mxu0
  %v7369 = vadd.f32 0.0, %v7368
  %v7370 = vpop.f32.mrb[0].mxu0
  %7371 = vmatprep.mubr.f32.mxu0 0.0
  %7372 = vmatmul.mubr.f32.gmra.mrb[0].mxu0 %v6953
  %v7373 = vpop.f32.mrb[0].mxu0
  %v7374 = vadd.f32 0.0, %v7373
  %v7375 = vpop.f32.mrb[0].mxu0
  %7376 = vmatprep.mubr.f32.mxu0 0.0
  %7377 = vmatmul.mubr.f32.gmra.mrb[0].mxu0 %v6954
  %v7378 = vpop.f32.mrb[0].mxu0
  %v7379 = vadd.f32 0.0, %v7378
  %v7380 = vpop.f32.mrb[0].mxu0
  %7381 = vmatprep.mubr.f32.mxu0 0.0
  %7382 = vmatmul.mubr.f32.gmra.mrb[0].mxu0 %v6955
  %v7383 = vpop.f32.mrb[0].mxu0
  %v7384 = vadd.f32 0.0, %v7383
  %v7385 = vpop.f32.mrb[0].mxu0
  %7386 = vmatprep.mubr.f32.mxu0 0.0
  %7387 = vmatmul.mubr.f32.gmra.mrb[0].mxu0 %v6956
  %v7388 = vpop.f32.mrb[0].mxu0
  %v7389 = vadd.f32 0.0, %v7388
  %v7390 = vpop.f32.mrb[0].mxu0
  %7391 = vmatprep.mubr.f32.mxu0 0.0
  %7392 = vmatmul.mubr.f32.gmra.mrb[0].mxu0 %v6957
  %v7393 = vpop.f32.mrb[0].mxu0
  %v7394 = vadd.f32 0.0, %v7393
  %v7395 = vpop.f32.mrb[0].mxu0
  %7396 = vmatprep.mubr.f32.mxu0 0.0
  %7397 = vmatmul.mubr.f32.gmra.mrb[0].mxu0 %v6958
  %v7398 = vpop.f32.mrb[0].mxu0
  %v7399 = vadd.f32 0.0, %v7398
  %v7400 = vpop.f32.mrb[0].mxu0
  %7401 = vmatprep.mubr.f32.mxu0 0.0
  %7402 = vmatmul.mubr.f32.gmra.mrb[0].mxu0 %v6959
  %v7403 = vpop.f32.mrb[0].mxu0
  %v7404 = vadd.f32 0.0, %v7403
  %v7405 = vpop.f32.mrb[0].mxu0
  %7406 = vmatprep.mubr.f32.mxu0 0.0
  %7407 = vmatmul.mubr.f32.gmra.mrb[0].mxu0 %v6960
  %v7408 = vpop.f32.mrb[0].mxu0
  %v7409 = vadd.f32 0.0, %v7408
  %v7410 = vpop.f32.mrb[0].mxu0
  %7411 = vmatprep.mubr.f32.mxu0 0.0
  %7412 = vmatmul.mubr.f32.gmra.mrb[0].mxu0 %v6961
  %v7413 = vpop.f32.mrb[0].mxu0
  %v7414 = vadd.f32 0.0, %v7413
  %v7415 = vpop.f32.mrb[0].mxu0
  %7416 = vmatprep.mubr.f32.mxu0 0.0
  %7417 = vmatmul.mubr.f32.gmra.mrb[0].mxu0 %v6962
  %v7418 = vpop.f32.mrb[0].mxu0
  %v7419 = vadd.f32 0.0, %v7418
  %v7420 = vpop.f32.mrb[0].mxu0
  %7421 = vmatprep.mubr.f32.mxu0 0.0
  %7422 = vmatmul.mubr.f32.gmra.mrb[0].mxu0 %v6963
  %v7423 = vpop.f32.mrb[0].mxu0
  %v7424 = vadd.f32 0.0, %v7423
  %v7425 = vpop.f32.mrb[0].mxu0
  %7426 = vmatprep.mubr.f32.mxu0 0.0
  %7427 = vmatmul.mubr.f32.gmra.mrb[0].mxu0 %v6964
  %v7428 = vpop.f32.mrb[0].mxu0
  %v7429 = vadd.f32 0.0, %v7428
  %v7430 = vpop.f32.mrb[0].mxu0
  %7431 = vmatprep.mubr.f32.mxu0 0.0
  %7432 = vmatmul.mubr.f32.gmra.mrb[0].mxu0 %v6965
  %v7433 = vpop.f32.mrb[0].mxu0
  %v7434 = vadd.f32 0.0, %v7433
  %v7435 = vpop.f32.mrb[0].mxu0
  %7436 = vmatprep.mubr.f32.mxu0 0.0
  %7437 = vmatmul.mubr.f32.gmra.mrb[0].mxu0 %v6966
  %v7438 = vpop.f32.mrb[0].mxu0
  %v7439 = vadd.f32 0.0, %v7438
  %v7440 = vpop.f32.mrb[0].mxu0
  %7441 = vmatprep.mubr.f32.mxu0 0.0
  %7442 = vmatmul.mubr.f32.gmra.mrb[0].mxu0 %v6967
  %v7443 = vpop.f32.mrb[0].mxu0
  %v7444 = vadd.f32 0.0, %v7443
  %v7445 = vpop.f32.mrb[0].mxu0
  %7446 = vmatprep.mubr.f32.mxu0 0.0
  %7447 = vmatmul.mubr.f32.gmra.mrb[0].mxu0 %v6968
  %v7448 = vpop.f32.mrb[0].mxu0
  %v7449 = vadd.f32 0.0, %v7448
  %v7450 = vpop.f32.mrb[0].mxu0
  %7451 = vmatprep.mubr.f32.mxu0 0.0
  %7452 = vmatmul.mubr.f32.gmra.mrb[0].mxu0 %v6969
  %v7453 = vpop.f32.mrb[0].mxu0
  %v7454 = vadd.f32 0.0, %v7453
  %v7455 = vpop.f32.mrb[0].mxu0
  %7456 = vdwg.mxu0
  %v7457 = vadd.f32 %v6808, %v7054
  %v7458 = vadd.f32 %v6809, %v7059
  %v7459 = vadd.f32 %v6810, %v7064
  %v7460 = vadd.f32 %v6811, %v7069
  %v7461 = vadd.f32 %v6812, %v7074
  %v7462 = vadd.f32 %v6813, %v7079
  %v7463 = vadd.f32 %v6814, %v7084
  %v7464 = vadd.f32 %v6815, %v7089
  %v7465 = vadd.f32 %v6816, %v7094
  %v7466 = vadd.f32 %v6817, %v7099
  %v7467 = vadd.f32 %v6818, %v7104
  %v7468 = vadd.f32 %v6819, %v7109
  %v7469 = vadd.f32 %v6820, %v7114
  %v7470 = vadd.f32 %v6821, %v7119
  %v7471 = vadd.f32 %v6822, %v7124
  %v7472 = vadd.f32 %v6823, %v7129
  %v7473 = vadd.f32 %v6824, %v7134
  %v7474 = vadd.f32 %v6825, %v7139
  %v7475 = vadd.f32 %v6826, %v7144
  %v7476 = vadd.f32 %v6827, %v7149
  %v7477 = vadd.f32 %v6828, %v7154
  %v7478 = vadd.f32 %v6829, %v7159
  %v7479 = vadd.f32 %v6830, %v7164
  %v7480 = vadd.f32 %v6831, %v7169
  %v7481 = vadd.f32 %v6832, %v7174
  %v7482 = vadd.f32 %v6833, %v7179
  %v7483 = vadd.f32 %v6834, %v7184
  %v7484 = vadd.f32 %v6835, %v7189
  %v7485 = vadd.f32 %v6836, %v7194
  %v7486 = vadd.f32 %v6837, %v7199
  %v7487 = vadd.f32 %v6838, %v7204
  %v7488 = vadd.f32 %v6839, %v7209
  %v7489 = vadd.f32 %v6840, %v7214
  %v7490 = vadd.f32 %v6841, %v7219
  %v7491 = vadd.f32 %v6842, %v7224
  %v7492 = vadd.f32 %v6843, %v7229
  %v7493 = vadd.f32 %v6844, %v7234
  %v7494 = vadd.f32 %v6845, %v7239
  %v7495 = vadd.f32 %v6846, %v7244
  %v7496 = vadd.f32 %v6847, %v7249
  %v7497 = vadd.f32 %v6848, %v7254
  %v7498 = vadd.f32 %v6849, %v7259
  %v7499 = vadd.f32 %v6850, %v7264
  %v7500 = vadd.f32 %v6851, %v7269
  %v7501 = vadd.f32 %v6852, %v7274
  %v7502 = vadd.f32 %v6853, %v7279
  %v7503 = vadd.f32 %v6854, %v7284
  %v7504 = vadd.f32 %v6855, %v7289
  %v7505 = vadd.f32 %v6856, %v7294
  %v7506 = vadd.f32 %v6857, %v7299
  %v7507 = vadd.f32 %v6858, %v7304
  %v7508 = vadd.f32 %v6859, %v7309
  %v7509 = vadd.f32 %v6860, %v7314
  %v7510 = vadd.f32 %v6861, %v7319
  %v7511 = vadd.f32 %v6862, %v7324
  %v7512 = vadd.f32 %v6863, %v7329
  %v7513 = vadd.f32 %v6864, %v7334
  %v7514 = vadd.f32 %v6865, %v7339
  %v7515 = vadd.f32 %v6866, %v7344
  %v7516 = vadd.f32 %v6867, %v7349
  %v7517 = vadd.f32 %v6868, %v7354
  %v7518 = vadd.f32 %v6869, %v7359
  %v7519 = vadd.f32 %v6870, %v7364
  %v7520 = vadd.f32 %v6871, %v7369
  %v7521 = vadd.f32 %v6872, %v7374
  %v7522 = vadd.f32 %v6873, %v7379
  %v7523 = vadd.f32 %v6874, %v7384
  %v7524 = vadd.f32 %v6875, %v7389
  %v7525 = vadd.f32 %v6876, %v7394
  %v7526 = vadd.f32 %v6877, %v7399
  %v7527 = vadd.f32 %v6878, %v7404
  %v7528 = vadd.f32 %v6879, %v7409
  %v7529 = vadd.f32 %v6880, %v7414
  %v7530 = vadd.f32 %v6881, %v7419
  %v7531 = vadd.f32 %v6882, %v7424
  %v7532 = vadd.f32 %v6883, %v7429
  %v7533 = vadd.f32 %v6884, %v7434
  %v7534 = vadd.f32 %v6885, %v7439
  %v7535 = vadd.f32 %v6886, %v7444
  %v7536 = vadd.f32 %v6887, %v7449
  %v7537 = vadd.f32 %v6888, %v7454
  %v7538 = vmul.f32 %v7457, %v1290
  %v7539 = vmul.f32 %v7458, %v1295
  %v7540 = vmul.f32 %v7459, %v1300
  %v7541 = vmul.f32 %v7460, %v1305
  %v7542 = vmul.f32 %v7461, %v1310
  %v7543 = vmul.f32 %v7462, %v1315
  %v7544 = vmul.f32 %v7463, %v1320
  %v7545 = vmul.f32 %v7464, %v1325
  %v7546 = vmul.f32 %v7465, %v1330
  %v7547 = vmul.f32 %v7466, %v1335
  %v7548 = vmul.f32 %v7467, %v1340
  %v7549 = vmul.f32 %v7468, %v1345
  %v7550 = vmul.f32 %v7469, %v1350
  %v7551 = vmul.f32 %v7470, %v1355
  %v7552 = vmul.f32 %v7471, %v1360
  %v7553 = vmul.f32 %v7472, %v1365
  %v7554 = vmul.f32 %v7473, %v1370
  %v7555 = vmul.f32 %v7474, %v1375
  %v7556 = vmul.f32 %v7475, %v1380
  %v7557 = vmul.f32 %v7476, %v1385
  %v7558 = vmul.f32 %v7477, %v1390
  %v7559 = vmul.f32 %v7478, %v1395
  %v7560 = vmul.f32 %v7479, %v1400
  %v7561 = vmul.f32 %v7480, %v1405
  %v7562 = vmul.f32 %v7481, %v1410
  %v7563 = vmul.f32 %v7482, %v1415
  %v7564 = vmul.f32 %v7483, %v1420
  %v7565 = vmul.f32 %v7484, %v1425
  %v7566 = vmul.f32 %v7485, %v1430
  %v7567 = vmul.f32 %v7486, %v1435
  %v7568 = vmul.f32 %v7487, %v1440
  %v7569 = vmul.f32 %v7488, %v1445
  %v7570 = vmul.f32 %v7489, %v1450
  %v7571 = vmul.f32 %v7490, %v1455
  %v7572 = vmul.f32 %v7491, %v1460
  %v7573 = vmul.f32 %v7492, %v1465
  %v7574 = vmul.f32 %v7493, %v1470
  %v7575 = vmul.f32 %v7494, %v1475
  %v7576 = vmul.f32 %v7495, %v1480
  %v7577 = vmul.f32 %v7496, %v1485
  %v7578 = vmul.f32 %v7497, %v1490
  %v7579 = vmul.f32 %v7498, %v1495
  %v7580 = vmul.f32 %v7499, %v1500
  %v7581 = vmul.f32 %v7500, %v1505
  %v7582 = vmul.f32 %v7501, %v1510
  %v7583 = vmul.f32 %v7502, %v1515
  %v7584 = vmul.f32 %v7503, %v1520
  %v7585 = vmul.f32 %v7504, %v1525
  %v7586 = vmul.f32 %v7505, %v1530
  %v7587 = vmul.f32 %v7506, %v1535
  %v7588 = vmul.f32 %v7507, %v1540
  %v7589 = vmul.f32 %v7508, %v1545
  %v7590 = vmul.f32 %v7509, %v1550
  %v7591 = vmul.f32 %v7510, %v1555
  %v7592 = vmul.f32 %v7511, %v1560
  %v7593 = vmul.f32 %v7512, %v1565
  %v7594 = vmul.f32 %v7513, %v1570
  %v7595 = vmul.f32 %v7514, %v1575
  %v7596 = vmul.f32 %v7515, %v1580
  %v7597 = vmul.f32 %v7516, %v1585
  %v7598 = vmul.f32 %v7517, %v1590
  %v7599 = vmul.f32 %v7518, %v1595
  %v7600 = vmul.f32 %v7519, %v1600
  %v7601 = vmul.f32 %v7520, %v1605
  %v7602 = vmul.f32 %v7521, %v1610
  %v7603 = vmul.f32 %v7522, %v1615
  %v7604 = vmul.f32 %v7523, %v1620
  %v7605 = vmul.f32 %v7524, %v1625
  %v7606 = vmul.f32 %v7525, %v1630
  %v7607 = vmul.f32 %v7526, %v1635
  %v7608 = vmul.f32 %v7527, %v1640
  %v7609 = vmul.f32 %v7528, %v1645
  %v7610 = vmul.f32 %v7529, %v1650
  %v7611 = vmul.f32 %v7530, %v1655
  %v7612 = vmul.f32 %v7531, %v1660
  %v7613 = vmul.f32 %v7532, %v1665
  %v7614 = vmul.f32 %v7533, %v1670
  %v7615 = vmul.f32 %v7534, %v1675
  %v7616 = vmul.f32 %v7535, %v1680
  %v7617 = vmul.f32 %v7536, %v1685
  %v7618 = vmul.f32 %v7537, %v1690
  %v7619 = vadd.f32 %v7538, %v7539
  %v7620 = vadd.f32 %v7619, %v7540
  %v7621 = vadd.f32 %v7620, %v7541
  %v7622 = vadd.f32 %v7621, %v7542
  %v7623 = vadd.f32 %v7622, %v7543
  %v7624 = vadd.f32 %v7623, %v7544
  %v7625 = vadd.f32 %v7624, %v7545
  %v7626 = vadd.f32 %v7625, %v7546
  %v7627 = vadd.f32 %v7626, %v7547
  %v7628 = vadd.f32 %v7627, %v7548
  %v7629 = vadd.f32 %v7628, %v7549
  %v7630 = vadd.f32 %v7629, %v7550
  %v7631 = vadd.f32 %v7630, %v7551
  %v7632 = vadd.f32 %v7631, %v7552
  %v7633 = vadd.f32 %v7632, %v7553
  %v7634 = vadd.f32 %v7633, %v7554
  %v7635 = vadd.f32 %v7634, %v7555
  %v7636 = vadd.f32 %v7635, %v7556
  %v7637 = vadd.f32 %v7636, %v7557
  %v7638 = vadd.f32 %v7637, %v7558
  %v7639 = vadd.f32 %v7638, %v7559
  %v7640 = vadd.f32 %v7639, %v7560
  %v7641 = vadd.f32 %v7640, %v7561
  %v7642 = vadd.f32 %v7641, %v7562
  %v7643 = vadd.f32 %v7642, %v7563
  %v7644 = vadd.f32 %v7643, %v7564
  %v7645 = vadd.f32 %v7644, %v7565
  %v7646 = vadd.f32 %v7645, %v7566
  %v7647 = vadd.f32 %v7646, %v7567
  %v7648 = vadd.f32 %v7647, %v7568
  %v7649 = vadd.f32 %v7648, %v7569
  %v7650 = vadd.f32 %v7649, %v7570
  %v7651 = vadd.f32 %v7650, %v7571
  %v7652 = vadd.f32 %v7651, %v7572
  %v7653 = vadd.f32 %v7652, %v7573
  %v7654 = vadd.f32 %v7653, %v7574
  %v7655 = vadd.f32 %v7654, %v7575
  %v7656 = vadd.f32 %v7655, %v7576
  %v7657 = vadd.f32 %v7656, %v7577
  %v7658 = vadd.f32 %v7657, %v7578
  %v7659 = vadd.f32 %v7658, %v7579
  %v7660 = vadd.f32 %v7659, %v7580
  %v7661 = vadd.f32 %v7660, %v7581
  %v7662 = vadd.f32 %v7661, %v7582
  %v7663 = vadd.f32 %v7662, %v7583
  %v7664 = vadd.f32 %v7663, %v7584
  %v7665 = vadd.f32 %v7664, %v7585
  %v7666 = vadd.f32 %v7665, %v7586
  %v7667 = vadd.f32 %v7666, %v7587
  %v7668 = vadd.f32 %v7667, %v7588
  %v7669 = vadd.f32 %v7668, %v7589
  %v7670 = vadd.f32 %v7669, %v7590
  %v7671 = vadd.f32 %v7670, %v7591
  %v7672 = vadd.f32 %v7671, %v7592
  %v7673 = vadd.f32 %v7672, %v7593
  %v7674 = vadd.f32 %v7673, %v7594
  %v7675 = vadd.f32 %v7674, %v7595
  %v7676 = vadd.f32 %v7675, %v7596
  %v7677 = vadd.f32 %v7676, %v7597
  %v7678 = vadd.f32 %v7677, %v7598
  %v7679 = vadd.f32 %v7678, %v7599
  %v7680 = vadd.f32 %v7679, %v7600
  %v7681 = vadd.f32 %v7680, %v7601
  %v7682 = vadd.f32 %v7681, %v7602
  %v7683 = vadd.f32 %v7682, %v7603
  %v7684 = vadd.f32 %v7683, %v7604
  %v7685 = vadd.f32 %v7684, %v7605
  %v7686 = vadd.f32 %v7685, %v7606
  %v7687 = vadd.f32 %v7686, %v7607
  %v7688 = vadd.f32 %v7687, %v7608
  %v7689 = vadd.f32 %v7688, %v7609
  %v7690 = vadd.f32 %v7689, %v7610
  %v7691 = vadd.f32 %v7690, %v7611
  %v7692 = vadd.f32 %v7691, %v7612
  %v7693 = vadd.f32 %v7692, %v7613
  %v7694 = vadd.f32 %v7693, %v7614
  %v7695 = vadd.f32 %v7694, %v7615
  %v7696 = vadd.f32 %v7695, %v7616
  %v7697 = vadd.f32 %v7696, %v7617
  %v7698 = vadd.f32 %v7697, %v7618
  %v7699 = vrot.slane %v7698, 4
  %v7700 = vadd.f32 %v7698, %v7699
  %v7701 = vrot.slane %v7700, 2
  %v7702 = vadd.f32 %v7700, %v7701
  %v7703 = vrot.slane %v7702, 1
  %v7704 = vadd.f32 %v7702, %v7703
  %v7705 = vmul.f32 %v7538, %v7538
  %v7706 = vmul.f32 %v7539, %v7539
  %v7707 = vmul.f32 %v7540, %v7540
  %v7708 = vmul.f32 %v7541, %v7541
  %v7709 = vmul.f32 %v7542, %v7542
  %v7710 = vmul.f32 %v7543, %v7543
  %v7711 = vmul.f32 %v7544, %v7544
  %v7712 = vmul.f32 %v7545, %v7545
  %v7713 = vmul.f32 %v7546, %v7546
  %v7714 = vmul.f32 %v7547, %v7547
  %v7715 = vmul.f32 %v7548, %v7548
  %v7716 = vmul.f32 %v7549, %v7549
  %v7717 = vmul.f32 %v7550, %v7550
  %v7718 = vmul.f32 %v7551, %v7551
  %v7719 = vmul.f32 %v7552, %v7552
  %v7720 = vmul.f32 %v7553, %v7553
  %v7721 = vmul.f32 %v7554, %v7554
  %v7722 = vmul.f32 %v7555, %v7555
  %v7723 = vmul.f32 %v7556, %v7556
  %v7724 = vmul.f32 %v7557, %v7557
  %v7725 = vmul.f32 %v7558, %v7558
  %v7726 = vmul.f32 %v7559, %v7559
  %v7727 = vmul.f32 %v7560, %v7560
  %v7728 = vmul.f32 %v7561, %v7561
  %v7729 = vmul.f32 %v7562, %v7562
  %v7730 = vmul.f32 %v7563, %v7563
  %v7731 = vmul.f32 %v7564, %v7564
  %v7732 = vmul.f32 %v7565, %v7565
  %v7733 = vmul.f32 %v7566, %v7566
  %v7734 = vmul.f32 %v7567, %v7567
  %v7735 = vmul.f32 %v7568, %v7568
  %v7736 = vmul.f32 %v7569, %v7569
  %v7737 = vmul.f32 %v7570, %v7570
  %v7738 = vmul.f32 %v7571, %v7571
  %v7739 = vmul.f32 %v7572, %v7572
  %v7740 = vmul.f32 %v7573, %v7573
  %v7741 = vmul.f32 %v7574, %v7574
  %v7742 = vmul.f32 %v7575, %v7575
  %v7743 = vmul.f32 %v7576, %v7576
  %v7744 = vmul.f32 %v7577, %v7577
  %v7745 = vmul.f32 %v7578, %v7578
  %v7746 = vmul.f32 %v7579, %v7579
  %v7747 = vmul.f32 %v7580, %v7580
  %v7748 = vmul.f32 %v7581, %v7581
  %v7749 = vmul.f32 %v7582, %v7582
  %v7750 = vmul.f32 %v7583, %v7583
  %v7751 = vmul.f32 %v7584, %v7584
  %v7752 = vmul.f32 %v7585, %v7585
  %v7753 = vmul.f32 %v7586, %v7586
  %v7754 = vmul.f32 %v7587, %v7587
  %v7755 = vmul.f32 %v7588, %v7588
  %v7756 = vmul.f32 %v7589, %v7589
  %v7757 = vmul.f32 %v7590, %v7590
  %v7758 = vmul.f32 %v7591, %v7591
  %v7759 = vmul.f32 %v7592, %v7592
  %v7760 = vmul.f32 %v7593, %v7593
  %v7761 = vmul.f32 %v7594, %v7594
  %v7762 = vmul.f32 %v7595, %v7595
  %v7763 = vmul.f32 %v7596, %v7596
  %v7764 = vmul.f32 %v7597, %v7597
  %v7765 = vmul.f32 %v7598, %v7598
  %v7766 = vmul.f32 %v7599, %v7599
  %v7767 = vmul.f32 %v7600, %v7600
  %v7768 = vmul.f32 %v7601, %v7601
  %v7769 = vmul.f32 %v7602, %v7602
  %v7770 = vmul.f32 %v7603, %v7603
  %v7771 = vmul.f32 %v7604, %v7604
  %v7772 = vmul.f32 %v7605, %v7605
  %v7773 = vmul.f32 %v7606, %v7606
  %v7774 = vmul.f32 %v7607, %v7607
  %v7775 = vmul.f32 %v7608, %v7608
  %v7776 = vmul.f32 %v7609, %v7609
  %v7777 = vmul.f32 %v7610, %v7610
  %v7778 = vmul.f32 %v7611, %v7611
  %v7779 = vmul.f32 %v7612, %v7612
  %v7780 = vmul.f32 %v7613, %v7613
  %v7781 = vmul.f32 %v7614, %v7614
  %v7782 = vmul.f32 %v7615, %v7615
  %v7783 = vmul.f32 %v7616, %v7616
  %v7784 = vmul.f32 %v7617, %v7617
  %v7785 = vmul.f32 %v7618, %v7618
  %v7786 = vadd.f32 %v7705, %v7706
  %v7787 = vadd.f32 %v7786, %v7707
  %v7788 = vadd.f32 %v7787, %v7708
  %v7789 = vadd.f32 %v7788, %v7709
  %v7790 = vadd.f32 %v7789, %v7710
  %v7791 = vadd.f32 %v7790, %v7711
  %v7792 = vadd.f32 %v7791, %v7712
  %v7793 = vadd.f32 %v7792, %v7713
  %v7794 = vadd.f32 %v7793, %v7714
  %v7795 = vadd.f32 %v7794, %v7715
  %v7796 = vadd.f32 %v7795, %v7716
  %v7797 = vadd.f32 %v7796, %v7717
  %v7798 = vadd.f32 %v7797, %v7718
  %v7799 = vadd.f32 %v7798, %v7719
  %v7800 = vadd.f32 %v7799, %v7720
  %v7801 = vadd.f32 %v7800, %v7721
  %v7802 = vadd.f32 %v7801, %v7722
  %v7803 = vadd.f32 %v7802, %v7723
  %v7804 = vadd.f32 %v7803, %v7724
  %v7805 = vadd.f32 %v7804, %v7725
  %v7806 = vadd.f32 %v7805, %v7726
  %v7807 = vadd.f32 %v7806, %v7727
  %v7808 = vadd.f32 %v7807, %v7728
  %v7809 = vadd.f32 %v7808, %v7729
  %v7810 = vadd.f32 %v7809, %v7730
  %v7811 = vadd.f32 %v7810, %v7731
  %v7812 = vadd.f32 %v7811, %v7732
  %v7813 = vadd.f32 %v7812, %v7733
  %v7814 = vadd.f32 %v7813, %v7734
  %v7815 = vadd.f32 %v7814, %v7735
  %v7816 = vadd.f32 %v7815, %v7736
  %v7817 = vadd.f32 %v7816, %v7737
  %v7818 = vadd.f32 %v7817, %v7738
  %v7819 = vadd.f32 %v7818, %v7739
  %v7820 = vadd.f32 %v7819, %v7740
  %v7821 = vadd.f32 %v7820, %v7741
  %v7822 = vadd.f32 %v7821, %v7742
  %v7823 = vadd.f32 %v7822, %v7743
  %v7824 = vadd.f32 %v7823, %v7744
  %v7825 = vadd.f32 %v7824, %v7745
  %v7826 = vadd.f32 %v7825, %v7746
  %v7827 = vadd.f32 %v7826, %v7747
  %v7828 = vadd.f32 %v7827, %v7748
  %v7829 = vadd.f32 %v7828, %v7749
  %v7830 = vadd.f32 %v7829, %v7750
  %v7831 = vadd.f32 %v7830, %v7751
  %v7832 = vadd.f32 %v7831, %v7752
  %v7833 = vadd.f32 %v7832, %v7753
  %v7834 = vadd.f32 %v7833, %v7754
  %v7835 = vadd.f32 %v7834, %v7755
  %v7836 = vadd.f32 %v7835, %v7756
  %v7837 = vadd.f32 %v7836, %v7757
  %v7838 = vadd.f32 %v7837, %v7758
  %v7839 = vadd.f32 %v7838, %v7759
  %v7840 = vadd.f32 %v7839, %v7760
  %v7841 = vadd.f32 %v7840, %v7761
  %v7842 = vadd.f32 %v7841, %v7762
  %v7843 = vadd.f32 %v7842, %v7763
  %v7844 = vadd.f32 %v7843, %v7764
  %v7845 = vadd.f32 %v7844, %v7765
  %v7846 = vadd.f32 %v7845, %v7766
  %v7847 = vadd.f32 %v7846, %v7767
  %v7848 = vadd.f32 %v7847, %v7768
  %v7849 = vadd.f32 %v7848, %v7769
  %v7850 = vadd.f32 %v7849, %v7770
  %v7851 = vadd.f32 %v7850, %v7771
  %v7852 = vadd.f32 %v7851, %v7772
  %v7853 = vadd.f32 %v7852, %v7773
  %v7854 = vadd.f32 %v7853, %v7774
  %v7855 = vadd.f32 %v7854, %v7775
  %v7856 = vadd.f32 %v7855, %v7776
  %v7857 = vadd.f32 %v7856, %v7777
  %v7858 = vadd.f32 %v7857, %v7778
  %v7859 = vadd.f32 %v7858, %v7779
  %v7860 = vadd.f32 %v7859, %v7780
  %v7861 = vadd.f32 %v7860, %v7781
  %v7862 = vadd.f32 %v7861, %v7782
  %v7863 = vadd.f32 %v7862, %v7783
  %v7864 = vadd.f32 %v7863, %v7784
  %v7865 = vadd.f32 %v7864, %v7785
  %v7866 = vrot.slane %v7865, 4
  %v7867 = vadd.f32 %v7865, %v7866
  %v7868 = vrot.slane %v7867, 2
  %v7869 = vadd.f32 %v7867, %v7868
  %v7870 = vrot.slane %v7869, 1
  %v7871 = vadd.f32 %v7869, %v7870
  %v7872 = vmul.f32 %v7704, 0.001953125
  %v7873 = vmul.f32 %v7871, 0.001953125
  %v7874 = vmul.f32 %v7872, %v7872
  %v7875 = vsub.f32 %v7873, %v7874
  %v7876 = vadd.f32 %v7875, 1e-05
  %v7877 = vrsqrt.pop %v7876
  %v7878 = vmul.f32 %v106, %v7877
  %v7879 = vmul.f32 %v7872, %v7878
  %v7880 = vsub.f32 %v107, %v7879
  %v7881 = vlaneseq
  %v7882 = vshrl.u32 %v7881, 7
  %v7883 = vsub.s32 0, %v7882
  %v7884 = vrot.slane %v7878, %v7883
  %v7885 = vmul.f32 %v7538, %v7884
  %v7886 = vmul.f32 %v7539, %v7884
  %v7887 = vmul.f32 %v7540, %v7884
  %v7888 = vmul.f32 %v7541, %v7884
  %v7889 = vmul.f32 %v7542, %v7884
  %v7890 = vmul.f32 %v7543, %v7884
  %v7891 = vmul.f32 %v7544, %v7884
  %v7892 = vmul.f32 %v7545, %v7884
  %v7893 = vmul.f32 %v7546, %v7884
  %v7894 = vmul.f32 %v7547, %v7884
  %v7895 = vmul.f32 %v7548, %v7884
  %v7896 = vmul.f32 %v7549, %v7884
  %v7897 = vmul.f32 %v7550, %v7884
  %v7898 = vmul.f32 %v7551, %v7884
  %v7899 = vmul.f32 %v7552, %v7884
  %v7900 = vmul.f32 %v7553, %v7884
  %v7901 = vmul.f32 %v7554, %v7884
  %v7902 = vmul.f32 %v7555, %v7884
  %v7903 = vmul.f32 %v7556, %v7884
  %v7904 = vmul.f32 %v7557, %v7884
  %v7905 = vmul.f32 %v7558, %v7884
  %v7906 = vmul.f32 %v7559, %v7884
  %v7907 = vmul.f32 %v7560, %v7884
  %v7908 = vmul.f32 %v7561, %v7884
  %v7909 = vmul.f32 %v7562, %v7884
  %v7910 = vmul.f32 %v7563, %v7884
  %v7911 = vmul.f32 %v7564, %v7884
  %v7912 = vmul.f32 %v7565, %v7884
  %v7913 = vmul.f32 %v7566, %v7884
  %v7914 = vmul.f32 %v7567, %v7884
  %v7915 = vmul.f32 %v7568, %v7884
  %v7916 = vmul.f32 %v7569, %v7884
  %v7917 = vmul.f32 %v7570, %v7884
  %v7918 = vmul.f32 %v7571, %v7884
  %v7919 = vmul.f32 %v7572, %v7884
  %v7920 = vmul.f32 %v7573, %v7884
  %v7921 = vmul.f32 %v7574, %v7884
  %v7922 = vmul.f32 %v7575, %v7884
  %v7923 = vmul.f32 %v7576, %v7884
  %v7924 = vmul.f32 %v7577, %v7884
  %v7925 = vmul.f32 %v7578, %v7884
  %v7926 = vmul.f32 %v7579, %v7884
  %v7927 = vmul.f32 %v7580, %v7884
  %v7928 = vmul.f32 %v7581, %v7884
  %v7929 = vmul.f32 %v7582, %v7884
  %v7930 = vmul.f32 %v7583, %v7884
  %v7931 = vmul.f32 %v7584, %v7884
  %v7932 = vmul.f32 %v7585, %v7884
  %v7933 = vmul.f32 %v7586, %v7884
  %v7934 = vmul.f32 %v7587, %v7884
  %v7935 = vmul.f32 %v7588, %v7884
  %v7936 = vmul.f32 %v7589, %v7884
  %v7937 = vmul.f32 %v7590, %v7884
  %v7938 = vmul.f32 %v7591, %v7884
  %v7939 = vmul.f32 %v7592, %v7884
  %v7940 = vmul.f32 %v7593, %v7884
  %v7941 = vmul.f32 %v7594, %v7884
  %v7942 = vmul.f32 %v7595, %v7884
  %v7943 = vmul.f32 %v7596, %v7884
  %v7944 = vmul.f32 %v7597, %v7884
  %v7945 = vmul.f32 %v7598, %v7884
  %v7946 = vmul.f32 %v7599, %v7884
  %v7947 = vmul.f32 %v7600, %v7884
  %v7948 = vmul.f32 %v7601, %v7884
  %v7949 = vmul.f32 %v7602, %v7884
  %v7950 = vmul.f32 %v7603, %v7884
  %v7951 = vmul.f32 %v7604, %v7884
  %v7952 = vmul.f32 %v7605, %v7884
  %v7953 = vmul.f32 %v7606, %v7884
  %v7954 = vmul.f32 %v7607, %v7884
  %v7955 = vmul.f32 %v7608, %v7884
  %v7956 = vmul.f32 %v7609, %v7884
  %v7957 = vmul.f32 %v7610, %v7884
  %v7958 = vmul.f32 %v7611, %v7884
  %v7959 = vmul.f32 %v7612, %v7884
  %v7960 = vmul.f32 %v7613, %v7884
  %v7961 = vmul.f32 %v7614, %v7884
  %v7962 = vmul.f32 %v7615, %v7884
  %v7963 = vmul.f32 %v7616, %v7884
  %v7964 = vmul.f32 %v7617, %v7884
  %v7965 = vmul.f32 %v7618, %v7884
  %v7966 = vlaneseq
  %v7967 = vshrl.u32 %v7966, 7
  %v7968 = vsub.s32 0, %v7967
  %v7969 = vrot.slane %v7880, %v7968
  %v7970 = vadd.f32 %v7885, %v7969
  %v7971 = vadd.f32 %v7886, %v7969
  %v7972 = vadd.f32 %v7887, %v7969
  %v7973 = vadd.f32 %v7888, %v7969
  %v7974 = vadd.f32 %v7889, %v7969
  %v7975 = vadd.f32 %v7890, %v7969
  %v7976 = vadd.f32 %v7891, %v7969
  %v7977 = vadd.f32 %v7892, %v7969
  %v7978 = vadd.f32 %v7893, %v7969
  %v7979 = vadd.f32 %v7894, %v7969
  %v7980 = vadd.f32 %v7895, %v7969
  %v7981 = vadd.f32 %v7896, %v7969
  %v7982 = vadd.f32 %v7897, %v7969
  %v7983 = vadd.f32 %v7898, %v7969
  %v7984 = vadd.f32 %v7899, %v7969
  %v7985 = vadd.f32 %v7900, %v7969
  %v7986 = vadd.f32 %v7901, %v7969
  %v7987 = vadd.f32 %v7902, %v7969
  %v7988 = vadd.f32 %v7903, %v7969
  %v7989 = vadd.f32 %v7904, %v7969
  %v7990 = vadd.f32 %v7905, %v7969
  %v7991 = vadd.f32 %v7906, %v7969
  %v7992 = vadd.f32 %v7907, %v7969
  %v7993 = vadd.f32 %v7908, %v7969
  %v7994 = vadd.f32 %v7909, %v7969
  %v7995 = vadd.f32 %v7910, %v7969
  %v7996 = vadd.f32 %v7911, %v7969
  %v7997 = vadd.f32 %v7912, %v7969
  %v7998 = vadd.f32 %v7913, %v7969
  %v7999 = vadd.f32 %v7914, %v7969
  %v8000 = vadd.f32 %v7915, %v7969
  %v8001 = vadd.f32 %v7916, %v7969
  %v8002 = vadd.f32 %v7917, %v7969
  %v8003 = vadd.f32 %v7918, %v7969
  %v8004 = vadd.f32 %v7919, %v7969
  %v8005 = vadd.f32 %v7920, %v7969
  %v8006 = vadd.f32 %v7921, %v7969
  %v8007 = vadd.f32 %v7922, %v7969
  %v8008 = vadd.f32 %v7923, %v7969
  %v8009 = vadd.f32 %v7924, %v7969
  %v8010 = vadd.f32 %v7925, %v7969
  %v8011 = vadd.f32 %v7926, %v7969
  %v8012 = vadd.f32 %v7927, %v7969
  %v8013 = vadd.f32 %v7928, %v7969
  %v8014 = vadd.f32 %v7929, %v7969
  %v8015 = vadd.f32 %v7930, %v7969
  %v8016 = vadd.f32 %v7931, %v7969
  %v8017 = vadd.f32 %v7932, %v7969
  %v8018 = vadd.f32 %v7933, %v7969
  %v8019 = vadd.f32 %v7934, %v7969
  %v8020 = vadd.f32 %v7935, %v7969
  %v8021 = vadd.f32 %v7936, %v7969
  %v8022 = vadd.f32 %v7937, %v7969
  %v8023 = vadd.f32 %v7938, %v7969
  %v8024 = vadd.f32 %v7939, %v7969
  %v8025 = vadd.f32 %v7940, %v7969
  %v8026 = vadd.f32 %v7941, %v7969
  %v8027 = vadd.f32 %v7942, %v7969
  %v8028 = vadd.f32 %v7943, %v7969
  %v8029 = vadd.f32 %v7944, %v7969
  %v8030 = vadd.f32 %v7945, %v7969
  %v8031 = vadd.f32 %v7946, %v7969
  %v8032 = vadd.f32 %v7947, %v7969
  %v8033 = vadd.f32 %v7948, %v7969
  %v8034 = vadd.f32 %v7949, %v7969
  %v8035 = vadd.f32 %v7950, %v7969
  %v8036 = vadd.f32 %v7951, %v7969
  %v8037 = vadd.f32 %v7952, %v7969
  %v8038 = vadd.f32 %v7953, %v7969
  %v8039 = vadd.f32 %v7954, %v7969
  %v8040 = vadd.f32 %v7955, %v7969
  %v8041 = vadd.f32 %v7956, %v7969
  %v8042 = vadd.f32 %v7957, %v7969
  %v8043 = vadd.f32 %v7958, %v7969
  %v8044 = vadd.f32 %v7959, %v7969
  %v8045 = vadd.f32 %v7960, %v7969
  %v8046 = vadd.f32 %v7961, %v7969
  %v8047 = vadd.f32 %v7962, %v7969
  %v8048 = vadd.f32 %v7963, %v7969
  %v8049 = vadd.f32 %v7964, %v7969
  %v8050 = vadd.f32 %v7965, %v7969
  %v8051 = vmax.f32 %v7970, 0.0
  %v8052 = vmax.f32 %v7971, 0.0
  %v8053 = vmax.f32 %v7972, 0.0
  %v8054 = vmax.f32 %v7973, 0.0
  %v8055 = vmax.f32 %v7974, 0.0
  %v8056 = vmax.f32 %v7975, 0.0
  %v8057 = vmax.f32 %v7976, 0.0
  %v8058 = vmax.f32 %v7977, 0.0
  %v8059 = vmax.f32 %v7978, 0.0
  %v8060 = vmax.f32 %v7979, 0.0
  %v8061 = vmax.f32 %v7980, 0.0
  %v8062 = vmax.f32 %v7981, 0.0
  %v8063 = vmax.f32 %v7982, 0.0
  %v8064 = vmax.f32 %v7983, 0.0
  %v8065 = vmax.f32 %v7984, 0.0
  %v8066 = vmax.f32 %v7985, 0.0
  %v8067 = vmax.f32 %v7986, 0.0
  %v8068 = vmax.f32 %v7987, 0.0
  %v8069 = vmax.f32 %v7988, 0.0
  %v8070 = vmax.f32 %v7989, 0.0
  %v8071 = vmax.f32 %v7990, 0.0
  %v8072 = vmax.f32 %v7991, 0.0
  %v8073 = vmax.f32 %v7992, 0.0
  %v8074 = vmax.f32 %v7993, 0.0
  %v8075 = vmax.f32 %v7994, 0.0
  %v8076 = vmax.f32 %v7995, 0.0
  %v8077 = vmax.f32 %v7996, 0.0
  %v8078 = vmax.f32 %v7997, 0.0
  %v8079 = vmax.f32 %v7998, 0.0
  %v8080 = vmax.f32 %v7999, 0.0
  %v8081 = vmax.f32 %v8000, 0.0
  %v8082 = vmax.f32 %v8001, 0.0
  %v8083 = vmax.f32 %v8002, 0.0
  %v8084 = vmax.f32 %v8003, 0.0
  %v8085 = vmax.f32 %v8004, 0.0
  %v8086 = vmax.f32 %v8005, 0.0
  %v8087 = vmax.f32 %v8006, 0.0
  %v8088 = vmax.f32 %v8007, 0.0
  %v8089 = vmax.f32 %v8008, 0.0
  %v8090 = vmax.f32 %v8009, 0.0
  %v8091 = vmax.f32 %v8010, 0.0
  %v8092 = vmax.f32 %v8011, 0.0
  %v8093 = vmax.f32 %v8012, 0.0
  %v8094 = vmax.f32 %v8013, 0.0
  %v8095 = vmax.f32 %v8014, 0.0
  %v8096 = vmax.f32 %v8015, 0.0
  %v8097 = vmax.f32 %v8016, 0.0
  %v8098 = vmax.f32 %v8017, 0.0
  %v8099 = vmax.f32 %v8018, 0.0
  %v8100 = vmax.f32 %v8019, 0.0
  %v8101 = vmax.f32 %v8020, 0.0
  %v8102 = vmax.f32 %v8021, 0.0
  %v8103 = vmax.f32 %v8022, 0.0
  %v8104 = vmax.f32 %v8023, 0.0
  %v8105 = vmax.f32 %v8024, 0.0
  %v8106 = vmax.f32 %v8025, 0.0
  %v8107 = vmax.f32 %v8026, 0.0
  %v8108 = vmax.f32 %v8027, 0.0
  %v8109 = vmax.f32 %v8028, 0.0
  %v8110 = vmax.f32 %v8029, 0.0
  %v8111 = vmax.f32 %v8030, 0.0
  %v8112 = vmax.f32 %v8031, 0.0
  %v8113 = vmax.f32 %v8032, 0.0
  %v8114 = vmax.f32 %v8033, 0.0
  %v8115 = vmax.f32 %v8034, 0.0
  %v8116 = vmax.f32 %v8035, 0.0
  %v8117 = vmax.f32 %v8036, 0.0
  %v8118 = vmax.f32 %v8037, 0.0
  %v8119 = vmax.f32 %v8038, 0.0
  %v8120 = vmax.f32 %v8039, 0.0
  %v8121 = vmax.f32 %v8040, 0.0
  %v8122 = vmax.f32 %v8041, 0.0
  %v8123 = vmax.f32 %v8042, 0.0
  %v8124 = vmax.f32 %v8043, 0.0
  %v8125 = vmax.f32 %v8044, 0.0
  %v8126 = vmax.f32 %v8045, 0.0
  %v8127 = vmax.f32 %v8046, 0.0
  %v8128 = vmax.f32 %v8047, 0.0
  %v8129 = vmax.f32 %v8048, 0.0
  %v8130 = vmax.f32 %v8049, 0.0
  %v8131 = vmax.f32 %v8050, 0.0
  %v8132 = vld [vmem:[%s4] sm:$0xff]
  %v8133 = vld [vmem:[%s4 + $0x8] sm:$0xff]
  %v8134 = vld [vmem:[%s4 + $0x10] sm:$0xff]
  %v8135 = vld [vmem:[%s4 + $0x18] sm:$0xff]
  %v8136 = vld [vmem:[%s4 + $0x20] sm:$0xff]
  %v8137 = vld [vmem:[%s4 + $0x28] sm:$0xff]
  %v8138 = vld [vmem:[%s4 + $0x30] sm:$0xff]
  %v8139 = vld [vmem:[%s4 + $0x38] sm:$0xff]
  %v8140 = vld [vmem:[%s4 + $0x40] sm:$0xff]
  %v8141 = vld [vmem:[%s4 + $0x48] sm:$0xff]
  %v8142 = vld [vmem:[%s4 + $0x50] sm:$0xff]
  %v8143 = vld [vmem:[%s4 + $0x58] sm:$0xff]
  %v8144 = vld [vmem:[%s4 + $0x60] sm:$0xff]
  %v8145 = vld [vmem:[%s4 + $0x68] sm:$0xff]
  %v8146 = vld [vmem:[%s4 + $0x70] sm:$0xff]
  %v8147 = vld [vmem:[%s4 + $0x78] sm:$0xff]
  %8148 = vmatprep.subr.mxu0 0.0
  %8149 = vmatpush1.msra.mxu0 %v8132
  %8150 = vmatprep.subr.mxu0 0.0
  %8151 = vmatpush1.msra.mxu0 %v8133
  %8152 = vmatprep.subr.mxu0 0.0
  %8153 = vmatpush1.msra.mxu0 %v8134
  %8154 = vmatprep.subr.mxu0 0.0
  %8155 = vmatpush1.msra.mxu0 %v8135
  %8156 = vmatprep.subr.mxu0 0.0
  %8157 = vmatpush1.msra.mxu0 %v8136
  %8158 = vmatprep.subr.mxu0 0.0
  %8159 = vmatpush1.msra.mxu0 %v8137
  %8160 = vmatprep.subr.mxu0 0.0
  %8161 = vmatpush1.msra.mxu0 %v8138
  %8162 = vmatprep.subr.mxu0 0.0
  %8163 = vmatpush1.msra.mxu0 %v8139
  %8164 = vmatprep.subr.mxu0 0.0
  %8165 = vmatpush1.msra.mxu0 %v8140
  %8166 = vmatprep.subr.mxu0 0.0
  %8167 = vmatpush1.msra.mxu0 %v8141
  %8168 = vmatprep.subr.mxu0 0.0
  %8169 = vmatpush1.msra.mxu0 %v8142
  %8170 = vmatprep.subr.mxu0 0.0
  %8171 = vmatpush1.msra.mxu0 %v8143
  %8172 = vmatprep.subr.mxu0 0.0
  %8173 = vmatpush1.msra.mxu0 %v8144
  %8174 = vmatprep.subr.mxu0 0.0
  %8175 = vmatpush1.msra.mxu0 %v8145
  %8176 = vmatprep.subr.mxu0 0.0
  %8177 = vmatpush1.msra.mxu0 %v8146
  %8178 = vmatprep.subr.mxu0 0.0
  %8179 = vmatpush1.msra.mxu0 %v8147
  %8180 = vmatprep.subr.mxu0 0.0
  %8181 = vmatpush1.msra.mxu0 0.0
  %8182 = vmatprep.subr.mxu0 0.0
  %8183 = vmatpush1.msra.mxu0 0.0
  %8184 = vmatprep.subr.mxu0 0.0
  %8185 = vmatpush1.msra.mxu0 0.0
  %8186 = vmatprep.subr.mxu0 0.0
  %8187 = vmatpush1.msra.mxu0 0.0
  %8188 = vmatprep.subr.mxu0 0.0
  %8189 = vmatpush1.msra.mxu0 0.0
  %8190 = vmatprep.subr.mxu0 0.0
  %8191 = vmatpush1.msra.mxu0 0.0
  %8192 = vmatprep.subr.mxu0 0.0
  %8193 = vmatpush1.msra.mxu0 0.0
  %8194 = vmatprep.subr.mxu0 0.0
  %8195 = vmatpush1.msra.mxu0 0.0
  %8196 = vmatprep.subr.mxu0 0.0
  %8197 = vmatpush1.msra.mxu0 0.0
  %8198 = vmatprep.subr.mxu0 0.0
  %8199 = vmatpush1.msra.mxu0 0.0
  %8200 = vmatprep.subr.mxu0 0.0
  %8201 = vmatpush1.msra.mxu0 0.0
  %8202 = vmatprep.subr.mxu0 0.0
  %8203 = vmatpush1.msra.mxu0 0.0
  %8204 = vmatprep.subr.mxu0 0.0
  %8205 = vmatpush1.msra.mxu0 0.0
  %8206 = vmatprep.subr.mxu0 0.0
  %8207 = vmatpush1.msra.mxu0 0.0
  %8208 = vmatprep.subr.mxu0 0.0
  %8209 = vmatpush1.msra.mxu0 0.0
  %8210 = vmatprep.subr.mxu0 0.0
  %8211 = vmatpush1.msra.mxu0 0.0
  %8212 = vmatprep.mubr.f32.mxu0 0.0
  %8213 = vmatmul.mubr.f32.gmra.mrb[0].mxu0 %v8051
  %v8214 = vpop.f32.mrb[0].mxu0
  %v8215 = vadd.f32 0.0, %v8214
  %v8216 = vpop.f32.mrb[0].mxu0
  %8217 = vmatprep.mubr.f32.mxu0 0.0
  %8218 = vmatmul.mubr.f32.gmra.mrb[0].mxu0 %v8052
  %v8219 = vpop.f32.mrb[0].mxu0
  %v8220 = vadd.f32 0.0, %v8219
  %v8221 = vpop.f32.mrb[0].mxu0
  %8222 = vmatprep.mubr.f32.mxu0 0.0
  %8223 = vmatmul.mubr.f32.gmra.mrb[0].mxu0 %v8053
  %v8224 = vpop.f32.mrb[0].mxu0
  %v8225 = vadd.f32 0.0, %v8224
  %v8226 = vpop.f32.mrb[0].mxu0
  %8227 = vmatprep.mubr.f32.mxu0 0.0
  %8228 = vmatmul.mubr.f32.gmra.mrb[0].mxu0 %v8054
  %v8229 = vpop.f32.mrb[0].mxu0
  %v8230 = vadd.f32 0.0, %v8229
  %v8231 = vpop.f32.mrb[0].mxu0
  %8232 = vmatprep.mubr.f32.mxu0 0.0
  %8233 = vmatmul.mubr.f32.gmra.mrb[0].mxu0 %v8055
  %v8234 = vpop.f32.mrb[0].mxu0
  %v8235 = vadd.f32 0.0, %v8234
  %v8236 = vpop.f32.mrb[0].mxu0
  %8237 = vmatprep.mubr.f32.mxu0 0.0
  %8238 = vmatmul.mubr.f32.gmra.mrb[0].mxu0 %v8056
  %v8239 = vpop.f32.mrb[0].mxu0
  %v8240 = vadd.f32 0.0, %v8239
  %v8241 = vpop.f32.mrb[0].mxu0
  %8242 = vmatprep.mubr.f32.mxu0 0.0
  %8243 = vmatmul.mubr.f32.gmra.mrb[0].mxu0 %v8057
  %v8244 = vpop.f32.mrb[0].mxu0
  %v8245 = vadd.f32 0.0, %v8244
  %v8246 = vpop.f32.mrb[0].mxu0
  %8247 = vmatprep.mubr.f32.mxu0 0.0
  %8248 = vmatmul.mubr.f32.gmra.mrb[0].mxu0 %v8058
  %v8249 = vpop.f32.mrb[0].mxu0
  %v8250 = vadd.f32 0.0, %v8249
  %v8251 = vpop.f32.mrb[0].mxu0
  %8252 = vmatprep.mubr.f32.mxu0 0.0
  %8253 = vmatmul.mubr.f32.gmra.mrb[0].mxu0 %v8059
  %v8254 = vpop.f32.mrb[0].mxu0
  %v8255 = vadd.f32 0.0, %v8254
  %v8256 = vpop.f32.mrb[0].mxu0
  %8257 = vmatprep.mubr.f32.mxu0 0.0
  %8258 = vmatmul.mubr.f32.gmra.mrb[0].mxu0 %v8060
  %v8259 = vpop.f32.mrb[0].mxu0
  %v8260 = vadd.f32 0.0, %v8259
  %v8261 = vpop.f32.mrb[0].mxu0
  %8262 = vmatprep.mubr.f32.mxu0 0.0
  %8263 = vmatmul.mubr.f32.gmra.mrb[0].mxu0 %v8061
  %v8264 = vpop.f32.mrb[0].mxu0
  %v8265 = vadd.f32 0.0, %v8264
  %v8266 = vpop.f32.mrb[0].mxu0
  %8267 = vmatprep.mubr.f32.mxu0 0.0
  %8268 = vmatmul.mubr.f32.gmra.mrb[0].mxu0 %v8062
  %v8269 = vpop.f32.mrb[0].mxu0
  %v8270 = vadd.f32 0.0, %v8269
  %v8271 = vpop.f32.mrb[0].mxu0
  %8272 = vmatprep.mubr.f32.mxu0 0.0
  %8273 = vmatmul.mubr.f32.gmra.mrb[0].mxu0 %v8063
  %v8274 = vpop.f32.mrb[0].mxu0
  %v8275 = vadd.f32 0.0, %v8274
  %v8276 = vpop.f32.mrb[0].mxu0
  %8277 = vmatprep.mubr.f32.mxu0 0.0
  %8278 = vmatmul.mubr.f32.gmra.mrb[0].mxu0 %v8064
  %v8279 = vpop.f32.mrb[0].mxu0
  %v8280 = vadd.f32 0.0, %v8279
  %v8281 = vpop.f32.mrb[0].mxu0
  %8282 = vmatprep.mubr.f32.mxu0 0.0
  %8283 = vmatmul.mubr.f32.gmra.mrb[0].mxu0 %v8065
  %v8284 = vpop.f32.mrb[0].mxu0
  %v8285 = vadd.f32 0.0, %v8284
  %v8286 = vpop.f32.mrb[0].mxu0
  %8287 = vmatprep.mubr.f32.mxu0 0.0
  %8288 = vmatmul.mubr.f32.gmra.mrb[0].mxu0 %v8066
  %v8289 = vpop.f32.mrb[0].mxu0
  %v8290 = vadd.f32 0.0, %v8289
  %v8291 = vpop.f32.mrb[0].mxu0
  %8292 = vmatprep.mubr.f32.mxu0 0.0
  %8293 = vmatmul.mubr.f32.gmra.mrb[0].mxu0 %v8067
  %v8294 = vpop.f32.mrb[0].mxu0
  %v8295 = vadd.f32 0.0, %v8294
  %v8296 = vpop.f32.mrb[0].mxu0
  %8297 = vmatprep.mubr.f32.mxu0 0.0
  %8298 = vmatmul.mubr.f32.gmra.mrb[0].mxu0 %v8068
  %v8299 = vpop.f32.mrb[0].mxu0
  %v8300 = vadd.f32 0.0, %v8299
  %v8301 = vpop.f32.mrb[0].mxu0
  %8302 = vmatprep.mubr.f32.mxu0 0.0
  %8303 = vmatmul.mubr.f32.gmra.mrb[0].mxu0 %v8069
  %v8304 = vpop.f32.mrb[0].mxu0
  %v8305 = vadd.f32 0.0, %v8304
  %v8306 = vpop.f32.mrb[0].mxu0
  %8307 = vmatprep.mubr.f32.mxu0 0.0
  %8308 = vmatmul.mubr.f32.gmra.mrb[0].mxu0 %v8070
  %v8309 = vpop.f32.mrb[0].mxu0
  %v8310 = vadd.f32 0.0, %v8309
  %v8311 = vpop.f32.mrb[0].mxu0
  %8312 = vmatprep.mubr.f32.mxu0 0.0
  %8313 = vmatmul.mubr.f32.gmra.mrb[0].mxu0 %v8071
  %v8314 = vpop.f32.mrb[0].mxu0
  %v8315 = vadd.f32 0.0, %v8314
  %v8316 = vpop.f32.mrb[0].mxu0
  %8317 = vmatprep.mubr.f32.mxu0 0.0
  %8318 = vmatmul.mubr.f32.gmra.mrb[0].mxu0 %v8072
  %v8319 = vpop.f32.mrb[0].mxu0
  %v8320 = vadd.f32 0.0, %v8319
  %v8321 = vpop.f32.mrb[0].mxu0
  %8322 = vmatprep.mubr.f32.mxu0 0.0
  %8323 = vmatmul.mubr.f32.gmra.mrb[0].mxu0 %v8073
  %v8324 = vpop.f32.mrb[0].mxu0
  %v8325 = vadd.f32 0.0, %v8324
  %v8326 = vpop.f32.mrb[0].mxu0
  %8327 = vmatprep.mubr.f32.mxu0 0.0
  %8328 = vmatmul.mubr.f32.gmra.mrb[0].mxu0 %v8074
  %v8329 = vpop.f32.mrb[0].mxu0
  %v8330 = vadd.f32 0.0, %v8329
  %v8331 = vpop.f32.mrb[0].mxu0
  %8332 = vmatprep.mubr.f32.mxu0 0.0
  %8333 = vmatmul.mubr.f32.gmra.mrb[0].mxu0 %v8075
  %v8334 = vpop.f32.mrb[0].mxu0
  %v8335 = vadd.f32 0.0, %v8334
  %v8336 = vpop.f32.mrb[0].mxu0
  %8337 = vmatprep.mubr.f32.mxu0 0.0
  %8338 = vmatmul.mubr.f32.gmra.mrb[0].mxu0 %v8076
  %v8339 = vpop.f32.mrb[0].mxu0
  %v8340 = vadd.f32 0.0, %v8339
  %v8341 = vpop.f32.mrb[0].mxu0
  %8342 = vmatprep.mubr.f32.mxu0 0.0
  %8343 = vmatmul.mubr.f32.gmra.mrb[0].mxu0 %v8077
  %v8344 = vpop.f32.mrb[0].mxu0
  %v8345 = vadd.f32 0.0, %v8344
  %v8346 = vpop.f32.mrb[0].mxu0
  %8347 = vmatprep.mubr.f32.mxu0 0.0
  %8348 = vmatmul.mubr.f32.gmra.mrb[0].mxu0 %v8078
  %v8349 = vpop.f32.mrb[0].mxu0
  %v8350 = vadd.f32 0.0, %v8349
  %v8351 = vpop.f32.mrb[0].mxu0
  %8352 = vmatprep.mubr.f32.mxu0 0.0
  %8353 = vmatmul.mubr.f32.gmra.mrb[0].mxu0 %v8079
  %v8354 = vpop.f32.mrb[0].mxu0
  %v8355 = vadd.f32 0.0, %v8354
  %v8356 = vpop.f32.mrb[0].mxu0
  %8357 = vmatprep.mubr.f32.mxu0 0.0
  %8358 = vmatmul.mubr.f32.gmra.mrb[0].mxu0 %v8080
  %v8359 = vpop.f32.mrb[0].mxu0
  %v8360 = vadd.f32 0.0, %v8359
  %v8361 = vpop.f32.mrb[0].mxu0
  %8362 = vmatprep.mubr.f32.mxu0 0.0
  %8363 = vmatmul.mubr.f32.gmra.mrb[0].mxu0 %v8081
  %v8364 = vpop.f32.mrb[0].mxu0
  %v8365 = vadd.f32 0.0, %v8364
  %v8366 = vpop.f32.mrb[0].mxu0
  %8367 = vmatprep.mubr.f32.mxu0 0.0
  %8368 = vmatmul.mubr.f32.gmra.mrb[0].mxu0 %v8082
  %v8369 = vpop.f32.mrb[0].mxu0
  %v8370 = vadd.f32 0.0, %v8369
  %v8371 = vpop.f32.mrb[0].mxu0
  %8372 = vmatprep.mubr.f32.mxu0 0.0
  %8373 = vmatmul.mubr.f32.gmra.mrb[0].mxu0 %v8083
  %v8374 = vpop.f32.mrb[0].mxu0
  %v8375 = vadd.f32 0.0, %v8374
  %v8376 = vpop.f32.mrb[0].mxu0
  %8377 = vmatprep.mubr.f32.mxu0 0.0
  %8378 = vmatmul.mubr.f32.gmra.mrb[0].mxu0 %v8084
  %v8379 = vpop.f32.mrb[0].mxu0
  %v8380 = vadd.f32 0.0, %v8379
  %v8381 = vpop.f32.mrb[0].mxu0
  %8382 = vmatprep.mubr.f32.mxu0 0.0
  %8383 = vmatmul.mubr.f32.gmra.mrb[0].mxu0 %v8085
  %v8384 = vpop.f32.mrb[0].mxu0
  %v8385 = vadd.f32 0.0, %v8384
  %v8386 = vpop.f32.mrb[0].mxu0
  %8387 = vmatprep.mubr.f32.mxu0 0.0
  %8388 = vmatmul.mubr.f32.gmra.mrb[0].mxu0 %v8086
  %v8389 = vpop.f32.mrb[0].mxu0
  %v8390 = vadd.f32 0.0, %v8389
  %v8391 = vpop.f32.mrb[0].mxu0
  %8392 = vmatprep.mubr.f32.mxu0 0.0
  %8393 = vmatmul.mubr.f32.gmra.mrb[0].mxu0 %v8087
  %v8394 = vpop.f32.mrb[0].mxu0
  %v8395 = vadd.f32 0.0, %v8394
  %v8396 = vpop.f32.mrb[0].mxu0
  %8397 = vmatprep.mubr.f32.mxu0 0.0
  %8398 = vmatmul.mubr.f32.gmra.mrb[0].mxu0 %v8088
  %v8399 = vpop.f32.mrb[0].mxu0
  %v8400 = vadd.f32 0.0, %v8399
  %v8401 = vpop.f32.mrb[0].mxu0
  %8402 = vmatprep.mubr.f32.mxu0 0.0
  %8403 = vmatmul.mubr.f32.gmra.mrb[0].mxu0 %v8089
  %v8404 = vpop.f32.mrb[0].mxu0
  %v8405 = vadd.f32 0.0, %v8404
  %v8406 = vpop.f32.mrb[0].mxu0
  %8407 = vmatprep.mubr.f32.mxu0 0.0
  %8408 = vmatmul.mubr.f32.gmra.mrb[0].mxu0 %v8090
  %v8409 = vpop.f32.mrb[0].mxu0
  %v8410 = vadd.f32 0.0, %v8409
  %v8411 = vpop.f32.mrb[0].mxu0
  %8412 = vmatprep.mubr.f32.mxu0 0.0
  %8413 = vmatmul.mubr.f32.gmra.mrb[0].mxu0 %v8091
  %v8414 = vpop.f32.mrb[0].mxu0
  %v8415 = vadd.f32 0.0, %v8414
  %v8416 = vpop.f32.mrb[0].mxu0
  %8417 = vmatprep.mubr.f32.mxu0 0.0
  %8418 = vmatmul.mubr.f32.gmra.mrb[0].mxu0 %v8092
  %v8419 = vpop.f32.mrb[0].mxu0
  %v8420 = vadd.f32 0.0, %v8419
  %v8421 = vpop.f32.mrb[0].mxu0
  %8422 = vmatprep.mubr.f32.mxu0 0.0
  %8423 = vmatmul.mubr.f32.gmra.mrb[0].mxu0 %v8093
  %v8424 = vpop.f32.mrb[0].mxu0
  %v8425 = vadd.f32 0.0, %v8424
  %v8426 = vpop.f32.mrb[0].mxu0
  %8427 = vmatprep.mubr.f32.mxu0 0.0
  %8428 = vmatmul.mubr.f32.gmra.mrb[0].mxu0 %v8094
  %v8429 = vpop.f32.mrb[0].mxu0
  %v8430 = vadd.f32 0.0, %v8429
  %v8431 = vpop.f32.mrb[0].mxu0
  %8432 = vmatprep.mubr.f32.mxu0 0.0
  %8433 = vmatmul.mubr.f32.gmra.mrb[0].mxu0 %v8095
  %v8434 = vpop.f32.mrb[0].mxu0
  %v8435 = vadd.f32 0.0, %v8434
  %v8436 = vpop.f32.mrb[0].mxu0
  %8437 = vmatprep.mubr.f32.mxu0 0.0
  %8438 = vmatmul.mubr.f32.gmra.mrb[0].mxu0 %v8096
  %v8439 = vpop.f32.mrb[0].mxu0
  %v8440 = vadd.f32 0.0, %v8439
  %v8441 = vpop.f32.mrb[0].mxu0
  %8442 = vmatprep.mubr.f32.mxu0 0.0
  %8443 = vmatmul.mubr.f32.gmra.mrb[0].mxu0 %v8097
  %v8444 = vpop.f32.mrb[0].mxu0
  %v8445 = vadd.f32 0.0, %v8444
  %v8446 = vpop.f32.mrb[0].mxu0
  %8447 = vmatprep.mubr.f32.mxu0 0.0
  %8448 = vmatmul.mubr.f32.gmra.mrb[0].mxu0 %v8098
  %v8449 = vpop.f32.mrb[0].mxu0
  %v8450 = vadd.f32 0.0, %v8449
  %v8451 = vpop.f32.mrb[0].mxu0
  %8452 = vmatprep.mubr.f32.mxu0 0.0
  %8453 = vmatmul.mubr.f32.gmra.mrb[0].mxu0 %v8099
  %v8454 = vpop.f32.mrb[0].mxu0
  %v8455 = vadd.f32 0.0, %v8454
  %v8456 = vpop.f32.mrb[0].mxu0
  %8457 = vmatprep.mubr.f32.mxu0 0.0
  %8458 = vmatmul.mubr.f32.gmra.mrb[0].mxu0 %v8100
  %v8459 = vpop.f32.mrb[0].mxu0
  %v8460 = vadd.f32 0.0, %v8459
  %v8461 = vpop.f32.mrb[0].mxu0
  %8462 = vmatprep.mubr.f32.mxu0 0.0
  %8463 = vmatmul.mubr.f32.gmra.mrb[0].mxu0 %v8101
  %v8464 = vpop.f32.mrb[0].mxu0
  %v8465 = vadd.f32 0.0, %v8464
  %v8466 = vpop.f32.mrb[0].mxu0
  %8467 = vmatprep.mubr.f32.mxu0 0.0
  %8468 = vmatmul.mubr.f32.gmra.mrb[0].mxu0 %v8102
  %v8469 = vpop.f32.mrb[0].mxu0
  %v8470 = vadd.f32 0.0, %v8469
  %v8471 = vpop.f32.mrb[0].mxu0
  %8472 = vmatprep.mubr.f32.mxu0 0.0
  %8473 = vmatmul.mubr.f32.gmra.mrb[0].mxu0 %v8103
  %v8474 = vpop.f32.mrb[0].mxu0
  %v8475 = vadd.f32 0.0, %v8474
  %v8476 = vpop.f32.mrb[0].mxu0
  %8477 = vmatprep.mubr.f32.mxu0 0.0
  %8478 = vmatmul.mubr.f32.gmra.mrb[0].mxu0 %v8104
  %v8479 = vpop.f32.mrb[0].mxu0
  %v8480 = vadd.f32 0.0, %v8479
  %v8481 = vpop.f32.mrb[0].mxu0
  %8482 = vmatprep.mubr.f32.mxu0 0.0
  %8483 = vmatmul.mubr.f32.gmra.mrb[0].mxu0 %v8105
  %v8484 = vpop.f32.mrb[0].mxu0
  %v8485 = vadd.f32 0.0, %v8484
  %v8486 = vpop.f32.mrb[0].mxu0
  %8487 = vmatprep.mubr.f32.mxu0 0.0
  %8488 = vmatmul.mubr.f32.gmra.mrb[0].mxu0 %v8106
  %v8489 = vpop.f32.mrb[0].mxu0
  %v8490 = vadd.f32 0.0, %v8489
  %v8491 = vpop.f32.mrb[0].mxu0
  %8492 = vmatprep.mubr.f32.mxu0 0.0
  %8493 = vmatmul.mubr.f32.gmra.mrb[0].mxu0 %v8107
  %v8494 = vpop.f32.mrb[0].mxu0
  %v8495 = vadd.f32 0.0, %v8494
  %v8496 = vpop.f32.mrb[0].mxu0
  %8497 = vmatprep.mubr.f32.mxu0 0.0
  %8498 = vmatmul.mubr.f32.gmra.mrb[0].mxu0 %v8108
  %v8499 = vpop.f32.mrb[0].mxu0
  %v8500 = vadd.f32 0.0, %v8499
  %v8501 = vpop.f32.mrb[0].mxu0
  %8502 = vmatprep.mubr.f32.mxu0 0.0
  %8503 = vmatmul.mubr.f32.gmra.mrb[0].mxu0 %v8109
  %v8504 = vpop.f32.mrb[0].mxu0
  %v8505 = vadd.f32 0.0, %v8504
  %v8506 = vpop.f32.mrb[0].mxu0
  %8507 = vmatprep.mubr.f32.mxu0 0.0
  %8508 = vmatmul.mubr.f32.gmra.mrb[0].mxu0 %v8110
  %v8509 = vpop.f32.mrb[0].mxu0
  %v8510 = vadd.f32 0.0, %v8509
  %v8511 = vpop.f32.mrb[0].mxu0
  %8512 = vmatprep.mubr.f32.mxu0 0.0
  %8513 = vmatmul.mubr.f32.gmra.mrb[0].mxu0 %v8111
  %v8514 = vpop.f32.mrb[0].mxu0
  %v8515 = vadd.f32 0.0, %v8514
  %v8516 = vpop.f32.mrb[0].mxu0
  %8517 = vmatprep.mubr.f32.mxu0 0.0
  %8518 = vmatmul.mubr.f32.gmra.mrb[0].mxu0 %v8112
  %v8519 = vpop.f32.mrb[0].mxu0
  %v8520 = vadd.f32 0.0, %v8519
  %v8521 = vpop.f32.mrb[0].mxu0
  %8522 = vmatprep.mubr.f32.mxu0 0.0
  %8523 = vmatmul.mubr.f32.gmra.mrb[0].mxu0 %v8113
  %v8524 = vpop.f32.mrb[0].mxu0
  %v8525 = vadd.f32 0.0, %v8524
  %v8526 = vpop.f32.mrb[0].mxu0
  %8527 = vmatprep.mubr.f32.mxu0 0.0
  %8528 = vmatmul.mubr.f32.gmra.mrb[0].mxu0 %v8114
  %v8529 = vpop.f32.mrb[0].mxu0
  %v8530 = vadd.f32 0.0, %v8529
  %v8531 = vpop.f32.mrb[0].mxu0
  %8532 = vmatprep.mubr.f32.mxu0 0.0
  %8533 = vmatmul.mubr.f32.gmra.mrb[0].mxu0 %v8115
  %v8534 = vpop.f32.mrb[0].mxu0
  %v8535 = vadd.f32 0.0, %v8534
  %v8536 = vpop.f32.mrb[0].mxu0
  %8537 = vmatprep.mubr.f32.mxu0 0.0
  %8538 = vmatmul.mubr.f32.gmra.mrb[0].mxu0 %v8116
  %v8539 = vpop.f32.mrb[0].mxu0
  %v8540 = vadd.f32 0.0, %v8539
  %v8541 = vpop.f32.mrb[0].mxu0
  %8542 = vmatprep.mubr.f32.mxu0 0.0
  %8543 = vmatmul.mubr.f32.gmra.mrb[0].mxu0 %v8117
  %v8544 = vpop.f32.mrb[0].mxu0
  %v8545 = vadd.f32 0.0, %v8544
  %v8546 = vpop.f32.mrb[0].mxu0
  %8547 = vmatprep.mubr.f32.mxu0 0.0
  %8548 = vmatmul.mubr.f32.gmra.mrb[0].mxu0 %v8118
  %v8549 = vpop.f32.mrb[0].mxu0
  %v8550 = vadd.f32 0.0, %v8549
  %v8551 = vpop.f32.mrb[0].mxu0
  %8552 = vmatprep.mubr.f32.mxu0 0.0
  %8553 = vmatmul.mubr.f32.gmra.mrb[0].mxu0 %v8119
  %v8554 = vpop.f32.mrb[0].mxu0
  %v8555 = vadd.f32 0.0, %v8554
  %v8556 = vpop.f32.mrb[0].mxu0
  %8557 = vmatprep.mubr.f32.mxu0 0.0
  %8558 = vmatmul.mubr.f32.gmra.mrb[0].mxu0 %v8120
  %v8559 = vpop.f32.mrb[0].mxu0
  %v8560 = vadd.f32 0.0, %v8559
  %v8561 = vpop.f32.mrb[0].mxu0
  %8562 = vmatprep.mubr.f32.mxu0 0.0
  %8563 = vmatmul.mubr.f32.gmra.mrb[0].mxu0 %v8121
  %v8564 = vpop.f32.mrb[0].mxu0
  %v8565 = vadd.f32 0.0, %v8564
  %v8566 = vpop.f32.mrb[0].mxu0
  %8567 = vmatprep.mubr.f32.mxu0 0.0
  %8568 = vmatmul.mubr.f32.gmra.mrb[0].mxu0 %v8122
  %v8569 = vpop.f32.mrb[0].mxu0
  %v8570 = vadd.f32 0.0, %v8569
  %v8571 = vpop.f32.mrb[0].mxu0
  %8572 = vmatprep.mubr.f32.mxu0 0.0
  %8573 = vmatmul.mubr.f32.gmra.mrb[0].mxu0 %v8123
  %v8574 = vpop.f32.mrb[0].mxu0
  %v8575 = vadd.f32 0.0, %v8574
  %v8576 = vpop.f32.mrb[0].mxu0
  %8577 = vmatprep.mubr.f32.mxu0 0.0
  %8578 = vmatmul.mubr.f32.gmra.mrb[0].mxu0 %v8124
  %v8579 = vpop.f32.mrb[0].mxu0
  %v8580 = vadd.f32 0.0, %v8579
  %v8581 = vpop.f32.mrb[0].mxu0
  %8582 = vmatprep.mubr.f32.mxu0 0.0
  %8583 = vmatmul.mubr.f32.gmra.mrb[0].mxu0 %v8125
  %v8584 = vpop.f32.mrb[0].mxu0
  %v8585 = vadd.f32 0.0, %v8584
  %v8586 = vpop.f32.mrb[0].mxu0
  %8587 = vmatprep.mubr.f32.mxu0 0.0
  %8588 = vmatmul.mubr.f32.gmra.mrb[0].mxu0 %v8126
  %v8589 = vpop.f32.mrb[0].mxu0
  %v8590 = vadd.f32 0.0, %v8589
  %v8591 = vpop.f32.mrb[0].mxu0
  %8592 = vmatprep.mubr.f32.mxu0 0.0
  %8593 = vmatmul.mubr.f32.gmra.mrb[0].mxu0 %v8127
  %v8594 = vpop.f32.mrb[0].mxu0
  %v8595 = vadd.f32 0.0, %v8594
  %v8596 = vpop.f32.mrb[0].mxu0
  %8597 = vmatprep.mubr.f32.mxu0 0.0
  %8598 = vmatmul.mubr.f32.gmra.mrb[0].mxu0 %v8128
  %v8599 = vpop.f32.mrb[0].mxu0
  %v8600 = vadd.f32 0.0, %v8599
  %v8601 = vpop.f32.mrb[0].mxu0
  %8602 = vmatprep.mubr.f32.mxu0 0.0
  %8603 = vmatmul.mubr.f32.gmra.mrb[0].mxu0 %v8129
  %v8604 = vpop.f32.mrb[0].mxu0
  %v8605 = vadd.f32 0.0, %v8604
  %v8606 = vpop.f32.mrb[0].mxu0
  %8607 = vmatprep.mubr.f32.mxu0 0.0
  %8608 = vmatmul.mubr.f32.gmra.mrb[0].mxu0 %v8130
  %v8609 = vpop.f32.mrb[0].mxu0
  %v8610 = vadd.f32 0.0, %v8609
  %v8611 = vpop.f32.mrb[0].mxu0
  %8612 = vmatprep.mubr.f32.mxu0 0.0
  %8613 = vmatmul.mubr.f32.gmra.mrb[0].mxu0 %v8131
  %v8614 = vpop.f32.mrb[0].mxu0
  %v8615 = vadd.f32 0.0, %v8614
  %v8616 = vpop.f32.mrb[0].mxu0
  %8617 = vdwg.mxu0
  %v8618 = vmul.f32 %v8215, %v1290
  %v8619 = vmul.f32 %v8220, %v1295
  %v8620 = vmul.f32 %v8225, %v1300
  %v8621 = vmul.f32 %v8230, %v1305
  %v8622 = vmul.f32 %v8235, %v1310
  %v8623 = vmul.f32 %v8240, %v1315
  %v8624 = vmul.f32 %v8245, %v1320
  %v8625 = vmul.f32 %v8250, %v1325
  %v8626 = vmul.f32 %v8255, %v1330
  %v8627 = vmul.f32 %v8260, %v1335
  %v8628 = vmul.f32 %v8265, %v1340
  %v8629 = vmul.f32 %v8270, %v1345
  %v8630 = vmul.f32 %v8275, %v1350
  %v8631 = vmul.f32 %v8280, %v1355
  %v8632 = vmul.f32 %v8285, %v1360
  %v8633 = vmul.f32 %v8290, %v1365
  %v8634 = vmul.f32 %v8295, %v1370
  %v8635 = vmul.f32 %v8300, %v1375
  %v8636 = vmul.f32 %v8305, %v1380
  %v8637 = vmul.f32 %v8310, %v1385
  %v8638 = vmul.f32 %v8315, %v1390
  %v8639 = vmul.f32 %v8320, %v1395
  %v8640 = vmul.f32 %v8325, %v1400
  %v8641 = vmul.f32 %v8330, %v1405
  %v8642 = vmul.f32 %v8335, %v1410
  %v8643 = vmul.f32 %v8340, %v1415
  %v8644 = vmul.f32 %v8345, %v1420
  %v8645 = vmul.f32 %v8350, %v1425
  %v8646 = vmul.f32 %v8355, %v1430
  %v8647 = vmul.f32 %v8360, %v1435
  %v8648 = vmul.f32 %v8365, %v1440
  %v8649 = vmul.f32 %v8370, %v1445
  %v8650 = vmul.f32 %v8375, %v1450
  %v8651 = vmul.f32 %v8380, %v1455
  %v8652 = vmul.f32 %v8385, %v1460
  %v8653 = vmul.f32 %v8390, %v1465
  %v8654 = vmul.f32 %v8395, %v1470
  %v8655 = vmul.f32 %v8400, %v1475
  %v8656 = vmul.f32 %v8405, %v1480
  %v8657 = vmul.f32 %v8410, %v1485
  %v8658 = vmul.f32 %v8415, %v1490
  %v8659 = vmul.f32 %v8420, %v1495
  %v8660 = vmul.f32 %v8425, %v1500
  %v8661 = vmul.f32 %v8430, %v1505
  %v8662 = vmul.f32 %v8435, %v1510
  %v8663 = vmul.f32 %v8440, %v1515
  %v8664 = vmul.f32 %v8445, %v1520
  %v8665 = vmul.f32 %v8450, %v1525
  %v8666 = vmul.f32 %v8455, %v1530
  %v8667 = vmul.f32 %v8460, %v1535
  %v8668 = vmul.f32 %v8465, %v1540
  %v8669 = vmul.f32 %v8470, %v1545
  %v8670 = vmul.f32 %v8475, %v1550
  %v8671 = vmul.f32 %v8480, %v1555
  %v8672 = vmul.f32 %v8485, %v1560
  %v8673 = vmul.f32 %v8490, %v1565
  %v8674 = vmul.f32 %v8495, %v1570
  %v8675 = vmul.f32 %v8500, %v1575
  %v8676 = vmul.f32 %v8505, %v1580
  %v8677 = vmul.f32 %v8510, %v1585
  %v8678 = vmul.f32 %v8515, %v1590
  %v8679 = vmul.f32 %v8520, %v1595
  %v8680 = vmul.f32 %v8525, %v1600
  %v8681 = vmul.f32 %v8530, %v1605
  %v8682 = vmul.f32 %v8535, %v1610
  %v8683 = vmul.f32 %v8540, %v1615
  %v8684 = vmul.f32 %v8545, %v1620
  %v8685 = vmul.f32 %v8550, %v1625
  %v8686 = vmul.f32 %v8555, %v1630
  %v8687 = vmul.f32 %v8560, %v1635
  %v8688 = vmul.f32 %v8565, %v1640
  %v8689 = vmul.f32 %v8570, %v1645
  %v8690 = vmul.f32 %v8575, %v1650
  %v8691 = vmul.f32 %v8580, %v1655
  %v8692 = vmul.f32 %v8585, %v1660
  %v8693 = vmul.f32 %v8590, %v1665
  %v8694 = vmul.f32 %v8595, %v1670
  %v8695 = vmul.f32 %v8600, %v1675
  %v8696 = vmul.f32 %v8605, %v1680
  %v8697 = vmul.f32 %v8610, %v1685
  %v8698 = vmul.f32 %v8615, %v1690
  %v8699 = vadd.f32 %v8618, %v8619
  %v8700 = vadd.f32 %v8699, %v8620
  %v8701 = vadd.f32 %v8700, %v8621
  %v8702 = vadd.f32 %v8701, %v8622
  %v8703 = vadd.f32 %v8702, %v8623
  %v8704 = vadd.f32 %v8703, %v8624
  %v8705 = vadd.f32 %v8704, %v8625
  %v8706 = vadd.f32 %v8705, %v8626
  %v8707 = vadd.f32 %v8706, %v8627
  %v8708 = vadd.f32 %v8707, %v8628
  %v8709 = vadd.f32 %v8708, %v8629
  %v8710 = vadd.f32 %v8709, %v8630
  %v8711 = vadd.f32 %v8710, %v8631
  %v8712 = vadd.f32 %v8711, %v8632
  %v8713 = vadd.f32 %v8712, %v8633
  %v8714 = vadd.f32 %v8713, %v8634
  %v8715 = vadd.f32 %v8714, %v8635
  %v8716 = vadd.f32 %v8715, %v8636
  %v8717 = vadd.f32 %v8716, %v8637
  %v8718 = vadd.f32 %v8717, %v8638
  %v8719 = vadd.f32 %v8718, %v8639
  %v8720 = vadd.f32 %v8719, %v8640
  %v8721 = vadd.f32 %v8720, %v8641
  %v8722 = vadd.f32 %v8721, %v8642
  %v8723 = vadd.f32 %v8722, %v8643
  %v8724 = vadd.f32 %v8723, %v8644
  %v8725 = vadd.f32 %v8724, %v8645
  %v8726 = vadd.f32 %v8725, %v8646
  %v8727 = vadd.f32 %v8726, %v8647
  %v8728 = vadd.f32 %v8727, %v8648
  %v8729 = vadd.f32 %v8728, %v8649
  %v8730 = vadd.f32 %v8729, %v8650
  %v8731 = vadd.f32 %v8730, %v8651
  %v8732 = vadd.f32 %v8731, %v8652
  %v8733 = vadd.f32 %v8732, %v8653
  %v8734 = vadd.f32 %v8733, %v8654
  %v8735 = vadd.f32 %v8734, %v8655
  %v8736 = vadd.f32 %v8735, %v8656
  %v8737 = vadd.f32 %v8736, %v8657
  %v8738 = vadd.f32 %v8737, %v8658
  %v8739 = vadd.f32 %v8738, %v8659
  %v8740 = vadd.f32 %v8739, %v8660
  %v8741 = vadd.f32 %v8740, %v8661
  %v8742 = vadd.f32 %v8741, %v8662
  %v8743 = vadd.f32 %v8742, %v8663
  %v8744 = vadd.f32 %v8743, %v8664
  %v8745 = vadd.f32 %v8744, %v8665
  %v8746 = vadd.f32 %v8745, %v8666
  %v8747 = vadd.f32 %v8746, %v8667
  %v8748 = vadd.f32 %v8747, %v8668
  %v8749 = vadd.f32 %v8748, %v8669
  %v8750 = vadd.f32 %v8749, %v8670
  %v8751 = vadd.f32 %v8750, %v8671
  %v8752 = vadd.f32 %v8751, %v8672
  %v8753 = vadd.f32 %v8752, %v8673
  %v8754 = vadd.f32 %v8753, %v8674
  %v8755 = vadd.f32 %v8754, %v8675
  %v8756 = vadd.f32 %v8755, %v8676
  %v8757 = vadd.f32 %v8756, %v8677
  %v8758 = vadd.f32 %v8757, %v8678
  %v8759 = vadd.f32 %v8758, %v8679
  %v8760 = vadd.f32 %v8759, %v8680
  %v8761 = vadd.f32 %v8760, %v8681
  %v8762 = vadd.f32 %v8761, %v8682
  %v8763 = vadd.f32 %v8762, %v8683
  %v8764 = vadd.f32 %v8763, %v8684
  %v8765 = vadd.f32 %v8764, %v8685
  %v8766 = vadd.f32 %v8765, %v8686
  %v8767 = vadd.f32 %v8766, %v8687
  %v8768 = vadd.f32 %v8767, %v8688
  %v8769 = vadd.f32 %v8768, %v8689
  %v8770 = vadd.f32 %v8769, %v8690
  %v8771 = vadd.f32 %v8770, %v8691
  %v8772 = vadd.f32 %v8771, %v8692
  %v8773 = vadd.f32 %v8772, %v8693
  %v8774 = vadd.f32 %v8773, %v8694
  %v8775 = vadd.f32 %v8774, %v8695
  %v8776 = vadd.f32 %v8775, %v8696
  %v8777 = vadd.f32 %v8776, %v8697
  %v8778 = vadd.f32 %v8777, %v8698
  %v8779 = vrot.slane %v8778, 4
  %v8780 = vadd.f32 %v8778, %v8779
  %v8781 = vrot.slane %v8780, 2
  %v8782 = vadd.f32 %v8780, %v8781
  %v8783 = vrot.slane %v8782, 1
  %v8784 = vadd.f32 %v8782, %v8783
  %v8785 = vmul.f32 %v8618, %v8618
  %v8786 = vmul.f32 %v8619, %v8619
  %v8787 = vmul.f32 %v8620, %v8620
  %v8788 = vmul.f32 %v8621, %v8621
  %v8789 = vmul.f32 %v8622, %v8622
  %v8790 = vmul.f32 %v8623, %v8623
  %v8791 = vmul.f32 %v8624, %v8624
  %v8792 = vmul.f32 %v8625, %v8625
  %v8793 = vmul.f32 %v8626, %v8626
  %v8794 = vmul.f32 %v8627, %v8627
  %v8795 = vmul.f32 %v8628, %v8628
  %v8796 = vmul.f32 %v8629, %v8629
  %v8797 = vmul.f32 %v8630, %v8630
  %v8798 = vmul.f32 %v8631, %v8631
  %v8799 = vmul.f32 %v8632, %v8632
  %v8800 = vmul.f32 %v8633, %v8633
  %v8801 = vmul.f32 %v8634, %v8634
  %v8802 = vmul.f32 %v8635, %v8635
  %v8803 = vmul.f32 %v8636, %v8636
  %v8804 = vmul.f32 %v8637, %v8637
  %v8805 = vmul.f32 %v8638, %v8638
  %v8806 = vmul.f32 %v8639, %v8639
  %v8807 = vmul.f32 %v8640, %v8640
  %v8808 = vmul.f32 %v8641, %v8641
  %v8809 = vmul.f32 %v8642, %v8642
  %v8810 = vmul.f32 %v8643, %v8643
  %v8811 = vmul.f32 %v8644, %v8644
  %v8812 = vmul.f32 %v8645, %v8645
  %v8813 = vmul.f32 %v8646, %v8646
  %v8814 = vmul.f32 %v8647, %v8647
  %v8815 = vmul.f32 %v8648, %v8648
  %v8816 = vmul.f32 %v8649, %v8649
  %v8817 = vmul.f32 %v8650, %v8650
  %v8818 = vmul.f32 %v8651, %v8651
  %v8819 = vmul.f32 %v8652, %v8652
  %v8820 = vmul.f32 %v8653, %v8653
  %v8821 = vmul.f32 %v8654, %v8654
  %v8822 = vmul.f32 %v8655, %v8655
  %v8823 = vmul.f32 %v8656, %v8656
  %v8824 = vmul.f32 %v8657, %v8657
  %v8825 = vmul.f32 %v8658, %v8658
  %v8826 = vmul.f32 %v8659, %v8659
  %v8827 = vmul.f32 %v8660, %v8660
  %v8828 = vmul.f32 %v8661, %v8661
  %v8829 = vmul.f32 %v8662, %v8662
  %v8830 = vmul.f32 %v8663, %v8663
  %v8831 = vmul.f32 %v8664, %v8664
  %v8832 = vmul.f32 %v8665, %v8665
  %v8833 = vmul.f32 %v8666, %v8666
  %v8834 = vmul.f32 %v8667, %v8667
  %v8835 = vmul.f32 %v8668, %v8668
  %v8836 = vmul.f32 %v8669, %v8669
  %v8837 = vmul.f32 %v8670, %v8670
  %v8838 = vmul.f32 %v8671, %v8671
  %v8839 = vmul.f32 %v8672, %v8672
  %v8840 = vmul.f32 %v8673, %v8673
  %v8841 = vmul.f32 %v8674, %v8674
  %v8842 = vmul.f32 %v8675, %v8675
  %v8843 = vmul.f32 %v8676, %v8676
  %v8844 = vmul.f32 %v8677, %v8677
  %v8845 = vmul.f32 %v8678, %v8678
  %v8846 = vmul.f32 %v8679, %v8679
  %v8847 = vmul.f32 %v8680, %v8680
  %v8848 = vmul.f32 %v8681, %v8681
  %v8849 = vmul.f32 %v8682, %v8682
  %v8850 = vmul.f32 %v8683, %v8683
  %v8851 = vmul.f32 %v8684, %v8684
  %v8852 = vmul.f32 %v8685, %v8685
  %v8853 = vmul.f32 %v8686, %v8686
  %v8854 = vmul.f32 %v8687, %v8687
  %v8855 = vmul.f32 %v8688, %v8688
  %v8856 = vmul.f32 %v8689, %v8689
  %v8857 = vmul.f32 %v8690, %v8690
  %v8858 = vmul.f32 %v8691, %v8691
  %v8859 = vmul.f32 %v8692, %v8692
  %v8860 = vmul.f32 %v8693, %v8693
  %v8861 = vmul.f32 %v8694, %v8694
  %v8862 = vmul.f32 %v8695, %v8695
  %v8863 = vmul.f32 %v8696, %v8696
  %v8864 = vmul.f32 %v8697, %v8697
  %v8865 = vmul.f32 %v8698, %v8698
  %v8866 = vadd.f32 %v8785, %v8786
  %v8867 = vadd.f32 %v8866, %v8787
  %v8868 = vadd.f32 %v8867, %v8788
  %v8869 = vadd.f32 %v8868, %v8789
  %v8870 = vadd.f32 %v8869, %v8790
  %v8871 = vadd.f32 %v8870, %v8791
  %v8872 = vadd.f32 %v8871, %v8792
  %v8873 = vadd.f32 %v8872, %v8793
  %v8874 = vadd.f32 %v8873, %v8794
  %v8875 = vadd.f32 %v8874, %v8795
  %v8876 = vadd.f32 %v8875, %v8796
  %v8877 = vadd.f32 %v8876, %v8797
  %v8878 = vadd.f32 %v8877, %v8798
  %v8879 = vadd.f32 %v8878, %v8799
  %v8880 = vadd.f32 %v8879, %v8800
  %v8881 = vadd.f32 %v8880, %v8801
  %v8882 = vadd.f32 %v8881, %v8802
  %v8883 = vadd.f32 %v8882, %v8803
  %v8884 = vadd.f32 %v8883, %v8804
  %v8885 = vadd.f32 %v8884, %v8805
  %v8886 = vadd.f32 %v8885, %v8806
  %v8887 = vadd.f32 %v8886, %v8807
  %v8888 = vadd.f32 %v8887, %v8808
  %v8889 = vadd.f32 %v8888, %v8809
  %v8890 = vadd.f32 %v8889, %v8810
  %v8891 = vadd.f32 %v8890, %v8811
  %v8892 = vadd.f32 %v8891, %v8812
  %v8893 = vadd.f32 %v8892, %v8813
  %v8894 = vadd.f32 %v8893, %v8814
  %v8895 = vadd.f32 %v8894, %v8815
  %v8896 = vadd.f32 %v8895, %v8816
  %v8897 = vadd.f32 %v8896, %v8817
  %v8898 = vadd.f32 %v8897, %v8818
  %v8899 = vadd.f32 %v8898, %v8819
  %v8900 = vadd.f32 %v8899, %v8820
  %v8901 = vadd.f32 %v8900, %v8821
  %v8902 = vadd.f32 %v8901, %v8822
  %v8903 = vadd.f32 %v8902, %v8823
  %v8904 = vadd.f32 %v8903, %v8824
  %v8905 = vadd.f32 %v8904, %v8825
  %v8906 = vadd.f32 %v8905, %v8826
  %v8907 = vadd.f32 %v8906, %v8827
  %v8908 = vadd.f32 %v8907, %v8828
  %v8909 = vadd.f32 %v8908, %v8829
  %v8910 = vadd.f32 %v8909, %v8830
  %v8911 = vadd.f32 %v8910, %v8831
  %v8912 = vadd.f32 %v8911, %v8832
  %v8913 = vadd.f32 %v8912, %v8833
  %v8914 = vadd.f32 %v8913, %v8834
  %v8915 = vadd.f32 %v8914, %v8835
  %v8916 = vadd.f32 %v8915, %v8836
  %v8917 = vadd.f32 %v8916, %v8837
  %v8918 = vadd.f32 %v8917, %v8838
  %v8919 = vadd.f32 %v8918, %v8839
  %v8920 = vadd.f32 %v8919, %v8840
  %v8921 = vadd.f32 %v8920, %v8841
  %v8922 = vadd.f32 %v8921, %v8842
  %v8923 = vadd.f32 %v8922, %v8843
  %v8924 = vadd.f32 %v8923, %v8844
  %v8925 = vadd.f32 %v8924, %v8845
  %v8926 = vadd.f32 %v8925, %v8846
  %v8927 = vadd.f32 %v8926, %v8847
  %v8928 = vadd.f32 %v8927, %v8848
  %v8929 = vadd.f32 %v8928, %v8849
  %v8930 = vadd.f32 %v8929, %v8850
  %v8931 = vadd.f32 %v8930, %v8851
  %v8932 = vadd.f32 %v8931, %v8852
  %v8933 = vadd.f32 %v8932, %v8853
  %v8934 = vadd.f32 %v8933, %v8854
  %v8935 = vadd.f32 %v8934, %v8855
  %v8936 = vadd.f32 %v8935, %v8856
  %v8937 = vadd.f32 %v8936, %v8857
  %v8938 = vadd.f32 %v8937, %v8858
  %v8939 = vadd.f32 %v8938, %v8859
  %v8940 = vadd.f32 %v8939, %v8860
  %v8941 = vadd.f32 %v8940, %v8861
  %v8942 = vadd.f32 %v8941, %v8862
  %v8943 = vadd.f32 %v8942, %v8863
  %v8944 = vadd.f32 %v8943, %v8864
  %v8945 = vadd.f32 %v8944, %v8865
  %v8946 = vrot.slane %v8945, 4
  %v8947 = vadd.f32 %v8945, %v8946
  %v8948 = vrot.slane %v8947, 2
  %v8949 = vadd.f32 %v8947, %v8948
  %v8950 = vrot.slane %v8949, 1
  %v8951 = vadd.f32 %v8949, %v8950
  %v8952 = vmul.f32 %v8784, 0.001953125
  %v8953 = vmul.f32 %v8951, 0.001953125
  %v8954 = vmul.f32 %v8952, %v8952
  %v8955 = vsub.f32 %v8953, %v8954
  %v8956 = vadd.f32 %v8955, 1e-05
  %v8957 = vrsqrt.pop %v8956
  %v8958 = vmul.f32 %v108, %v8957
  %v8959 = vmul.f32 %v8952, %v8958
  %v8960 = vsub.f32 %v109, %v8959
  %v8961 = vlaneseq
  %v8962 = vshrl.u32 %v8961, 7
  %v8963 = vsub.s32 0, %v8962
  %v8964 = vrot.slane %v8958, %v8963
  %v8965 = vmul.f32 %v8618, %v8964
  %v8966 = vmul.f32 %v8619, %v8964
  %v8967 = vmul.f32 %v8620, %v8964
  %v8968 = vmul.f32 %v8621, %v8964
  %v8969 = vmul.f32 %v8622, %v8964
  %v8970 = vmul.f32 %v8623, %v8964
  %v8971 = vmul.f32 %v8624, %v8964
  %v8972 = vmul.f32 %v8625, %v8964
  %v8973 = vmul.f32 %v8626, %v8964
  %v8974 = vmul.f32 %v8627, %v8964
  %v8975 = vmul.f32 %v8628, %v8964
  %v8976 = vmul.f32 %v8629, %v8964
  %v8977 = vmul.f32 %v8630, %v8964
  %v8978 = vmul.f32 %v8631, %v8964
  %v8979 = vmul.f32 %v8632, %v8964
  %v8980 = vmul.f32 %v8633, %v8964
  %v8981 = vmul.f32 %v8634, %v8964
  %v8982 = vmul.f32 %v8635, %v8964
  %v8983 = vmul.f32 %v8636, %v8964
  %v8984 = vmul.f32 %v8637, %v8964
  %v8985 = vmul.f32 %v8638, %v8964
  %v8986 = vmul.f32 %v8639, %v8964
  %v8987 = vmul.f32 %v8640, %v8964
  %v8988 = vmul.f32 %v8641, %v8964
  %v8989 = vmul.f32 %v8642, %v8964
  %v8990 = vmul.f32 %v8643, %v8964
  %v8991 = vmul.f32 %v8644, %v8964
  %v8992 = vmul.f32 %v8645, %v8964
  %v8993 = vmul.f32 %v8646, %v8964
  %v8994 = vmul.f32 %v8647, %v8964
  %v8995 = vmul.f32 %v8648, %v8964
  %v8996 = vmul.f32 %v8649, %v8964
  %v8997 = vmul.f32 %v8650, %v8964
  %v8998 = vmul.f32 %v8651, %v8964
  %v8999 = vmul.f32 %v8652, %v8964
  %v9000 = vmul.f32 %v8653, %v8964
  %v9001 = vmul.f32 %v8654, %v8964
  %v9002 = vmul.f32 %v8655, %v8964
  %v9003 = vmul.f32 %v8656, %v8964
  %v9004 = vmul.f32 %v8657, %v8964
  %v9005 = vmul.f32 %v8658, %v8964
  %v9006 = vmul.f32 %v8659, %v8964
  %v9007 = vmul.f32 %v8660, %v8964
  %v9008 = vmul.f32 %v8661, %v8964
  %v9009 = vmul.f32 %v8662, %v8964
  %v9010 = vmul.f32 %v8663, %v8964
  %v9011 = vmul.f32 %v8664, %v8964
  %v9012 = vmul.f32 %v8665, %v8964
  %v9013 = vmul.f32 %v8666, %v8964
  %v9014 = vmul.f32 %v8667, %v8964
  %v9015 = vmul.f32 %v8668, %v8964
  %v9016 = vmul.f32 %v8669, %v8964
  %v9017 = vmul.f32 %v8670, %v8964
  %v9018 = vmul.f32 %v8671, %v8964
  %v9019 = vmul.f32 %v8672, %v8964
  %v9020 = vmul.f32 %v8673, %v8964
  %v9021 = vmul.f32 %v8674, %v8964
  %v9022 = vmul.f32 %v8675, %v8964
  %v9023 = vmul.f32 %v8676, %v8964
  %v9024 = vmul.f32 %v8677, %v8964
  %v9025 = vmul.f32 %v8678, %v8964
  %v9026 = vmul.f32 %v8679, %v8964
  %v9027 = vmul.f32 %v8680, %v8964
  %v9028 = vmul.f32 %v8681, %v8964
  %v9029 = vmul.f32 %v8682, %v8964
  %v9030 = vmul.f32 %v8683, %v8964
  %v9031 = vmul.f32 %v8684, %v8964
  %v9032 = vmul.f32 %v8685, %v8964
  %v9033 = vmul.f32 %v8686, %v8964
  %v9034 = vmul.f32 %v8687, %v8964
  %v9035 = vmul.f32 %v8688, %v8964
  %v9036 = vmul.f32 %v8689, %v8964
  %v9037 = vmul.f32 %v8690, %v8964
  %v9038 = vmul.f32 %v8691, %v8964
  %v9039 = vmul.f32 %v8692, %v8964
  %v9040 = vmul.f32 %v8693, %v8964
  %v9041 = vmul.f32 %v8694, %v8964
  %v9042 = vmul.f32 %v8695, %v8964
  %v9043 = vmul.f32 %v8696, %v8964
  %v9044 = vmul.f32 %v8697, %v8964
  %v9045 = vmul.f32 %v8698, %v8964
  %v9046 = vlaneseq
  %v9047 = vshrl.u32 %v9046, 7
  %v9048 = vsub.s32 0, %v9047
  %v9049 = vrot.slane %v8960, %v9048
  %v9050 = vadd.f32 %v8965, %v9049
  %v9051 = vadd.f32 %v8966, %v9049
  %v9052 = vadd.f32 %v8967, %v9049
  %v9053 = vadd.f32 %v8968, %v9049
  %v9054 = vadd.f32 %v8969, %v9049
  %v9055 = vadd.f32 %v8970, %v9049
  %v9056 = vadd.f32 %v8971, %v9049
  %v9057 = vadd.f32 %v8972, %v9049
  %v9058 = vadd.f32 %v8973, %v9049
  %v9059 = vadd.f32 %v8974, %v9049
  %v9060 = vadd.f32 %v8975, %v9049
  %v9061 = vadd.f32 %v8976, %v9049
  %v9062 = vadd.f32 %v8977, %v9049
  %v9063 = vadd.f32 %v8978, %v9049
  %v9064 = vadd.f32 %v8979, %v9049
  %v9065 = vadd.f32 %v8980, %v9049
  %v9066 = vadd.f32 %v8981, %v9049
  %v9067 = vadd.f32 %v8982, %v9049
  %v9068 = vadd.f32 %v8983, %v9049
  %v9069 = vadd.f32 %v8984, %v9049
  %v9070 = vadd.f32 %v8985, %v9049
  %v9071 = vadd.f32 %v8986, %v9049
  %v9072 = vadd.f32 %v8987, %v9049
  %v9073 = vadd.f32 %v8988, %v9049
  %v9074 = vadd.f32 %v8989, %v9049
  %v9075 = vadd.f32 %v8990, %v9049
  %v9076 = vadd.f32 %v8991, %v9049
  %v9077 = vadd.f32 %v8992, %v9049
  %v9078 = vadd.f32 %v8993, %v9049
  %v9079 = vadd.f32 %v8994, %v9049
  %v9080 = vadd.f32 %v8995, %v9049
  %v9081 = vadd.f32 %v8996, %v9049
  %v9082 = vadd.f32 %v8997, %v9049
  %v9083 = vadd.f32 %v8998, %v9049
  %v9084 = vadd.f32 %v8999, %v9049
  %v9085 = vadd.f32 %v9000, %v9049
  %v9086 = vadd.f32 %v9001, %v9049
  %v9087 = vadd.f32 %v9002, %v9049
  %v9088 = vadd.f32 %v9003, %v9049
  %v9089 = vadd.f32 %v9004, %v9049
  %v9090 = vadd.f32 %v9005, %v9049
  %v9091 = vadd.f32 %v9006, %v9049
  %v9092 = vadd.f32 %v9007, %v9049
  %v9093 = vadd.f32 %v9008, %v9049
  %v9094 = vadd.f32 %v9009, %v9049
  %v9095 = vadd.f32 %v9010, %v9049
  %v9096 = vadd.f32 %v9011, %v9049
  %v9097 = vadd.f32 %v9012, %v9049
  %v9098 = vadd.f32 %v9013, %v9049
  %v9099 = vadd.f32 %v9014, %v9049
  %v9100 = vadd.f32 %v9015, %v9049
  %v9101 = vadd.f32 %v9016, %v9049
  %v9102 = vadd.f32 %v9017, %v9049
  %v9103 = vadd.f32 %v9018, %v9049
  %v9104 = vadd.f32 %v9019, %v9049
  %v9105 = vadd.f32 %v9020, %v9049
  %v9106 = vadd.f32 %v9021, %v9049
  %v9107 = vadd.f32 %v9022, %v9049
  %v9108 = vadd.f32 %v9023, %v9049
  %v9109 = vadd.f32 %v9024, %v9049
  %v9110 = vadd.f32 %v9025, %v9049
  %v9111 = vadd.f32 %v9026, %v9049
  %v9112 = vadd.f32 %v9027, %v9049
  %v9113 = vadd.f32 %v9028, %v9049
  %v9114 = vadd.f32 %v9029, %v9049
  %v9115 = vadd.f32 %v9030, %v9049
  %v9116 = vadd.f32 %v9031, %v9049
  %v9117 = vadd.f32 %v9032, %v9049
  %v9118 = vadd.f32 %v9033, %v9049
  %v9119 = vadd.f32 %v9034, %v9049
  %v9120 = vadd.f32 %v9035, %v9049
  %v9121 = vadd.f32 %v9036, %v9049
  %v9122 = vadd.f32 %v9037, %v9049
  %v9123 = vadd.f32 %v9038, %v9049
  %v9124 = vadd.f32 %v9039, %v9049
  %v9125 = vadd.f32 %v9040, %v9049
  %v9126 = vadd.f32 %v9041, %v9049
  %v9127 = vadd.f32 %v9042, %v9049
  %v9128 = vadd.f32 %v9043, %v9049
  %v9129 = vadd.f32 %v9044, %v9049
  %v9130 = vadd.f32 %v9045, %v9049
  %v9131 = vadd.f32 %v9050, %v292
  %v9132 = vadd.f32 %v9051, %v298
  %v9133 = vadd.f32 %v9052, %v304
  %v9134 = vadd.f32 %v9053, %v310
  %v9135 = vadd.f32 %v9054, %v316
  %v9136 = vadd.f32 %v9055, %v322
  %v9137 = vadd.f32 %v9056, %v328
  %v9138 = vadd.f32 %v9057, %v334
  %v9139 = vadd.f32 %v9058, %v340
  %v9140 = vadd.f32 %v9059, %v346
  %v9141 = vadd.f32 %v9060, %v352
  %v9142 = vadd.f32 %v9061, %v358
  %v9143 = vadd.f32 %v9062, %v364
  %v9144 = vadd.f32 %v9063, %v370
  %v9145 = vadd.f32 %v9064, %v376
  %v9146 = vadd.f32 %v9065, %v382
  %v9147 = vadd.f32 %v9066, %v388
  %v9148 = vadd.f32 %v9067, %v394
  %v9149 = vadd.f32 %v9068, %v400
  %v9150 = vadd.f32 %v9069, %v406
  %v9151 = vadd.f32 %v9070, %v412
  %v9152 = vadd.f32 %v9071, %v418
  %v9153 = vadd.f32 %v9072, %v424
  %v9154 = vadd.f32 %v9073, %v430
  %v9155 = vadd.f32 %v9074, %v436
  %v9156 = vadd.f32 %v9075, %v442
  %v9157 = vadd.f32 %v9076, %v448
  %v9158 = vadd.f32 %v9077, %v454
  %v9159 = vadd.f32 %v9078, %v460
  %v9160 = vadd.f32 %v9079, %v466
  %v9161 = vadd.f32 %v9080, %v472
  %v9162 = vadd.f32 %v9081, %v478
  %v9163 = vadd.f32 %v9082, %v484
  %v9164 = vadd.f32 %v9083, %v490
  %v9165 = vadd.f32 %v9084, %v496
  %v9166 = vadd.f32 %v9085, %v502
  %v9167 = vadd.f32 %v9086, %v508
  %v9168 = vadd.f32 %v9087, %v514
  %v9169 = vadd.f32 %v9088, %v520
  %v9170 = vadd.f32 %v9089, %v526
  %v9171 = vadd.f32 %v9090, %v532
  %v9172 = vadd.f32 %v9091, %v538
  %v9173 = vadd.f32 %v9092, %v544
  %v9174 = vadd.f32 %v9093, %v550
  %v9175 = vadd.f32 %v9094, %v556
  %v9176 = vadd.f32 %v9095, %v562
  %v9177 = vadd.f32 %v9096, %v568
  %v9178 = vadd.f32 %v9097, %v574
  %v9179 = vadd.f32 %v9098, %v580
  %v9180 = vadd.f32 %v9099, %v586
  %v9181 = vadd.f32 %v9100, %v592
  %v9182 = vadd.f32 %v9101, %v598
  %v9183 = vadd.f32 %v9102, %v604
  %v9184 = vadd.f32 %v9103, %v610
  %v9185 = vadd.f32 %v9104, %v616
  %v9186 = vadd.f32 %v9105, %v622
  %v9187 = vadd.f32 %v9106, %v628
  %v9188 = vadd.f32 %v9107, %v634
  %v9189 = vadd.f32 %v9108, %v640
  %v9190 = vadd.f32 %v9109, %v646
  %v9191 = vadd.f32 %v9110, %v652
  %v9192 = vadd.f32 %v9111, %v658
  %v9193 = vadd.f32 %v9112, %v664
  %v9194 = vadd.f32 %v9113, %v670
  %v9195 = vadd.f32 %v9114, %v676
  %v9196 = vadd.f32 %v9115, %v682
  %v9197 = vadd.f32 %v9116, %v688
  %v9198 = vadd.f32 %v9117, %v694
  %v9199 = vadd.f32 %v9118, %v700
  %v9200 = vadd.f32 %v9119, %v706
  %v9201 = vadd.f32 %v9120, %v712
  %v9202 = vadd.f32 %v9121, %v718
  %v9203 = vadd.f32 %v9122, %v724
  %v9204 = vadd.f32 %v9123, %v730
  %v9205 = vadd.f32 %v9124, %v736
  %v9206 = vadd.f32 %v9125, %v742
  %v9207 = vadd.f32 %v9126, %v748
  %v9208 = vadd.f32 %v9127, %v754
  %v9209 = vadd.f32 %v9128, %v760
  %v9210 = vadd.f32 %v9129, %v766
  %v9211 = vadd.f32 %v9130, %v772
  %v9212 = vmax.f32 %v9131, 0.0
  %v9213 = vmax.f32 %v9132, 0.0
  %v9214 = vmax.f32 %v9133, 0.0
  %v9215 = vmax.f32 %v9134, 0.0
  %v9216 = vmax.f32 %v9135, 0.0
  %v9217 = vmax.f32 %v9136, 0.0
  %v9218 = vmax.f32 %v9137, 0.0
  %v9219 = vmax.f32 %v9138, 0.0
  %v9220 = vmax.f32 %v9139, 0.0
  %v9221 = vmax.f32 %v9140, 0.0
  %v9222 = vmax.f32 %v9141, 0.0
  %v9223 = vmax.f32 %v9142, 0.0
  %v9224 = vmax.f32 %v9143, 0.0
  %v9225 = vmax.f32 %v9144, 0.0
  %v9226 = vmax.f32 %v9145, 0.0
  %v9227 = vmax.f32 %v9146, 0.0
  %v9228 = vmax.f32 %v9147, 0.0
  %v9229 = vmax.f32 %v9148, 0.0
  %v9230 = vmax.f32 %v9149, 0.0
  %v9231 = vmax.f32 %v9150, 0.0
  %v9232 = vmax.f32 %v9151, 0.0
  %v9233 = vmax.f32 %v9152, 0.0
  %v9234 = vmax.f32 %v9153, 0.0
  %v9235 = vmax.f32 %v9154, 0.0
  %v9236 = vmax.f32 %v9155, 0.0
  %v9237 = vmax.f32 %v9156, 0.0
  %v9238 = vmax.f32 %v9157, 0.0
  %v9239 = vmax.f32 %v9158, 0.0
  %v9240 = vmax.f32 %v9159, 0.0
  %v9241 = vmax.f32 %v9160, 0.0
  %v9242 = vmax.f32 %v9161, 0.0
  %v9243 = vmax.f32 %v9162, 0.0
  %v9244 = vmax.f32 %v9163, 0.0
  %v9245 = vmax.f32 %v9164, 0.0
  %v9246 = vmax.f32 %v9165, 0.0
  %v9247 = vmax.f32 %v9166, 0.0
  %v9248 = vmax.f32 %v9167, 0.0
  %v9249 = vmax.f32 %v9168, 0.0
  %v9250 = vmax.f32 %v9169, 0.0
  %v9251 = vmax.f32 %v9170, 0.0
  %v9252 = vmax.f32 %v9171, 0.0
  %v9253 = vmax.f32 %v9172, 0.0
  %v9254 = vmax.f32 %v9173, 0.0
  %v9255 = vmax.f32 %v9174, 0.0
  %v9256 = vmax.f32 %v9175, 0.0
  %v9257 = vmax.f32 %v9176, 0.0
  %v9258 = vmax.f32 %v9177, 0.0
  %v9259 = vmax.f32 %v9178, 0.0
  %v9260 = vmax.f32 %v9179, 0.0
  %v9261 = vmax.f32 %v9180, 0.0
  %v9262 = vmax.f32 %v9181, 0.0
  %v9263 = vmax.f32 %v9182, 0.0
  %v9264 = vmax.f32 %v9183, 0.0
  %v9265 = vmax.f32 %v9184, 0.0
  %v9266 = vmax.f32 %v9185, 0.0
  %v9267 = vmax.f32 %v9186, 0.0
  %v9268 = vmax.f32 %v9187, 0.0
  %v9269 = vmax.f32 %v9188, 0.0
  %v9270 = vmax.f32 %v9189, 0.0
  %v9271 = vmax.f32 %v9190, 0.0
  %v9272 = vmax.f32 %v9191, 0.0
  %v9273 = vmax.f32 %v9192, 0.0
  %v9274 = vmax.f32 %v9193, 0.0
  %v9275 = vmax.f32 %v9194, 0.0
  %v9276 = vmax.f32 %v9195, 0.0
  %v9277 = vmax.f32 %v9196, 0.0
  %v9278 = vmax.f32 %v9197, 0.0
  %v9279 = vmax.f32 %v9198, 0.0
  %v9280 = vmax.f32 %v9199, 0.0
  %v9281 = vmax.f32 %v9200, 0.0
  %v9282 = vmax.f32 %v9201, 0.0
  %v9283 = vmax.f32 %v9202, 0.0
  %v9284 = vmax.f32 %v9203, 0.0
  %v9285 = vmax.f32 %v9204, 0.0
  %v9286 = vmax.f32 %v9205, 0.0
  %v9287 = vmax.f32 %v9206, 0.0
  %v9288 = vmax.f32 %v9207, 0.0
  %v9289 = vmax.f32 %v9208, 0.0
  %v9290 = vmax.f32 %v9209, 0.0
  %v9291 = vmax.f32 %v9210, 0.0
  %v9292 = vmax.f32 %v9211, 0.0
  %9293 = vst [vmem:[%s6] sm:$0xff] %v9212
  %9294 = vst [vmem:[%s6 + $0x8] sm:$0xff] %v9213
  %9295 = vst [vmem:[%s6 + $0x10] sm:$0xff] %v9214
  %9296 = vst [vmem:[%s6 + $0x18] sm:$0xff] %v9215
  %9297 = vst [vmem:[%s6 + $0x20] sm:$0xff] %v9216
  %9298 = vst [vmem:[%s6 + $0x28] sm:$0xff] %v9217
  %9299 = vst [vmem:[%s6 + $0x30] sm:$0xff] %v9218
  %9300 = vst [vmem:[%s6 + $0x38] sm:$0xff] %v9219
  %9301 = vst [vmem:[%s6 + $0x40] sm:$0xff] %v9220
  %9302 = vst [vmem:[%s6 + $0x48] sm:$0xff] %v9221
  %9303 = vst [vmem:[%s6 + $0x50] sm:$0xff] %v9222
  %9304 = vst [vmem:[%s6 + $0x58] sm:$0xff] %v9223
  %9305 = vst [vmem:[%s6 + $0x60] sm:$0xff] %v9224
  %9306 = vst [vmem:[%s6 + $0x68] sm:$0xff] %v9225
  %9307 = vst [vmem:[%s6 + $0x70] sm:$0xff] %v9226
  %9308 = vst [vmem:[%s6 + $0x78] sm:$0xff] %v9227
  %9309 = vst [vmem:[%s6 + $0x80] sm:$0xff] %v9228
  %9310 = vst [vmem:[%s6 + $0x88] sm:$0xff] %v9229
  %9311 = vst [vmem:[%s6 + $0x90] sm:$0xff] %v9230
  %9312 = vst [vmem:[%s6 + $0x98] sm:$0xff] %v9231
  %9313 = vst [vmem:[%s6 + $0xa0] sm:$0xff] %v9232
  %9314 = vst [vmem:[%s6 + $0xa8] sm:$0xff] %v9233
  %9315 = vst [vmem:[%s6 + $0xb0] sm:$0xff] %v9234
  %9316 = vst [vmem:[%s6 + $0xb8] sm:$0xff] %v9235
  %9317 = vst [vmem:[%s6 + $0xc0] sm:$0xff] %v9236
  %9318 = vst [vmem:[%s6 + $0xc8] sm:$0xff] %v9237
  %9319 = vst [vmem:[%s6 + $0xd0] sm:$0xff] %v9238
  %9320 = vst [vmem:[%s6 + $0xd8] sm:$0xff] %v9239
  %9321 = vst [vmem:[%s6 + $0xe0] sm:$0xff] %v9240
  %9322 = vst [vmem:[%s6 + $0xe8] sm:$0xff] %v9241
  %9323 = vst [vmem:[%s6 + $0xf0] sm:$0xff] %v9242
  %9324 = vst [vmem:[%s6 + $0xf8] sm:$0xff] %v9243
  %9325 = vst [vmem:[%s6 + $0x100] sm:$0xff] %v9244
  %9326 = vst [vmem:[%s6 + $0x108] sm:$0xff] %v9245
  %9327 = vst [vmem:[%s6 + $0x110] sm:$0xff] %v9246
  %9328 = vst [vmem:[%s6 + $0x118] sm:$0xff] %v9247
  %9329 = vst [vmem:[%s6 + $0x120] sm:$0xff] %v9248
  %9330 = vst [vmem:[%s6 + $0x128] sm:$0xff] %v9249
  %9331 = vst [vmem:[%s6 + $0x130] sm:$0xff] %v9250
  %9332 = vst [vmem:[%s6 + $0x138] sm:$0xff] %v9251
  %9333 = vst [vmem:[%s6 + $0x140] sm:$0xff] %v9252
  %9334 = vst [vmem:[%s6 + $0x148] sm:$0xff] %v9253
  %9335 = vst [vmem:[%s6 + $0x150] sm:$0xff] %v9254
  %9336 = vst [vmem:[%s6 + $0x158] sm:$0xff] %v9255
  %9337 = vst [vmem:[%s6 + $0x160] sm:$0xff] %v9256
  %9338 = vst [vmem:[%s6 + $0x168] sm:$0xff] %v9257
  %9339 = vst [vmem:[%s6 + $0x170] sm:$0xff] %v9258
  %9340 = vst [vmem:[%s6 + $0x178] sm:$0xff] %v9259
  %9341 = vst [vmem:[%s6 + $0x180] sm:$0xff] %v9260
  %9342 = vst [vmem:[%s6 + $0x188] sm:$0xff] %v9261
  %9343 = vst [vmem:[%s6 + $0x190] sm:$0xff] %v9262
  %9344 = vst [vmem:[%s6 + $0x198] sm:$0xff] %v9263
  %9345 = vst [vmem:[%s6 + $0x1a0] sm:$0xff] %v9264
  %9346 = vst [vmem:[%s6 + $0x1a8] sm:$0xff] %v9265
  %9347 = vst [vmem:[%s6 + $0x1b0] sm:$0xff] %v9266
  %9348 = vst [vmem:[%s6 + $0x1b8] sm:$0xff] %v9267
  %9349 = vst [vmem:[%s6 + $0x1c0] sm:$0xff] %v9268
  %9350 = vst [vmem:[%s6 + $0x1c8] sm:$0xff] %v9269
  %9351 = vst [vmem:[%s6 + $0x1d0] sm:$0xff] %v9270
  %9352 = vst [vmem:[%s6 + $0x1d8] sm:$0xff] %v9271
  %9353 = vst [vmem:[%s6 + $0x1e0] sm:$0xff] %v9272
  %9354 = vst [vmem:[%s6 + $0x1e8] sm:$0xff] %v9273
  %9355 = vst [vmem:[%s6 + $0x1f0] sm:$0xff] %v9274
  %9356 = vst [vmem:[%s6 + $0x1f8] sm:$0xff] %v9275
  %9357 = vst [vmem:[%s6 + $0x200] sm:$0xff] %v9276
  %9358 = vst [vmem:[%s6 + $0x208] sm:$0xff] %v9277
  %9359 = vst [vmem:[%s6 + $0x210] sm:$0xff] %v9278
  %9360 = vst [vmem:[%s6 + $0x218] sm:$0xff] %v9279
  %9361 = vst [vmem:[%s6 + $0x220] sm:$0xff] %v9280
  %9362 = vst [vmem:[%s6 + $0x228] sm:$0xff] %v9281
  %9363 = vst [vmem:[%s6 + $0x230] sm:$0xff] %v9282
  %9364 = vst [vmem:[%s6 + $0x238] sm:$0xff] %v9283
  %9365 = vst [vmem:[%s6 + $0x240] sm:$0xff] %v9284
  %9366 = vst [vmem:[%s6 + $0x248] sm:$0xff] %v9285
  %9367 = vst [vmem:[%s6 + $0x250] sm:$0xff] %v9286
  %9368 = vst [vmem:[%s6 + $0x258] sm:$0xff] %v9287
  %9369 = vst [vmem:[%s6 + $0x260] sm:$0xff] %v9288
  %9370 = vst [vmem:[%s6 + $0x268] sm:$0xff] %v9289
  %9371 = vst [vmem:[%s6 + $0x270] sm:$0xff] %v9290
  %9372 = vst [vmem:[%s6 + $0x278] sm:$0xff] %v9291
  %9373 = vst [vmem:[%s6 + $0x280] sm:$0xff] %v9292
  // Predicated region
  $region26: #{residual_block.1} parent=0 // pred_check
    _
  $region27: #{residual_block.1} parent=0 // pred_check_branch
    %9375 = sbr.rel (0) target = $region29
  $region28: #{residual_block.1} parent=0 // pred_region
    _
  $region29: #{residual_block.1} parent=0 // pred_fallthru
    _
  // Predicated region
  $region30: #{residual_block.1} parent=0 // pred_check
    _
  $region31: #{residual_block.1} parent=0 // pred_check_branch
    %9377 = sbr.rel (0) target = $region33
  $region32: #{residual_block.1} parent=0 // pred_region
    _
  $region33: #{residual_block.1} parent=0 // pred_fallthru
    _

</llo_original>
